<compile_context>
chip_gen: v6e
topology: v6e:2x2x1
jax: 0.10.0
libtpu: 0.0.40
codegen_flags: <defaults>
</compile_context>

<pallas_src>
import functools

import jax
import jax.numpy as jnp
from jax.experimental import pallas as pl
from jax.experimental.pallas import tpu as pltpu


def _sigmoid_1eup(x):
    # sigmoid(x) == 0.5 * tanh(0.5 * x) + 0.5 : exactly one EUP op (tanh) plus
    # cheap VPU mul/adds, instead of exp + divide on the serial gate chain.
    return 0.5 * jnp.tanh(0.5 * x) + 0.5


# ----------------------------------------------------------------------------
# Fused kernel: 3 LSTM layers + ReLU + Linear + mean over time (one branch tile).
# ----------------------------------------------------------------------------
def _make_fused_kernel(num_layers: int, seq_len: int, hidden: int):
    S, H = seq_len, hidden

    def kernel(*refs):
        # refs = [gx0, w_hh_0, b_0, (w_ih_l, w_hh_l, b_l for l>=1)..., w_pred,
        #         out_ref, gx_scr, hseq_scr]
        it = iter(refs)
        gx0_ref = next(it)                      # (S, BP, 4H) bf16, layer-0 gates (no bias)
        w_ih_refs = [None] * num_layers
        w_hh_refs = [None] * num_layers
        b_refs = [None] * num_layers
        w_hh_refs[0] = next(it)
        b_refs[0] = next(it)
        for l in range(1, num_layers):
            w_ih_refs[l] = next(it)
            w_hh_refs[l] = next(it)
            b_refs[l] = next(it)
        w_pred_ref = next(it)                   # (1, H) f32
        out_ref = next(it)                      # (BP, 1) f32
        gx_scr = next(it)                       # (S, BP, 4H) bf16 scratch
        hseq_scr = next(it)                     # (S, BP, H)  f32 scratch

        BP = out_ref.shape[0]

        for l in range(num_layers):
            if l == 0:
                gx_src = gx0_ref                # precomputed in the wrapper
            else:
                # hoisted input projection: one big MXU matmul per layer
                inp = hseq_scr[...].reshape(S * BP, H).astype(jnp.bfloat16)
                gx = jnp.dot(inp, w_ih_refs[l][...],
                             preferred_element_type=jnp.float32)
                gx_scr[...] = gx.reshape(S, BP, 4 * H).astype(jnp.bfloat16)
                gx_src = gx_scr
            bias = b_refs[l][...]               # (1, 4H) f32 (b_ih + b_hh)

            # ---- recurrence: statically unrolled over the fixed S steps ----
            h = jnp.zeros((BP, H), jnp.float32)
            c = jnp.zeros((BP, H), jnp.float32)
            # TODO(synk): at production S=50 use lax.fori_loop(..., unroll=4..8)
            # with gx_src[pl.ds(...)] instead of fully unrolling 150 bodies.
            for t in range(S):
                gates = (gx_src[t].astype(jnp.float32) + bias
                         + jnp.dot(h.astype(jnp.bfloat16), w_hh_refs[l][...],
                                   preferred_element_type=jnp.float32))  # (BP, 4H)
                # H == 128 -> each gate slice is a whole 128-lane group.
                i_g = _sigmoid_1eup(gates[:, 0 * H:1 * H])
                f_g = _sigmoid_1eup(gates[:, 1 * H:2 * H])
                g_g = jnp.tanh(gates[:, 2 * H:3 * H])
                o_g = _sigmoid_1eup(gates[:, 3 * H:4 * H])
                c = f_g * c + i_g * g_g
                h = o_g * jnp.tanh(c)
                hseq_scr[t] = h                 # stays in VMEM only

        # ---- ReLU -> Linear(H, 1, bias=False) -> mean over time ----
        relu_h = jnp.maximum(hseq_scr[...], 0.0)        # (S, BP, H)
        h_mean = jnp.mean(relu_h, axis=0)               # (BP, H)
        # VPU multiply + lane (XLU) reduction instead of an N=1 MXU matmul.
        out_ref[...] = jnp.sum(h_mean * w_pred_ref[...], axis=-1, keepdims=True)

    return kernel


# ----------------------------------------------------------------------------
# pallas_call wrapper: grid=(2,) parallel over the two branches
# ----------------------------------------------------------------------------
def lstm_scorer_pallas(gates0, kernel_weights, w_pred_row, num_layers):
    """gates0: (S, 2*bp, 4H) bf16 layer-0 gate pre-activations (no bias),
    branch 0 in rows [0, bp), branch 1 in rows [bp, 2*bp).
    kernel_weights: [w_hh_0, b_0, w_ih_1, w_hh_1, b_1, ...].
    Returns (2*bp, 1) f32 scores."""
    S, total_bp, G = gates0.shape
    H = G // 4
    bp = total_bp // 2                      # one grid tile per branch

    in_specs = [pl.BlockSpec((S, bp, G), lambda i: (0, i, 0))]
    for w in list(kernel_weights) + [w_pred_row]:
        # constant block index -> weights stay resident across grid steps
        in_specs.append(pl.BlockSpec(w.shape, lambda i: (0, 0)))

    return pl.pallas_call(
        _make_fused_kernel(num_layers, S, H),
        out_shape=jax.ShapeDtypeStruct((total_bp, 1), jnp.float32),
        grid=(2,),
        in_specs=in_specs,
        out_specs=pl.BlockSpec((bp, 1), lambda i: (i, 0)),
        scratch_shapes=[
            pltpu.VMEM((S, bp, 4 * H), jnp.bfloat16),   # hoisted input gates (bf16)
            pltpu.VMEM((S, bp, H), jnp.float32),        # hidden sequence
        ],
        compiler_params=pltpu.CompilerParams(
            dimension_semantics=("parallel",),          # v7x: one branch per TC
            vmem_limit_bytes=32 * 1024 * 1024,
        ),
    )(gates0, *kernel_weights, w_pred_row)


# ----------------------------------------------------------------------------
# LSTMScorer forward (embedding + layer-0 projection in XLA, rest in Pallas)
# ----------------------------------------------------------------------------
@jax.jit
def lstm_scorer_forward(seq1, seq2, params):
    word_emb = params["word_emb"]          # (V, D) f32 (frozen/pretrained)
    pos_emb = params["pos_emb"]            # (S, D) f32
    layers = params["layers"]              # list of (w_ih, w_hh, b)
    w_pred_row = params["w_pred_row"]      # (1, H)
    num_layers = len(layers)

    B, _ = seq1.shape
    bp = ((B + 7) // 8) * 8                # pad each branch to 8 sublanes

    def embed(ids):
        e = jnp.take(word_emb, ids, axis=0) + pos_emb[None, :, :]   # (B, S, D)
        # word dropout: eval-mode identity
        e = jnp.transpose(e, (1, 0, 2))                             # (S, B, D)
        return jnp.pad(e, ((0, 0), (0, bp - B), (0, 0)))            # (S, bp, D)

    x = jnp.concatenate([embed(seq1), embed(seq2)], axis=1)         # (S, 2bp, D)

    # Layer-0 input projection hoisted OUT of the kernel (K = word_dim is tiny;
    # XLA handles this GEMM fine).  Bias is added per-step in the kernel in f32.
    w_ih0 = layers[0][0]                                            # (D, 4H) bf16
    gates0 = jnp.einsum("sbd,dg->sbg", x.astype(jnp.bfloat16), w_ih0,
                        preferred_element_type=jnp.float32).astype(jnp.bfloat16)

    kernel_weights = [layers[0][1], layers[0][2]]                   # w_hh_0, b_0
    for l in range(1, num_layers):
        kernel_weights += [layers[l][0], layers[l][1], layers[l][2]]

    scores = lstm_scorer_pallas(gates0, kernel_weights, w_pred_row, num_layers)
    s1 = scores[:B, 0]                                              # squeeze
    s2 = scores[bp:bp + B, 0]
    return s1, s2


# ----------------------------------------------------------------------------
# Pure-JAX reference (f32) for tolerance checking
# ----------------------------------------------------------------------------
def lstm_scorer_reference(seq1, seq2, params):
    word_emb = params["word_emb"]
    pos_emb = params["pos_emb"]

    def branch(ids):
        h_seq = jnp.take(word_emb, ids, axis=0).astype(jnp.float32) + pos_emb[None]
        for (w_ih, w_hh, b) in params["layers"]:
            w_ih = w_ih.astype(jnp.float32)
            w_hh = w_hh.astype(jnp.float32)
            H = w_hh.shape[0]

            def step(carry, x_t):
                h, c = carry
                g = x_t @ w_ih + h @ w_hh + b[0]
                i = jax.nn.sigmoid(g[:, :H])
                f = jax.nn.sigmoid(g[:, H:2 * H])
                gg = jnp.tanh(g[:, 2 * H:3 * H])
                o = jax.nn.sigmoid(g[:, 3 * H:])
                c = f * c + i * gg
                h = o * jnp.tanh(c)
                return (h, c), h

            B_ = h_seq.shape[0]
            init = (jnp.zeros((B_, H), jnp.float32), jnp.zeros((B_, H), jnp.float32))
            _, hs = jax.lax.scan(step, init, jnp.transpose(h_seq, (1, 0, 2)))
            h_seq = jnp.transpose(hs, (1, 0, 2))
        r = jnp.maximum(h_seq, 0.0)                               # (B, S, H)
        return (r @ params["w_pred_row"][0]).mean(axis=1)         # (B,)

    return branch(seq1), branch(seq2)


# ----------------------------------------------------------------------------
# Deterministic parameter construction
# ----------------------------------------------------------------------------
def make_params(key, vocab_size, word_dim, hidden_dim, num_layers, seq_len):
    keys = jax.random.split(key, 3 + 4 * num_layers)
    k = 1.0 / jnp.sqrt(jnp.float32(hidden_dim))

    word_emb = jax.random.normal(keys[0], (vocab_size, word_dim), jnp.float32) * 0.1
    pos_emb = jax.random.normal(keys[1], (seq_len, word_dim), jnp.float32) * 0.1
    w_pred_row = jax.random.uniform(keys[2], (1, hidden_dim), jnp.float32, -k, k)

    layers = []
    for l in range(num_layers):
        in_dim = word_dim if l == 0 else hidden_dim
        kw = keys[3 + 4 * l: 3 + 4 * (l + 1)]
        w_ih = jax.random.uniform(kw[0], (in_dim, 4 * hidden_dim), jnp.float32, -k, k)
        w_hh = jax.random.uniform(kw[1], (hidden_dim, 4 * hidden_dim), jnp.float32, -k, k)
        b_ih = jax.random.uniform(kw[2], (1, 4 * hidden_dim), jnp.float32, -k, k)
        b_hh = jax.random.uniform(kw[3], (1, 4 * hidden_dim), jnp.float32, -k, k)
        layers.append((w_ih.astype(jnp.bfloat16),     # MXU operands in bf16
                       w_hh.astype(jnp.bfloat16),
                       b_ih + b_hh))                  # combined bias, f32
    return {"word_emb": word_emb, "pos_emb": pos_emb,
            "layers": layers, "w_pred_row": w_pred_row}


# ----------------------------------------------------------------------------
if __name__ == "__main__":
    BATCH = 2
    SEQ_LEN = 8
    VOCAB = 64
    WORD_DIM = 16
    HIDDEN = 128       # lane-aligned hidden size (production module uses 512)
    NUM_LAYERS = 3

    root = jax.random.PRNGKey(0)
    k_params, k_s1, k_s2 = jax.random.split(root, 3)

    params = make_params(k_params, VOCAB, WORD_DIM, HIDDEN, NUM_LAYERS, SEQ_LEN)

    seq1 = jax.random.randint(k_s1, (BATCH, SEQ_LEN), 0, VOCAB, dtype=jnp.int32)
    seq2 = jax.random.randint(k_s2, (BATCH, SEQ_LEN), 0, VOCAB, dtype=jnp.int32)

    s1, s2 = lstm_scorer_forward(seq1, seq2, params)
    s1 = jax.block_until_ready(s1)
    s2 = jax.block_until_ready(s2)

    assert s1.shape == (BATCH,) and s2.shape == (BATCH,)
    assert bool(jnp.all(jnp.isfinite(s1))) and bool(jnp.all(jnp.isfinite(s2)))

    # bf16 MXU path vs f32 reference: loose tolerance (review's correctness note)
    r1, r2 = lstm_scorer_reference(seq1, seq2, params)
    tol = 5e-2
    assert bool(jnp.all(jnp.abs(s1 - r1) <= tol + tol * jnp.abs(r1)))
    assert bool(jnp.all(jnp.abs(s2 - r2) <= tol + tol * jnp.abs(r2)))

    print("KERNEL_OK")
</pallas_src>

<mosaic_0001>
module attributes {stable_mosaic.version = 11 : i64} {
  func.func @kernel(%arg0: i32, %arg1: memref<8x8x512xbf16, #tpu.memory_space<vmem>>, %arg2: memref<128x512xbf16, #tpu.memory_space<vmem>>, %arg3: memref<1x512xf32, #tpu.memory_space<vmem>>, %arg4: memref<128x512xbf16, #tpu.memory_space<vmem>>, %arg5: memref<128x512xbf16, #tpu.memory_space<vmem>>, %arg6: memref<1x512xf32, #tpu.memory_space<vmem>>, %arg7: memref<128x512xbf16, #tpu.memory_space<vmem>>, %arg8: memref<128x512xbf16, #tpu.memory_space<vmem>>, %arg9: memref<1x512xf32, #tpu.memory_space<vmem>>, %arg10: memref<1x128xf32, #tpu.memory_space<vmem>>, %arg11: memref<8x1xf32, #tpu.memory_space<vmem>>, %arg12: memref<8x8x512xbf16, #tpu.memory_space<vmem>>, %arg13: memref<8x8x128xf32, #tpu.memory_space<vmem>>) attributes {dimension_semantics = [#tpu.dimension_semantics<parallel>], iteration_bounds = array<i64: 2>, scalar_prefetch = 0 : i64, scratch_operands = 2 : i64, tpu.core_type = #tpu.core_type<tc>, window_params = [{transform_indices = @transform_0, window_bounds = array<i64: 8, 8, 512>}, {pipeline_mode = #tpu.pipeline_mode<synchronous>, transform_indices = @transform_1, window_bounds = array<i64: 128, 512>}, {pipeline_mode = #tpu.pipeline_mode<synchronous>, transform_indices = @transform_2, window_bounds = array<i64: 1, 512>}, {pipeline_mode = #tpu.pipeline_mode<synchronous>, transform_indices = @transform_3, window_bounds = array<i64: 128, 512>}, {pipeline_mode = #tpu.pipeline_mode<synchronous>, transform_indices = @transform_4, window_bounds = array<i64: 128, 512>}, {pipeline_mode = #tpu.pipeline_mode<synchronous>, transform_indices = @transform_5, window_bounds = array<i64: 1, 512>}, {pipeline_mode = #tpu.pipeline_mode<synchronous>, transform_indices = @transform_6, window_bounds = array<i64: 128, 512>}, {pipeline_mode = #tpu.pipeline_mode<synchronous>, transform_indices = @transform_7, window_bounds = array<i64: 128, 512>}, {pipeline_mode = #tpu.pipeline_mode<synchronous>, transform_indices = @transform_8, window_bounds = array<i64: 1, 512>}, {pipeline_mode = #tpu.pipeline_mode<synchronous>, transform_indices = @transform_9, window_bounds = array<i64: 1, 128>}, {transform_indices = @transform_10, window_bounds = array<i64: 8, 1>}]} {
    %c0 = arith.constant 0 : index
    %c0_0 = arith.constant 0 : index
    %0 = vector.load %arg3[%c0, %c0_0] : memref<1x512xf32, #tpu.memory_space<vmem>>, vector<1x512xf32>
    %cst = arith.constant 0.000000e+00 : f32
    %1 = vector.broadcast %cst : f32 to vector<8x128xf32>
    %cst_1 = arith.constant 0.000000e+00 : f32
    %2 = vector.broadcast %cst_1 : f32 to vector<8x128xf32>
    %c0_2 = arith.constant 0 : index
    %c0_3 = arith.constant 0 : index
    %c0_4 = arith.constant 0 : index
    %3 = vector.load %arg1[%c0_2, %c0_3, %c0_4] : memref<8x8x512xbf16, #tpu.memory_space<vmem>>, vector<1x8x512xbf16>
    %4 = vector.shape_cast %3 : vector<1x8x512xbf16> to vector<8x512xbf16>
    %5 = arith.extf %4 : vector<8x512xbf16> to vector<8x512xf32>
    %6 = vector.broadcast %0 : vector<1x512xf32> to vector<8x512xf32>
    %7 = arith.addf %5, %6 : vector<8x512xf32>
    %8 = arith.truncf %1 : vector<8x128xf32> to vector<8x128xbf16>
    %c0_5 = arith.constant 0 : index
    %c0_6 = arith.constant 0 : index
    %9 = vector.load %arg2[%c0_5, %c0_6] : memref<128x512xbf16, #tpu.memory_space<vmem>>, vector<128x512xbf16>
    %cst_7 = arith.constant dense<0.000000e+00> : vector<8x512xf32>
    %10 = tpu.matmul %8, %9, %cst_7 {dimension_numbers = #tpu.dot_dimension_numbers<[1], [0], [0], [1], [0, 0, 1, 1], [], []>} : vector<8x128xbf16>, vector<128x512xbf16>, vector<8x512xf32> -> vector<8x512xf32>
    %11 = arith.addf %7, %10 : vector<8x512xf32>
    %12 = vector.extract_strided_slice %11 {offsets = [0, 0], sizes = [8, 128], strides = [1, 1]} : vector<8x512xf32> to vector<8x128xf32>
    %cst_8 = arith.constant 5.000000e-01 : f32
    %13 = vector.broadcast %cst_8 : f32 to vector<8x128xf32>
    %14 = arith.mulf %13, %12 : vector<8x128xf32>
    %15 = math.tanh %14 : vector<8x128xf32>
    %cst_9 = arith.constant 5.000000e-01 : f32
    %16 = vector.broadcast %cst_9 : f32 to vector<8x128xf32>
    %17 = arith.mulf %16, %15 : vector<8x128xf32>
    %cst_10 = arith.constant 5.000000e-01 : f32
    %18 = vector.broadcast %cst_10 : f32 to vector<8x128xf32>
    %19 = arith.addf %17, %18 : vector<8x128xf32>
    %20 = vector.extract_strided_slice %11 {offsets = [0, 128], sizes = [8, 128], strides = [1, 1]} : vector<8x512xf32> to vector<8x128xf32>
    %cst_11 = arith.constant 5.000000e-01 : f32
    %21 = vector.broadcast %cst_11 : f32 to vector<8x128xf32>
    %22 = arith.mulf %21, %20 : vector<8x128xf32>
    %23 = math.tanh %22 : vector<8x128xf32>
    %cst_12 = arith.constant 5.000000e-01 : f32
    %24 = vector.broadcast %cst_12 : f32 to vector<8x128xf32>
    %25 = arith.mulf %24, %23 : vector<8x128xf32>
    %cst_13 = arith.constant 5.000000e-01 : f32
    %26 = vector.broadcast %cst_13 : f32 to vector<8x128xf32>
    %27 = arith.addf %25, %26 : vector<8x128xf32>
    %28 = vector.extract_strided_slice %11 {offsets = [0, 256], sizes = [8, 128], strides = [1, 1]} : vector<8x512xf32> to vector<8x128xf32>
    %29 = math.tanh %28 : vector<8x128xf32>
    %30 = vector.extract_strided_slice %11 {offsets = [0, 384], sizes = [8, 128], strides = [1, 1]} : vector<8x512xf32> to vector<8x128xf32>
    %cst_14 = arith.constant 5.000000e-01 : f32
    %31 = vector.broadcast %cst_14 : f32 to vector<8x128xf32>
    %32 = arith.mulf %31, %30 : vector<8x128xf32>
    %33 = math.tanh %32 : vector<8x128xf32>
    %cst_15 = arith.constant 5.000000e-01 : f32
    %34 = vector.broadcast %cst_15 : f32 to vector<8x128xf32>
    %35 = arith.mulf %34, %33 : vector<8x128xf32>
    %cst_16 = arith.constant 5.000000e-01 : f32
    %36 = vector.broadcast %cst_16 : f32 to vector<8x128xf32>
    %37 = arith.addf %35, %36 : vector<8x128xf32>
    %38 = arith.mulf %27, %2 : vector<8x128xf32>
    %39 = arith.mulf %19, %29 : vector<8x128xf32>
    %40 = arith.addf %38, %39 : vector<8x128xf32>
    %41 = math.tanh %40 : vector<8x128xf32>
    %42 = arith.mulf %37, %41 : vector<8x128xf32>
    %c0_17 = arith.constant 0 : index
    %c0_18 = arith.constant 0 : index
    %c0_19 = arith.constant 0 : index
    %43 = vector.load %arg13[%c0_17, %c0_18, %c0_19] : memref<8x8x128xf32, #tpu.memory_space<vmem>>, vector<1x8x128xf32>
    %44 = vector.shape_cast %43 : vector<1x8x128xf32> to vector<8x128xf32>
    %45 = vector.shape_cast %42 : vector<8x128xf32> to vector<1x8x128xf32>
    tpu.vector_store %arg13[%c0_17, %c0_18, %c0_19], %45 {strides = array<i32>} : memref<8x8x128xf32, #tpu.memory_space<vmem>>, vector<1x8x128xf32>,
    %c1 = arith.constant 1 : index
    %c0_20 = arith.constant 0 : index
    %c0_21 = arith.constant 0 : index
    %46 = vector.load %arg1[%c1, %c0_20, %c0_21] : memref<8x8x512xbf16, #tpu.memory_space<vmem>>, vector<1x8x512xbf16>
    %47 = vector.shape_cast %46 : vector<1x8x512xbf16> to vector<8x512xbf16>
    %48 = arith.extf %47 : vector<8x512xbf16> to vector<8x512xf32>
    %49 = vector.broadcast %0 : vector<1x512xf32> to vector<8x512xf32>
    %50 = arith.addf %48, %49 : vector<8x512xf32>
    %51 = arith.truncf %42 : vector<8x128xf32> to vector<8x128xbf16>
    %c0_22 = arith.constant 0 : index
    %c0_23 = arith.constant 0 : index
    %52 = vector.load %arg2[%c0_22, %c0_23] : memref<128x512xbf16, #tpu.memory_space<vmem>>, vector<128x512xbf16>
    %cst_24 = arith.constant dense<0.000000e+00> : vector<8x512xf32>
    %53 = tpu.matmul %51, %52, %cst_24 {dimension_numbers = #tpu.dot_dimension_numbers<[1], [0], [0], [1], [0, 0, 1, 1], [], []>} : vector<8x128xbf16>, vector<128x512xbf16>, vector<8x512xf32> -> vector<8x512xf32>
    %54 = arith.addf %50, %53 : vector<8x512xf32>
    %55 = vector.extract_strided_slice %54 {offsets = [0, 0], sizes = [8, 128], strides = [1, 1]} : vector<8x512xf32> to vector<8x128xf32>
    %cst_25 = arith.constant 5.000000e-01 : f32
    %56 = vector.broadcast %cst_25 : f32 to vector<8x128xf32>
    %57 = arith.mulf %56, %55 : vector<8x128xf32>
    %58 = math.tanh %57 : vector<8x128xf32>
    %cst_26 = arith.constant 5.000000e-01 : f32
    %59 = vector.broadcast %cst_26 : f32 to vector<8x128xf32>
    %60 = arith.mulf %59, %58 : vector<8x128xf32>
    %cst_27 = arith.constant 5.000000e-01 : f32
    %61 = vector.broadcast %cst_27 : f32 to vector<8x128xf32>
    %62 = arith.addf %60, %61 : vector<8x128xf32>
    %63 = vector.extract_strided_slice %54 {offsets = [0, 128], sizes = [8, 128], strides = [1, 1]} : vector<8x512xf32> to vector<8x128xf32>
    %cst_28 = arith.constant 5.000000e-01 : f32
    %64 = vector.broadcast %cst_28 : f32 to vector<8x128xf32>
    %65 = arith.mulf %64, %63 : vector<8x128xf32>
    %66 = math.tanh %65 : vector<8x128xf32>
    %cst_29 = arith.constant 5.000000e-01 : f32
    %67 = vector.broadcast %cst_29 : f32 to vector<8x128xf32>
    %68 = arith.mulf %67, %66 : vector<8x128xf32>
    %cst_30 = arith.constant 5.000000e-01 : f32
    %69 = vector.broadcast %cst_30 : f32 to vector<8x128xf32>
    %70 = arith.addf %68, %69 : vector<8x128xf32>
    %71 = vector.extract_strided_slice %54 {offsets = [0, 256], sizes = [8, 128], strides = [1, 1]} : vector<8x512xf32> to vector<8x128xf32>
    %72 = math.tanh %71 : vector<8x128xf32>
    %73 = vector.extract_strided_slice %54 {offsets = [0, 384], sizes = [8, 128], strides = [1, 1]} : vector<8x512xf32> to vector<8x128xf32>
    %cst_31 = arith.constant 5.000000e-01 : f32
    %74 = vector.broadcast %cst_31 : f32 to vector<8x128xf32>
    %75 = arith.mulf %74, %73 : vector<8x128xf32>
    %76 = math.tanh %75 : vector<8x128xf32>
    %cst_32 = arith.constant 5.000000e-01 : f32
    %77 = vector.broadcast %cst_32 : f32 to vector<8x128xf32>
    %78 = arith.mulf %77, %76 : vector<8x128xf32>
    %cst_33 = arith.constant 5.000000e-01 : f32
    %79 = vector.broadcast %cst_33 : f32 to vector<8x128xf32>
    %80 = arith.addf %78, %79 : vector<8x128xf32>
    %81 = arith.mulf %70, %40 : vector<8x128xf32>
    %82 = arith.mulf %62, %72 : vector<8x128xf32>
    %83 = arith.addf %81, %82 : vector<8x128xf32>
    %84 = math.tanh %83 : vector<8x128xf32>
    %85 = arith.mulf %80, %84 : vector<8x128xf32>
    %c1_34 = arith.constant 1 : index
    %c0_35 = arith.constant 0 : index
    %c0_36 = arith.constant 0 : index
    %86 = vector.load %arg13[%c1_34, %c0_35, %c0_36] : memref<8x8x128xf32, #tpu.memory_space<vmem>>, vector<1x8x128xf32>
    %87 = vector.shape_cast %86 : vector<1x8x128xf32> to vector<8x128xf32>
    %88 = vector.shape_cast %85 : vector<8x128xf32> to vector<1x8x128xf32>
    tpu.vector_store %arg13[%c1_34, %c0_35, %c0_36], %88 {strides = array<i32>} : memref<8x8x128xf32, #tpu.memory_space<vmem>>, vector<1x8x128xf32>,
    %c2 = arith.constant 2 : index
    %c0_37 = arith.constant 0 : index
    %c0_38 = arith.constant 0 : index
    %89 = vector.load %arg1[%c2, %c0_37, %c0_38] : memref<8x8x512xbf16, #tpu.memory_space<vmem>>, vector<1x8x512xbf16>
    %90 = vector.shape_cast %89 : vector<1x8x512xbf16> to vector<8x512xbf16>
    %91 = arith.extf %90 : vector<8x512xbf16> to vector<8x512xf32>
    %92 = vector.broadcast %0 : vector<1x512xf32> to vector<8x512xf32>
    %93 = arith.addf %91, %92 : vector<8x512xf32>
    %94 = arith.truncf %85 : vector<8x128xf32> to vector<8x128xbf16>
    %c0_39 = arith.constant 0 : index
    %c0_40 = arith.constant 0 : index
    %95 = vector.load %arg2[%c0_39, %c0_40] : memref<128x512xbf16, #tpu.memory_space<vmem>>, vector<128x512xbf16>
    %cst_41 = arith.constant dense<0.000000e+00> : vector<8x512xf32>
    %96 = tpu.matmul %94, %95, %cst_41 {dimension_numbers = #tpu.dot_dimension_numbers<[1], [0], [0], [1], [0, 0, 1, 1], [], []>} : vector<8x128xbf16>, vector<128x512xbf16>, vector<8x512xf32> -> vector<8x512xf32>
    %97 = arith.addf %93, %96 : vector<8x512xf32>
    %98 = vector.extract_strided_slice %97 {offsets = [0, 0], sizes = [8, 128], strides = [1, 1]} : vector<8x512xf32> to vector<8x128xf32>
    %cst_42 = arith.constant 5.000000e-01 : f32
    %99 = vector.broadcast %cst_42 : f32 to vector<8x128xf32>
    %100 = arith.mulf %99, %98 : vector<8x128xf32>
    %101 = math.tanh %100 : vector<8x128xf32>
    %cst_43 = arith.constant 5.000000e-01 : f32
    %102 = vector.broadcast %cst_43 : f32 to vector<8x128xf32>
    %103 = arith.mulf %102, %101 : vector<8x128xf32>
    %cst_44 = arith.constant 5.000000e-01 : f32
    %104 = vector.broadcast %cst_44 : f32 to vector<8x128xf32>
    %105 = arith.addf %103, %104 : vector<8x128xf32>
    %106 = vector.extract_strided_slice %97 {offsets = [0, 128], sizes = [8, 128], strides = [1, 1]} : vector<8x512xf32> to vector<8x128xf32>
    %cst_45 = arith.constant 5.000000e-01 : f32
    %107 = vector.broadcast %cst_45 : f32 to vector<8x128xf32>
    %108 = arith.mulf %107, %106 : vector<8x128xf32>
    %109 = math.tanh %108 : vector<8x128xf32>
    %cst_46 = arith.constant 5.000000e-01 : f32
    %110 = vector.broadcast %cst_46 : f32 to vector<8x128xf32>
    %111 = arith.mulf %110, %109 : vector<8x128xf32>
    %cst_47 = arith.constant 5.000000e-01 : f32
    %112 = vector.broadcast %cst_47 : f32 to vector<8x128xf32>
    %113 = arith.addf %111, %112 : vector<8x128xf32>
    %114 = vector.extract_strided_slice %97 {offsets = [0, 256], sizes = [8, 128], strides = [1, 1]} : vector<8x512xf32> to vector<8x128xf32>
    %115 = math.tanh %114 : vector<8x128xf32>
    %116 = vector.extract_strided_slice %97 {offsets = [0, 384], sizes = [8, 128], strides = [1, 1]} : vector<8x512xf32> to vector<8x128xf32>
    %cst_48 = arith.constant 5.000000e-01 : f32
    %117 = vector.broadcast %cst_48 : f32 to vector<8x128xf32>
    %118 = arith.mulf %117, %116 : vector<8x128xf32>
    %119 = math.tanh %118 : vector<8x128xf32>
    %cst_49 = arith.constant 5.000000e-01 : f32
    %120 = vector.broadcast %cst_49 : f32 to vector<8x128xf32>
    %121 = arith.mulf %120, %119 : vector<8x128xf32>
    %cst_50 = arith.constant 5.000000e-01 : f32
    %122 = vector.broadcast %cst_50 : f32 to vector<8x128xf32>
    %123 = arith.addf %121, %122 : vector<8x128xf32>
    %124 = arith.mulf %113, %83 : vector<8x128xf32>
    %125 = arith.mulf %105, %115 : vector<8x128xf32>
    %126 = arith.addf %124, %125 : vector<8x128xf32>
    %127 = math.tanh %126 : vector<8x128xf32>
    %128 = arith.mulf %123, %127 : vector<8x128xf32>
    %c2_51 = arith.constant 2 : index
    %c0_52 = arith.constant 0 : index
    %c0_53 = arith.constant 0 : index
    %129 = vector.load %arg13[%c2_51, %c0_52, %c0_53] : memref<8x8x128xf32, #tpu.memory_space<vmem>>, vector<1x8x128xf32>
    %130 = vector.shape_cast %129 : vector<1x8x128xf32> to vector<8x128xf32>
    %131 = vector.shape_cast %128 : vector<8x128xf32> to vector<1x8x128xf32>
    tpu.vector_store %arg13[%c2_51, %c0_52, %c0_53], %131 {strides = array<i32>} : memref<8x8x128xf32, #tpu.memory_space<vmem>>, vector<1x8x128xf32>,
    %c3 = arith.constant 3 : index
    %c0_54 = arith.constant 0 : index
    %c0_55 = arith.constant 0 : index
    %132 = vector.load %arg1[%c3, %c0_54, %c0_55] : memref<8x8x512xbf16, #tpu.memory_space<vmem>>, vector<1x8x512xbf16>
    %133 = vector.shape_cast %132 : vector<1x8x512xbf16> to vector<8x512xbf16>
    %134 = arith.extf %133 : vector<8x512xbf16> to vector<8x512xf32>
    %135 = vector.broadcast %0 : vector<1x512xf32> to vector<8x512xf32>
    %136 = arith.addf %134, %135 : vector<8x512xf32>
    %137 = arith.truncf %128 : vector<8x128xf32> to vector<8x128xbf16>
    %c0_56 = arith.constant 0 : index
    %c0_57 = arith.constant 0 : index
    %138 = vector.load %arg2[%c0_56, %c0_57] : memref<128x512xbf16, #tpu.memory_space<vmem>>, vector<128x512xbf16>
    %cst_58 = arith.constant dense<0.000000e+00> : vector<8x512xf32>
    %139 = tpu.matmul %137, %138, %cst_58 {dimension_numbers = #tpu.dot_dimension_numbers<[1], [0], [0], [1], [0, 0, 1, 1], [], []>} : vector<8x128xbf16>, vector<128x512xbf16>, vector<8x512xf32> -> vector<8x512xf32>
    %140 = arith.addf %136, %139 : vector<8x512xf32>
    %141 = vector.extract_strided_slice %140 {offsets = [0, 0], sizes = [8, 128], strides = [1, 1]} : vector<8x512xf32> to vector<8x128xf32>
    %cst_59 = arith.constant 5.000000e-01 : f32
    %142 = vector.broadcast %cst_59 : f32 to vector<8x128xf32>
    %143 = arith.mulf %142, %141 : vector<8x128xf32>
    %144 = math.tanh %143 : vector<8x128xf32>
    %cst_60 = arith.constant 5.000000e-01 : f32
    %145 = vector.broadcast %cst_60 : f32 to vector<8x128xf32>
    %146 = arith.mulf %145, %144 : vector<8x128xf32>
    %cst_61 = arith.constant 5.000000e-01 : f32
    %147 = vector.broadcast %cst_61 : f32 to vector<8x128xf32>
    %148 = arith.addf %146, %147 : vector<8x128xf32>
    %149 = vector.extract_strided_slice %140 {offsets = [0, 128], sizes = [8, 128], strides = [1, 1]} : vector<8x512xf32> to vector<8x128xf32>
    %cst_62 = arith.constant 5.000000e-01 : f32
    %150 = vector.broadcast %cst_62 : f32 to vector<8x128xf32>
    %151 = arith.mulf %150, %149 : vector<8x128xf32>
    %152 = math.tanh %151 : vector<8x128xf32>
    %cst_63 = arith.constant 5.000000e-01 : f32
    %153 = vector.broadcast %cst_63 : f32 to vector<8x128xf32>
    %154 = arith.mulf %153, %152 : vector<8x128xf32>
    %cst_64 = arith.constant 5.000000e-01 : f32
    %155 = vector.broadcast %cst_64 : f32 to vector<8x128xf32>
    %156 = arith.addf %154, %155 : vector<8x128xf32>
    %157 = vector.extract_strided_slice %140 {offsets = [0, 256], sizes = [8, 128], strides = [1, 1]} : vector<8x512xf32> to vector<8x128xf32>
    %158 = math.tanh %157 : vector<8x128xf32>
    %159 = vector.extract_strided_slice %140 {offsets = [0, 384], sizes = [8, 128], strides = [1, 1]} : vector<8x512xf32> to vector<8x128xf32>
    %cst_65 = arith.constant 5.000000e-01 : f32
    %160 = vector.broadcast %cst_65 : f32 to vector<8x128xf32>
    %161 = arith.mulf %160, %159 : vector<8x128xf32>
    %162 = math.tanh %161 : vector<8x128xf32>
    %cst_66 = arith.constant 5.000000e-01 : f32
    %163 = vector.broadcast %cst_66 : f32 to vector<8x128xf32>
    %164 = arith.mulf %163, %162 : vector<8x128xf32>
    %cst_67 = arith.constant 5.000000e-01 : f32
    %165 = vector.broadcast %cst_67 : f32 to vector<8x128xf32>
    %166 = arith.addf %164, %165 : vector<8x128xf32>
    %167 = arith.mulf %156, %126 : vector<8x128xf32>
    %168 = arith.mulf %148, %158 : vector<8x128xf32>
    %169 = arith.addf %167, %168 : vector<8x128xf32>
    %170 = math.tanh %169 : vector<8x128xf32>
    %171 = arith.mulf %166, %170 : vector<8x128xf32>
    %c3_68 = arith.constant 3 : index
    %c0_69 = arith.constant 0 : index
    %c0_70 = arith.constant 0 : index
    %172 = vector.load %arg13[%c3_68, %c0_69, %c0_70] : memref<8x8x128xf32, #tpu.memory_space<vmem>>, vector<1x8x128xf32>
    %173 = vector.shape_cast %172 : vector<1x8x128xf32> to vector<8x128xf32>
    %174 = vector.shape_cast %171 : vector<8x128xf32> to vector<1x8x128xf32>
    tpu.vector_store %arg13[%c3_68, %c0_69, %c0_70], %174 {strides = array<i32>} : memref<8x8x128xf32, #tpu.memory_space<vmem>>, vector<1x8x128xf32>,
    %c4 = arith.constant 4 : index
    %c0_71 = arith.constant 0 : index
    %c0_72 = arith.constant 0 : index
    %175 = vector.load %arg1[%c4, %c0_71, %c0_72] : memref<8x8x512xbf16, #tpu.memory_space<vmem>>, vector<1x8x512xbf16>
    %176 = vector.shape_cast %175 : vector<1x8x512xbf16> to vector<8x512xbf16>
    %177 = arith.extf %176 : vector<8x512xbf16> to vector<8x512xf32>
    %178 = vector.broadcast %0 : vector<1x512xf32> to vector<8x512xf32>
    %179 = arith.addf %177, %178 : vector<8x512xf32>
    %180 = arith.truncf %171 : vector<8x128xf32> to vector<8x128xbf16>
    %c0_73 = arith.constant 0 : index
    %c0_74 = arith.constant 0 : index
    %181 = vector.load %arg2[%c0_73, %c0_74] : memref<128x512xbf16, #tpu.memory_space<vmem>>, vector<128x512xbf16>
    %cst_75 = arith.constant dense<0.000000e+00> : vector<8x512xf32>
    %182 = tpu.matmul %180, %181, %cst_75 {dimension_numbers = #tpu.dot_dimension_numbers<[1], [0], [0], [1], [0, 0, 1, 1], [], []>} : vector<8x128xbf16>, vector<128x512xbf16>, vector<8x512xf32> -> vector<8x512xf32>
    %183 = arith.addf %179, %182 : vector<8x512xf32>
    %184 = vector.extract_strided_slice %183 {offsets = [0, 0], sizes = [8, 128], strides = [1, 1]} : vector<8x512xf32> to vector<8x128xf32>
    %cst_76 = arith.constant 5.000000e-01 : f32
    %185 = vector.broadcast %cst_76 : f32 to vector<8x128xf32>
    %186 = arith.mulf %185, %184 : vector<8x128xf32>
    %187 = math.tanh %186 : vector<8x128xf32>
    %cst_77 = arith.constant 5.000000e-01 : f32
    %188 = vector.broadcast %cst_77 : f32 to vector<8x128xf32>
    %189 = arith.mulf %188, %187 : vector<8x128xf32>
    %cst_78 = arith.constant 5.000000e-01 : f32
    %190 = vector.broadcast %cst_78 : f32 to vector<8x128xf32>
    %191 = arith.addf %189, %190 : vector<8x128xf32>
    %192 = vector.extract_strided_slice %183 {offsets = [0, 128], sizes = [8, 128], strides = [1, 1]} : vector<8x512xf32> to vector<8x128xf32>
    %cst_79 = arith.constant 5.000000e-01 : f32
    %193 = vector.broadcast %cst_79 : f32 to vector<8x128xf32>
    %194 = arith.mulf %193, %192 : vector<8x128xf32>
    %195 = math.tanh %194 : vector<8x128xf32>
    %cst_80 = arith.constant 5.000000e-01 : f32
    %196 = vector.broadcast %cst_80 : f32 to vector<8x128xf32>
    %197 = arith.mulf %196, %195 : vector<8x128xf32>
    %cst_81 = arith.constant 5.000000e-01 : f32
    %198 = vector.broadcast %cst_81 : f32 to vector<8x128xf32>
    %199 = arith.addf %197, %198 : vector<8x128xf32>
    %200 = vector.extract_strided_slice %183 {offsets = [0, 256], sizes = [8, 128], strides = [1, 1]} : vector<8x512xf32> to vector<8x128xf32>
    %201 = math.tanh %200 : vector<8x128xf32>
    %202 = vector.extract_strided_slice %183 {offsets = [0, 384], sizes = [8, 128], strides = [1, 1]} : vector<8x512xf32> to vector<8x128xf32>
    %cst_82 = arith.constant 5.000000e-01 : f32
    %203 = vector.broadcast %cst_82 : f32 to vector<8x128xf32>
    %204 = arith.mulf %203, %202 : vector<8x128xf32>
    %205 = math.tanh %204 : vector<8x128xf32>
    %cst_83 = arith.constant 5.000000e-01 : f32
    %206 = vector.broadcast %cst_83 : f32 to vector<8x128xf32>
    %207 = arith.mulf %206, %205 : vector<8x128xf32>
    %cst_84 = arith.constant 5.000000e-01 : f32
    %208 = vector.broadcast %cst_84 : f32 to vector<8x128xf32>
    %209 = arith.addf %207, %208 : vector<8x128xf32>
    %210 = arith.mulf %199, %169 : vector<8x128xf32>
    %211 = arith.mulf %191, %201 : vector<8x128xf32>
    %212 = arith.addf %210, %211 : vector<8x128xf32>
    %213 = math.tanh %212 : vector<8x128xf32>
    %214 = arith.mulf %209, %213 : vector<8x128xf32>
    %c4_85 = arith.constant 4 : index
    %c0_86 = arith.constant 0 : index
    %c0_87 = arith.constant 0 : index
    %215 = vector.load %arg13[%c4_85, %c0_86, %c0_87] : memref<8x8x128xf32, #tpu.memory_space<vmem>>, vector<1x8x128xf32>
    %216 = vector.shape_cast %215 : vector<1x8x128xf32> to vector<8x128xf32>
    %217 = vector.shape_cast %214 : vector<8x128xf32> to vector<1x8x128xf32>
    tpu.vector_store %arg13[%c4_85, %c0_86, %c0_87], %217 {strides = array<i32>} : memref<8x8x128xf32, #tpu.memory_space<vmem>>, vector<1x8x128xf32>,
    %c5 = arith.constant 5 : index
    %c0_88 = arith.constant 0 : index
    %c0_89 = arith.constant 0 : index
    %218 = vector.load %arg1[%c5, %c0_88, %c0_89] : memref<8x8x512xbf16, #tpu.memory_space<vmem>>, vector<1x8x512xbf16>
    %219 = vector.shape_cast %218 : vector<1x8x512xbf16> to vector<8x512xbf16>
    %220 = arith.extf %219 : vector<8x512xbf16> to vector<8x512xf32>
    %221 = vector.broadcast %0 : vector<1x512xf32> to vector<8x512xf32>
    %222 = arith.addf %220, %221 : vector<8x512xf32>
    %223 = arith.truncf %214 : vector<8x128xf32> to vector<8x128xbf16>
    %c0_90 = arith.constant 0 : index
    %c0_91 = arith.constant 0 : index
    %224 = vector.load %arg2[%c0_90, %c0_91] : memref<128x512xbf16, #tpu.memory_space<vmem>>, vector<128x512xbf16>
    %cst_92 = arith.constant dense<0.000000e+00> : vector<8x512xf32>
    %225 = tpu.matmul %223, %224, %cst_92 {dimension_numbers = #tpu.dot_dimension_numbers<[1], [0], [0], [1], [0, 0, 1, 1], [], []>} : vector<8x128xbf16>, vector<128x512xbf16>, vector<8x512xf32> -> vector<8x512xf32>
    %226 = arith.addf %222, %225 : vector<8x512xf32>
    %227 = vector.extract_strided_slice %226 {offsets = [0, 0], sizes = [8, 128], strides = [1, 1]} : vector<8x512xf32> to vector<8x128xf32>
    %cst_93 = arith.constant 5.000000e-01 : f32
    %228 = vector.broadcast %cst_93 : f32 to vector<8x128xf32>
    %229 = arith.mulf %228, %227 : vector<8x128xf32>
    %230 = math.tanh %229 : vector<8x128xf32>
    %cst_94 = arith.constant 5.000000e-01 : f32
    %231 = vector.broadcast %cst_94 : f32 to vector<8x128xf32>
    %232 = arith.mulf %231, %230 : vector<8x128xf32>
    %cst_95 = arith.constant 5.000000e-01 : f32
    %233 = vector.broadcast %cst_95 : f32 to vector<8x128xf32>
    %234 = arith.addf %232, %233 : vector<8x128xf32>
    %235 = vector.extract_strided_slice %226 {offsets = [0, 128], sizes = [8, 128], strides = [1, 1]} : vector<8x512xf32> to vector<8x128xf32>
    %cst_96 = arith.constant 5.000000e-01 : f32
    %236 = vector.broadcast %cst_96 : f32 to vector<8x128xf32>
    %237 = arith.mulf %236, %235 : vector<8x128xf32>
    %238 = math.tanh %237 : vector<8x128xf32>
    %cst_97 = arith.constant 5.000000e-01 : f32
    %239 = vector.broadcast %cst_97 : f32 to vector<8x128xf32>
    %240 = arith.mulf %239, %238 : vector<8x128xf32>
    %cst_98 = arith.constant 5.000000e-01 : f32
    %241 = vector.broadcast %cst_98 : f32 to vector<8x128xf32>
    %242 = arith.addf %240, %241 : vector<8x128xf32>
    %243 = vector.extract_strided_slice %226 {offsets = [0, 256], sizes = [8, 128], strides = [1, 1]} : vector<8x512xf32> to vector<8x128xf32>
    %244 = math.tanh %243 : vector<8x128xf32>
    %245 = vector.extract_strided_slice %226 {offsets = [0, 384], sizes = [8, 128], strides = [1, 1]} : vector<8x512xf32> to vector<8x128xf32>
    %cst_99 = arith.constant 5.000000e-01 : f32
    %246 = vector.broadcast %cst_99 : f32 to vector<8x128xf32>
    %247 = arith.mulf %246, %245 : vector<8x128xf32>
    %248 = math.tanh %247 : vector<8x128xf32>
    %cst_100 = arith.constant 5.000000e-01 : f32
    %249 = vector.broadcast %cst_100 : f32 to vector<8x128xf32>
    %250 = arith.mulf %249, %248 : vector<8x128xf32>
    %cst_101 = arith.constant 5.000000e-01 : f32
    %251 = vector.broadcast %cst_101 : f32 to vector<8x128xf32>
    %252 = arith.addf %250, %251 : vector<8x128xf32>
    %253 = arith.mulf %242, %212 : vector<8x128xf32>
    %254 = arith.mulf %234, %244 : vector<8x128xf32>
    %255 = arith.addf %253, %254 : vector<8x128xf32>
    %256 = math.tanh %255 : vector<8x128xf32>
    %257 = arith.mulf %252, %256 : vector<8x128xf32>
    %c5_102 = arith.constant 5 : index
    %c0_103 = arith.constant 0 : index
    %c0_104 = arith.constant 0 : index
    %258 = vector.load %arg13[%c5_102, %c0_103, %c0_104] : memref<8x8x128xf32, #tpu.memory_space<vmem>>, vector<1x8x128xf32>
    %259 = vector.shape_cast %258 : vector<1x8x128xf32> to vector<8x128xf32>
    %260 = vector.shape_cast %257 : vector<8x128xf32> to vector<1x8x128xf32>
    tpu.vector_store %arg13[%c5_102, %c0_103, %c0_104], %260 {strides = array<i32>} : memref<8x8x128xf32, #tpu.memory_space<vmem>>, vector<1x8x128xf32>,
    %c6 = arith.constant 6 : index
    %c0_105 = arith.constant 0 : index
    %c0_106 = arith.constant 0 : index
    %261 = vector.load %arg1[%c6, %c0_105, %c0_106] : memref<8x8x512xbf16, #tpu.memory_space<vmem>>, vector<1x8x512xbf16>
    %262 = vector.shape_cast %261 : vector<1x8x512xbf16> to vector<8x512xbf16>
    %263 = arith.extf %262 : vector<8x512xbf16> to vector<8x512xf32>
    %264 = vector.broadcast %0 : vector<1x512xf32> to vector<8x512xf32>
    %265 = arith.addf %263, %264 : vector<8x512xf32>
    %266 = arith.truncf %257 : vector<8x128xf32> to vector<8x128xbf16>
    %c0_107 = arith.constant 0 : index
    %c0_108 = arith.constant 0 : index
    %267 = vector.load %arg2[%c0_107, %c0_108] : memref<128x512xbf16, #tpu.memory_space<vmem>>, vector<128x512xbf16>
    %cst_109 = arith.constant dense<0.000000e+00> : vector<8x512xf32>
    %268 = tpu.matmul %266, %267, %cst_109 {dimension_numbers = #tpu.dot_dimension_numbers<[1], [0], [0], [1], [0, 0, 1, 1], [], []>} : vector<8x128xbf16>, vector<128x512xbf16>, vector<8x512xf32> -> vector<8x512xf32>
    %269 = arith.addf %265, %268 : vector<8x512xf32>
    %270 = vector.extract_strided_slice %269 {offsets = [0, 0], sizes = [8, 128], strides = [1, 1]} : vector<8x512xf32> to vector<8x128xf32>
    %cst_110 = arith.constant 5.000000e-01 : f32
    %271 = vector.broadcast %cst_110 : f32 to vector<8x128xf32>
    %272 = arith.mulf %271, %270 : vector<8x128xf32>
    %273 = math.tanh %272 : vector<8x128xf32>
    %cst_111 = arith.constant 5.000000e-01 : f32
    %274 = vector.broadcast %cst_111 : f32 to vector<8x128xf32>
    %275 = arith.mulf %274, %273 : vector<8x128xf32>
    %cst_112 = arith.constant 5.000000e-01 : f32
    %276 = vector.broadcast %cst_112 : f32 to vector<8x128xf32>
    %277 = arith.addf %275, %276 : vector<8x128xf32>
    %278 = vector.extract_strided_slice %269 {offsets = [0, 128], sizes = [8, 128], strides = [1, 1]} : vector<8x512xf32> to vector<8x128xf32>
    %cst_113 = arith.constant 5.000000e-01 : f32
    %279 = vector.broadcast %cst_113 : f32 to vector<8x128xf32>
    %280 = arith.mulf %279, %278 : vector<8x128xf32>
    %281 = math.tanh %280 : vector<8x128xf32>
    %cst_114 = arith.constant 5.000000e-01 : f32
    %282 = vector.broadcast %cst_114 : f32 to vector<8x128xf32>
    %283 = arith.mulf %282, %281 : vector<8x128xf32>
    %cst_115 = arith.constant 5.000000e-01 : f32
    %284 = vector.broadcast %cst_115 : f32 to vector<8x128xf32>
    %285 = arith.addf %283, %284 : vector<8x128xf32>
    %286 = vector.extract_strided_slice %269 {offsets = [0, 256], sizes = [8, 128], strides = [1, 1]} : vector<8x512xf32> to vector<8x128xf32>
    %287 = math.tanh %286 : vector<8x128xf32>
    %288 = vector.extract_strided_slice %269 {offsets = [0, 384], sizes = [8, 128], strides = [1, 1]} : vector<8x512xf32> to vector<8x128xf32>
    %cst_116 = arith.constant 5.000000e-01 : f32
    %289 = vector.broadcast %cst_116 : f32 to vector<8x128xf32>
    %290 = arith.mulf %289, %288 : vector<8x128xf32>
    %291 = math.tanh %290 : vector<8x128xf32>
    %cst_117 = arith.constant 5.000000e-01 : f32
    %292 = vector.broadcast %cst_117 : f32 to vector<8x128xf32>
    %293 = arith.mulf %292, %291 : vector<8x128xf32>
    %cst_118 = arith.constant 5.000000e-01 : f32
    %294 = vector.broadcast %cst_118 : f32 to vector<8x128xf32>
    %295 = arith.addf %293, %294 : vector<8x128xf32>
    %296 = arith.mulf %285, %255 : vector<8x128xf32>
    %297 = arith.mulf %277, %287 : vector<8x128xf32>
    %298 = arith.addf %296, %297 : vector<8x128xf32>
    %299 = math.tanh %298 : vector<8x128xf32>
    %300 = arith.mulf %295, %299 : vector<8x128xf32>
    %c6_119 = arith.constant 6 : index
    %c0_120 = arith.constant 0 : index
    %c0_121 = arith.constant 0 : index
    %301 = vector.load %arg13[%c6_119, %c0_120, %c0_121] : memref<8x8x128xf32, #tpu.memory_space<vmem>>, vector<1x8x128xf32>
    %302 = vector.shape_cast %301 : vector<1x8x128xf32> to vector<8x128xf32>
    %303 = vector.shape_cast %300 : vector<8x128xf32> to vector<1x8x128xf32>
    tpu.vector_store %arg13[%c6_119, %c0_120, %c0_121], %303 {strides = array<i32>} : memref<8x8x128xf32, #tpu.memory_space<vmem>>, vector<1x8x128xf32>,
    %c7 = arith.constant 7 : index
    %c0_122 = arith.constant 0 : index
    %c0_123 = arith.constant 0 : index
    %304 = vector.load %arg1[%c7, %c0_122, %c0_123] : memref<8x8x512xbf16, #tpu.memory_space<vmem>>, vector<1x8x512xbf16>
    %305 = vector.shape_cast %304 : vector<1x8x512xbf16> to vector<8x512xbf16>
    %306 = arith.extf %305 : vector<8x512xbf16> to vector<8x512xf32>
    %307 = vector.broadcast %0 : vector<1x512xf32> to vector<8x512xf32>
    %308 = arith.addf %306, %307 : vector<8x512xf32>
    %309 = arith.truncf %300 : vector<8x128xf32> to vector<8x128xbf16>
    %c0_124 = arith.constant 0 : index
    %c0_125 = arith.constant 0 : index
    %310 = vector.load %arg2[%c0_124, %c0_125] : memref<128x512xbf16, #tpu.memory_space<vmem>>, vector<128x512xbf16>
    %cst_126 = arith.constant dense<0.000000e+00> : vector<8x512xf32>
    %311 = tpu.matmul %309, %310, %cst_126 {dimension_numbers = #tpu.dot_dimension_numbers<[1], [0], [0], [1], [0, 0, 1, 1], [], []>} : vector<8x128xbf16>, vector<128x512xbf16>, vector<8x512xf32> -> vector<8x512xf32>
    %312 = arith.addf %308, %311 : vector<8x512xf32>
    %313 = vector.extract_strided_slice %312 {offsets = [0, 0], sizes = [8, 128], strides = [1, 1]} : vector<8x512xf32> to vector<8x128xf32>
    %cst_127 = arith.constant 5.000000e-01 : f32
    %314 = vector.broadcast %cst_127 : f32 to vector<8x128xf32>
    %315 = arith.mulf %314, %313 : vector<8x128xf32>
    %316 = math.tanh %315 : vector<8x128xf32>
    %cst_128 = arith.constant 5.000000e-01 : f32
    %317 = vector.broadcast %cst_128 : f32 to vector<8x128xf32>
    %318 = arith.mulf %317, %316 : vector<8x128xf32>
    %cst_129 = arith.constant 5.000000e-01 : f32
    %319 = vector.broadcast %cst_129 : f32 to vector<8x128xf32>
    %320 = arith.addf %318, %319 : vector<8x128xf32>
    %321 = vector.extract_strided_slice %312 {offsets = [0, 128], sizes = [8, 128], strides = [1, 1]} : vector<8x512xf32> to vector<8x128xf32>
    %cst_130 = arith.constant 5.000000e-01 : f32
    %322 = vector.broadcast %cst_130 : f32 to vector<8x128xf32>
    %323 = arith.mulf %322, %321 : vector<8x128xf32>
    %324 = math.tanh %323 : vector<8x128xf32>
    %cst_131 = arith.constant 5.000000e-01 : f32
    %325 = vector.broadcast %cst_131 : f32 to vector<8x128xf32>
    %326 = arith.mulf %325, %324 : vector<8x128xf32>
    %cst_132 = arith.constant 5.000000e-01 : f32
    %327 = vector.broadcast %cst_132 : f32 to vector<8x128xf32>
    %328 = arith.addf %326, %327 : vector<8x128xf32>
    %329 = vector.extract_strided_slice %312 {offsets = [0, 256], sizes = [8, 128], strides = [1, 1]} : vector<8x512xf32> to vector<8x128xf32>
    %330 = math.tanh %329 : vector<8x128xf32>
    %331 = vector.extract_strided_slice %312 {offsets = [0, 384], sizes = [8, 128], strides = [1, 1]} : vector<8x512xf32> to vector<8x128xf32>
    %cst_133 = arith.constant 5.000000e-01 : f32
    %332 = vector.broadcast %cst_133 : f32 to vector<8x128xf32>
    %333 = arith.mulf %332, %331 : vector<8x128xf32>
    %334 = math.tanh %333 : vector<8x128xf32>
    %cst_134 = arith.constant 5.000000e-01 : f32
    %335 = vector.broadcast %cst_134 : f32 to vector<8x128xf32>
    %336 = arith.mulf %335, %334 : vector<8x128xf32>
    %cst_135 = arith.constant 5.000000e-01 : f32
    %337 = vector.broadcast %cst_135 : f32 to vector<8x128xf32>
    %338 = arith.addf %336, %337 : vector<8x128xf32>
    %339 = arith.mulf %328, %298 : vector<8x128xf32>
    %340 = arith.mulf %320, %330 : vector<8x128xf32>
    %341 = arith.addf %339, %340 : vector<8x128xf32>
    %342 = math.tanh %341 : vector<8x128xf32>
    %343 = arith.mulf %338, %342 : vector<8x128xf32>
    %c7_136 = arith.constant 7 : index
    %c0_137 = arith.constant 0 : index
    %c0_138 = arith.constant 0 : index
    %344 = vector.load %arg13[%c7_136, %c0_137, %c0_138] : memref<8x8x128xf32, #tpu.memory_space<vmem>>, vector<1x8x128xf32>
    %345 = vector.shape_cast %344 : vector<1x8x128xf32> to vector<8x128xf32>
    %346 = vector.shape_cast %343 : vector<8x128xf32> to vector<1x8x128xf32>
    tpu.vector_store %arg13[%c7_136, %c0_137, %c0_138], %346 {strides = array<i32>} : memref<8x8x128xf32, #tpu.memory_space<vmem>>, vector<1x8x128xf32>,
    %c0_139 = arith.constant 0 : index
    %c0_140 = arith.constant 0 : index
    %c0_141 = arith.constant 0 : index
    %347 = vector.load %arg13[%c0_139, %c0_140, %c0_141] : memref<8x8x128xf32, #tpu.memory_space<vmem>>, vector<8x8x128xf32>
    %348 = vector.shape_cast %347 : vector<8x8x128xf32> to vector<64x128xf32>
    %349 = arith.truncf %348 : vector<64x128xf32> to vector<64x128xbf16>
    %c0_142 = arith.constant 0 : index
    %c0_143 = arith.constant 0 : index
    %350 = vector.load %arg4[%c0_142, %c0_143] : memref<128x512xbf16, #tpu.memory_space<vmem>>, vector<128x512xbf16>
    %cst_144 = arith.constant dense<0.000000e+00> : vector<64x512xf32>
    %351 = tpu.matmul %349, %350, %cst_144 {dimension_numbers = #tpu.dot_dimension_numbers<[1], [0], [0], [1], [0, 0, 1, 1], [], []>} : vector<64x128xbf16>, vector<128x512xbf16>, vector<64x512xf32> -> vector<64x512xf32>
    %352 = vector.shape_cast %351 : vector<64x512xf32> to vector<8x8x512xf32>
    %353 = arith.truncf %352 : vector<8x8x512xf32> to vector<8x8x512xbf16>
    %c0_145 = arith.constant 0 : index
    %c0_146 = arith.constant 0 : index
    %c0_147 = arith.constant 0 : index
    %354 = vector.load %arg12[%c0_145, %c0_146, %c0_147] : memref<8x8x512xbf16, #tpu.memory_space<vmem>>, vector<8x8x512xbf16>
    tpu.vector_store %arg12[%c0_145, %c0_146, %c0_147], %353 {strides = array<i32>} : memref<8x8x512xbf16, #tpu.memory_space<vmem>>, vector<8x8x512xbf16>,
    %c0_148 = arith.constant 0 : index
    %c0_149 = arith.constant 0 : index
    %355 = vector.load %arg6[%c0_148, %c0_149] : memref<1x512xf32, #tpu.memory_space<vmem>>, vector<1x512xf32>
    %cst_150 = arith.constant 0.000000e+00 : f32
    %356 = vector.broadcast %cst_150 : f32 to vector<8x128xf32>
    %cst_151 = arith.constant 0.000000e+00 : f32
    %357 = vector.broadcast %cst_151 : f32 to vector<8x128xf32>
    %c0_152 = arith.constant 0 : index
    %c0_153 = arith.constant 0 : index
    %c0_154 = arith.constant 0 : index
    %358 = vector.load %arg12[%c0_152, %c0_153, %c0_154] : memref<8x8x512xbf16, #tpu.memory_space<vmem>>, vector<1x8x512xbf16>
    %359 = vector.shape_cast %358 : vector<1x8x512xbf16> to vector<8x512xbf16>
    %360 = arith.extf %359 : vector<8x512xbf16> to vector<8x512xf32>
    %361 = vector.broadcast %355 : vector<1x512xf32> to vector<8x512xf32>
    %362 = arith.addf %360, %361 : vector<8x512xf32>
    %363 = arith.truncf %356 : vector<8x128xf32> to vector<8x128xbf16>
    %c0_155 = arith.constant 0 : index
    %c0_156 = arith.constant 0 : index
    %364 = vector.load %arg5[%c0_155, %c0_156] : memref<128x512xbf16, #tpu.memory_space<vmem>>, vector<128x512xbf16>
    %cst_157 = arith.constant dense<0.000000e+00> : vector<8x512xf32>
    %365 = tpu.matmul %363, %364, %cst_157 {dimension_numbers = #tpu.dot_dimension_numbers<[1], [0], [0], [1], [0, 0, 1, 1], [], []>} : vector<8x128xbf16>, vector<128x512xbf16>, vector<8x512xf32> -> vector<8x512xf32>
    %366 = arith.addf %362, %365 : vector<8x512xf32>
    %367 = vector.extract_strided_slice %366 {offsets = [0, 0], sizes = [8, 128], strides = [1, 1]} : vector<8x512xf32> to vector<8x128xf32>
    %cst_158 = arith.constant 5.000000e-01 : f32
    %368 = vector.broadcast %cst_158 : f32 to vector<8x128xf32>
    %369 = arith.mulf %368, %367 : vector<8x128xf32>
    %370 = math.tanh %369 : vector<8x128xf32>
    %cst_159 = arith.constant 5.000000e-01 : f32
    %371 = vector.broadcast %cst_159 : f32 to vector<8x128xf32>
    %372 = arith.mulf %371, %370 : vector<8x128xf32>
    %cst_160 = arith.constant 5.000000e-01 : f32
    %373 = vector.broadcast %cst_160 : f32 to vector<8x128xf32>
    %374 = arith.addf %372, %373 : vector<8x128xf32>
    %375 = vector.extract_strided_slice %366 {offsets = [0, 128], sizes = [8, 128], strides = [1, 1]} : vector<8x512xf32> to vector<8x128xf32>
    %cst_161 = arith.constant 5.000000e-01 : f32
    %376 = vector.broadcast %cst_161 : f32 to vector<8x128xf32>
    %377 = arith.mulf %376, %375 : vector<8x128xf32>
    %378 = math.tanh %377 : vector<8x128xf32>
    %cst_162 = arith.constant 5.000000e-01 : f32
    %379 = vector.broadcast %cst_162 : f32 to vector<8x128xf32>
    %380 = arith.mulf %379, %378 : vector<8x128xf32>
    %cst_163 = arith.constant 5.000000e-01 : f32
    %381 = vector.broadcast %cst_163 : f32 to vector<8x128xf32>
    %382 = arith.addf %380, %381 : vector<8x128xf32>
    %383 = vector.extract_strided_slice %366 {offsets = [0, 256], sizes = [8, 128], strides = [1, 1]} : vector<8x512xf32> to vector<8x128xf32>
    %384 = math.tanh %383 : vector<8x128xf32>
    %385 = vector.extract_strided_slice %366 {offsets = [0, 384], sizes = [8, 128], strides = [1, 1]} : vector<8x512xf32> to vector<8x128xf32>
    %cst_164 = arith.constant 5.000000e-01 : f32
    %386 = vector.broadcast %cst_164 : f32 to vector<8x128xf32>
    %387 = arith.mulf %386, %385 : vector<8x128xf32>
    %388 = math.tanh %387 : vector<8x128xf32>
    %cst_165 = arith.constant 5.000000e-01 : f32
    %389 = vector.broadcast %cst_165 : f32 to vector<8x128xf32>
    %390 = arith.mulf %389, %388 : vector<8x128xf32>
    %cst_166 = arith.constant 5.000000e-01 : f32
    %391 = vector.broadcast %cst_166 : f32 to vector<8x128xf32>
    %392 = arith.addf %390, %391 : vector<8x128xf32>
    %393 = arith.mulf %382, %357 : vector<8x128xf32>
    %394 = arith.mulf %374, %384 : vector<8x128xf32>
    %395 = arith.addf %393, %394 : vector<8x128xf32>
    %396 = math.tanh %395 : vector<8x128xf32>
    %397 = arith.mulf %392, %396 : vector<8x128xf32>
    %c0_167 = arith.constant 0 : index
    %c0_168 = arith.constant 0 : index
    %c0_169 = arith.constant 0 : index
    %398 = vector.load %arg13[%c0_167, %c0_168, %c0_169] : memref<8x8x128xf32, #tpu.memory_space<vmem>>, vector<1x8x128xf32>
    %399 = vector.shape_cast %398 : vector<1x8x128xf32> to vector<8x128xf32>
    %400 = vector.shape_cast %397 : vector<8x128xf32> to vector<1x8x128xf32>
    tpu.vector_store %arg13[%c0_167, %c0_168, %c0_169], %400 {strides = array<i32>} : memref<8x8x128xf32, #tpu.memory_space<vmem>>, vector<1x8x128xf32>,
    %c1_170 = arith.constant 1 : index
    %c0_171 = arith.constant 0 : index
    %c0_172 = arith.constant 0 : index
    %401 = vector.load %arg12[%c1_170, %c0_171, %c0_172] : memref<8x8x512xbf16, #tpu.memory_space<vmem>>, vector<1x8x512xbf16>
    %402 = vector.shape_cast %401 : vector<1x8x512xbf16> to vector<8x512xbf16>
    %403 = arith.extf %402 : vector<8x512xbf16> to vector<8x512xf32>
    %404 = vector.broadcast %355 : vector<1x512xf32> to vector<8x512xf32>
    %405 = arith.addf %403, %404 : vector<8x512xf32>
    %406 = arith.truncf %397 : vector<8x128xf32> to vector<8x128xbf16>
    %c0_173 = arith.constant 0 : index
    %c0_174 = arith.constant 0 : index
    %407 = vector.load %arg5[%c0_173, %c0_174] : memref<128x512xbf16, #tpu.memory_space<vmem>>, vector<128x512xbf16>
    %cst_175 = arith.constant dense<0.000000e+00> : vector<8x512xf32>
    %408 = tpu.matmul %406, %407, %cst_175 {dimension_numbers = #tpu.dot_dimension_numbers<[1], [0], [0], [1], [0, 0, 1, 1], [], []>} : vector<8x128xbf16>, vector<128x512xbf16>, vector<8x512xf32> -> vector<8x512xf32>
    %409 = arith.addf %405, %408 : vector<8x512xf32>
    %410 = vector.extract_strided_slice %409 {offsets = [0, 0], sizes = [8, 128], strides = [1, 1]} : vector<8x512xf32> to vector<8x128xf32>
    %cst_176 = arith.constant 5.000000e-01 : f32
    %411 = vector.broadcast %cst_176 : f32 to vector<8x128xf32>
    %412 = arith.mulf %411, %410 : vector<8x128xf32>
    %413 = math.tanh %412 : vector<8x128xf32>
    %cst_177 = arith.constant 5.000000e-01 : f32
    %414 = vector.broadcast %cst_177 : f32 to vector<8x128xf32>
    %415 = arith.mulf %414, %413 : vector<8x128xf32>
    %cst_178 = arith.constant 5.000000e-01 : f32
    %416 = vector.broadcast %cst_178 : f32 to vector<8x128xf32>
    %417 = arith.addf %415, %416 : vector<8x128xf32>
    %418 = vector.extract_strided_slice %409 {offsets = [0, 128], sizes = [8, 128], strides = [1, 1]} : vector<8x512xf32> to vector<8x128xf32>
    %cst_179 = arith.constant 5.000000e-01 : f32
    %419 = vector.broadcast %cst_179 : f32 to vector<8x128xf32>
    %420 = arith.mulf %419, %418 : vector<8x128xf32>
    %421 = math.tanh %420 : vector<8x128xf32>
    %cst_180 = arith.constant 5.000000e-01 : f32
    %422 = vector.broadcast %cst_180 : f32 to vector<8x128xf32>
    %423 = arith.mulf %422, %421 : vector<8x128xf32>
    %cst_181 = arith.constant 5.000000e-01 : f32
    %424 = vector.broadcast %cst_181 : f32 to vector<8x128xf32>
    %425 = arith.addf %423, %424 : vector<8x128xf32>
    %426 = vector.extract_strided_slice %409 {offsets = [0, 256], sizes = [8, 128], strides = [1, 1]} : vector<8x512xf32> to vector<8x128xf32>
    %427 = math.tanh %426 : vector<8x128xf32>
    %428 = vector.extract_strided_slice %409 {offsets = [0, 384], sizes = [8, 128], strides = [1, 1]} : vector<8x512xf32> to vector<8x128xf32>
    %cst_182 = arith.constant 5.000000e-01 : f32
    %429 = vector.broadcast %cst_182 : f32 to vector<8x128xf32>
    %430 = arith.mulf %429, %428 : vector<8x128xf32>
    %431 = math.tanh %430 : vector<8x128xf32>
    %cst_183 = arith.constant 5.000000e-01 : f32
    %432 = vector.broadcast %cst_183 : f32 to vector<8x128xf32>
    %433 = arith.mulf %432, %431 : vector<8x128xf32>
    %cst_184 = arith.constant 5.000000e-01 : f32
    %434 = vector.broadcast %cst_184 : f32 to vector<8x128xf32>
    %435 = arith.addf %433, %434 : vector<8x128xf32>
    %436 = arith.mulf %425, %395 : vector<8x128xf32>
    %437 = arith.mulf %417, %427 : vector<8x128xf32>
    %438 = arith.addf %436, %437 : vector<8x128xf32>
    %439 = math.tanh %438 : vector<8x128xf32>
    %440 = arith.mulf %435, %439 : vector<8x128xf32>
    %c1_185 = arith.constant 1 : index
    %c0_186 = arith.constant 0 : index
    %c0_187 = arith.constant 0 : index
    %441 = vector.load %arg13[%c1_185, %c0_186, %c0_187] : memref<8x8x128xf32, #tpu.memory_space<vmem>>, vector<1x8x128xf32>
    %442 = vector.shape_cast %441 : vector<1x8x128xf32> to vector<8x128xf32>
    %443 = vector.shape_cast %440 : vector<8x128xf32> to vector<1x8x128xf32>
    tpu.vector_store %arg13[%c1_185, %c0_186, %c0_187], %443 {strides = array<i32>} : memref<8x8x128xf32, #tpu.memory_space<vmem>>, vector<1x8x128xf32>,
    %c2_188 = arith.constant 2 : index
    %c0_189 = arith.constant 0 : index
    %c0_190 = arith.constant 0 : index
    %444 = vector.load %arg12[%c2_188, %c0_189, %c0_190] : memref<8x8x512xbf16, #tpu.memory_space<vmem>>, vector<1x8x512xbf16>
    %445 = vector.shape_cast %444 : vector<1x8x512xbf16> to vector<8x512xbf16>
    %446 = arith.extf %445 : vector<8x512xbf16> to vector<8x512xf32>
    %447 = vector.broadcast %355 : vector<1x512xf32> to vector<8x512xf32>
    %448 = arith.addf %446, %447 : vector<8x512xf32>
    %449 = arith.truncf %440 : vector<8x128xf32> to vector<8x128xbf16>
    %c0_191 = arith.constant 0 : index
    %c0_192 = arith.constant 0 : index
    %450 = vector.load %arg5[%c0_191, %c0_192] : memref<128x512xbf16, #tpu.memory_space<vmem>>, vector<128x512xbf16>
    %cst_193 = arith.constant dense<0.000000e+00> : vector<8x512xf32>
    %451 = tpu.matmul %449, %450, %cst_193 {dimension_numbers = #tpu.dot_dimension_numbers<[1], [0], [0], [1], [0, 0, 1, 1], [], []>} : vector<8x128xbf16>, vector<128x512xbf16>, vector<8x512xf32> -> vector<8x512xf32>
    %452 = arith.addf %448, %451 : vector<8x512xf32>
    %453 = vector.extract_strided_slice %452 {offsets = [0, 0], sizes = [8, 128], strides = [1, 1]} : vector<8x512xf32> to vector<8x128xf32>
    %cst_194 = arith.constant 5.000000e-01 : f32
    %454 = vector.broadcast %cst_194 : f32 to vector<8x128xf32>
    %455 = arith.mulf %454, %453 : vector<8x128xf32>
    %456 = math.tanh %455 : vector<8x128xf32>
    %cst_195 = arith.constant 5.000000e-01 : f32
    %457 = vector.broadcast %cst_195 : f32 to vector<8x128xf32>
    %458 = arith.mulf %457, %456 : vector<8x128xf32>
    %cst_196 = arith.constant 5.000000e-01 : f32
    %459 = vector.broadcast %cst_196 : f32 to vector<8x128xf32>
    %460 = arith.addf %458, %459 : vector<8x128xf32>
    %461 = vector.extract_strided_slice %452 {offsets = [0, 128], sizes = [8, 128], strides = [1, 1]} : vector<8x512xf32> to vector<8x128xf32>
    %cst_197 = arith.constant 5.000000e-01 : f32
    %462 = vector.broadcast %cst_197 : f32 to vector<8x128xf32>
    %463 = arith.mulf %462, %461 : vector<8x128xf32>
    %464 = math.tanh %463 : vector<8x128xf32>
    %cst_198 = arith.constant 5.000000e-01 : f32
    %465 = vector.broadcast %cst_198 : f32 to vector<8x128xf32>
    %466 = arith.mulf %465, %464 : vector<8x128xf32>
    %cst_199 = arith.constant 5.000000e-01 : f32
    %467 = vector.broadcast %cst_199 : f32 to vector<8x128xf32>
    %468 = arith.addf %466, %467 : vector<8x128xf32>
    %469 = vector.extract_strided_slice %452 {offsets = [0, 256], sizes = [8, 128], strides = [1, 1]} : vector<8x512xf32> to vector<8x128xf32>
    %470 = math.tanh %469 : vector<8x128xf32>
    %471 = vector.extract_strided_slice %452 {offsets = [0, 384], sizes = [8, 128], strides = [1, 1]} : vector<8x512xf32> to vector<8x128xf32>
    %cst_200 = arith.constant 5.000000e-01 : f32
    %472 = vector.broadcast %cst_200 : f32 to vector<8x128xf32>
    %473 = arith.mulf %472, %471 : vector<8x128xf32>
    %474 = math.tanh %473 : vector<8x128xf32>
    %cst_201 = arith.constant 5.000000e-01 : f32
    %475 = vector.broadcast %cst_201 : f32 to vector<8x128xf32>
    %476 = arith.mulf %475, %474 : vector<8x128xf32>
    %cst_202 = arith.constant 5.000000e-01 : f32
    %477 = vector.broadcast %cst_202 : f32 to vector<8x128xf32>
    %478 = arith.addf %476, %477 : vector<8x128xf32>
    %479 = arith.mulf %468, %438 : vector<8x128xf32>
    %480 = arith.mulf %460, %470 : vector<8x128xf32>
    %481 = arith.addf %479, %480 : vector<8x128xf32>
    %482 = math.tanh %481 : vector<8x128xf32>
    %483 = arith.mulf %478, %482 : vector<8x128xf32>
    %c2_203 = arith.constant 2 : index
    %c0_204 = arith.constant 0 : index
    %c0_205 = arith.constant 0 : index
    %484 = vector.load %arg13[%c2_203, %c0_204, %c0_205] : memref<8x8x128xf32, #tpu.memory_space<vmem>>, vector<1x8x128xf32>
    %485 = vector.shape_cast %484 : vector<1x8x128xf32> to vector<8x128xf32>
    %486 = vector.shape_cast %483 : vector<8x128xf32> to vector<1x8x128xf32>
    tpu.vector_store %arg13[%c2_203, %c0_204, %c0_205], %486 {strides = array<i32>} : memref<8x8x128xf32, #tpu.memory_space<vmem>>, vector<1x8x128xf32>,
    %c3_206 = arith.constant 3 : index
    %c0_207 = arith.constant 0 : index
    %c0_208 = arith.constant 0 : index
    %487 = vector.load %arg12[%c3_206, %c0_207, %c0_208] : memref<8x8x512xbf16, #tpu.memory_space<vmem>>, vector<1x8x512xbf16>
    %488 = vector.shape_cast %487 : vector<1x8x512xbf16> to vector<8x512xbf16>
    %489 = arith.extf %488 : vector<8x512xbf16> to vector<8x512xf32>
    %490 = vector.broadcast %355 : vector<1x512xf32> to vector<8x512xf32>
    %491 = arith.addf %489, %490 : vector<8x512xf32>
    %492 = arith.truncf %483 : vector<8x128xf32> to vector<8x128xbf16>
    %c0_209 = arith.constant 0 : index
    %c0_210 = arith.constant 0 : index
    %493 = vector.load %arg5[%c0_209, %c0_210] : memref<128x512xbf16, #tpu.memory_space<vmem>>, vector<128x512xbf16>
    %cst_211 = arith.constant dense<0.000000e+00> : vector<8x512xf32>
    %494 = tpu.matmul %492, %493, %cst_211 {dimension_numbers = #tpu.dot_dimension_numbers<[1], [0], [0], [1], [0, 0, 1, 1], [], []>} : vector<8x128xbf16>, vector<128x512xbf16>, vector<8x512xf32> -> vector<8x512xf32>
    %495 = arith.addf %491, %494 : vector<8x512xf32>
    %496 = vector.extract_strided_slice %495 {offsets = [0, 0], sizes = [8, 128], strides = [1, 1]} : vector<8x512xf32> to vector<8x128xf32>
    %cst_212 = arith.constant 5.000000e-01 : f32
    %497 = vector.broadcast %cst_212 : f32 to vector<8x128xf32>
    %498 = arith.mulf %497, %496 : vector<8x128xf32>
    %499 = math.tanh %498 : vector<8x128xf32>
    %cst_213 = arith.constant 5.000000e-01 : f32
    %500 = vector.broadcast %cst_213 : f32 to vector<8x128xf32>
    %501 = arith.mulf %500, %499 : vector<8x128xf32>
    %cst_214 = arith.constant 5.000000e-01 : f32
    %502 = vector.broadcast %cst_214 : f32 to vector<8x128xf32>
    %503 = arith.addf %501, %502 : vector<8x128xf32>
    %504 = vector.extract_strided_slice %495 {offsets = [0, 128], sizes = [8, 128], strides = [1, 1]} : vector<8x512xf32> to vector<8x128xf32>
    %cst_215 = arith.constant 5.000000e-01 : f32
    %505 = vector.broadcast %cst_215 : f32 to vector<8x128xf32>
    %506 = arith.mulf %505, %504 : vector<8x128xf32>
    %507 = math.tanh %506 : vector<8x128xf32>
    %cst_216 = arith.constant 5.000000e-01 : f32
    %508 = vector.broadcast %cst_216 : f32 to vector<8x128xf32>
    %509 = arith.mulf %508, %507 : vector<8x128xf32>
    %cst_217 = arith.constant 5.000000e-01 : f32
    %510 = vector.broadcast %cst_217 : f32 to vector<8x128xf32>
    %511 = arith.addf %509, %510 : vector<8x128xf32>
    %512 = vector.extract_strided_slice %495 {offsets = [0, 256], sizes = [8, 128], strides = [1, 1]} : vector<8x512xf32> to vector<8x128xf32>
    %513 = math.tanh %512 : vector<8x128xf32>
    %514 = vector.extract_strided_slice %495 {offsets = [0, 384], sizes = [8, 128], strides = [1, 1]} : vector<8x512xf32> to vector<8x128xf32>
    %cst_218 = arith.constant 5.000000e-01 : f32
    %515 = vector.broadcast %cst_218 : f32 to vector<8x128xf32>
    %516 = arith.mulf %515, %514 : vector<8x128xf32>
    %517 = math.tanh %516 : vector<8x128xf32>
    %cst_219 = arith.constant 5.000000e-01 : f32
    %518 = vector.broadcast %cst_219 : f32 to vector<8x128xf32>
    %519 = arith.mulf %518, %517 : vector<8x128xf32>
    %cst_220 = arith.constant 5.000000e-01 : f32
    %520 = vector.broadcast %cst_220 : f32 to vector<8x128xf32>
    %521 = arith.addf %519, %520 : vector<8x128xf32>
    %522 = arith.mulf %511, %481 : vector<8x128xf32>
    %523 = arith.mulf %503, %513 : vector<8x128xf32>
    %524 = arith.addf %522, %523 : vector<8x128xf32>
    %525 = math.tanh %524 : vector<8x128xf32>
    %526 = arith.mulf %521, %525 : vector<8x128xf32>
    %c3_221 = arith.constant 3 : index
    %c0_222 = arith.constant 0 : index
    %c0_223 = arith.constant 0 : index
    %527 = vector.load %arg13[%c3_221, %c0_222, %c0_223] : memref<8x8x128xf32, #tpu.memory_space<vmem>>, vector<1x8x128xf32>
    %528 = vector.shape_cast %527 : vector<1x8x128xf32> to vector<8x128xf32>
    %529 = vector.shape_cast %526 : vector<8x128xf32> to vector<1x8x128xf32>
    tpu.vector_store %arg13[%c3_221, %c0_222, %c0_223], %529 {strides = array<i32>} : memref<8x8x128xf32, #tpu.memory_space<vmem>>, vector<1x8x128xf32>,
    %c4_224 = arith.constant 4 : index
    %c0_225 = arith.constant 0 : index
    %c0_226 = arith.constant 0 : index
    %530 = vector.load %arg12[%c4_224, %c0_225, %c0_226] : memref<8x8x512xbf16, #tpu.memory_space<vmem>>, vector<1x8x512xbf16>
    %531 = vector.shape_cast %530 : vector<1x8x512xbf16> to vector<8x512xbf16>
    %532 = arith.extf %531 : vector<8x512xbf16> to vector<8x512xf32>
    %533 = vector.broadcast %355 : vector<1x512xf32> to vector<8x512xf32>
    %534 = arith.addf %532, %533 : vector<8x512xf32>
    %535 = arith.truncf %526 : vector<8x128xf32> to vector<8x128xbf16>
    %c0_227 = arith.constant 0 : index
    %c0_228 = arith.constant 0 : index
    %536 = vector.load %arg5[%c0_227, %c0_228] : memref<128x512xbf16, #tpu.memory_space<vmem>>, vector<128x512xbf16>
    %cst_229 = arith.constant dense<0.000000e+00> : vector<8x512xf32>
    %537 = tpu.matmul %535, %536, %cst_229 {dimension_numbers = #tpu.dot_dimension_numbers<[1], [0], [0], [1], [0, 0, 1, 1], [], []>} : vector<8x128xbf16>, vector<128x512xbf16>, vector<8x512xf32> -> vector<8x512xf32>
    %538 = arith.addf %534, %537 : vector<8x512xf32>
    %539 = vector.extract_strided_slice %538 {offsets = [0, 0], sizes = [8, 128], strides = [1, 1]} : vector<8x512xf32> to vector<8x128xf32>
    %cst_230 = arith.constant 5.000000e-01 : f32
    %540 = vector.broadcast %cst_230 : f32 to vector<8x128xf32>
    %541 = arith.mulf %540, %539 : vector<8x128xf32>
    %542 = math.tanh %541 : vector<8x128xf32>
    %cst_231 = arith.constant 5.000000e-01 : f32
    %543 = vector.broadcast %cst_231 : f32 to vector<8x128xf32>
    %544 = arith.mulf %543, %542 : vector<8x128xf32>
    %cst_232 = arith.constant 5.000000e-01 : f32
    %545 = vector.broadcast %cst_232 : f32 to vector<8x128xf32>
    %546 = arith.addf %544, %545 : vector<8x128xf32>
    %547 = vector.extract_strided_slice %538 {offsets = [0, 128], sizes = [8, 128], strides = [1, 1]} : vector<8x512xf32> to vector<8x128xf32>
    %cst_233 = arith.constant 5.000000e-01 : f32
    %548 = vector.broadcast %cst_233 : f32 to vector<8x128xf32>
    %549 = arith.mulf %548, %547 : vector<8x128xf32>
    %550 = math.tanh %549 : vector<8x128xf32>
    %cst_234 = arith.constant 5.000000e-01 : f32
    %551 = vector.broadcast %cst_234 : f32 to vector<8x128xf32>
    %552 = arith.mulf %551, %550 : vector<8x128xf32>
    %cst_235 = arith.constant 5.000000e-01 : f32
    %553 = vector.broadcast %cst_235 : f32 to vector<8x128xf32>
    %554 = arith.addf %552, %553 : vector<8x128xf32>
    %555 = vector.extract_strided_slice %538 {offsets = [0, 256], sizes = [8, 128], strides = [1, 1]} : vector<8x512xf32> to vector<8x128xf32>
    %556 = math.tanh %555 : vector<8x128xf32>
    %557 = vector.extract_strided_slice %538 {offsets = [0, 384], sizes = [8, 128], strides = [1, 1]} : vector<8x512xf32> to vector<8x128xf32>
    %cst_236 = arith.constant 5.000000e-01 : f32
    %558 = vector.broadcast %cst_236 : f32 to vector<8x128xf32>
    %559 = arith.mulf %558, %557 : vector<8x128xf32>
    %560 = math.tanh %559 : vector<8x128xf32>
    %cst_237 = arith.constant 5.000000e-01 : f32
    %561 = vector.broadcast %cst_237 : f32 to vector<8x128xf32>
    %562 = arith.mulf %561, %560 : vector<8x128xf32>
    %cst_238 = arith.constant 5.000000e-01 : f32
    %563 = vector.broadcast %cst_238 : f32 to vector<8x128xf32>
    %564 = arith.addf %562, %563 : vector<8x128xf32>
    %565 = arith.mulf %554, %524 : vector<8x128xf32>
    %566 = arith.mulf %546, %556 : vector<8x128xf32>
    %567 = arith.addf %565, %566 : vector<8x128xf32>
    %568 = math.tanh %567 : vector<8x128xf32>
    %569 = arith.mulf %564, %568 : vector<8x128xf32>
    %c4_239 = arith.constant 4 : index
    %c0_240 = arith.constant 0 : index
    %c0_241 = arith.constant 0 : index
    %570 = vector.load %arg13[%c4_239, %c0_240, %c0_241] : memref<8x8x128xf32, #tpu.memory_space<vmem>>, vector<1x8x128xf32>
    %571 = vector.shape_cast %570 : vector<1x8x128xf32> to vector<8x128xf32>
    %572 = vector.shape_cast %569 : vector<8x128xf32> to vector<1x8x128xf32>
    tpu.vector_store %arg13[%c4_239, %c0_240, %c0_241], %572 {strides = array<i32>} : memref<8x8x128xf32, #tpu.memory_space<vmem>>, vector<1x8x128xf32>,
    %c5_242 = arith.constant 5 : index
    %c0_243 = arith.constant 0 : index
    %c0_244 = arith.constant 0 : index
    %573 = vector.load %arg12[%c5_242, %c0_243, %c0_244] : memref<8x8x512xbf16, #tpu.memory_space<vmem>>, vector<1x8x512xbf16>
    %574 = vector.shape_cast %573 : vector<1x8x512xbf16> to vector<8x512xbf16>
    %575 = arith.extf %574 : vector<8x512xbf16> to vector<8x512xf32>
    %576 = vector.broadcast %355 : vector<1x512xf32> to vector<8x512xf32>
    %577 = arith.addf %575, %576 : vector<8x512xf32>
    %578 = arith.truncf %569 : vector<8x128xf32> to vector<8x128xbf16>
    %c0_245 = arith.constant 0 : index
    %c0_246 = arith.constant 0 : index
    %579 = vector.load %arg5[%c0_245, %c0_246] : memref<128x512xbf16, #tpu.memory_space<vmem>>, vector<128x512xbf16>
    %cst_247 = arith.constant dense<0.000000e+00> : vector<8x512xf32>
    %580 = tpu.matmul %578, %579, %cst_247 {dimension_numbers = #tpu.dot_dimension_numbers<[1], [0], [0], [1], [0, 0, 1, 1], [], []>} : vector<8x128xbf16>, vector<128x512xbf16>, vector<8x512xf32> -> vector<8x512xf32>
    %581 = arith.addf %577, %580 : vector<8x512xf32>
    %582 = vector.extract_strided_slice %581 {offsets = [0, 0], sizes = [8, 128], strides = [1, 1]} : vector<8x512xf32> to vector<8x128xf32>
    %cst_248 = arith.constant 5.000000e-01 : f32
    %583 = vector.broadcast %cst_248 : f32 to vector<8x128xf32>
    %584 = arith.mulf %583, %582 : vector<8x128xf32>
    %585 = math.tanh %584 : vector<8x128xf32>
    %cst_249 = arith.constant 5.000000e-01 : f32
    %586 = vector.broadcast %cst_249 : f32 to vector<8x128xf32>
    %587 = arith.mulf %586, %585 : vector<8x128xf32>
    %cst_250 = arith.constant 5.000000e-01 : f32
    %588 = vector.broadcast %cst_250 : f32 to vector<8x128xf32>
    %589 = arith.addf %587, %588 : vector<8x128xf32>
    %590 = vector.extract_strided_slice %581 {offsets = [0, 128], sizes = [8, 128], strides = [1, 1]} : vector<8x512xf32> to vector<8x128xf32>
    %cst_251 = arith.constant 5.000000e-01 : f32
    %591 = vector.broadcast %cst_251 : f32 to vector<8x128xf32>
    %592 = arith.mulf %591, %590 : vector<8x128xf32>
    %593 = math.tanh %592 : vector<8x128xf32>
    %cst_252 = arith.constant 5.000000e-01 : f32
    %594 = vector.broadcast %cst_252 : f32 to vector<8x128xf32>
    %595 = arith.mulf %594, %593 : vector<8x128xf32>
    %cst_253 = arith.constant 5.000000e-01 : f32
    %596 = vector.broadcast %cst_253 : f32 to vector<8x128xf32>
    %597 = arith.addf %595, %596 : vector<8x128xf32>
    %598 = vector.extract_strided_slice %581 {offsets = [0, 256], sizes = [8, 128], strides = [1, 1]} : vector<8x512xf32> to vector<8x128xf32>
    %599 = math.tanh %598 : vector<8x128xf32>
    %600 = vector.extract_strided_slice %581 {offsets = [0, 384], sizes = [8, 128], strides = [1, 1]} : vector<8x512xf32> to vector<8x128xf32>
    %cst_254 = arith.constant 5.000000e-01 : f32
    %601 = vector.broadcast %cst_254 : f32 to vector<8x128xf32>
    %602 = arith.mulf %601, %600 : vector<8x128xf32>
    %603 = math.tanh %602 : vector<8x128xf32>
    %cst_255 = arith.constant 5.000000e-01 : f32
    %604 = vector.broadcast %cst_255 : f32 to vector<8x128xf32>
    %605 = arith.mulf %604, %603 : vector<8x128xf32>
    %cst_256 = arith.constant 5.000000e-01 : f32
    %606 = vector.broadcast %cst_256 : f32 to vector<8x128xf32>
    %607 = arith.addf %605, %606 : vector<8x128xf32>
    %608 = arith.mulf %597, %567 : vector<8x128xf32>
    %609 = arith.mulf %589, %599 : vector<8x128xf32>
    %610 = arith.addf %608, %609 : vector<8x128xf32>
    %611 = math.tanh %610 : vector<8x128xf32>
    %612 = arith.mulf %607, %611 : vector<8x128xf32>
    %c5_257 = arith.constant 5 : index
    %c0_258 = arith.constant 0 : index
    %c0_259 = arith.constant 0 : index
    %613 = vector.load %arg13[%c5_257, %c0_258, %c0_259] : memref<8x8x128xf32, #tpu.memory_space<vmem>>, vector<1x8x128xf32>
    %614 = vector.shape_cast %613 : vector<1x8x128xf32> to vector<8x128xf32>
    %615 = vector.shape_cast %612 : vector<8x128xf32> to vector<1x8x128xf32>
    tpu.vector_store %arg13[%c5_257, %c0_258, %c0_259], %615 {strides = array<i32>} : memref<8x8x128xf32, #tpu.memory_space<vmem>>, vector<1x8x128xf32>,
    %c6_260 = arith.constant 6 : index
    %c0_261 = arith.constant 0 : index
    %c0_262 = arith.constant 0 : index
    %616 = vector.load %arg12[%c6_260, %c0_261, %c0_262] : memref<8x8x512xbf16, #tpu.memory_space<vmem>>, vector<1x8x512xbf16>
    %617 = vector.shape_cast %616 : vector<1x8x512xbf16> to vector<8x512xbf16>
    %618 = arith.extf %617 : vector<8x512xbf16> to vector<8x512xf32>
    %619 = vector.broadcast %355 : vector<1x512xf32> to vector<8x512xf32>
    %620 = arith.addf %618, %619 : vector<8x512xf32>
    %621 = arith.truncf %612 : vector<8x128xf32> to vector<8x128xbf16>
    %c0_263 = arith.constant 0 : index
    %c0_264 = arith.constant 0 : index
    %622 = vector.load %arg5[%c0_263, %c0_264] : memref<128x512xbf16, #tpu.memory_space<vmem>>, vector<128x512xbf16>
    %cst_265 = arith.constant dense<0.000000e+00> : vector<8x512xf32>
    %623 = tpu.matmul %621, %622, %cst_265 {dimension_numbers = #tpu.dot_dimension_numbers<[1], [0], [0], [1], [0, 0, 1, 1], [], []>} : vector<8x128xbf16>, vector<128x512xbf16>, vector<8x512xf32> -> vector<8x512xf32>
    %624 = arith.addf %620, %623 : vector<8x512xf32>
    %625 = vector.extract_strided_slice %624 {offsets = [0, 0], sizes = [8, 128], strides = [1, 1]} : vector<8x512xf32> to vector<8x128xf32>
    %cst_266 = arith.constant 5.000000e-01 : f32
    %626 = vector.broadcast %cst_266 : f32 to vector<8x128xf32>
    %627 = arith.mulf %626, %625 : vector<8x128xf32>
    %628 = math.tanh %627 : vector<8x128xf32>
    %cst_267 = arith.constant 5.000000e-01 : f32
    %629 = vector.broadcast %cst_267 : f32 to vector<8x128xf32>
    %630 = arith.mulf %629, %628 : vector<8x128xf32>
    %cst_268 = arith.constant 5.000000e-01 : f32
    %631 = vector.broadcast %cst_268 : f32 to vector<8x128xf32>
    %632 = arith.addf %630, %631 : vector<8x128xf32>
    %633 = vector.extract_strided_slice %624 {offsets = [0, 128], sizes = [8, 128], strides = [1, 1]} : vector<8x512xf32> to vector<8x128xf32>
    %cst_269 = arith.constant 5.000000e-01 : f32
    %634 = vector.broadcast %cst_269 : f32 to vector<8x128xf32>
    %635 = arith.mulf %634, %633 : vector<8x128xf32>
    %636 = math.tanh %635 : vector<8x128xf32>
    %cst_270 = arith.constant 5.000000e-01 : f32
    %637 = vector.broadcast %cst_270 : f32 to vector<8x128xf32>
    %638 = arith.mulf %637, %636 : vector<8x128xf32>
    %cst_271 = arith.constant 5.000000e-01 : f32
    %639 = vector.broadcast %cst_271 : f32 to vector<8x128xf32>
    %640 = arith.addf %638, %639 : vector<8x128xf32>
    %641 = vector.extract_strided_slice %624 {offsets = [0, 256], sizes = [8, 128], strides = [1, 1]} : vector<8x512xf32> to vector<8x128xf32>
    %642 = math.tanh %641 : vector<8x128xf32>
    %643 = vector.extract_strided_slice %624 {offsets = [0, 384], sizes = [8, 128], strides = [1, 1]} : vector<8x512xf32> to vector<8x128xf32>
    %cst_272 = arith.constant 5.000000e-01 : f32
    %644 = vector.broadcast %cst_272 : f32 to vector<8x128xf32>
    %645 = arith.mulf %644, %643 : vector<8x128xf32>
    %646 = math.tanh %645 : vector<8x128xf32>
    %cst_273 = arith.constant 5.000000e-01 : f32
    %647 = vector.broadcast %cst_273 : f32 to vector<8x128xf32>
    %648 = arith.mulf %647, %646 : vector<8x128xf32>
    %cst_274 = arith.constant 5.000000e-01 : f32
    %649 = vector.broadcast %cst_274 : f32 to vector<8x128xf32>
    %650 = arith.addf %648, %649 : vector<8x128xf32>
    %651 = arith.mulf %640, %610 : vector<8x128xf32>
    %652 = arith.mulf %632, %642 : vector<8x128xf32>
    %653 = arith.addf %651, %652 : vector<8x128xf32>
    %654 = math.tanh %653 : vector<8x128xf32>
    %655 = arith.mulf %650, %654 : vector<8x128xf32>
    %c6_275 = arith.constant 6 : index
    %c0_276 = arith.constant 0 : index
    %c0_277 = arith.constant 0 : index
    %656 = vector.load %arg13[%c6_275, %c0_276, %c0_277] : memref<8x8x128xf32, #tpu.memory_space<vmem>>, vector<1x8x128xf32>
    %657 = vector.shape_cast %656 : vector<1x8x128xf32> to vector<8x128xf32>
    %658 = vector.shape_cast %655 : vector<8x128xf32> to vector<1x8x128xf32>
    tpu.vector_store %arg13[%c6_275, %c0_276, %c0_277], %658 {strides = array<i32>} : memref<8x8x128xf32, #tpu.memory_space<vmem>>, vector<1x8x128xf32>,
    %c7_278 = arith.constant 7 : index
    %c0_279 = arith.constant 0 : index
    %c0_280 = arith.constant 0 : index
    %659 = vector.load %arg12[%c7_278, %c0_279, %c0_280] : memref<8x8x512xbf16, #tpu.memory_space<vmem>>, vector<1x8x512xbf16>
    %660 = vector.shape_cast %659 : vector<1x8x512xbf16> to vector<8x512xbf16>
    %661 = arith.extf %660 : vector<8x512xbf16> to vector<8x512xf32>
    %662 = vector.broadcast %355 : vector<1x512xf32> to vector<8x512xf32>
    %663 = arith.addf %661, %662 : vector<8x512xf32>
    %664 = arith.truncf %655 : vector<8x128xf32> to vector<8x128xbf16>
    %c0_281 = arith.constant 0 : index
    %c0_282 = arith.constant 0 : index
    %665 = vector.load %arg5[%c0_281, %c0_282] : memref<128x512xbf16, #tpu.memory_space<vmem>>, vector<128x512xbf16>
    %cst_283 = arith.constant dense<0.000000e+00> : vector<8x512xf32>
    %666 = tpu.matmul %664, %665, %cst_283 {dimension_numbers = #tpu.dot_dimension_numbers<[1], [0], [0], [1], [0, 0, 1, 1], [], []>} : vector<8x128xbf16>, vector<128x512xbf16>, vector<8x512xf32> -> vector<8x512xf32>
    %667 = arith.addf %663, %666 : vector<8x512xf32>
    %668 = vector.extract_strided_slice %667 {offsets = [0, 0], sizes = [8, 128], strides = [1, 1]} : vector<8x512xf32> to vector<8x128xf32>
    %cst_284 = arith.constant 5.000000e-01 : f32
    %669 = vector.broadcast %cst_284 : f32 to vector<8x128xf32>
    %670 = arith.mulf %669, %668 : vector<8x128xf32>
    %671 = math.tanh %670 : vector<8x128xf32>
    %cst_285 = arith.constant 5.000000e-01 : f32
    %672 = vector.broadcast %cst_285 : f32 to vector<8x128xf32>
    %673 = arith.mulf %672, %671 : vector<8x128xf32>
    %cst_286 = arith.constant 5.000000e-01 : f32
    %674 = vector.broadcast %cst_286 : f32 to vector<8x128xf32>
    %675 = arith.addf %673, %674 : vector<8x128xf32>
    %676 = vector.extract_strided_slice %667 {offsets = [0, 128], sizes = [8, 128], strides = [1, 1]} : vector<8x512xf32> to vector<8x128xf32>
    %cst_287 = arith.constant 5.000000e-01 : f32
    %677 = vector.broadcast %cst_287 : f32 to vector<8x128xf32>
    %678 = arith.mulf %677, %676 : vector<8x128xf32>
    %679 = math.tanh %678 : vector<8x128xf32>
    %cst_288 = arith.constant 5.000000e-01 : f32
    %680 = vector.broadcast %cst_288 : f32 to vector<8x128xf32>
    %681 = arith.mulf %680, %679 : vector<8x128xf32>
    %cst_289 = arith.constant 5.000000e-01 : f32
    %682 = vector.broadcast %cst_289 : f32 to vector<8x128xf32>
    %683 = arith.addf %681, %682 : vector<8x128xf32>
    %684 = vector.extract_strided_slice %667 {offsets = [0, 256], sizes = [8, 128], strides = [1, 1]} : vector<8x512xf32> to vector<8x128xf32>
    %685 = math.tanh %684 : vector<8x128xf32>
    %686 = vector.extract_strided_slice %667 {offsets = [0, 384], sizes = [8, 128], strides = [1, 1]} : vector<8x512xf32> to vector<8x128xf32>
    %cst_290 = arith.constant 5.000000e-01 : f32
    %687 = vector.broadcast %cst_290 : f32 to vector<8x128xf32>
    %688 = arith.mulf %687, %686 : vector<8x128xf32>
    %689 = math.tanh %688 : vector<8x128xf32>
    %cst_291 = arith.constant 5.000000e-01 : f32
    %690 = vector.broadcast %cst_291 : f32 to vector<8x128xf32>
    %691 = arith.mulf %690, %689 : vector<8x128xf32>
    %cst_292 = arith.constant 5.000000e-01 : f32
    %692 = vector.broadcast %cst_292 : f32 to vector<8x128xf32>
    %693 = arith.addf %691, %692 : vector<8x128xf32>
    %694 = arith.mulf %683, %653 : vector<8x128xf32>
    %695 = arith.mulf %675, %685 : vector<8x128xf32>
    %696 = arith.addf %694, %695 : vector<8x128xf32>
    %697 = math.tanh %696 : vector<8x128xf32>
    %698 = arith.mulf %693, %697 : vector<8x128xf32>
    %c7_293 = arith.constant 7 : index
    %c0_294 = arith.constant 0 : index
    %c0_295 = arith.constant 0 : index
    %699 = vector.load %arg13[%c7_293, %c0_294, %c0_295] : memref<8x8x128xf32, #tpu.memory_space<vmem>>, vector<1x8x128xf32>
    %700 = vector.shape_cast %699 : vector<1x8x128xf32> to vector<8x128xf32>
    %701 = vector.shape_cast %698 : vector<8x128xf32> to vector<1x8x128xf32>
    tpu.vector_store %arg13[%c7_293, %c0_294, %c0_295], %701 {strides = array<i32>} : memref<8x8x128xf32, #tpu.memory_space<vmem>>, vector<1x8x128xf32>,
    %c0_296 = arith.constant 0 : index
    %c0_297 = arith.constant 0 : index
    %c0_298 = arith.constant 0 : index
    %702 = vector.load %arg13[%c0_296, %c0_297, %c0_298] : memref<8x8x128xf32, #tpu.memory_space<vmem>>, vector<8x8x128xf32>
    %703 = vector.shape_cast %702 : vector<8x8x128xf32> to vector<64x128xf32>
    %704 = arith.truncf %703 : vector<64x128xf32> to vector<64x128xbf16>
    %c0_299 = arith.constant 0 : index
    %c0_300 = arith.constant 0 : index
    %705 = vector.load %arg7[%c0_299, %c0_300] : memref<128x512xbf16, #tpu.memory_space<vmem>>, vector<128x512xbf16>
    %cst_301 = arith.constant dense<0.000000e+00> : vector<64x512xf32>
    %706 = tpu.matmul %704, %705, %cst_301 {dimension_numbers = #tpu.dot_dimension_numbers<[1], [0], [0], [1], [0, 0, 1, 1], [], []>} : vector<64x128xbf16>, vector<128x512xbf16>, vector<64x512xf32> -> vector<64x512xf32>
    %707 = vector.shape_cast %706 : vector<64x512xf32> to vector<8x8x512xf32>
    %708 = arith.truncf %707 : vector<8x8x512xf32> to vector<8x8x512xbf16>
    %c0_302 = arith.constant 0 : index
    %c0_303 = arith.constant 0 : index
    %c0_304 = arith.constant 0 : index
    %709 = vector.load %arg12[%c0_302, %c0_303, %c0_304] : memref<8x8x512xbf16, #tpu.memory_space<vmem>>, vector<8x8x512xbf16>
    tpu.vector_store %arg12[%c0_302, %c0_303, %c0_304], %708 {strides = array<i32>} : memref<8x8x512xbf16, #tpu.memory_space<vmem>>, vector<8x8x512xbf16>,
    %c0_305 = arith.constant 0 : index
    %c0_306 = arith.constant 0 : index
    %710 = vector.load %arg9[%c0_305, %c0_306] : memref<1x512xf32, #tpu.memory_space<vmem>>, vector<1x512xf32>
    %cst_307 = arith.constant 0.000000e+00 : f32
    %711 = vector.broadcast %cst_307 : f32 to vector<8x128xf32>
    %cst_308 = arith.constant 0.000000e+00 : f32
    %712 = vector.broadcast %cst_308 : f32 to vector<8x128xf32>
    %c0_309 = arith.constant 0 : index
    %c0_310 = arith.constant 0 : index
    %c0_311 = arith.constant 0 : index
    %713 = vector.load %arg12[%c0_309, %c0_310, %c0_311] : memref<8x8x512xbf16, #tpu.memory_space<vmem>>, vector<1x8x512xbf16>
    %714 = vector.shape_cast %713 : vector<1x8x512xbf16> to vector<8x512xbf16>
    %715 = arith.extf %714 : vector<8x512xbf16> to vector<8x512xf32>
    %716 = vector.broadcast %710 : vector<1x512xf32> to vector<8x512xf32>
    %717 = arith.addf %715, %716 : vector<8x512xf32>
    %718 = arith.truncf %711 : vector<8x128xf32> to vector<8x128xbf16>
    %c0_312 = arith.constant 0 : index
    %c0_313 = arith.constant 0 : index
    %719 = vector.load %arg8[%c0_312, %c0_313] : memref<128x512xbf16, #tpu.memory_space<vmem>>, vector<128x512xbf16>
    %cst_314 = arith.constant dense<0.000000e+00> : vector<8x512xf32>
    %720 = tpu.matmul %718, %719, %cst_314 {dimension_numbers = #tpu.dot_dimension_numbers<[1], [0], [0], [1], [0, 0, 1, 1], [], []>} : vector<8x128xbf16>, vector<128x512xbf16>, vector<8x512xf32> -> vector<8x512xf32>
    %721 = arith.addf %717, %720 : vector<8x512xf32>
    %722 = vector.extract_strided_slice %721 {offsets = [0, 0], sizes = [8, 128], strides = [1, 1]} : vector<8x512xf32> to vector<8x128xf32>
    %cst_315 = arith.constant 5.000000e-01 : f32
    %723 = vector.broadcast %cst_315 : f32 to vector<8x128xf32>
    %724 = arith.mulf %723, %722 : vector<8x128xf32>
    %725 = math.tanh %724 : vector<8x128xf32>
    %cst_316 = arith.constant 5.000000e-01 : f32
    %726 = vector.broadcast %cst_316 : f32 to vector<8x128xf32>
    %727 = arith.mulf %726, %725 : vector<8x128xf32>
    %cst_317 = arith.constant 5.000000e-01 : f32
    %728 = vector.broadcast %cst_317 : f32 to vector<8x128xf32>
    %729 = arith.addf %727, %728 : vector<8x128xf32>
    %730 = vector.extract_strided_slice %721 {offsets = [0, 128], sizes = [8, 128], strides = [1, 1]} : vector<8x512xf32> to vector<8x128xf32>
    %cst_318 = arith.constant 5.000000e-01 : f32
    %731 = vector.broadcast %cst_318 : f32 to vector<8x128xf32>
    %732 = arith.mulf %731, %730 : vector<8x128xf32>
    %733 = math.tanh %732 : vector<8x128xf32>
    %cst_319 = arith.constant 5.000000e-01 : f32
    %734 = vector.broadcast %cst_319 : f32 to vector<8x128xf32>
    %735 = arith.mulf %734, %733 : vector<8x128xf32>
    %cst_320 = arith.constant 5.000000e-01 : f32
    %736 = vector.broadcast %cst_320 : f32 to vector<8x128xf32>
    %737 = arith.addf %735, %736 : vector<8x128xf32>
    %738 = vector.extract_strided_slice %721 {offsets = [0, 256], sizes = [8, 128], strides = [1, 1]} : vector<8x512xf32> to vector<8x128xf32>
    %739 = math.tanh %738 : vector<8x128xf32>
    %740 = vector.extract_strided_slice %721 {offsets = [0, 384], sizes = [8, 128], strides = [1, 1]} : vector<8x512xf32> to vector<8x128xf32>
    %cst_321 = arith.constant 5.000000e-01 : f32
    %741 = vector.broadcast %cst_321 : f32 to vector<8x128xf32>
    %742 = arith.mulf %741, %740 : vector<8x128xf32>
    %743 = math.tanh %742 : vector<8x128xf32>
    %cst_322 = arith.constant 5.000000e-01 : f32
    %744 = vector.broadcast %cst_322 : f32 to vector<8x128xf32>
    %745 = arith.mulf %744, %743 : vector<8x128xf32>
    %cst_323 = arith.constant 5.000000e-01 : f32
    %746 = vector.broadcast %cst_323 : f32 to vector<8x128xf32>
    %747 = arith.addf %745, %746 : vector<8x128xf32>
    %748 = arith.mulf %737, %712 : vector<8x128xf32>
    %749 = arith.mulf %729, %739 : vector<8x128xf32>
    %750 = arith.addf %748, %749 : vector<8x128xf32>
    %751 = math.tanh %750 : vector<8x128xf32>
    %752 = arith.mulf %747, %751 : vector<8x128xf32>
    %c0_324 = arith.constant 0 : index
    %c0_325 = arith.constant 0 : index
    %c0_326 = arith.constant 0 : index
    %753 = vector.load %arg13[%c0_324, %c0_325, %c0_326] : memref<8x8x128xf32, #tpu.memory_space<vmem>>, vector<1x8x128xf32>
    %754 = vector.shape_cast %753 : vector<1x8x128xf32> to vector<8x128xf32>
    %755 = vector.shape_cast %752 : vector<8x128xf32> to vector<1x8x128xf32>
    tpu.vector_store %arg13[%c0_324, %c0_325, %c0_326], %755 {strides = array<i32>} : memref<8x8x128xf32, #tpu.memory_space<vmem>>, vector<1x8x128xf32>,
    %c1_327 = arith.constant 1 : index
    %c0_328 = arith.constant 0 : index
    %c0_329 = arith.constant 0 : index
    %756 = vector.load %arg12[%c1_327, %c0_328, %c0_329] : memref<8x8x512xbf16, #tpu.memory_space<vmem>>, vector<1x8x512xbf16>
    %757 = vector.shape_cast %756 : vector<1x8x512xbf16> to vector<8x512xbf16>
    %758 = arith.extf %757 : vector<8x512xbf16> to vector<8x512xf32>
    %759 = vector.broadcast %710 : vector<1x512xf32> to vector<8x512xf32>
    %760 = arith.addf %758, %759 : vector<8x512xf32>
    %761 = arith.truncf %752 : vector<8x128xf32> to vector<8x128xbf16>
    %c0_330 = arith.constant 0 : index
    %c0_331 = arith.constant 0 : index
    %762 = vector.load %arg8[%c0_330, %c0_331] : memref<128x512xbf16, #tpu.memory_space<vmem>>, vector<128x512xbf16>
    %cst_332 = arith.constant dense<0.000000e+00> : vector<8x512xf32>
    %763 = tpu.matmul %761, %762, %cst_332 {dimension_numbers = #tpu.dot_dimension_numbers<[1], [0], [0], [1], [0, 0, 1, 1], [], []>} : vector<8x128xbf16>, vector<128x512xbf16>, vector<8x512xf32> -> vector<8x512xf32>
    %764 = arith.addf %760, %763 : vector<8x512xf32>
    %765 = vector.extract_strided_slice %764 {offsets = [0, 0], sizes = [8, 128], strides = [1, 1]} : vector<8x512xf32> to vector<8x128xf32>
    %cst_333 = arith.constant 5.000000e-01 : f32
    %766 = vector.broadcast %cst_333 : f32 to vector<8x128xf32>
    %767 = arith.mulf %766, %765 : vector<8x128xf32>
    %768 = math.tanh %767 : vector<8x128xf32>
    %cst_334 = arith.constant 5.000000e-01 : f32
    %769 = vector.broadcast %cst_334 : f32 to vector<8x128xf32>
    %770 = arith.mulf %769, %768 : vector<8x128xf32>
    %cst_335 = arith.constant 5.000000e-01 : f32
    %771 = vector.broadcast %cst_335 : f32 to vector<8x128xf32>
    %772 = arith.addf %770, %771 : vector<8x128xf32>
    %773 = vector.extract_strided_slice %764 {offsets = [0, 128], sizes = [8, 128], strides = [1, 1]} : vector<8x512xf32> to vector<8x128xf32>
    %cst_336 = arith.constant 5.000000e-01 : f32
    %774 = vector.broadcast %cst_336 : f32 to vector<8x128xf32>
    %775 = arith.mulf %774, %773 : vector<8x128xf32>
    %776 = math.tanh %775 : vector<8x128xf32>
    %cst_337 = arith.constant 5.000000e-01 : f32
    %777 = vector.broadcast %cst_337 : f32 to vector<8x128xf32>
    %778 = arith.mulf %777, %776 : vector<8x128xf32>
    %cst_338 = arith.constant 5.000000e-01 : f32
    %779 = vector.broadcast %cst_338 : f32 to vector<8x128xf32>
    %780 = arith.addf %778, %779 : vector<8x128xf32>
    %781 = vector.extract_strided_slice %764 {offsets = [0, 256], sizes = [8, 128], strides = [1, 1]} : vector<8x512xf32> to vector<8x128xf32>
    %782 = math.tanh %781 : vector<8x128xf32>
    %783 = vector.extract_strided_slice %764 {offsets = [0, 384], sizes = [8, 128], strides = [1, 1]} : vector<8x512xf32> to vector<8x128xf32>
    %cst_339 = arith.constant 5.000000e-01 : f32
    %784 = vector.broadcast %cst_339 : f32 to vector<8x128xf32>
    %785 = arith.mulf %784, %783 : vector<8x128xf32>
    %786 = math.tanh %785 : vector<8x128xf32>
    %cst_340 = arith.constant 5.000000e-01 : f32
    %787 = vector.broadcast %cst_340 : f32 to vector<8x128xf32>
    %788 = arith.mulf %787, %786 : vector<8x128xf32>
    %cst_341 = arith.constant 5.000000e-01 : f32
    %789 = vector.broadcast %cst_341 : f32 to vector<8x128xf32>
    %790 = arith.addf %788, %789 : vector<8x128xf32>
    %791 = arith.mulf %780, %750 : vector<8x128xf32>
    %792 = arith.mulf %772, %782 : vector<8x128xf32>
    %793 = arith.addf %791, %792 : vector<8x128xf32>
    %794 = math.tanh %793 : vector<8x128xf32>
    %795 = arith.mulf %790, %794 : vector<8x128xf32>
    %c1_342 = arith.constant 1 : index
    %c0_343 = arith.constant 0 : index
    %c0_344 = arith.constant 0 : index
    %796 = vector.load %arg13[%c1_342, %c0_343, %c0_344] : memref<8x8x128xf32, #tpu.memory_space<vmem>>, vector<1x8x128xf32>
    %797 = vector.shape_cast %796 : vector<1x8x128xf32> to vector<8x128xf32>
    %798 = vector.shape_cast %795 : vector<8x128xf32> to vector<1x8x128xf32>
    tpu.vector_store %arg13[%c1_342, %c0_343, %c0_344], %798 {strides = array<i32>} : memref<8x8x128xf32, #tpu.memory_space<vmem>>, vector<1x8x128xf32>,
    %c2_345 = arith.constant 2 : index
    %c0_346 = arith.constant 0 : index
    %c0_347 = arith.constant 0 : index
    %799 = vector.load %arg12[%c2_345, %c0_346, %c0_347] : memref<8x8x512xbf16, #tpu.memory_space<vmem>>, vector<1x8x512xbf16>
    %800 = vector.shape_cast %799 : vector<1x8x512xbf16> to vector<8x512xbf16>
    %801 = arith.extf %800 : vector<8x512xbf16> to vector<8x512xf32>
    %802 = vector.broadcast %710 : vector<1x512xf32> to vector<8x512xf32>
    %803 = arith.addf %801, %802 : vector<8x512xf32>
    %804 = arith.truncf %795 : vector<8x128xf32> to vector<8x128xbf16>
    %c0_348 = arith.constant 0 : index
    %c0_349 = arith.constant 0 : index
    %805 = vector.load %arg8[%c0_348, %c0_349] : memref<128x512xbf16, #tpu.memory_space<vmem>>, vector<128x512xbf16>
    %cst_350 = arith.constant dense<0.000000e+00> : vector<8x512xf32>
    %806 = tpu.matmul %804, %805, %cst_350 {dimension_numbers = #tpu.dot_dimension_numbers<[1], [0], [0], [1], [0, 0, 1, 1], [], []>} : vector<8x128xbf16>, vector<128x512xbf16>, vector<8x512xf32> -> vector<8x512xf32>
    %807 = arith.addf %803, %806 : vector<8x512xf32>
    %808 = vector.extract_strided_slice %807 {offsets = [0, 0], sizes = [8, 128], strides = [1, 1]} : vector<8x512xf32> to vector<8x128xf32>
    %cst_351 = arith.constant 5.000000e-01 : f32
    %809 = vector.broadcast %cst_351 : f32 to vector<8x128xf32>
    %810 = arith.mulf %809, %808 : vector<8x128xf32>
    %811 = math.tanh %810 : vector<8x128xf32>
    %cst_352 = arith.constant 5.000000e-01 : f32
    %812 = vector.broadcast %cst_352 : f32 to vector<8x128xf32>
    %813 = arith.mulf %812, %811 : vector<8x128xf32>
    %cst_353 = arith.constant 5.000000e-01 : f32
    %814 = vector.broadcast %cst_353 : f32 to vector<8x128xf32>
    %815 = arith.addf %813, %814 : vector<8x128xf32>
    %816 = vector.extract_strided_slice %807 {offsets = [0, 128], sizes = [8, 128], strides = [1, 1]} : vector<8x512xf32> to vector<8x128xf32>
    %cst_354 = arith.constant 5.000000e-01 : f32
    %817 = vector.broadcast %cst_354 : f32 to vector<8x128xf32>
    %818 = arith.mulf %817, %816 : vector<8x128xf32>
    %819 = math.tanh %818 : vector<8x128xf32>
    %cst_355 = arith.constant 5.000000e-01 : f32
    %820 = vector.broadcast %cst_355 : f32 to vector<8x128xf32>
    %821 = arith.mulf %820, %819 : vector<8x128xf32>
    %cst_356 = arith.constant 5.000000e-01 : f32
    %822 = vector.broadcast %cst_356 : f32 to vector<8x128xf32>
    %823 = arith.addf %821, %822 : vector<8x128xf32>
    %824 = vector.extract_strided_slice %807 {offsets = [0, 256], sizes = [8, 128], strides = [1, 1]} : vector<8x512xf32> to vector<8x128xf32>
    %825 = math.tanh %824 : vector<8x128xf32>
    %826 = vector.extract_strided_slice %807 {offsets = [0, 384], sizes = [8, 128], strides = [1, 1]} : vector<8x512xf32> to vector<8x128xf32>
    %cst_357 = arith.constant 5.000000e-01 : f32
    %827 = vector.broadcast %cst_357 : f32 to vector<8x128xf32>
    %828 = arith.mulf %827, %826 : vector<8x128xf32>
    %829 = math.tanh %828 : vector<8x128xf32>
    %cst_358 = arith.constant 5.000000e-01 : f32
    %830 = vector.broadcast %cst_358 : f32 to vector<8x128xf32>
    %831 = arith.mulf %830, %829 : vector<8x128xf32>
    %cst_359 = arith.constant 5.000000e-01 : f32
    %832 = vector.broadcast %cst_359 : f32 to vector<8x128xf32>
    %833 = arith.addf %831, %832 : vector<8x128xf32>
    %834 = arith.mulf %823, %793 : vector<8x128xf32>
    %835 = arith.mulf %815, %825 : vector<8x128xf32>
    %836 = arith.addf %834, %835 : vector<8x128xf32>
    %837 = math.tanh %836 : vector<8x128xf32>
    %838 = arith.mulf %833, %837 : vector<8x128xf32>
    %c2_360 = arith.constant 2 : index
    %c0_361 = arith.constant 0 : index
    %c0_362 = arith.constant 0 : index
    %839 = vector.load %arg13[%c2_360, %c0_361, %c0_362] : memref<8x8x128xf32, #tpu.memory_space<vmem>>, vector<1x8x128xf32>
    %840 = vector.shape_cast %839 : vector<1x8x128xf32> to vector<8x128xf32>
    %841 = vector.shape_cast %838 : vector<8x128xf32> to vector<1x8x128xf32>
    tpu.vector_store %arg13[%c2_360, %c0_361, %c0_362], %841 {strides = array<i32>} : memref<8x8x128xf32, #tpu.memory_space<vmem>>, vector<1x8x128xf32>,
    %c3_363 = arith.constant 3 : index
    %c0_364 = arith.constant 0 : index
    %c0_365 = arith.constant 0 : index
    %842 = vector.load %arg12[%c3_363, %c0_364, %c0_365] : memref<8x8x512xbf16, #tpu.memory_space<vmem>>, vector<1x8x512xbf16>
    %843 = vector.shape_cast %842 : vector<1x8x512xbf16> to vector<8x512xbf16>
    %844 = arith.extf %843 : vector<8x512xbf16> to vector<8x512xf32>
    %845 = vector.broadcast %710 : vector<1x512xf32> to vector<8x512xf32>
    %846 = arith.addf %844, %845 : vector<8x512xf32>
    %847 = arith.truncf %838 : vector<8x128xf32> to vector<8x128xbf16>
    %c0_366 = arith.constant 0 : index
    %c0_367 = arith.constant 0 : index
    %848 = vector.load %arg8[%c0_366, %c0_367] : memref<128x512xbf16, #tpu.memory_space<vmem>>, vector<128x512xbf16>
    %cst_368 = arith.constant dense<0.000000e+00> : vector<8x512xf32>
    %849 = tpu.matmul %847, %848, %cst_368 {dimension_numbers = #tpu.dot_dimension_numbers<[1], [0], [0], [1], [0, 0, 1, 1], [], []>} : vector<8x128xbf16>, vector<128x512xbf16>, vector<8x512xf32> -> vector<8x512xf32>
    %850 = arith.addf %846, %849 : vector<8x512xf32>
    %851 = vector.extract_strided_slice %850 {offsets = [0, 0], sizes = [8, 128], strides = [1, 1]} : vector<8x512xf32> to vector<8x128xf32>
    %cst_369 = arith.constant 5.000000e-01 : f32
    %852 = vector.broadcast %cst_369 : f32 to vector<8x128xf32>
    %853 = arith.mulf %852, %851 : vector<8x128xf32>
    %854 = math.tanh %853 : vector<8x128xf32>
    %cst_370 = arith.constant 5.000000e-01 : f32
    %855 = vector.broadcast %cst_370 : f32 to vector<8x128xf32>
    %856 = arith.mulf %855, %854 : vector<8x128xf32>
    %cst_371 = arith.constant 5.000000e-01 : f32
    %857 = vector.broadcast %cst_371 : f32 to vector<8x128xf32>
    %858 = arith.addf %856, %857 : vector<8x128xf32>
    %859 = vector.extract_strided_slice %850 {offsets = [0, 128], sizes = [8, 128], strides = [1, 1]} : vector<8x512xf32> to vector<8x128xf32>
    %cst_372 = arith.constant 5.000000e-01 : f32
    %860 = vector.broadcast %cst_372 : f32 to vector<8x128xf32>
    %861 = arith.mulf %860, %859 : vector<8x128xf32>
    %862 = math.tanh %861 : vector<8x128xf32>
    %cst_373 = arith.constant 5.000000e-01 : f32
    %863 = vector.broadcast %cst_373 : f32 to vector<8x128xf32>
    %864 = arith.mulf %863, %862 : vector<8x128xf32>
    %cst_374 = arith.constant 5.000000e-01 : f32
    %865 = vector.broadcast %cst_374 : f32 to vector<8x128xf32>
    %866 = arith.addf %864, %865 : vector<8x128xf32>
    %867 = vector.extract_strided_slice %850 {offsets = [0, 256], sizes = [8, 128], strides = [1, 1]} : vector<8x512xf32> to vector<8x128xf32>
    %868 = math.tanh %867 : vector<8x128xf32>
    %869 = vector.extract_strided_slice %850 {offsets = [0, 384], sizes = [8, 128], strides = [1, 1]} : vector<8x512xf32> to vector<8x128xf32>
    %cst_375 = arith.constant 5.000000e-01 : f32
    %870 = vector.broadcast %cst_375 : f32 to vector<8x128xf32>
    %871 = arith.mulf %870, %869 : vector<8x128xf32>
    %872 = math.tanh %871 : vector<8x128xf32>
    %cst_376 = arith.constant 5.000000e-01 : f32
    %873 = vector.broadcast %cst_376 : f32 to vector<8x128xf32>
    %874 = arith.mulf %873, %872 : vector<8x128xf32>
    %cst_377 = arith.constant 5.000000e-01 : f32
    %875 = vector.broadcast %cst_377 : f32 to vector<8x128xf32>
    %876 = arith.addf %874, %875 : vector<8x128xf32>
    %877 = arith.mulf %866, %836 : vector<8x128xf32>
    %878 = arith.mulf %858, %868 : vector<8x128xf32>
    %879 = arith.addf %877, %878 : vector<8x128xf32>
    %880 = math.tanh %879 : vector<8x128xf32>
    %881 = arith.mulf %876, %880 : vector<8x128xf32>
    %c3_378 = arith.constant 3 : index
    %c0_379 = arith.constant 0 : index
    %c0_380 = arith.constant 0 : index
    %882 = vector.load %arg13[%c3_378, %c0_379, %c0_380] : memref<8x8x128xf32, #tpu.memory_space<vmem>>, vector<1x8x128xf32>
    %883 = vector.shape_cast %882 : vector<1x8x128xf32> to vector<8x128xf32>
    %884 = vector.shape_cast %881 : vector<8x128xf32> to vector<1x8x128xf32>
    tpu.vector_store %arg13[%c3_378, %c0_379, %c0_380], %884 {strides = array<i32>} : memref<8x8x128xf32, #tpu.memory_space<vmem>>, vector<1x8x128xf32>,
    %c4_381 = arith.constant 4 : index
    %c0_382 = arith.constant 0 : index
    %c0_383 = arith.constant 0 : index
    %885 = vector.load %arg12[%c4_381, %c0_382, %c0_383] : memref<8x8x512xbf16, #tpu.memory_space<vmem>>, vector<1x8x512xbf16>
    %886 = vector.shape_cast %885 : vector<1x8x512xbf16> to vector<8x512xbf16>
    %887 = arith.extf %886 : vector<8x512xbf16> to vector<8x512xf32>
    %888 = vector.broadcast %710 : vector<1x512xf32> to vector<8x512xf32>
    %889 = arith.addf %887, %888 : vector<8x512xf32>
    %890 = arith.truncf %881 : vector<8x128xf32> to vector<8x128xbf16>
    %c0_384 = arith.constant 0 : index
    %c0_385 = arith.constant 0 : index
    %891 = vector.load %arg8[%c0_384, %c0_385] : memref<128x512xbf16, #tpu.memory_space<vmem>>, vector<128x512xbf16>
    %cst_386 = arith.constant dense<0.000000e+00> : vector<8x512xf32>
    %892 = tpu.matmul %890, %891, %cst_386 {dimension_numbers = #tpu.dot_dimension_numbers<[1], [0], [0], [1], [0, 0, 1, 1], [], []>} : vector<8x128xbf16>, vector<128x512xbf16>, vector<8x512xf32> -> vector<8x512xf32>
    %893 = arith.addf %889, %892 : vector<8x512xf32>
    %894 = vector.extract_strided_slice %893 {offsets = [0, 0], sizes = [8, 128], strides = [1, 1]} : vector<8x512xf32> to vector<8x128xf32>
    %cst_387 = arith.constant 5.000000e-01 : f32
    %895 = vector.broadcast %cst_387 : f32 to vector<8x128xf32>
    %896 = arith.mulf %895, %894 : vector<8x128xf32>
    %897 = math.tanh %896 : vector<8x128xf32>
    %cst_388 = arith.constant 5.000000e-01 : f32
    %898 = vector.broadcast %cst_388 : f32 to vector<8x128xf32>
    %899 = arith.mulf %898, %897 : vector<8x128xf32>
    %cst_389 = arith.constant 5.000000e-01 : f32
    %900 = vector.broadcast %cst_389 : f32 to vector<8x128xf32>
    %901 = arith.addf %899, %900 : vector<8x128xf32>
    %902 = vector.extract_strided_slice %893 {offsets = [0, 128], sizes = [8, 128], strides = [1, 1]} : vector<8x512xf32> to vector<8x128xf32>
    %cst_390 = arith.constant 5.000000e-01 : f32
    %903 = vector.broadcast %cst_390 : f32 to vector<8x128xf32>
    %904 = arith.mulf %903, %902 : vector<8x128xf32>
    %905 = math.tanh %904 : vector<8x128xf32>
    %cst_391 = arith.constant 5.000000e-01 : f32
    %906 = vector.broadcast %cst_391 : f32 to vector<8x128xf32>
    %907 = arith.mulf %906, %905 : vector<8x128xf32>
    %cst_392 = arith.constant 5.000000e-01 : f32
    %908 = vector.broadcast %cst_392 : f32 to vector<8x128xf32>
    %909 = arith.addf %907, %908 : vector<8x128xf32>
    %910 = vector.extract_strided_slice %893 {offsets = [0, 256], sizes = [8, 128], strides = [1, 1]} : vector<8x512xf32> to vector<8x128xf32>
    %911 = math.tanh %910 : vector<8x128xf32>
    %912 = vector.extract_strided_slice %893 {offsets = [0, 384], sizes = [8, 128], strides = [1, 1]} : vector<8x512xf32> to vector<8x128xf32>
    %cst_393 = arith.constant 5.000000e-01 : f32
    %913 = vector.broadcast %cst_393 : f32 to vector<8x128xf32>
    %914 = arith.mulf %913, %912 : vector<8x128xf32>
    %915 = math.tanh %914 : vector<8x128xf32>
    %cst_394 = arith.constant 5.000000e-01 : f32
    %916 = vector.broadcast %cst_394 : f32 to vector<8x128xf32>
    %917 = arith.mulf %916, %915 : vector<8x128xf32>
    %cst_395 = arith.constant 5.000000e-01 : f32
    %918 = vector.broadcast %cst_395 : f32 to vector<8x128xf32>
    %919 = arith.addf %917, %918 : vector<8x128xf32>
    %920 = arith.mulf %909, %879 : vector<8x128xf32>
    %921 = arith.mulf %901, %911 : vector<8x128xf32>
    %922 = arith.addf %920, %921 : vector<8x128xf32>
    %923 = math.tanh %922 : vector<8x128xf32>
    %924 = arith.mulf %919, %923 : vector<8x128xf32>
    %c4_396 = arith.constant 4 : index
    %c0_397 = arith.constant 0 : index
    %c0_398 = arith.constant 0 : index
    %925 = vector.load %arg13[%c4_396, %c0_397, %c0_398] : memref<8x8x128xf32, #tpu.memory_space<vmem>>, vector<1x8x128xf32>
    %926 = vector.shape_cast %925 : vector<1x8x128xf32> to vector<8x128xf32>
    %927 = vector.shape_cast %924 : vector<8x128xf32> to vector<1x8x128xf32>
    tpu.vector_store %arg13[%c4_396, %c0_397, %c0_398], %927 {strides = array<i32>} : memref<8x8x128xf32, #tpu.memory_space<vmem>>, vector<1x8x128xf32>,
    %c5_399 = arith.constant 5 : index
    %c0_400 = arith.constant 0 : index
    %c0_401 = arith.constant 0 : index
    %928 = vector.load %arg12[%c5_399, %c0_400, %c0_401] : memref<8x8x512xbf16, #tpu.memory_space<vmem>>, vector<1x8x512xbf16>
    %929 = vector.shape_cast %928 : vector<1x8x512xbf16> to vector<8x512xbf16>
    %930 = arith.extf %929 : vector<8x512xbf16> to vector<8x512xf32>
    %931 = vector.broadcast %710 : vector<1x512xf32> to vector<8x512xf32>
    %932 = arith.addf %930, %931 : vector<8x512xf32>
    %933 = arith.truncf %924 : vector<8x128xf32> to vector<8x128xbf16>
    %c0_402 = arith.constant 0 : index
    %c0_403 = arith.constant 0 : index
    %934 = vector.load %arg8[%c0_402, %c0_403] : memref<128x512xbf16, #tpu.memory_space<vmem>>, vector<128x512xbf16>
    %cst_404 = arith.constant dense<0.000000e+00> : vector<8x512xf32>
    %935 = tpu.matmul %933, %934, %cst_404 {dimension_numbers = #tpu.dot_dimension_numbers<[1], [0], [0], [1], [0, 0, 1, 1], [], []>} : vector<8x128xbf16>, vector<128x512xbf16>, vector<8x512xf32> -> vector<8x512xf32>
    %936 = arith.addf %932, %935 : vector<8x512xf32>
    %937 = vector.extract_strided_slice %936 {offsets = [0, 0], sizes = [8, 128], strides = [1, 1]} : vector<8x512xf32> to vector<8x128xf32>
    %cst_405 = arith.constant 5.000000e-01 : f32
    %938 = vector.broadcast %cst_405 : f32 to vector<8x128xf32>
    %939 = arith.mulf %938, %937 : vector<8x128xf32>
    %940 = math.tanh %939 : vector<8x128xf32>
    %cst_406 = arith.constant 5.000000e-01 : f32
    %941 = vector.broadcast %cst_406 : f32 to vector<8x128xf32>
    %942 = arith.mulf %941, %940 : vector<8x128xf32>
    %cst_407 = arith.constant 5.000000e-01 : f32
    %943 = vector.broadcast %cst_407 : f32 to vector<8x128xf32>
    %944 = arith.addf %942, %943 : vector<8x128xf32>
    %945 = vector.extract_strided_slice %936 {offsets = [0, 128], sizes = [8, 128], strides = [1, 1]} : vector<8x512xf32> to vector<8x128xf32>
    %cst_408 = arith.constant 5.000000e-01 : f32
    %946 = vector.broadcast %cst_408 : f32 to vector<8x128xf32>
    %947 = arith.mulf %946, %945 : vector<8x128xf32>
    %948 = math.tanh %947 : vector<8x128xf32>
    %cst_409 = arith.constant 5.000000e-01 : f32
    %949 = vector.broadcast %cst_409 : f32 to vector<8x128xf32>
    %950 = arith.mulf %949, %948 : vector<8x128xf32>
    %cst_410 = arith.constant 5.000000e-01 : f32
    %951 = vector.broadcast %cst_410 : f32 to vector<8x128xf32>
    %952 = arith.addf %950, %951 : vector<8x128xf32>
    %953 = vector.extract_strided_slice %936 {offsets = [0, 256], sizes = [8, 128], strides = [1, 1]} : vector<8x512xf32> to vector<8x128xf32>
    %954 = math.tanh %953 : vector<8x128xf32>
    %955 = vector.extract_strided_slice %936 {offsets = [0, 384], sizes = [8, 128], strides = [1, 1]} : vector<8x512xf32> to vector<8x128xf32>
    %cst_411 = arith.constant 5.000000e-01 : f32
    %956 = vector.broadcast %cst_411 : f32 to vector<8x128xf32>
    %957 = arith.mulf %956, %955 : vector<8x128xf32>
    %958 = math.tanh %957 : vector<8x128xf32>
    %cst_412 = arith.constant 5.000000e-01 : f32
    %959 = vector.broadcast %cst_412 : f32 to vector<8x128xf32>
    %960 = arith.mulf %959, %958 : vector<8x128xf32>
    %cst_413 = arith.constant 5.000000e-01 : f32
    %961 = vector.broadcast %cst_413 : f32 to vector<8x128xf32>
    %962 = arith.addf %960, %961 : vector<8x128xf32>
    %963 = arith.mulf %952, %922 : vector<8x128xf32>
    %964 = arith.mulf %944, %954 : vector<8x128xf32>
    %965 = arith.addf %963, %964 : vector<8x128xf32>
    %966 = math.tanh %965 : vector<8x128xf32>
    %967 = arith.mulf %962, %966 : vector<8x128xf32>
    %c5_414 = arith.constant 5 : index
    %c0_415 = arith.constant 0 : index
    %c0_416 = arith.constant 0 : index
    %968 = vector.load %arg13[%c5_414, %c0_415, %c0_416] : memref<8x8x128xf32, #tpu.memory_space<vmem>>, vector<1x8x128xf32>
    %969 = vector.shape_cast %968 : vector<1x8x128xf32> to vector<8x128xf32>
    %970 = vector.shape_cast %967 : vector<8x128xf32> to vector<1x8x128xf32>
    tpu.vector_store %arg13[%c5_414, %c0_415, %c0_416], %970 {strides = array<i32>} : memref<8x8x128xf32, #tpu.memory_space<vmem>>, vector<1x8x128xf32>,
    %c6_417 = arith.constant 6 : index
    %c0_418 = arith.constant 0 : index
    %c0_419 = arith.constant 0 : index
    %971 = vector.load %arg12[%c6_417, %c0_418, %c0_419] : memref<8x8x512xbf16, #tpu.memory_space<vmem>>, vector<1x8x512xbf16>
    %972 = vector.shape_cast %971 : vector<1x8x512xbf16> to vector<8x512xbf16>
    %973 = arith.extf %972 : vector<8x512xbf16> to vector<8x512xf32>
    %974 = vector.broadcast %710 : vector<1x512xf32> to vector<8x512xf32>
    %975 = arith.addf %973, %974 : vector<8x512xf32>
    %976 = arith.truncf %967 : vector<8x128xf32> to vector<8x128xbf16>
    %c0_420 = arith.constant 0 : index
    %c0_421 = arith.constant 0 : index
    %977 = vector.load %arg8[%c0_420, %c0_421] : memref<128x512xbf16, #tpu.memory_space<vmem>>, vector<128x512xbf16>
    %cst_422 = arith.constant dense<0.000000e+00> : vector<8x512xf32>
    %978 = tpu.matmul %976, %977, %cst_422 {dimension_numbers = #tpu.dot_dimension_numbers<[1], [0], [0], [1], [0, 0, 1, 1], [], []>} : vector<8x128xbf16>, vector<128x512xbf16>, vector<8x512xf32> -> vector<8x512xf32>
    %979 = arith.addf %975, %978 : vector<8x512xf32>
    %980 = vector.extract_strided_slice %979 {offsets = [0, 0], sizes = [8, 128], strides = [1, 1]} : vector<8x512xf32> to vector<8x128xf32>
    %cst_423 = arith.constant 5.000000e-01 : f32
    %981 = vector.broadcast %cst_423 : f32 to vector<8x128xf32>
    %982 = arith.mulf %981, %980 : vector<8x128xf32>
    %983 = math.tanh %982 : vector<8x128xf32>
    %cst_424 = arith.constant 5.000000e-01 : f32
    %984 = vector.broadcast %cst_424 : f32 to vector<8x128xf32>
    %985 = arith.mulf %984, %983 : vector<8x128xf32>
    %cst_425 = arith.constant 5.000000e-01 : f32
    %986 = vector.broadcast %cst_425 : f32 to vector<8x128xf32>
    %987 = arith.addf %985, %986 : vector<8x128xf32>
    %988 = vector.extract_strided_slice %979 {offsets = [0, 128], sizes = [8, 128], strides = [1, 1]} : vector<8x512xf32> to vector<8x128xf32>
    %cst_426 = arith.constant 5.000000e-01 : f32
    %989 = vector.broadcast %cst_426 : f32 to vector<8x128xf32>
    %990 = arith.mulf %989, %988 : vector<8x128xf32>
    %991 = math.tanh %990 : vector<8x128xf32>
    %cst_427 = arith.constant 5.000000e-01 : f32
    %992 = vector.broadcast %cst_427 : f32 to vector<8x128xf32>
    %993 = arith.mulf %992, %991 : vector<8x128xf32>
    %cst_428 = arith.constant 5.000000e-01 : f32
    %994 = vector.broadcast %cst_428 : f32 to vector<8x128xf32>
    %995 = arith.addf %993, %994 : vector<8x128xf32>
    %996 = vector.extract_strided_slice %979 {offsets = [0, 256], sizes = [8, 128], strides = [1, 1]} : vector<8x512xf32> to vector<8x128xf32>
    %997 = math.tanh %996 : vector<8x128xf32>
    %998 = vector.extract_strided_slice %979 {offsets = [0, 384], sizes = [8, 128], strides = [1, 1]} : vector<8x512xf32> to vector<8x128xf32>
    %cst_429 = arith.constant 5.000000e-01 : f32
    %999 = vector.broadcast %cst_429 : f32 to vector<8x128xf32>
    %1000 = arith.mulf %999, %998 : vector<8x128xf32>
    %1001 = math.tanh %1000 : vector<8x128xf32>
    %cst_430 = arith.constant 5.000000e-01 : f32
    %1002 = vector.broadcast %cst_430 : f32 to vector<8x128xf32>
    %1003 = arith.mulf %1002, %1001 : vector<8x128xf32>
    %cst_431 = arith.constant 5.000000e-01 : f32
    %1004 = vector.broadcast %cst_431 : f32 to vector<8x128xf32>
    %1005 = arith.addf %1003, %1004 : vector<8x128xf32>
    %1006 = arith.mulf %995, %965 : vector<8x128xf32>
    %1007 = arith.mulf %987, %997 : vector<8x128xf32>
    %1008 = arith.addf %1006, %1007 : vector<8x128xf32>
    %1009 = math.tanh %1008 : vector<8x128xf32>
    %1010 = arith.mulf %1005, %1009 : vector<8x128xf32>
    %c6_432 = arith.constant 6 : index
    %c0_433 = arith.constant 0 : index
    %c0_434 = arith.constant 0 : index
    %1011 = vector.load %arg13[%c6_432, %c0_433, %c0_434] : memref<8x8x128xf32, #tpu.memory_space<vmem>>, vector<1x8x128xf32>
    %1012 = vector.shape_cast %1011 : vector<1x8x128xf32> to vector<8x128xf32>
    %1013 = vector.shape_cast %1010 : vector<8x128xf32> to vector<1x8x128xf32>
    tpu.vector_store %arg13[%c6_432, %c0_433, %c0_434], %1013 {strides = array<i32>} : memref<8x8x128xf32, #tpu.memory_space<vmem>>, vector<1x8x128xf32>,
    %c7_435 = arith.constant 7 : index
    %c0_436 = arith.constant 0 : index
    %c0_437 = arith.constant 0 : index
    %1014 = vector.load %arg12[%c7_435, %c0_436, %c0_437] : memref<8x8x512xbf16, #tpu.memory_space<vmem>>, vector<1x8x512xbf16>
    %1015 = vector.shape_cast %1014 : vector<1x8x512xbf16> to vector<8x512xbf16>
    %1016 = arith.extf %1015 : vector<8x512xbf16> to vector<8x512xf32>
    %1017 = vector.broadcast %710 : vector<1x512xf32> to vector<8x512xf32>
    %1018 = arith.addf %1016, %1017 : vector<8x512xf32>
    %1019 = arith.truncf %1010 : vector<8x128xf32> to vector<8x128xbf16>
    %c0_438 = arith.constant 0 : index
    %c0_439 = arith.constant 0 : index
    %1020 = vector.load %arg8[%c0_438, %c0_439] : memref<128x512xbf16, #tpu.memory_space<vmem>>, vector<128x512xbf16>
    %cst_440 = arith.constant dense<0.000000e+00> : vector<8x512xf32>
    %1021 = tpu.matmul %1019, %1020, %cst_440 {dimension_numbers = #tpu.dot_dimension_numbers<[1], [0], [0], [1], [0, 0, 1, 1], [], []>} : vector<8x128xbf16>, vector<128x512xbf16>, vector<8x512xf32> -> vector<8x512xf32>
    %1022 = arith.addf %1018, %1021 : vector<8x512xf32>
    %1023 = vector.extract_strided_slice %1022 {offsets = [0, 0], sizes = [8, 128], strides = [1, 1]} : vector<8x512xf32> to vector<8x128xf32>
    %cst_441 = arith.constant 5.000000e-01 : f32
    %1024 = vector.broadcast %cst_441 : f32 to vector<8x128xf32>
    %1025 = arith.mulf %1024, %1023 : vector<8x128xf32>
    %1026 = math.tanh %1025 : vector<8x128xf32>
    %cst_442 = arith.constant 5.000000e-01 : f32
    %1027 = vector.broadcast %cst_442 : f32 to vector<8x128xf32>
    %1028 = arith.mulf %1027, %1026 : vector<8x128xf32>
    %cst_443 = arith.constant 5.000000e-01 : f32
    %1029 = vector.broadcast %cst_443 : f32 to vector<8x128xf32>
    %1030 = arith.addf %1028, %1029 : vector<8x128xf32>
    %1031 = vector.extract_strided_slice %1022 {offsets = [0, 128], sizes = [8, 128], strides = [1, 1]} : vector<8x512xf32> to vector<8x128xf32>
    %cst_444 = arith.constant 5.000000e-01 : f32
    %1032 = vector.broadcast %cst_444 : f32 to vector<8x128xf32>
    %1033 = arith.mulf %1032, %1031 : vector<8x128xf32>
    %1034 = math.tanh %1033 : vector<8x128xf32>
    %cst_445 = arith.constant 5.000000e-01 : f32
    %1035 = vector.broadcast %cst_445 : f32 to vector<8x128xf32>
    %1036 = arith.mulf %1035, %1034 : vector<8x128xf32>
    %cst_446 = arith.constant 5.000000e-01 : f32
    %1037 = vector.broadcast %cst_446 : f32 to vector<8x128xf32>
    %1038 = arith.addf %1036, %1037 : vector<8x128xf32>
    %1039 = vector.extract_strided_slice %1022 {offsets = [0, 256], sizes = [8, 128], strides = [1, 1]} : vector<8x512xf32> to vector<8x128xf32>
    %1040 = math.tanh %1039 : vector<8x128xf32>
    %1041 = vector.extract_strided_slice %1022 {offsets = [0, 384], sizes = [8, 128], strides = [1, 1]} : vector<8x512xf32> to vector<8x128xf32>
    %cst_447 = arith.constant 5.000000e-01 : f32
    %1042 = vector.broadcast %cst_447 : f32 to vector<8x128xf32>
    %1043 = arith.mulf %1042, %1041 : vector<8x128xf32>
    %1044 = math.tanh %1043 : vector<8x128xf32>
    %cst_448 = arith.constant 5.000000e-01 : f32
    %1045 = vector.broadcast %cst_448 : f32 to vector<8x128xf32>
    %1046 = arith.mulf %1045, %1044 : vector<8x128xf32>
    %cst_449 = arith.constant 5.000000e-01 : f32
    %1047 = vector.broadcast %cst_449 : f32 to vector<8x128xf32>
    %1048 = arith.addf %1046, %1047 : vector<8x128xf32>
    %1049 = arith.mulf %1038, %1008 : vector<8x128xf32>
    %1050 = arith.mulf %1030, %1040 : vector<8x128xf32>
    %1051 = arith.addf %1049, %1050 : vector<8x128xf32>
    %1052 = math.tanh %1051 : vector<8x128xf32>
    %1053 = arith.mulf %1048, %1052 : vector<8x128xf32>
    %c7_450 = arith.constant 7 : index
    %c0_451 = arith.constant 0 : index
    %c0_452 = arith.constant 0 : index
    %1054 = vector.load %arg13[%c7_450, %c0_451, %c0_452] : memref<8x8x128xf32, #tpu.memory_space<vmem>>, vector<1x8x128xf32>
    %1055 = vector.shape_cast %1054 : vector<1x8x128xf32> to vector<8x128xf32>
    %1056 = vector.shape_cast %1053 : vector<8x128xf32> to vector<1x8x128xf32>
    tpu.vector_store %arg13[%c7_450, %c0_451, %c0_452], %1056 {strides = array<i32>} : memref<8x8x128xf32, #tpu.memory_space<vmem>>, vector<1x8x128xf32>,
    %c0_453 = arith.constant 0 : index
    %c0_454 = arith.constant 0 : index
    %c0_455 = arith.constant 0 : index
    %1057 = vector.load %arg13[%c0_453, %c0_454, %c0_455] : memref<8x8x128xf32, #tpu.memory_space<vmem>>, vector<8x8x128xf32>
    %cst_456 = arith.constant 0.000000e+00 : f32
    %1058 = vector.broadcast %cst_456 : f32 to vector<8x8x128xf32>
    %1059 = arith.maximumf %1057, %1058 : vector<8x8x128xf32>
    %cst_457 = arith.constant dense<0.000000e+00> : vector<8x128xf32>
    %1060 = vector.multi_reduction <add>, %1059, %cst_457 [0] : vector<8x8x128xf32> to vector<8x128xf32>
    %cst_458 = arith.constant 8.000000e+00 : f32
    %1061 = vector.broadcast %cst_458 : f32 to vector<8x128xf32>
    %1062 = arith.divf %1060, %1061 : vector<8x128xf32>
    %c0_459 = arith.constant 0 : index
    %c0_460 = arith.constant 0 : index
    %1063 = vector.load %arg10[%c0_459, %c0_460] : memref<1x128xf32, #tpu.memory_space<vmem>>, vector<1x128xf32>
    %1064 = vector.broadcast %1063 : vector<1x128xf32> to vector<8x128xf32>
    %1065 = arith.mulf %1062, %1064 : vector<8x128xf32>
    %cst_461 = arith.constant dense<0.000000e+00> : vector<8xf32>
    %1066 = vector.multi_reduction <add>, %1065, %cst_461 [1] : vector<8x128xf32> to vector<8xf32>
    %1067 = vector.shape_cast %1066 : vector<8xf32> to vector<8x1xf32>
    %c0_462 = arith.constant 0 : index
    %c0_463 = arith.constant 0 : index
    %1068 = vector.load %arg11[%c0_462, %c0_463] : memref<8x1xf32, #tpu.memory_space<vmem>>, vector<8x1xf32>
    tpu.vector_store %arg11[%c0_462, %c0_463], %1067 {strides = array<i32>} : memref<8x1xf32, #tpu.memory_space<vmem>>, vector<8x1xf32>,
    return
  }
  func.func @transform_0(%arg0: i32) -> (i32, i32, i32) {
    %c0_i32 = arith.constant 0 : i32
    %c0_i32_0 = arith.constant 0 : i32
    %c0_i32_1 = arith.constant 0 : i32
    return %c0_i32, %arg0, %c0_i32_0 : i32, i32, i32
  }
  func.func @transform_1(%arg0: i32) -> (i32, i32) {
    %c0_i32 = arith.constant 0 : i32
    %c0_i32_0 = arith.constant 0 : i32
    %c0_i32_1 = arith.constant 0 : i32
    return %c0_i32, %c0_i32_0 : i32, i32
  }
  func.func @transform_2(%arg0: i32) -> (i32, i32) {
    %c0_i32 = arith.constant 0 : i32
    %c0_i32_0 = arith.constant 0 : i32
    %c0_i32_1 = arith.constant 0 : i32
    return %c0_i32, %c0_i32_0 : i32, i32
  }
  func.func @transform_3(%arg0: i32) -> (i32, i32) {
    %c0_i32 = arith.constant 0 : i32
    %c0_i32_0 = arith.constant 0 : i32
    %c0_i32_1 = arith.constant 0 : i32
    return %c0_i32, %c0_i32_0 : i32, i32
  }
  func.func @transform_4(%arg0: i32) -> (i32, i32) {
    %c0_i32 = arith.constant 0 : i32
    %c0_i32_0 = arith.constant 0 : i32
    %c0_i32_1 = arith.constant 0 : i32
    return %c0_i32, %c0_i32_0 : i32, i32
  }
  func.func @transform_5(%arg0: i32) -> (i32, i32) {
    %c0_i32 = arith.constant 0 : i32
    %c0_i32_0 = arith.constant 0 : i32
    %c0_i32_1 = arith.constant 0 : i32
    return %c0_i32, %c0_i32_0 : i32, i32
  }
  func.func @transform_6(%arg0: i32) -> (i32, i32) {
    %c0_i32 = arith.constant 0 : i32
    %c0_i32_0 = arith.constant 0 : i32
    %c0_i32_1 = arith.constant 0 : i32
    return %c0_i32, %c0_i32_0 : i32, i32
  }
  func.func @transform_7(%arg0: i32) -> (i32, i32) {
    %c0_i32 = arith.constant 0 : i32
    %c0_i32_0 = arith.constant 0 : i32
    %c0_i32_1 = arith.constant 0 : i32
    return %c0_i32, %c0_i32_0 : i32, i32
  }
  func.func @transform_8(%arg0: i32) -> (i32, i32) {
    %c0_i32 = arith.constant 0 : i32
    %c0_i32_0 = arith.constant 0 : i32
    %c0_i32_1 = arith.constant 0 : i32
    return %c0_i32, %c0_i32_0 : i32, i32
  }
  func.func @transform_9(%arg0: i32) -> (i32, i32) {
    %c0_i32 = arith.constant 0 : i32
    %c0_i32_0 = arith.constant 0 : i32
    %c0_i32_1 = arith.constant 0 : i32
    return %c0_i32, %c0_i32_0 : i32, i32
  }
  func.func @transform_10(%arg0: i32) -> (i32, i32) {
    %c0_i32 = arith.constant 0 : i32
    %c0_i32_0 = arith.constant 0 : i32
    return %arg0, %c0_i32 : i32, i32
  }
}

</mosaic_0001>

<llo_original>
// kernel: lstm_scorer_forward.1
$region0: #{lstm_scorer_forward.1}
  #allocation0 [shape = 'u32[]', space=smem, size = 0x4, offset = 0x4, fixed_abs, tag = 'smem constant byte address 0x4 - core index']
  #allocation1 [shape = 'u32[144,128]{1,0:T(1,128)}', space=vmem, size = 0x12000, scoped, tag = 'internal scratch']
  #allocation2 [shape = 'bf16[8,8,512]{2,1,0:T(8,128)(2,1)}', space=vmem, size = 0x10000, scoped, tag = 'scratch operand']
  #allocation3 [shape = 'f32[8,8,128]{2,1,0:T(8,128)}', space=vmem, size = 0x8000, scoped, tag = 'scratch operand']
  %s0 = inlined_call_operand.vmem [shape: bf16[8,16,512], index: 0, kind: input, shape index: {}]
  %s1 = inlined_call_operand.vmem [shape: bf16[128,512], index: 1, kind: input, shape index: {}]
  %s2 = inlined_call_operand.hbm [shape: f32[1,512], index: 2, kind: input, shape index: {}]
  %s3 = inlined_call_operand.vmem [shape: bf16[128,512], index: 3, kind: input, shape index: {}]
  %s4 = inlined_call_operand.vmem [shape: bf16[128,512], index: 4, kind: input, shape index: {}]
  %s5 = inlined_call_operand.hbm [shape: f32[1,512], index: 5, kind: input, shape index: {}]
  %s6 = inlined_call_operand.hbm [shape: bf16[128,512], index: 6, kind: input, shape index: {}]
  %s7 = inlined_call_operand.hbm [shape: bf16[128,512], index: 7, kind: input, shape index: {}]
  %s8 = inlined_call_operand.hbm [shape: f32[1,512], index: 8, kind: input, shape index: {}]
  %s9 = inlined_call_operand.vmem [shape: f32[1,128], index: 9, kind: input, shape index: {}]
  %s10 = inlined_call_operand.vmem [shape: f32[16,1], index: 10, kind: output, shape index: {}]
  %s11 = sld [smem:[#allocation0]]
  $region116: #{lstm_scorer_forward.1} parent=0
    _
  %s13 = ssub.s32 1, %s11
  %s14 = scalar_select 0, %s13, %s11
  $region1: #{lstm_scorer_forward.1} parent=0
    #allocation4 [shape = 'u8[131072]{0}', space=vmem, size = 0x20000, scoped, tag = 'input window, operand 0']
    #allocation5 [shape = 'u8[2048]{0}', space=vmem, size = 0x800, scoped, tag = 'input window, operand 2, single buffered']
    #allocation6 [shape = 's32[2]{0}', space=sflag, size = 0x8, scoped, tag = 'scoped memory for lstm_scorer_forward.1']
    #allocation7 [shape = 'u8[2048]{0}', space=vmem, size = 0x800, scoped, tag = 'input window, operand 5, single buffered']
    #allocation8 [shape = 's32[1]{0}', space=sflag, size = 0x4, scoped, tag = 'scoped memory for lstm_scorer_forward.1']
    #allocation9 [shape = 'u8[131072]{0}', space=vmem, size = 0x20000, scoped, tag = 'input window, operand 6, single buffered']
    #allocation10 [shape = 'u8[131072]{0}', space=vmem, size = 0x20000, scoped, tag = 'input window, operand 7, single buffered']
    #allocation11 [shape = 's32[1]{0}', space=sflag, size = 0x4, scoped, tag = 'scoped memory for lstm_scorer_forward.1']
    #allocation12 [shape = 'u8[2048]{0}', space=vmem, size = 0x800, scoped, tag = 'input window, operand 8, single buffered']
    %15 = vsyncpa [#allocation6], 0
    %16 = vsyncpa [#allocation8], 0
    %17 = vsyncpa [#allocation11], 0
    loop: start=0, step=1, limit=4
    $region2: #{lstm_scorer_forward.1} parent=1 // loop_pre_header
      _
    $region3: #{lstm_scorer_forward.1} parent=1 // loop_header
      %s19 = sphi 0, %s23
      %p20 = scmp.ge.s32.totalorder %s19, 4
      %s29 = sphi 0, %s31
      %s32 = sphi 0, %s29
      %s33 = sphi 0, %s32
      %s49 = sphi 0, %s33
      %s53 = sphi 0, %s53
      %s55 = sphi 0, %s53
      %s56 = sphi 0, %s55
      %s70 = sphi 0, %s56
      %s74 = sphi 0, %s74
      %s76 = sphi 0, %s74
      %s77 = sphi 0, %s76
      %s91 = sphi 0, %s77
      %s95 = sphi 0, %s95
      %s97 = sphi 0, %s95
      %s98 = sphi 0, %s97
      %s112 = sphi 0, %s98
      %s116 = sphi 0, %s116
      %s118 = sphi 0, %s116
      %s119 = sphi 0, %s118
      %s133 = sphi 0, %s119
      %s137 = sphi 0, %s137
      %s139 = sphi 0, %s137
      %s140 = sphi 0, %s139
      %s154 = sphi 0, %s140
      %s158 = sphi 0, %s158
      %s160 = sphi 0, %s158
      %s161 = sphi 0, %s160
      %s175 = sphi 0, %s161
      %s179 = sphi 0, %s179
      %s181 = sphi 0, %s179
      %s182 = sphi 0, %s181
      %s196 = sphi 0, %s182
      %s200 = sphi 0, %s200
      %s202 = sphi 0, %s200
      %s203 = sphi 0, %s202
      %s217 = sphi 0, %s203
      %s221 = sphi 0, %s221
      %s223 = sphi 0, %s221
      %s224 = sphi 0, %s223
      %s238 = sphi 0, %s224
      %s244 = sphi 0, %s246
      %s247 = sphi 0, %s244
      %s248 = sphi 0, %s247
      %s264 = sphi 0, %s248
    $region4: #{lstm_scorer_forward.1} parent=1 // loop_header_branch
      %22 = sbr.rel (%p20) target = $region8
    $region5: #{lstm_scorer_forward.1} parent=1 // loop_body
      %s24 = ssub.s32 %s19, 1
      %s25 = ssub.s32 %s19, 2
      %s26 = sadd.s32 %s19, 1
      %s27 = ssub.s32 %s19, %s26
      %p28 = scmp.eq.s32.totalorder %s27, 0
      %s30 = sadd.s32 %s29, 1
      %s31 = scalar_select %p28, %s29, %s30
      %p34 = pneg %p28
      %p35 = scmp.eq.s32.totalorder %s19, 1
      %p36 = por %p34, %p35
      %p37 = scmp.ne.s32.totalorder %s29, %s32
      %p38 = scmp.eq.s32.totalorder %s19, 0
      %p39 = por %p37, %p38
      %p40 = scmp.ne.s32.totalorder %s29, %s32
      %p41 = scmp.eq.s32.totalorder %s24, 1
      %p42 = por %p40, %p41
      %p43 = scmp.ne.s32.totalorder %s32, %s33
      %p44 = scmp.eq.s32.totalorder %s24, 0
      %p45 = por %p43, %p44
      %p46 = scmp.ne.s32.totalorder %s32, %s33
      %p47 = scmp.eq.s32.totalorder %s25, 1
      %p48 = por %p46, %p47
      %p50 = scmp.ne.s32.totalorder %s33, %s49
      %p51 = scmp.eq.s32.totalorder %s25, 0
      %p52 = por %p50, %p51
      %s54 = sadd.s32 %s53, 1
      %p57 = scmp.eq.s32.totalorder %s19, 1
      %p58 = scmp.ne.s32.totalorder %s53, %s55
      %p59 = scmp.eq.s32.totalorder %s19, 0
      %p60 = por %p58, %p59
      %p61 = scmp.ne.s32.totalorder %s53, %s55
      %p62 = scmp.eq.s32.totalorder %s24, 1
      %p63 = por %p61, %p62
      %p64 = scmp.ne.s32.totalorder %s55, %s56
      %p65 = scmp.eq.s32.totalorder %s24, 0
      %p66 = por %p64, %p65
      %p67 = scmp.ne.s32.totalorder %s55, %s56
      %p68 = scmp.eq.s32.totalorder %s25, 1
      %p69 = por %p67, %p68
      %p71 = scmp.ne.s32.totalorder %s56, %s70
      %p72 = scmp.eq.s32.totalorder %s25, 0
      %p73 = por %p71, %p72
      %s75 = sadd.s32 %s74, 1
      %p78 = scmp.eq.s32.totalorder %s19, 1
      %p79 = scmp.ne.s32.totalorder %s74, %s76
      %p80 = scmp.eq.s32.totalorder %s19, 0
      %p81 = por %p79, %p80
      %p82 = scmp.ne.s32.totalorder %s74, %s76
      %p83 = scmp.eq.s32.totalorder %s24, 1
      %p84 = por %p82, %p83
      %p85 = scmp.ne.s32.totalorder %s76, %s77
      %p86 = scmp.eq.s32.totalorder %s24, 0
      %p87 = por %p85, %p86
      %p88 = scmp.ne.s32.totalorder %s76, %s77
      %p89 = scmp.eq.s32.totalorder %s25, 1
      %p90 = por %p88, %p89
      %p92 = scmp.ne.s32.totalorder %s77, %s91
      %p93 = scmp.eq.s32.totalorder %s25, 0
      %p94 = por %p92, %p93
      %s96 = sadd.s32 %s95, 1
      %p99 = scmp.eq.s32.totalorder %s19, 1
      %p100 = scmp.ne.s32.totalorder %s95, %s97
      %p101 = scmp.eq.s32.totalorder %s19, 0
      %p102 = por %p100, %p101
      %p103 = scmp.ne.s32.totalorder %s95, %s97
      %p104 = scmp.eq.s32.totalorder %s24, 1
      %p105 = por %p103, %p104
      %p106 = scmp.ne.s32.totalorder %s97, %s98
      %p107 = scmp.eq.s32.totalorder %s24, 0
      %p108 = por %p106, %p107
      %p109 = scmp.ne.s32.totalorder %s97, %s98
      %p110 = scmp.eq.s32.totalorder %s25, 1
      %p111 = por %p109, %p110
      %p113 = scmp.ne.s32.totalorder %s98, %s112
      %p114 = scmp.eq.s32.totalorder %s25, 0
      %p115 = por %p113, %p114
      %s117 = sadd.s32 %s116, 1
      %p120 = scmp.eq.s32.totalorder %s19, 1
      %p121 = scmp.ne.s32.totalorder %s116, %s118
      %p122 = scmp.eq.s32.totalorder %s19, 0
      %p123 = por %p121, %p122
      %p124 = scmp.ne.s32.totalorder %s116, %s118
      %p125 = scmp.eq.s32.totalorder %s24, 1
      %p126 = por %p124, %p125
      %p127 = scmp.ne.s32.totalorder %s118, %s119
      %p128 = scmp.eq.s32.totalorder %s24, 0
      %p129 = por %p127, %p128
      %p130 = scmp.ne.s32.totalorder %s118, %s119
      %p131 = scmp.eq.s32.totalorder %s25, 1
      %p132 = por %p130, %p131
      %p134 = scmp.ne.s32.totalorder %s119, %s133
      %p135 = scmp.eq.s32.totalorder %s25, 0
      %p136 = por %p134, %p135
      %s138 = sadd.s32 %s137, 1
      %p141 = scmp.eq.s32.totalorder %s19, 1
      %p142 = scmp.ne.s32.totalorder %s137, %s139
      %p143 = scmp.eq.s32.totalorder %s19, 0
      %p144 = por %p142, %p143
      %p145 = scmp.ne.s32.totalorder %s137, %s139
      %p146 = scmp.eq.s32.totalorder %s24, 1
      %p147 = por %p145, %p146
      %p148 = scmp.ne.s32.totalorder %s139, %s140
      %p149 = scmp.eq.s32.totalorder %s24, 0
      %p150 = por %p148, %p149
      %p151 = scmp.ne.s32.totalorder %s139, %s140
      %p152 = scmp.eq.s32.totalorder %s25, 1
      %p153 = por %p151, %p152
      %p155 = scmp.ne.s32.totalorder %s140, %s154
      %p156 = scmp.eq.s32.totalorder %s25, 0
      %p157 = por %p155, %p156
      %s159 = sadd.s32 %s158, 1
      %p162 = scmp.eq.s32.totalorder %s19, 1
      %p163 = scmp.ne.s32.totalorder %s158, %s160
      %p164 = scmp.eq.s32.totalorder %s19, 0
      %p165 = por %p163, %p164
      %p166 = scmp.ne.s32.totalorder %s158, %s160
      %p167 = scmp.eq.s32.totalorder %s24, 1
      %p168 = por %p166, %p167
      %p169 = scmp.ne.s32.totalorder %s160, %s161
      %p170 = scmp.eq.s32.totalorder %s24, 0
      %p171 = por %p169, %p170
      %p172 = scmp.ne.s32.totalorder %s160, %s161
      %p173 = scmp.eq.s32.totalorder %s25, 1
      %p174 = por %p172, %p173
      %p176 = scmp.ne.s32.totalorder %s161, %s175
      %p177 = scmp.eq.s32.totalorder %s25, 0
      %p178 = por %p176, %p177
      %s180 = sadd.s32 %s179, 1
      %p183 = scmp.eq.s32.totalorder %s19, 1
      %p184 = scmp.ne.s32.totalorder %s179, %s181
      %p185 = scmp.eq.s32.totalorder %s19, 0
      %p186 = por %p184, %p185
      %p187 = scmp.ne.s32.totalorder %s179, %s181
      %p188 = scmp.eq.s32.totalorder %s24, 1
      %p189 = por %p187, %p188
      %p190 = scmp.ne.s32.totalorder %s181, %s182
      %p191 = scmp.eq.s32.totalorder %s24, 0
      %p192 = por %p190, %p191
      %p193 = scmp.ne.s32.totalorder %s181, %s182
      %p194 = scmp.eq.s32.totalorder %s25, 1
      %p195 = por %p193, %p194
      %p197 = scmp.ne.s32.totalorder %s182, %s196
      %p198 = scmp.eq.s32.totalorder %s25, 0
      %p199 = por %p197, %p198
      %s201 = sadd.s32 %s200, 1
      %p204 = scmp.eq.s32.totalorder %s19, 1
      %p205 = scmp.ne.s32.totalorder %s200, %s202
      %p206 = scmp.eq.s32.totalorder %s19, 0
      %p207 = por %p205, %p206
      %p208 = scmp.ne.s32.totalorder %s200, %s202
      %p209 = scmp.eq.s32.totalorder %s24, 1
      %p210 = por %p208, %p209
      %p211 = scmp.ne.s32.totalorder %s202, %s203
      %p212 = scmp.eq.s32.totalorder %s24, 0
      %p213 = por %p211, %p212
      %p214 = scmp.ne.s32.totalorder %s202, %s203
      %p215 = scmp.eq.s32.totalorder %s25, 1
      %p216 = por %p214, %p215
      %p218 = scmp.ne.s32.totalorder %s203, %s217
      %p219 = scmp.eq.s32.totalorder %s25, 0
      %p220 = por %p218, %p219
      %s222 = sadd.s32 %s221, 1
      %p225 = scmp.eq.s32.totalorder %s19, 1
      %p226 = scmp.ne.s32.totalorder %s221, %s223
      %p227 = scmp.eq.s32.totalorder %s19, 0
      %p228 = por %p226, %p227
      %p229 = scmp.ne.s32.totalorder %s221, %s223
      %p230 = scmp.eq.s32.totalorder %s24, 1
      %p231 = por %p229, %p230
      %p232 = scmp.ne.s32.totalorder %s223, %s224
      %p233 = scmp.eq.s32.totalorder %s24, 0
      %p234 = por %p232, %p233
      %p235 = scmp.ne.s32.totalorder %s223, %s224
      %p236 = scmp.eq.s32.totalorder %s25, 1
      %p237 = por %p235, %p236
      %p239 = scmp.ne.s32.totalorder %s224, %s238
      %p240 = scmp.eq.s32.totalorder %s25, 0
      %p241 = por %p239, %p240
      %s242 = ssub.s32 %s19, %s26
      %p243 = scmp.eq.s32.totalorder %s242, 0
      %s245 = sadd.s32 %s244, 1
      %s246 = scalar_select %p243, %s244, %s245
      %p249 = pneg %p243
      %p250 = scmp.eq.s32.totalorder %s19, 1
      %p251 = por %p249, %p250
      %p252 = scmp.ne.s32.totalorder %s244, %s247
      %p253 = scmp.eq.s32.totalorder %s19, 0
      %p254 = por %p252, %p253
      %p255 = scmp.ne.s32.totalorder %s244, %s247
      %p256 = scmp.eq.s32.totalorder %s24, 1
      %p257 = por %p255, %p256
      %p258 = scmp.ne.s32.totalorder %s247, %s248
      %p259 = scmp.eq.s32.totalorder %s24, 0
      %p260 = por %p258, %p259
      %p261 = scmp.ne.s32.totalorder %s247, %s248
      %p262 = scmp.eq.s32.totalorder %s25, 1
      %p263 = por %p261, %p262
      %p265 = scmp.ne.s32.totalorder %s248, %s264
      %p266 = scmp.eq.s32.totalorder %s25, 0
      %p267 = por %p265, %p266
      %p268 = scmp.le.s32.totalorder 1, %s19
      %p269 = scmp.lt.s32.totalorder %s19, 3
      %p270 = pnand %p268, %p269
      %p271 = pneg %p270
      // Predicated region
      $region9: #{lstm_scorer_forward.1} parent=5 // pred_check
        _
      $region10: #{lstm_scorer_forward.1} parent=5 // pred_check_branch
        %273 = sbr.rel (%p270) target = $region12
      $region11: #{lstm_scorer_forward.1} parent=5 // pred_region
        %s274 = ssub.s32 %s19, 1
        // Predicated region
        $region13: #{lstm_scorer_forward.1} parent=11 // pred_check
          %p275 = pneg %p66
        $region14: #{lstm_scorer_forward.1} parent=11 // pred_check_branch
          %277 = sbr.rel (%p275) target = $region16
        $region15: #{lstm_scorer_forward.1} parent=11 // pred_region
          _
        $region16: #{lstm_scorer_forward.1} parent=11 // pred_fallthru
          _
        // Predicated region
        $region17: #{lstm_scorer_forward.1} parent=11 // pred_check
          %p278 = pneg %p87
        $region18: #{lstm_scorer_forward.1} parent=11 // pred_check_branch
          %280 = sbr.rel (%p278) target = $region20
        $region19: #{lstm_scorer_forward.1} parent=11 // pred_region
          %s282 = ssub.s32 64, 64
          %283 = vsyncadd [#allocation6], %s282
          %s285 = sshll.u32 [#allocation5], 4
          %s286 = int_to_ptr.vmem [resolvable:$true] %s285
          %288 = dma.hbm_to_vmem [thread:$0]  %s2, 64, %s286, [#allocation6]
        $region20: #{lstm_scorer_forward.1} parent=11 // pred_fallthru
          _
        // Predicated region
        $region21: #{lstm_scorer_forward.1} parent=11 // pred_check
          %p289 = pneg %p108
        $region22: #{lstm_scorer_forward.1} parent=11 // pred_check_branch
          %291 = sbr.rel (%p289) target = $region24
        $region23: #{lstm_scorer_forward.1} parent=11 // pred_region
          _
        $region24: #{lstm_scorer_forward.1} parent=11 // pred_fallthru
          _
        // Predicated region
        $region25: #{lstm_scorer_forward.1} parent=11 // pred_check
          %p292 = pneg %p129
        $region26: #{lstm_scorer_forward.1} parent=11 // pred_check_branch
          %294 = sbr.rel (%p292) target = $region28
        $region27: #{lstm_scorer_forward.1} parent=11 // pred_region
          _
        $region28: #{lstm_scorer_forward.1} parent=11 // pred_fallthru
          _
        // Predicated region
        $region29: #{lstm_scorer_forward.1} parent=11 // pred_check
          %p295 = pneg %p150
        $region30: #{lstm_scorer_forward.1} parent=11 // pred_check_branch
          %297 = sbr.rel (%p295) target = $region32
        $region31: #{lstm_scorer_forward.1} parent=11 // pred_region
          %s299 = ssub.s32 64, 64
          %300 = vsyncadd [#allocation8], %s299
          %s302 = sshll.u32 [#allocation7], 4
          %s303 = int_to_ptr.vmem [resolvable:$true] %s302
          %305 = dma.hbm_to_vmem [thread:$0]  %s5, 64, %s303, [#allocation8]
        $region32: #{lstm_scorer_forward.1} parent=11 // pred_fallthru
          _
        // Predicated region
        $region33: #{lstm_scorer_forward.1} parent=11 // pred_check
          %p306 = pneg %p171
        $region34: #{lstm_scorer_forward.1} parent=11 // pred_check_branch
          %308 = sbr.rel (%p306) target = $region36
        $region35: #{lstm_scorer_forward.1} parent=11 // pred_region
          %s310 = ssub.s32 4096, 4096
          %311 = vsyncadd [#allocation8], %s310
          %s312 = sshll.u32 [#allocation9], 4
          %s313 = int_to_ptr.vmem [resolvable:$true] %s312
          %318 = dma.hbm_to_vmem [thread:$0]  %s6, 4096, %s313, [#allocation8], 256, 256, 16
        $region36: #{lstm_scorer_forward.1} parent=11 // pred_fallthru
          _
        // Predicated region
        $region37: #{lstm_scorer_forward.1} parent=11 // pred_check
          %p319 = pneg %p192
        $region38: #{lstm_scorer_forward.1} parent=11 // pred_check_branch
          %321 = sbr.rel (%p319) target = $region40
        $region39: #{lstm_scorer_forward.1} parent=11 // pred_region
          %s323 = ssub.s32 4096, 4096
          %324 = vsyncadd [#allocation11], %s323
          %s325 = sshll.u32 [#allocation10], 4
          %s326 = int_to_ptr.vmem [resolvable:$true] %s325
          %331 = dma.hbm_to_vmem [thread:$0]  %s7, 4096, %s326, [#allocation11], 256, 256, 16
        $region40: #{lstm_scorer_forward.1} parent=11 // pred_fallthru
          _
        // Predicated region
        $region41: #{lstm_scorer_forward.1} parent=11 // pred_check
          %p332 = pneg %p213
        $region42: #{lstm_scorer_forward.1} parent=11 // pred_check_branch
          %334 = sbr.rel (%p332) target = $region44
        $region43: #{lstm_scorer_forward.1} parent=11 // pred_region
          %s336 = ssub.s32 64, 64
          %337 = vsyncadd [#allocation11], %s336
          %s339 = sshll.u32 [#allocation12], 4
          %s340 = int_to_ptr.vmem [resolvable:$true] %s339
          %342 = dma.hbm_to_vmem [thread:$0]  %s8, 64, %s340, [#allocation11]
        $region44: #{lstm_scorer_forward.1} parent=11 // pred_fallthru
          _
        // Predicated region
        $region45: #{lstm_scorer_forward.1} parent=11 // pred_check
          %p343 = pneg %p234
        $region46: #{lstm_scorer_forward.1} parent=11 // pred_check_branch
          %345 = sbr.rel (%p343) target = $region48
        $region47: #{lstm_scorer_forward.1} parent=11 // pred_region
          _
        $region48: #{lstm_scorer_forward.1} parent=11 // pred_fallthru
          _
      $region12: #{lstm_scorer_forward.1} parent=5 // pred_fallthru
        _
      %p346 = scmp.lt.s32.totalorder %s19, 2
      // Predicated region
      $region49: #{lstm_scorer_forward.1} parent=5 // pred_check
        %p347 = pneg %p346
      $region50: #{lstm_scorer_forward.1} parent=5 // pred_check_branch
        %349 = sbr.rel (%p347) target = $region52
      $region51: #{lstm_scorer_forward.1} parent=5 // pred_region
        // Predicated region
        $region53: #{lstm_scorer_forward.1} parent=51 // pred_check
          %p350 = pneg %p39
        $region54: #{lstm_scorer_forward.1} parent=51 // pred_check_branch
          %352 = sbr.rel (%p350) target = $region56
        $region55: #{lstm_scorer_forward.1} parent=51 // pred_region
          %s353 = sand.u32 %s29, 1
          %s354 = sand.u32 %s29, 1
          %s355 = smul.addr %s354, 128
          %s356 = scalar_lea.vmem [#allocation4], %s355
          %s357 = smul.addr %s19, 4
          %s358 = smul.addr %s357, 4
          %s359 = scalar_lea.vmem %s0, %s358
          // Predicated region
          $region57: #{lstm_scorer_forward.1} parent=55 // pred_check
            _
          $region58: #{lstm_scorer_forward.1} parent=55 // pred_check_branch
            %361 = sbr.rel (0) target = $region60
          $region59: #{lstm_scorer_forward.1} parent=55 // pred_region
            // Predicated region
            $region61: #{lstm_scorer_forward.1} parent=59 // pred_check
              _
            $region62: #{lstm_scorer_forward.1} parent=59 // pred_check_branch
              %363 = sbr.rel (0) target = $region64
            $region63: #{lstm_scorer_forward.1} parent=59 // pred_region
              loop: start=0, step=1, limit=1
              $region65: #{lstm_scorer_forward.1} parent=63 // loop_pre_header
                _
              $region66: #{lstm_scorer_forward.1} parent=63 // loop_header
                %s365 = sphi 0, %s369
                %p366 = scmp.ge.s32.totalorder %s365, 1
                %s370 = sphi %s359, %s359
                %s371 = sphi %s356, %s356
              $region67: #{lstm_scorer_forward.1} parent=63 // loop_header_branch
                %368 = sbr.rel (%p366) target = $region71
              $region68: #{lstm_scorer_forward.1} parent=63 // loop_body
                %v372 = vld [vmem:[%s370] sm:$0xff]
                %373 = vst [vmem:[%s371] sm:$0xff] %v372
                %v374 = vld [vmem:[%s370 + $0x8] sm:$0xff]
                %375 = vst [vmem:[%s371 + $0x8] sm:$0xff] %v374
                %v376 = vld [vmem:[%s370 + $0x20] sm:$0xff]
                %377 = vst [vmem:[%s371 + $0x10] sm:$0xff] %v376
                %v378 = vld [vmem:[%s370 + $0x28] sm:$0xff]
                %379 = vst [vmem:[%s371 + $0x18] sm:$0xff] %v378
                %v380 = vld [vmem:[%s370 + $0x40] sm:$0xff]
                %381 = vst [vmem:[%s371 + $0x20] sm:$0xff] %v380
                %v382 = vld [vmem:[%s370 + $0x48] sm:$0xff]
                %383 = vst [vmem:[%s371 + $0x28] sm:$0xff] %v382
                %v384 = vld [vmem:[%s370 + $0x60] sm:$0xff]
                %385 = vst [vmem:[%s371 + $0x30] sm:$0xff] %v384
                %v386 = vld [vmem:[%s370 + $0x68] sm:$0xff]
                %387 = vst [vmem:[%s371 + $0x38] sm:$0xff] %v386
                %v388 = vld [vmem:[%s370 + $0x80] sm:$0xff]
                %389 = vst [vmem:[%s371 + $0x40] sm:$0xff] %v388
                %v390 = vld [vmem:[%s370 + $0x88] sm:$0xff]
                %391 = vst [vmem:[%s371 + $0x48] sm:$0xff] %v390
                %v392 = vld [vmem:[%s370 + $0xa0] sm:$0xff]
                %393 = vst [vmem:[%s371 + $0x50] sm:$0xff] %v392
                %v394 = vld [vmem:[%s370 + $0xa8] sm:$0xff]
                %395 = vst [vmem:[%s371 + $0x58] sm:$0xff] %v394
                %v396 = vld [vmem:[%s370 + $0xc0] sm:$0xff]
                %397 = vst [vmem:[%s371 + $0x60] sm:$0xff] %v396
                %v398 = vld [vmem:[%s370 + $0xc8] sm:$0xff]
                %399 = vst [vmem:[%s371 + $0x68] sm:$0xff] %v398
                %v400 = vld [vmem:[%s370 + $0xe0] sm:$0xff]
                %401 = vst [vmem:[%s371 + $0x70] sm:$0xff] %v400
                %v402 = vld [vmem:[%s370 + $0xe8] sm:$0xff]
                %403 = vst [vmem:[%s371 + $0x78] sm:$0xff] %v402
              $region69: #{lstm_scorer_forward.1} parent=63 // loop_footer
                %s369 = sadd.s32 1, %s365
              $region70: #{lstm_scorer_forward.1} parent=63 // loop_footer_branch
                %364 = sbr.rel target = $region66
              $region71: #{lstm_scorer_forward.1} parent=63 // loop_exit
                _
            $region64: #{lstm_scorer_forward.1} parent=59 // pred_fallthru
              _
            // Predicated region
            $region72: #{lstm_scorer_forward.1} parent=59 // pred_check
              _
            $region73: #{lstm_scorer_forward.1} parent=59 // pred_check_branch
              %405 = sbr.rel target = $region75
            $region74: #{lstm_scorer_forward.1} parent=59 // pred_region
              _
            $region75: #{lstm_scorer_forward.1} parent=59 // pred_fallthru
              _
          $region60: #{lstm_scorer_forward.1} parent=55 // pred_fallthru
            _
          %406 = vnop
        $region56: #{lstm_scorer_forward.1} parent=51 // pred_fallthru
          _
      $region52: #{lstm_scorer_forward.1} parent=5 // pred_fallthru
        _
      %p407 = scmp.le.s32.totalorder 1, %s19
      %p408 = scmp.lt.s32.totalorder %s19, 3
      %p409 = pnand %p407, %p408
      %p410 = pneg %p409
      // Predicated region
      $region76: #{lstm_scorer_forward.1} parent=5 // pred_check
        _
      $region77: #{lstm_scorer_forward.1} parent=5 // pred_check_branch
        %412 = sbr.rel (%p409) target = $region79
      $region78: #{lstm_scorer_forward.1} parent=5 // pred_region
        %s413 = ssub.s32 %s19, 1
        %s414 = sand.u32 %s32, 1
        %s415 = sand.u32 %s32, 1
        %s416 = smul.addr %s415, 128
        %s417 = scalar_lea.vmem [#allocation4], %s416
        // Predicated region
        $region80: #{lstm_scorer_forward.1} parent=78 // pred_check
          %p418 = pneg %p45
        $region81: #{lstm_scorer_forward.1} parent=78 // pred_check_branch
          %420 = sbr.rel (%p418) target = $region83
        $region82: #{lstm_scorer_forward.1} parent=78 // pred_region
          _
        $region83: #{lstm_scorer_forward.1} parent=78 // pred_fallthru
          _
        // Predicated region
        $region84: #{lstm_scorer_forward.1} parent=78 // pred_check
          %p421 = pneg %p87
        $region85: #{lstm_scorer_forward.1} parent=78 // pred_check_branch
          %423 = sbr.rel (%p421) target = $region87
        $region86: #{lstm_scorer_forward.1} parent=78 // pred_region
          %424 = dma.done [#allocation6], 64
        $region87: #{lstm_scorer_forward.1} parent=78 // pred_fallthru
          _
        // Predicated region
        $region88: #{lstm_scorer_forward.1} parent=78 // pred_check
          %p425 = pneg %p150
        $region89: #{lstm_scorer_forward.1} parent=78 // pred_check_branch
          %427 = sbr.rel (%p425) target = $region91
        $region90: #{lstm_scorer_forward.1} parent=78 // pred_region
          %428 = dma.done [#allocation8], 64
        $region91: #{lstm_scorer_forward.1} parent=78 // pred_fallthru
          _
        // Predicated region
        $region92: #{lstm_scorer_forward.1} parent=78 // pred_check
          %p429 = pneg %p171
        $region93: #{lstm_scorer_forward.1} parent=78 // pred_check_branch
          %431 = sbr.rel (%p429) target = $region95
        $region94: #{lstm_scorer_forward.1} parent=78 // pred_region
          %432 = dma.done [#allocation8], 4096
        $region95: #{lstm_scorer_forward.1} parent=78 // pred_fallthru
          _
        // Predicated region
        $region96: #{lstm_scorer_forward.1} parent=78 // pred_check
          %p433 = pneg %p192
        $region97: #{lstm_scorer_forward.1} parent=78 // pred_check_branch
          %435 = sbr.rel (%p433) target = $region99
        $region98: #{lstm_scorer_forward.1} parent=78 // pred_region
          %436 = dma.done [#allocation11], 4096
        $region99: #{lstm_scorer_forward.1} parent=78 // pred_fallthru
          _
        // Predicated region
        $region100: #{lstm_scorer_forward.1} parent=78 // pred_check
          %p437 = pneg %p213
        $region101: #{lstm_scorer_forward.1} parent=78 // pred_check_branch
          %439 = sbr.rel (%p437) target = $region103
        $region102: #{lstm_scorer_forward.1} parent=78 // pred_region
          %440 = dma.done [#allocation11], 64
        $region103: #{lstm_scorer_forward.1} parent=78 // pred_fallthru
          _
        %s441 = sand.u32 %s32, 1
        %s442 = sand.u32 %s32, 1
        %s443 = smul.addr %s442, 128
        %s444 = scalar_lea.vmem [#allocation4], %s443
        %p445 = pneg %p45
        %p446 = pneg %p42
        %p447 = pneg %p66
        %p448 = pneg %p63
        %p449 = pneg %p87
        %p450 = pneg %p84
        %p451 = pneg %p108
        %p452 = pneg %p105
        %p453 = pneg %p129
        %p454 = pneg %p126
        %p455 = pneg %p150
        %p456 = pneg %p147
        %p457 = pneg %p171
        %p458 = pneg %p168
        %p459 = pneg %p192
        %p460 = pneg %p189
        %p461 = pneg %p213
        %p462 = pneg %p210
        %p463 = pneg %p234
        %p464 = pneg %p231
        %p465 = pneg %p260
        %p466 = pneg %p257
        %p467 = scmp.lt.s32.totalorder %s24, 1
        %s468 = scalar_select %p467, %s24, 1
        %s469 = smul.addr %s468, 8
        %s470 = scalar_lea.vmem %s10, %s469
        %p471 = scmp.lt.s32.totalorder %s24, 1
        %s472 = scalar_select %p471, %s24, 1
        %s473 = smul.addr %s472, 8
        %s474 = scalar_lea.vmem %s10, %s473
        %v476 = vld [vmem:[#allocation5] sm:$0xf]
        %v477 = vld [vmem:[%s417] sm:$0xff]
        %v478 = vld [vmem:[%s417 + $0x8] sm:$0xff]
        %v479 = vunpack.c.l.bf16 %v477
        %v480 = vunpack.c.h.bf16 %v477
        %v481 = vunpack.c.l.bf16 %v478
        %v482 = vunpack.c.h.bf16 %v478
        %v484 = vlaneseq
        %v485 = vshrl.u32 %v484, 7
        %v486 = vsub.s32 0, %v485
        %v487 = vrot.slane %v476, %v486
        %v488 = vlaneseq
        %v489 = vshrl.u32 %v488, 7
        %v490 = vsub.s32 1, %v489
        %v491 = vrot.slane %v476, %v490
        %v492 = vlaneseq
        %v493 = vshrl.u32 %v492, 7
        %v494 = vsub.s32 2, %v493
        %v495 = vrot.slane %v476, %v494
        %v496 = vlaneseq
        %v497 = vshrl.u32 %v496, 7
        %v498 = vsub.s32 3, %v497
        %v499 = vrot.slane %v476, %v498
        %v504 = vadd.f32 %v479, %v487
        %v505 = vadd.f32 %v480, %v491
        %v506 = vadd.f32 %v481, %v495
        %v507 = vadd.f32 %v482, %v499
        %v508 = vld [vmem:[%s1] sm:$0xff]
        %v509 = vld [vmem:[%s1 + $0x8] sm:$0xff]
        %v510 = vld [vmem:[%s1 + $0x10] sm:$0xff]
        %v511 = vld [vmem:[%s1 + $0x18] sm:$0xff]
        %v512 = vld [vmem:[%s1 + $0x20] sm:$0xff]
        %v513 = vld [vmem:[%s1 + $0x28] sm:$0xff]
        %v514 = vld [vmem:[%s1 + $0x30] sm:$0xff]
        %v515 = vld [vmem:[%s1 + $0x38] sm:$0xff]
        %v516 = vld [vmem:[%s1 + $0x40] sm:$0xff]
        %v517 = vld [vmem:[%s1 + $0x48] sm:$0xff]
        %v518 = vld [vmem:[%s1 + $0x50] sm:$0xff]
        %v519 = vld [vmem:[%s1 + $0x58] sm:$0xff]
        %v520 = vld [vmem:[%s1 + $0x60] sm:$0xff]
        %v521 = vld [vmem:[%s1 + $0x68] sm:$0xff]
        %v522 = vld [vmem:[%s1 + $0x70] sm:$0xff]
        %v523 = vld [vmem:[%s1 + $0x78] sm:$0xff]
        %v524 = vld [vmem:[%s1 + $0x80] sm:$0xff]
        %v525 = vld [vmem:[%s1 + $0x88] sm:$0xff]
        %v526 = vld [vmem:[%s1 + $0x90] sm:$0xff]
        %v527 = vld [vmem:[%s1 + $0x98] sm:$0xff]
        %v528 = vld [vmem:[%s1 + $0xa0] sm:$0xff]
        %v529 = vld [vmem:[%s1 + $0xa8] sm:$0xff]
        %v530 = vld [vmem:[%s1 + $0xb0] sm:$0xff]
        %v531 = vld [vmem:[%s1 + $0xb8] sm:$0xff]
        %v532 = vld [vmem:[%s1 + $0xc0] sm:$0xff]
        %v533 = vld [vmem:[%s1 + $0xc8] sm:$0xff]
        %v534 = vld [vmem:[%s1 + $0xd0] sm:$0xff]
        %v535 = vld [vmem:[%s1 + $0xd8] sm:$0xff]
        %v536 = vld [vmem:[%s1 + $0xe0] sm:$0xff]
        %v537 = vld [vmem:[%s1 + $0xe8] sm:$0xff]
        %v538 = vld [vmem:[%s1 + $0xf0] sm:$0xff]
        %v539 = vld [vmem:[%s1 + $0xf8] sm:$0xff]
        %v572 = vunpack.c.l.b16 %v508
        %v573 = vunpack.c.h.b16 %v508
        %v574 = vunpack.c.l.b16 %v509
        %v575 = vunpack.c.h.b16 %v509
        %v576 = vunpack.c.l.b16 %v510
        %v577 = vunpack.c.h.b16 %v510
        %v578 = vunpack.c.l.b16 %v511
        %v579 = vunpack.c.h.b16 %v511
        %v580 = vunpack.c.l.b16 %v512
        %v581 = vunpack.c.h.b16 %v512
        %v582 = vunpack.c.l.b16 %v513
        %v583 = vunpack.c.h.b16 %v513
        %v584 = vunpack.c.l.b16 %v514
        %v585 = vunpack.c.h.b16 %v514
        %v586 = vunpack.c.l.b16 %v515
        %v587 = vunpack.c.h.b16 %v515
        %v588 = vunpack.c.l.b16 %v516
        %v589 = vunpack.c.h.b16 %v516
        %v590 = vunpack.c.l.b16 %v517
        %v591 = vunpack.c.h.b16 %v517
        %v592 = vunpack.c.l.b16 %v518
        %v593 = vunpack.c.h.b16 %v518
        %v594 = vunpack.c.l.b16 %v519
        %v595 = vunpack.c.h.b16 %v519
        %v596 = vunpack.c.l.b16 %v520
        %v597 = vunpack.c.h.b16 %v520
        %v598 = vunpack.c.l.b16 %v521
        %v599 = vunpack.c.h.b16 %v521
        %v600 = vunpack.c.l.b16 %v522
        %v601 = vunpack.c.h.b16 %v522
        %v602 = vunpack.c.l.b16 %v523
        %v603 = vunpack.c.h.b16 %v523
        %v604 = vunpack.c.l.b16 %v524
        %v605 = vunpack.c.h.b16 %v524
        %v606 = vunpack.c.l.b16 %v525
        %v607 = vunpack.c.h.b16 %v525
        %v608 = vunpack.c.l.b16 %v526
        %v609 = vunpack.c.h.b16 %v526
        %v610 = vunpack.c.l.b16 %v527
        %v611 = vunpack.c.h.b16 %v527
        %v612 = vunpack.c.l.b16 %v528
        %v613 = vunpack.c.h.b16 %v528
        %v614 = vunpack.c.l.b16 %v529
        %v615 = vunpack.c.h.b16 %v529
        %v616 = vunpack.c.l.b16 %v530
        %v617 = vunpack.c.h.b16 %v530
        %v618 = vunpack.c.l.b16 %v531
        %v619 = vunpack.c.h.b16 %v531
        %v620 = vunpack.c.l.b16 %v532
        %v621 = vunpack.c.h.b16 %v532
        %v622 = vunpack.c.l.b16 %v533
        %v623 = vunpack.c.h.b16 %v533
        %v624 = vunpack.c.l.b16 %v534
        %v625 = vunpack.c.h.b16 %v534
        %v626 = vunpack.c.l.b16 %v535
        %v627 = vunpack.c.h.b16 %v535
        %v628 = vunpack.c.l.b16 %v536
        %v629 = vunpack.c.h.b16 %v536
        %v630 = vunpack.c.l.b16 %v537
        %v631 = vunpack.c.h.b16 %v537
        %v632 = vunpack.c.l.b16 %v538
        %v633 = vunpack.c.h.b16 %v538
        %v634 = vunpack.c.l.b16 %v539
        %v635 = vunpack.c.h.b16 %v539
        %v636 = vpack.c.b16 %v576, %v572
        %v637 = vpack.c.b16 %v577, %v573
        %v638 = vpack.c.b16 %v578, %v574
        %v639 = vpack.c.b16 %v579, %v575
        %v640 = vpack.c.b16 %v584, %v580
        %v641 = vpack.c.b16 %v585, %v581
        %v642 = vpack.c.b16 %v586, %v582
        %v643 = vpack.c.b16 %v587, %v583
        %v644 = vpack.c.b16 %v592, %v588
        %v645 = vpack.c.b16 %v593, %v589
        %v646 = vpack.c.b16 %v594, %v590
        %v647 = vpack.c.b16 %v595, %v591
        %v648 = vpack.c.b16 %v600, %v596
        %v649 = vpack.c.b16 %v601, %v597
        %v650 = vpack.c.b16 %v602, %v598
        %v651 = vpack.c.b16 %v603, %v599
        %v652 = vpack.c.b16 %v608, %v604
        %v653 = vpack.c.b16 %v609, %v605
        %v654 = vpack.c.b16 %v610, %v606
        %v655 = vpack.c.b16 %v611, %v607
        %v656 = vpack.c.b16 %v616, %v612
        %v657 = vpack.c.b16 %v617, %v613
        %v658 = vpack.c.b16 %v618, %v614
        %v659 = vpack.c.b16 %v619, %v615
        %v660 = vpack.c.b16 %v624, %v620
        %v661 = vpack.c.b16 %v625, %v621
        %v662 = vpack.c.b16 %v626, %v622
        %v663 = vpack.c.b16 %v627, %v623
        %v664 = vpack.c.b16 %v632, %v628
        %v665 = vpack.c.b16 %v633, %v629
        %v666 = vpack.c.b16 %v634, %v630
        %v667 = vpack.c.b16 %v635, %v631
        %700 = vmatprep.subr.bf16.mxu0 %v665
        %701 = vmatpush1.bf16.msra.mxu0 %v664
        %702 = vmatprep.subr.bf16.mxu0 %v661
        %703 = vmatpush1.bf16.msra.mxu0 %v660
        %704 = vmatprep.subr.bf16.mxu0 %v657
        %705 = vmatpush1.bf16.msra.mxu0 %v656
        %706 = vmatprep.subr.bf16.mxu0 %v653
        %707 = vmatpush1.bf16.msra.mxu0 %v652
        %708 = vmatprep.subr.bf16.mxu0 %v649
        %709 = vmatpush1.bf16.msra.mxu0 %v648
        %710 = vmatprep.subr.bf16.mxu0 %v645
        %711 = vmatpush1.bf16.msra.mxu0 %v644
        %712 = vmatprep.subr.bf16.mxu0 %v641
        %713 = vmatpush1.bf16.msra.mxu0 %v640
        %714 = vmatprep.subr.bf16.mxu0 %v637
        %715 = vmatpush1.bf16.msra.mxu0 %v636
        %716 = vmatprep.subr.bf16.mxu0 0
        %717 = vmatpush2.bf16.msra.mxu0 0
        %718 = vmatprep.subr.bf16.mxu0 0
        %719 = vmatpush2.bf16.msra.mxu0 0
        %720 = vmatprep.subr.bf16.mxu0 0
        %721 = vmatpush2.bf16.msra.mxu0 0
        %722 = vmatprep.subr.bf16.mxu0 0
        %723 = vmatpush2.bf16.msra.mxu0 0
        %724 = vmatprep.subr.bf16.mxu0 0
        %725 = vmatpush2.bf16.msra.mxu0 0
        %726 = vmatprep.subr.bf16.mxu0 0
        %727 = vmatpush2.bf16.msra.mxu0 0
        %728 = vmatprep.subr.bf16.mxu0 0
        %729 = vmatpush2.bf16.msra.mxu0 0
        %730 = vmatprep.subr.bf16.mxu0 0
        %731 = vmatpush2.bf16.msra.mxu0 0
        %732 = vmatprep.mubr.bf16.mxu0 0
        %733 = vmatmul.mubr.bf16.gmra.mxu0 0
        %v734 = vpop.f32.mrf.mxu0
        %v735 = vadd.f32 0.0, %v734
        %v736 = vpop.f32.mrf.mxu0
        %v737 = vadd.f32 0.0, %v736
        %v738 = vpop.f32.mrf.mxu0
        %v739 = vpop.f32.mrf.mxu0
        %740 = vdwg.mxu0
        %741 = vmatprep.subr.bf16.mxu0 %v667
        %742 = vmatpush1.bf16.msra.mxu0 %v666
        %743 = vmatprep.subr.bf16.mxu0 %v663
        %744 = vmatpush1.bf16.msra.mxu0 %v662
        %745 = vmatprep.subr.bf16.mxu0 %v659
        %746 = vmatpush1.bf16.msra.mxu0 %v658
        %747 = vmatprep.subr.bf16.mxu0 %v655
        %748 = vmatpush1.bf16.msra.mxu0 %v654
        %749 = vmatprep.subr.bf16.mxu0 %v651
        %750 = vmatpush1.bf16.msra.mxu0 %v650
        %751 = vmatprep.subr.bf16.mxu0 %v647
        %752 = vmatpush1.bf16.msra.mxu0 %v646
        %753 = vmatprep.subr.bf16.mxu0 %v643
        %754 = vmatpush1.bf16.msra.mxu0 %v642
        %755 = vmatprep.subr.bf16.mxu0 %v639
        %756 = vmatpush1.bf16.msra.mxu0 %v638
        %757 = vmatprep.subr.bf16.mxu0 0
        %758 = vmatpush2.bf16.msra.mxu0 0
        %759 = vmatprep.subr.bf16.mxu0 0
        %760 = vmatpush2.bf16.msra.mxu0 0
        %761 = vmatprep.subr.bf16.mxu0 0
        %762 = vmatpush2.bf16.msra.mxu0 0
        %763 = vmatprep.subr.bf16.mxu0 0
        %764 = vmatpush2.bf16.msra.mxu0 0
        %765 = vmatprep.subr.bf16.mxu0 0
        %766 = vmatpush2.bf16.msra.mxu0 0
        %767 = vmatprep.subr.bf16.mxu0 0
        %768 = vmatpush2.bf16.msra.mxu0 0
        %769 = vmatprep.subr.bf16.mxu0 0
        %770 = vmatpush2.bf16.msra.mxu0 0
        %771 = vmatprep.subr.bf16.mxu0 0
        %772 = vmatpush2.bf16.msra.mxu0 0
        %773 = vmatprep.mubr.bf16.mxu0 0
        %774 = vmatmul.mubr.bf16.gmra.mxu0 0
        %v775 = vpop.f32.mrf.mxu0
        %v776 = vadd.f32 0.0, %v775
        %v777 = vpop.f32.mrf.mxu0
        %v778 = vadd.f32 0.0, %v777
        %v779 = vpop.f32.mrf.mxu0
        %v780 = vpop.f32.mrf.mxu0
        %781 = vdwg.mxu0
        %v782 = vadd.f32 %v504, %v735
        %v783 = vadd.f32 %v505, %v737
        %v784 = vadd.f32 %v506, %v776
        %v785 = vadd.f32 %v507, %v778
        %v786 = vmul.f32 %v782, 0.5
        %v787 = vtanh.pop %v786
        %v788 = vmul.f32 %v787, 0.5
        %v789 = vadd.f32 %v788, 0.5
        %v790 = vmul.f32 %v783, 0.5
        %v791 = vtanh.pop %v790
        %v792 = vmul.f32 %v791, 0.5
        %v793 = vadd.f32 %v792, 0.5
        %v794 = vtanh.pop %v784
        %v795 = vmul.f32 %v785, 0.5
        %v796 = vtanh.pop %v795
        %v797 = vmul.f32 %v796, 0.5
        %v798 = vadd.f32 %v797, 0.5
        %v799 = vmul.f32 %v793, 0.0
        %v800 = vmul.f32 %v789, %v794
        %v801 = vadd.f32 %v799, %v800
        %v802 = vtanh.pop %v801
        %v803 = vmul.f32 %v798, %v802
        %804 = vst [vmem:[#allocation3] sm:$0xff] %v803
        %s805 = scalar_lea.vmem %s417, 16 [#allocation4]
        %v806 = vld [vmem:[%s805] sm:$0xff]
        %v807 = vld [vmem:[%s805 + $0x8] sm:$0xff]
        %v808 = vunpack.c.l.bf16 %v806
        %v809 = vunpack.c.h.bf16 %v806
        %v810 = vunpack.c.l.bf16 %v807
        %v811 = vunpack.c.h.bf16 %v807
        %v812 = vadd.f32 %v808, %v487
        %v813 = vadd.f32 %v809, %v491
        %v814 = vadd.f32 %v810, %v495
        %v815 = vadd.f32 %v811, %v499
        %v816 = vpack.c.bf16 %v803, %v803
        %v817 = vld [vmem:[%s1] sm:$0xff]
        %v818 = vld [vmem:[%s1 + $0x8] sm:$0xff]
        %v819 = vld [vmem:[%s1 + $0x10] sm:$0xff]
        %v820 = vld [vmem:[%s1 + $0x18] sm:$0xff]
        %v821 = vld [vmem:[%s1 + $0x20] sm:$0xff]
        %v822 = vld [vmem:[%s1 + $0x28] sm:$0xff]
        %v823 = vld [vmem:[%s1 + $0x30] sm:$0xff]
        %v824 = vld [vmem:[%s1 + $0x38] sm:$0xff]
        %v825 = vld [vmem:[%s1 + $0x40] sm:$0xff]
        %v826 = vld [vmem:[%s1 + $0x48] sm:$0xff]
        %v827 = vld [vmem:[%s1 + $0x50] sm:$0xff]
        %v828 = vld [vmem:[%s1 + $0x58] sm:$0xff]
        %v829 = vld [vmem:[%s1 + $0x60] sm:$0xff]
        %v830 = vld [vmem:[%s1 + $0x68] sm:$0xff]
        %v831 = vld [vmem:[%s1 + $0x70] sm:$0xff]
        %v832 = vld [vmem:[%s1 + $0x78] sm:$0xff]
        %v833 = vld [vmem:[%s1 + $0x80] sm:$0xff]
        %v834 = vld [vmem:[%s1 + $0x88] sm:$0xff]
        %v835 = vld [vmem:[%s1 + $0x90] sm:$0xff]
        %v836 = vld [vmem:[%s1 + $0x98] sm:$0xff]
        %v837 = vld [vmem:[%s1 + $0xa0] sm:$0xff]
        %v838 = vld [vmem:[%s1 + $0xa8] sm:$0xff]
        %v839 = vld [vmem:[%s1 + $0xb0] sm:$0xff]
        %v840 = vld [vmem:[%s1 + $0xb8] sm:$0xff]
        %v841 = vld [vmem:[%s1 + $0xc0] sm:$0xff]
        %v842 = vld [vmem:[%s1 + $0xc8] sm:$0xff]
        %v843 = vld [vmem:[%s1 + $0xd0] sm:$0xff]
        %v844 = vld [vmem:[%s1 + $0xd8] sm:$0xff]
        %v845 = vld [vmem:[%s1 + $0xe0] sm:$0xff]
        %v846 = vld [vmem:[%s1 + $0xe8] sm:$0xff]
        %v847 = vld [vmem:[%s1 + $0xf0] sm:$0xff]
        %v848 = vld [vmem:[%s1 + $0xf8] sm:$0xff]
        %v881 = vunpack.c.l.b16 %v817
        %v882 = vunpack.c.h.b16 %v817
        %v883 = vunpack.c.l.b16 %v818
        %v884 = vunpack.c.h.b16 %v818
        %v885 = vunpack.c.l.b16 %v819
        %v886 = vunpack.c.h.b16 %v819
        %v887 = vunpack.c.l.b16 %v820
        %v888 = vunpack.c.h.b16 %v820
        %v889 = vunpack.c.l.b16 %v821
        %v890 = vunpack.c.h.b16 %v821
        %v891 = vunpack.c.l.b16 %v822
        %v892 = vunpack.c.h.b16 %v822
        %v893 = vunpack.c.l.b16 %v823
        %v894 = vunpack.c.h.b16 %v823
        %v895 = vunpack.c.l.b16 %v824
        %v896 = vunpack.c.h.b16 %v824
        %v897 = vunpack.c.l.b16 %v825
        %v898 = vunpack.c.h.b16 %v825
        %v899 = vunpack.c.l.b16 %v826
        %v900 = vunpack.c.h.b16 %v826
        %v901 = vunpack.c.l.b16 %v827
        %v902 = vunpack.c.h.b16 %v827
        %v903 = vunpack.c.l.b16 %v828
        %v904 = vunpack.c.h.b16 %v828
        %v905 = vunpack.c.l.b16 %v829
        %v906 = vunpack.c.h.b16 %v829
        %v907 = vunpack.c.l.b16 %v830
        %v908 = vunpack.c.h.b16 %v830
        %v909 = vunpack.c.l.b16 %v831
        %v910 = vunpack.c.h.b16 %v831
        %v911 = vunpack.c.l.b16 %v832
        %v912 = vunpack.c.h.b16 %v832
        %v913 = vunpack.c.l.b16 %v833
        %v914 = vunpack.c.h.b16 %v833
        %v915 = vunpack.c.l.b16 %v834
        %v916 = vunpack.c.h.b16 %v834
        %v917 = vunpack.c.l.b16 %v835
        %v918 = vunpack.c.h.b16 %v835
        %v919 = vunpack.c.l.b16 %v836
        %v920 = vunpack.c.h.b16 %v836
        %v921 = vunpack.c.l.b16 %v837
        %v922 = vunpack.c.h.b16 %v837
        %v923 = vunpack.c.l.b16 %v838
        %v924 = vunpack.c.h.b16 %v838
        %v925 = vunpack.c.l.b16 %v839
        %v926 = vunpack.c.h.b16 %v839
        %v927 = vunpack.c.l.b16 %v840
        %v928 = vunpack.c.h.b16 %v840
        %v929 = vunpack.c.l.b16 %v841
        %v930 = vunpack.c.h.b16 %v841
        %v931 = vunpack.c.l.b16 %v842
        %v932 = vunpack.c.h.b16 %v842
        %v933 = vunpack.c.l.b16 %v843
        %v934 = vunpack.c.h.b16 %v843
        %v935 = vunpack.c.l.b16 %v844
        %v936 = vunpack.c.h.b16 %v844
        %v937 = vunpack.c.l.b16 %v845
        %v938 = vunpack.c.h.b16 %v845
        %v939 = vunpack.c.l.b16 %v846
        %v940 = vunpack.c.h.b16 %v846
        %v941 = vunpack.c.l.b16 %v847
        %v942 = vunpack.c.h.b16 %v847
        %v943 = vunpack.c.l.b16 %v848
        %v944 = vunpack.c.h.b16 %v848
        %v945 = vpack.c.b16 %v885, %v881
        %v946 = vpack.c.b16 %v886, %v882
        %v947 = vpack.c.b16 %v887, %v883
        %v948 = vpack.c.b16 %v888, %v884
        %v949 = vpack.c.b16 %v893, %v889
        %v950 = vpack.c.b16 %v894, %v890
        %v951 = vpack.c.b16 %v895, %v891
        %v952 = vpack.c.b16 %v896, %v892
        %v953 = vpack.c.b16 %v901, %v897
        %v954 = vpack.c.b16 %v902, %v898
        %v955 = vpack.c.b16 %v903, %v899
        %v956 = vpack.c.b16 %v904, %v900
        %v957 = vpack.c.b16 %v909, %v905
        %v958 = vpack.c.b16 %v910, %v906
        %v959 = vpack.c.b16 %v911, %v907
        %v960 = vpack.c.b16 %v912, %v908
        %v961 = vpack.c.b16 %v917, %v913
        %v962 = vpack.c.b16 %v918, %v914
        %v963 = vpack.c.b16 %v919, %v915
        %v964 = vpack.c.b16 %v920, %v916
        %v965 = vpack.c.b16 %v925, %v921
        %v966 = vpack.c.b16 %v926, %v922
        %v967 = vpack.c.b16 %v927, %v923
        %v968 = vpack.c.b16 %v928, %v924
        %v969 = vpack.c.b16 %v933, %v929
        %v970 = vpack.c.b16 %v934, %v930
        %v971 = vpack.c.b16 %v935, %v931
        %v972 = vpack.c.b16 %v936, %v932
        %v973 = vpack.c.b16 %v941, %v937
        %v974 = vpack.c.b16 %v942, %v938
        %v975 = vpack.c.b16 %v943, %v939
        %v976 = vpack.c.b16 %v944, %v940
        %1009 = vmatprep.subr.bf16.mxu0 %v974
        %1010 = vmatpush1.bf16.msra.mxu0 %v973
        %1011 = vmatprep.subr.bf16.mxu0 %v970
        %1012 = vmatpush1.bf16.msra.mxu0 %v969
        %1013 = vmatprep.subr.bf16.mxu0 %v966
        %1014 = vmatpush1.bf16.msra.mxu0 %v965
        %1015 = vmatprep.subr.bf16.mxu0 %v962
        %1016 = vmatpush1.bf16.msra.mxu0 %v961
        %1017 = vmatprep.subr.bf16.mxu0 %v958
        %1018 = vmatpush1.bf16.msra.mxu0 %v957
        %1019 = vmatprep.subr.bf16.mxu0 %v954
        %1020 = vmatpush1.bf16.msra.mxu0 %v953
        %1021 = vmatprep.subr.bf16.mxu0 %v950
        %1022 = vmatpush1.bf16.msra.mxu0 %v949
        %1023 = vmatprep.subr.bf16.mxu0 %v946
        %1024 = vmatpush1.bf16.msra.mxu0 %v945
        %1025 = vmatprep.subr.bf16.mxu0 0
        %1026 = vmatpush2.bf16.msra.mxu0 0
        %1027 = vmatprep.subr.bf16.mxu0 0
        %1028 = vmatpush2.bf16.msra.mxu0 0
        %1029 = vmatprep.subr.bf16.mxu0 0
        %1030 = vmatpush2.bf16.msra.mxu0 0
        %1031 = vmatprep.subr.bf16.mxu0 0
        %1032 = vmatpush2.bf16.msra.mxu0 0
        %1033 = vmatprep.subr.bf16.mxu0 0
        %1034 = vmatpush2.bf16.msra.mxu0 0
        %1035 = vmatprep.subr.bf16.mxu0 0
        %1036 = vmatpush2.bf16.msra.mxu0 0
        %1037 = vmatprep.subr.bf16.mxu0 0
        %1038 = vmatpush2.bf16.msra.mxu0 0
        %1039 = vmatprep.subr.bf16.mxu0 0
        %1040 = vmatpush2.bf16.msra.mxu0 0
        %1041 = vmatprep.mubr.bf16.mxu0 0
        %1042 = vmatmul.mubr.bf16.gmra.mxu0 %v816
        %v1043 = vpop.f32.mrf.mxu0
        %v1044 = vadd.f32 0.0, %v1043
        %v1045 = vpop.f32.mrf.mxu0
        %v1046 = vadd.f32 0.0, %v1045
        %v1047 = vpop.f32.mrf.mxu0
        %v1048 = vpop.f32.mrf.mxu0
        %1049 = vdwg.mxu0
        %1050 = vmatprep.subr.bf16.mxu0 %v976
        %1051 = vmatpush1.bf16.msra.mxu0 %v975
        %1052 = vmatprep.subr.bf16.mxu0 %v972
        %1053 = vmatpush1.bf16.msra.mxu0 %v971
        %1054 = vmatprep.subr.bf16.mxu0 %v968
        %1055 = vmatpush1.bf16.msra.mxu0 %v967
        %1056 = vmatprep.subr.bf16.mxu0 %v964
        %1057 = vmatpush1.bf16.msra.mxu0 %v963
        %1058 = vmatprep.subr.bf16.mxu0 %v960
        %1059 = vmatpush1.bf16.msra.mxu0 %v959
        %1060 = vmatprep.subr.bf16.mxu0 %v956
        %1061 = vmatpush1.bf16.msra.mxu0 %v955
        %1062 = vmatprep.subr.bf16.mxu0 %v952
        %1063 = vmatpush1.bf16.msra.mxu0 %v951
        %1064 = vmatprep.subr.bf16.mxu0 %v948
        %1065 = vmatpush1.bf16.msra.mxu0 %v947
        %1066 = vmatprep.subr.bf16.mxu0 0
        %1067 = vmatpush2.bf16.msra.mxu0 0
        %1068 = vmatprep.subr.bf16.mxu0 0
        %1069 = vmatpush2.bf16.msra.mxu0 0
        %1070 = vmatprep.subr.bf16.mxu0 0
        %1071 = vmatpush2.bf16.msra.mxu0 0
        %1072 = vmatprep.subr.bf16.mxu0 0
        %1073 = vmatpush2.bf16.msra.mxu0 0
        %1074 = vmatprep.subr.bf16.mxu0 0
        %1075 = vmatpush2.bf16.msra.mxu0 0
        %1076 = vmatprep.subr.bf16.mxu0 0
        %1077 = vmatpush2.bf16.msra.mxu0 0
        %1078 = vmatprep.subr.bf16.mxu0 0
        %1079 = vmatpush2.bf16.msra.mxu0 0
        %1080 = vmatprep.subr.bf16.mxu0 0
        %1081 = vmatpush2.bf16.msra.mxu0 0
        %1082 = vmatprep.mubr.bf16.mxu0 0
        %1083 = vmatmul.mubr.bf16.gmra.mxu0 %v816
        %v1084 = vpop.f32.mrf.mxu0
        %v1085 = vadd.f32 0.0, %v1084
        %v1086 = vpop.f32.mrf.mxu0
        %v1087 = vadd.f32 0.0, %v1086
        %v1088 = vpop.f32.mrf.mxu0
        %v1089 = vpop.f32.mrf.mxu0
        %1090 = vdwg.mxu0
        %v1091 = vadd.f32 %v812, %v1044
        %v1092 = vadd.f32 %v813, %v1046
        %v1093 = vadd.f32 %v814, %v1085
        %v1094 = vadd.f32 %v815, %v1087
        %v1095 = vmul.f32 %v1091, 0.5
        %v1096 = vtanh.pop %v1095
        %v1097 = vmul.f32 %v1096, 0.5
        %v1098 = vadd.f32 %v1097, 0.5
        %v1099 = vmul.f32 %v1092, 0.5
        %v1100 = vtanh.pop %v1099
        %v1101 = vmul.f32 %v1100, 0.5
        %v1102 = vadd.f32 %v1101, 0.5
        %v1103 = vtanh.pop %v1093
        %v1104 = vmul.f32 %v1094, 0.5
        %v1105 = vtanh.pop %v1104
        %v1106 = vmul.f32 %v1105, 0.5
        %v1107 = vadd.f32 %v1106, 0.5
        %v1108 = vmul.f32 %v1102, %v801
        %v1109 = vmul.f32 %v1098, %v1103
        %v1110 = vadd.f32 %v1108, %v1109
        %v1111 = vtanh.pop %v1110
        %v1112 = vmul.f32 %v1107, %v1111
        %s1113 = scalar_lea.vmem [#allocation3], 8
        %1114 = vst [vmem:[%s1113] sm:$0xff] %v1112
        %s1115 = scalar_lea.vmem %s417, 32 [#allocation4]
        %v1116 = vld [vmem:[%s1115] sm:$0xff]
        %v1117 = vld [vmem:[%s1115 + $0x8] sm:$0xff]
        %v1118 = vunpack.c.l.bf16 %v1116
        %v1119 = vunpack.c.h.bf16 %v1116
        %v1120 = vunpack.c.l.bf16 %v1117
        %v1121 = vunpack.c.h.bf16 %v1117
        %v1122 = vadd.f32 %v1118, %v487
        %v1123 = vadd.f32 %v1119, %v491
        %v1124 = vadd.f32 %v1120, %v495
        %v1125 = vadd.f32 %v1121, %v499
        %v1126 = vpack.c.bf16 %v1112, %v1112
        %v1127 = vld [vmem:[%s1] sm:$0xff]
        %v1128 = vld [vmem:[%s1 + $0x8] sm:$0xff]
        %v1129 = vld [vmem:[%s1 + $0x10] sm:$0xff]
        %v1130 = vld [vmem:[%s1 + $0x18] sm:$0xff]
        %v1131 = vld [vmem:[%s1 + $0x20] sm:$0xff]
        %v1132 = vld [vmem:[%s1 + $0x28] sm:$0xff]
        %v1133 = vld [vmem:[%s1 + $0x30] sm:$0xff]
        %v1134 = vld [vmem:[%s1 + $0x38] sm:$0xff]
        %v1135 = vld [vmem:[%s1 + $0x40] sm:$0xff]
        %v1136 = vld [vmem:[%s1 + $0x48] sm:$0xff]
        %v1137 = vld [vmem:[%s1 + $0x50] sm:$0xff]
        %v1138 = vld [vmem:[%s1 + $0x58] sm:$0xff]
        %v1139 = vld [vmem:[%s1 + $0x60] sm:$0xff]
        %v1140 = vld [vmem:[%s1 + $0x68] sm:$0xff]
        %v1141 = vld [vmem:[%s1 + $0x70] sm:$0xff]
        %v1142 = vld [vmem:[%s1 + $0x78] sm:$0xff]
        %v1143 = vld [vmem:[%s1 + $0x80] sm:$0xff]
        %v1144 = vld [vmem:[%s1 + $0x88] sm:$0xff]
        %v1145 = vld [vmem:[%s1 + $0x90] sm:$0xff]
        %v1146 = vld [vmem:[%s1 + $0x98] sm:$0xff]
        %v1147 = vld [vmem:[%s1 + $0xa0] sm:$0xff]
        %v1148 = vld [vmem:[%s1 + $0xa8] sm:$0xff]
        %v1149 = vld [vmem:[%s1 + $0xb0] sm:$0xff]
        %v1150 = vld [vmem:[%s1 + $0xb8] sm:$0xff]
        %v1151 = vld [vmem:[%s1 + $0xc0] sm:$0xff]
        %v1152 = vld [vmem:[%s1 + $0xc8] sm:$0xff]
        %v1153 = vld [vmem:[%s1 + $0xd0] sm:$0xff]
        %v1154 = vld [vmem:[%s1 + $0xd8] sm:$0xff]
        %v1155 = vld [vmem:[%s1 + $0xe0] sm:$0xff]
        %v1156 = vld [vmem:[%s1 + $0xe8] sm:$0xff]
        %v1157 = vld [vmem:[%s1 + $0xf0] sm:$0xff]
        %v1158 = vld [vmem:[%s1 + $0xf8] sm:$0xff]
        %v1191 = vunpack.c.l.b16 %v1127
        %v1192 = vunpack.c.h.b16 %v1127
        %v1193 = vunpack.c.l.b16 %v1128
        %v1194 = vunpack.c.h.b16 %v1128
        %v1195 = vunpack.c.l.b16 %v1129
        %v1196 = vunpack.c.h.b16 %v1129
        %v1197 = vunpack.c.l.b16 %v1130
        %v1198 = vunpack.c.h.b16 %v1130
        %v1199 = vunpack.c.l.b16 %v1131
        %v1200 = vunpack.c.h.b16 %v1131
        %v1201 = vunpack.c.l.b16 %v1132
        %v1202 = vunpack.c.h.b16 %v1132
        %v1203 = vunpack.c.l.b16 %v1133
        %v1204 = vunpack.c.h.b16 %v1133
        %v1205 = vunpack.c.l.b16 %v1134
        %v1206 = vunpack.c.h.b16 %v1134
        %v1207 = vunpack.c.l.b16 %v1135
        %v1208 = vunpack.c.h.b16 %v1135
        %v1209 = vunpack.c.l.b16 %v1136
        %v1210 = vunpack.c.h.b16 %v1136
        %v1211 = vunpack.c.l.b16 %v1137
        %v1212 = vunpack.c.h.b16 %v1137
        %v1213 = vunpack.c.l.b16 %v1138
        %v1214 = vunpack.c.h.b16 %v1138
        %v1215 = vunpack.c.l.b16 %v1139
        %v1216 = vunpack.c.h.b16 %v1139
        %v1217 = vunpack.c.l.b16 %v1140
        %v1218 = vunpack.c.h.b16 %v1140
        %v1219 = vunpack.c.l.b16 %v1141
        %v1220 = vunpack.c.h.b16 %v1141
        %v1221 = vunpack.c.l.b16 %v1142
        %v1222 = vunpack.c.h.b16 %v1142
        %v1223 = vunpack.c.l.b16 %v1143
        %v1224 = vunpack.c.h.b16 %v1143
        %v1225 = vunpack.c.l.b16 %v1144
        %v1226 = vunpack.c.h.b16 %v1144
        %v1227 = vunpack.c.l.b16 %v1145
        %v1228 = vunpack.c.h.b16 %v1145
        %v1229 = vunpack.c.l.b16 %v1146
        %v1230 = vunpack.c.h.b16 %v1146
        %v1231 = vunpack.c.l.b16 %v1147
        %v1232 = vunpack.c.h.b16 %v1147
        %v1233 = vunpack.c.l.b16 %v1148
        %v1234 = vunpack.c.h.b16 %v1148
        %v1235 = vunpack.c.l.b16 %v1149
        %v1236 = vunpack.c.h.b16 %v1149
        %v1237 = vunpack.c.l.b16 %v1150
        %v1238 = vunpack.c.h.b16 %v1150
        %v1239 = vunpack.c.l.b16 %v1151
        %v1240 = vunpack.c.h.b16 %v1151
        %v1241 = vunpack.c.l.b16 %v1152
        %v1242 = vunpack.c.h.b16 %v1152
        %v1243 = vunpack.c.l.b16 %v1153
        %v1244 = vunpack.c.h.b16 %v1153
        %v1245 = vunpack.c.l.b16 %v1154
        %v1246 = vunpack.c.h.b16 %v1154
        %v1247 = vunpack.c.l.b16 %v1155
        %v1248 = vunpack.c.h.b16 %v1155
        %v1249 = vunpack.c.l.b16 %v1156
        %v1250 = vunpack.c.h.b16 %v1156
        %v1251 = vunpack.c.l.b16 %v1157
        %v1252 = vunpack.c.h.b16 %v1157
        %v1253 = vunpack.c.l.b16 %v1158
        %v1254 = vunpack.c.h.b16 %v1158
        %v1255 = vpack.c.b16 %v1195, %v1191
        %v1256 = vpack.c.b16 %v1196, %v1192
        %v1257 = vpack.c.b16 %v1197, %v1193
        %v1258 = vpack.c.b16 %v1198, %v1194
        %v1259 = vpack.c.b16 %v1203, %v1199
        %v1260 = vpack.c.b16 %v1204, %v1200
        %v1261 = vpack.c.b16 %v1205, %v1201
        %v1262 = vpack.c.b16 %v1206, %v1202
        %v1263 = vpack.c.b16 %v1211, %v1207
        %v1264 = vpack.c.b16 %v1212, %v1208
        %v1265 = vpack.c.b16 %v1213, %v1209
        %v1266 = vpack.c.b16 %v1214, %v1210
        %v1267 = vpack.c.b16 %v1219, %v1215
        %v1268 = vpack.c.b16 %v1220, %v1216
        %v1269 = vpack.c.b16 %v1221, %v1217
        %v1270 = vpack.c.b16 %v1222, %v1218
        %v1271 = vpack.c.b16 %v1227, %v1223
        %v1272 = vpack.c.b16 %v1228, %v1224
        %v1273 = vpack.c.b16 %v1229, %v1225
        %v1274 = vpack.c.b16 %v1230, %v1226
        %v1275 = vpack.c.b16 %v1235, %v1231
        %v1276 = vpack.c.b16 %v1236, %v1232
        %v1277 = vpack.c.b16 %v1237, %v1233
        %v1278 = vpack.c.b16 %v1238, %v1234
        %v1279 = vpack.c.b16 %v1243, %v1239
        %v1280 = vpack.c.b16 %v1244, %v1240
        %v1281 = vpack.c.b16 %v1245, %v1241
        %v1282 = vpack.c.b16 %v1246, %v1242
        %v1283 = vpack.c.b16 %v1251, %v1247
        %v1284 = vpack.c.b16 %v1252, %v1248
        %v1285 = vpack.c.b16 %v1253, %v1249
        %v1286 = vpack.c.b16 %v1254, %v1250
        %1319 = vmatprep.subr.bf16.mxu0 %v1284
        %1320 = vmatpush1.bf16.msra.mxu0 %v1283
        %1321 = vmatprep.subr.bf16.mxu0 %v1280
        %1322 = vmatpush1.bf16.msra.mxu0 %v1279
        %1323 = vmatprep.subr.bf16.mxu0 %v1276
        %1324 = vmatpush1.bf16.msra.mxu0 %v1275
        %1325 = vmatprep.subr.bf16.mxu0 %v1272
        %1326 = vmatpush1.bf16.msra.mxu0 %v1271
        %1327 = vmatprep.subr.bf16.mxu0 %v1268
        %1328 = vmatpush1.bf16.msra.mxu0 %v1267
        %1329 = vmatprep.subr.bf16.mxu0 %v1264
        %1330 = vmatpush1.bf16.msra.mxu0 %v1263
        %1331 = vmatprep.subr.bf16.mxu0 %v1260
        %1332 = vmatpush1.bf16.msra.mxu0 %v1259
        %1333 = vmatprep.subr.bf16.mxu0 %v1256
        %1334 = vmatpush1.bf16.msra.mxu0 %v1255
        %1335 = vmatprep.subr.bf16.mxu0 0
        %1336 = vmatpush2.bf16.msra.mxu0 0
        %1337 = vmatprep.subr.bf16.mxu0 0
        %1338 = vmatpush2.bf16.msra.mxu0 0
        %1339 = vmatprep.subr.bf16.mxu0 0
        %1340 = vmatpush2.bf16.msra.mxu0 0
        %1341 = vmatprep.subr.bf16.mxu0 0
        %1342 = vmatpush2.bf16.msra.mxu0 0
        %1343 = vmatprep.subr.bf16.mxu0 0
        %1344 = vmatpush2.bf16.msra.mxu0 0
        %1345 = vmatprep.subr.bf16.mxu0 0
        %1346 = vmatpush2.bf16.msra.mxu0 0
        %1347 = vmatprep.subr.bf16.mxu0 0
        %1348 = vmatpush2.bf16.msra.mxu0 0
        %1349 = vmatprep.subr.bf16.mxu0 0
        %1350 = vmatpush2.bf16.msra.mxu0 0
        %1351 = vmatprep.mubr.bf16.mxu0 0
        %1352 = vmatmul.mubr.bf16.gmra.mxu0 %v1126
        %v1353 = vpop.f32.mrf.mxu0
        %v1354 = vadd.f32 0.0, %v1353
        %v1355 = vpop.f32.mrf.mxu0
        %v1356 = vadd.f32 0.0, %v1355
        %v1357 = vpop.f32.mrf.mxu0
        %v1358 = vpop.f32.mrf.mxu0
        %1359 = vdwg.mxu0
        %1360 = vmatprep.subr.bf16.mxu0 %v1286
        %1361 = vmatpush1.bf16.msra.mxu0 %v1285
        %1362 = vmatprep.subr.bf16.mxu0 %v1282
        %1363 = vmatpush1.bf16.msra.mxu0 %v1281
        %1364 = vmatprep.subr.bf16.mxu0 %v1278
        %1365 = vmatpush1.bf16.msra.mxu0 %v1277
        %1366 = vmatprep.subr.bf16.mxu0 %v1274
        %1367 = vmatpush1.bf16.msra.mxu0 %v1273
        %1368 = vmatprep.subr.bf16.mxu0 %v1270
        %1369 = vmatpush1.bf16.msra.mxu0 %v1269
        %1370 = vmatprep.subr.bf16.mxu0 %v1266
        %1371 = vmatpush1.bf16.msra.mxu0 %v1265
        %1372 = vmatprep.subr.bf16.mxu0 %v1262
        %1373 = vmatpush1.bf16.msra.mxu0 %v1261
        %1374 = vmatprep.subr.bf16.mxu0 %v1258
        %1375 = vmatpush1.bf16.msra.mxu0 %v1257
        %1376 = vmatprep.subr.bf16.mxu0 0
        %1377 = vmatpush2.bf16.msra.mxu0 0
        %1378 = vmatprep.subr.bf16.mxu0 0
        %1379 = vmatpush2.bf16.msra.mxu0 0
        %1380 = vmatprep.subr.bf16.mxu0 0
        %1381 = vmatpush2.bf16.msra.mxu0 0
        %1382 = vmatprep.subr.bf16.mxu0 0
        %1383 = vmatpush2.bf16.msra.mxu0 0
        %1384 = vmatprep.subr.bf16.mxu0 0
        %1385 = vmatpush2.bf16.msra.mxu0 0
        %1386 = vmatprep.subr.bf16.mxu0 0
        %1387 = vmatpush2.bf16.msra.mxu0 0
        %1388 = vmatprep.subr.bf16.mxu0 0
        %1389 = vmatpush2.bf16.msra.mxu0 0
        %1390 = vmatprep.subr.bf16.mxu0 0
        %1391 = vmatpush2.bf16.msra.mxu0 0
        %1392 = vmatprep.mubr.bf16.mxu0 0
        %1393 = vmatmul.mubr.bf16.gmra.mxu0 %v1126
        %v1394 = vpop.f32.mrf.mxu0
        %v1395 = vadd.f32 0.0, %v1394
        %v1396 = vpop.f32.mrf.mxu0
        %v1397 = vadd.f32 0.0, %v1396
        %v1398 = vpop.f32.mrf.mxu0
        %v1399 = vpop.f32.mrf.mxu0
        %1400 = vdwg.mxu0
        %v1401 = vadd.f32 %v1122, %v1354
        %v1402 = vadd.f32 %v1123, %v1356
        %v1403 = vadd.f32 %v1124, %v1395
        %v1404 = vadd.f32 %v1125, %v1397
        %v1405 = vmul.f32 %v1401, 0.5
        %v1406 = vtanh.pop %v1405
        %v1407 = vmul.f32 %v1406, 0.5
        %v1408 = vadd.f32 %v1407, 0.5
        %v1409 = vmul.f32 %v1402, 0.5
        %v1410 = vtanh.pop %v1409
        %v1411 = vmul.f32 %v1410, 0.5
        %v1412 = vadd.f32 %v1411, 0.5
        %v1413 = vtanh.pop %v1403
        %v1414 = vmul.f32 %v1404, 0.5
        %v1415 = vtanh.pop %v1414
        %v1416 = vmul.f32 %v1415, 0.5
        %v1417 = vadd.f32 %v1416, 0.5
        %v1418 = vmul.f32 %v1412, %v1110
        %v1419 = vmul.f32 %v1408, %v1413
        %v1420 = vadd.f32 %v1418, %v1419
        %v1421 = vtanh.pop %v1420
        %v1422 = vmul.f32 %v1417, %v1421
        %s1423 = scalar_lea.vmem [#allocation3], 16
        %1424 = vst [vmem:[%s1423] sm:$0xff] %v1422
        %s1425 = scalar_lea.vmem %s417, 48 [#allocation4]
        %v1426 = vld [vmem:[%s1425] sm:$0xff]
        %v1427 = vld [vmem:[%s1425 + $0x8] sm:$0xff]
        %v1428 = vunpack.c.l.bf16 %v1426
        %v1429 = vunpack.c.h.bf16 %v1426
        %v1430 = vunpack.c.l.bf16 %v1427
        %v1431 = vunpack.c.h.bf16 %v1427
        %v1432 = vadd.f32 %v1428, %v487
        %v1433 = vadd.f32 %v1429, %v491
        %v1434 = vadd.f32 %v1430, %v495
        %v1435 = vadd.f32 %v1431, %v499
        %v1436 = vpack.c.bf16 %v1422, %v1422
        %v1437 = vld [vmem:[%s1] sm:$0xff]
        %v1438 = vld [vmem:[%s1 + $0x8] sm:$0xff]
        %v1439 = vld [vmem:[%s1 + $0x10] sm:$0xff]
        %v1440 = vld [vmem:[%s1 + $0x18] sm:$0xff]
        %v1441 = vld [vmem:[%s1 + $0x20] sm:$0xff]
        %v1442 = vld [vmem:[%s1 + $0x28] sm:$0xff]
        %v1443 = vld [vmem:[%s1 + $0x30] sm:$0xff]
        %v1444 = vld [vmem:[%s1 + $0x38] sm:$0xff]
        %v1445 = vld [vmem:[%s1 + $0x40] sm:$0xff]
        %v1446 = vld [vmem:[%s1 + $0x48] sm:$0xff]
        %v1447 = vld [vmem:[%s1 + $0x50] sm:$0xff]
        %v1448 = vld [vmem:[%s1 + $0x58] sm:$0xff]
        %v1449 = vld [vmem:[%s1 + $0x60] sm:$0xff]
        %v1450 = vld [vmem:[%s1 + $0x68] sm:$0xff]
        %v1451 = vld [vmem:[%s1 + $0x70] sm:$0xff]
        %v1452 = vld [vmem:[%s1 + $0x78] sm:$0xff]
        %v1453 = vld [vmem:[%s1 + $0x80] sm:$0xff]
        %v1454 = vld [vmem:[%s1 + $0x88] sm:$0xff]
        %v1455 = vld [vmem:[%s1 + $0x90] sm:$0xff]
        %v1456 = vld [vmem:[%s1 + $0x98] sm:$0xff]
        %v1457 = vld [vmem:[%s1 + $0xa0] sm:$0xff]
        %v1458 = vld [vmem:[%s1 + $0xa8] sm:$0xff]
        %v1459 = vld [vmem:[%s1 + $0xb0] sm:$0xff]
        %v1460 = vld [vmem:[%s1 + $0xb8] sm:$0xff]
        %v1461 = vld [vmem:[%s1 + $0xc0] sm:$0xff]
        %v1462 = vld [vmem:[%s1 + $0xc8] sm:$0xff]
        %v1463 = vld [vmem:[%s1 + $0xd0] sm:$0xff]
        %v1464 = vld [vmem:[%s1 + $0xd8] sm:$0xff]
        %v1465 = vld [vmem:[%s1 + $0xe0] sm:$0xff]
        %v1466 = vld [vmem:[%s1 + $0xe8] sm:$0xff]
        %v1467 = vld [vmem:[%s1 + $0xf0] sm:$0xff]
        %v1468 = vld [vmem:[%s1 + $0xf8] sm:$0xff]
        %v1501 = vunpack.c.l.b16 %v1437
        %v1502 = vunpack.c.h.b16 %v1437
        %v1503 = vunpack.c.l.b16 %v1438
        %v1504 = vunpack.c.h.b16 %v1438
        %v1505 = vunpack.c.l.b16 %v1439
        %v1506 = vunpack.c.h.b16 %v1439
        %v1507 = vunpack.c.l.b16 %v1440
        %v1508 = vunpack.c.h.b16 %v1440
        %v1509 = vunpack.c.l.b16 %v1441
        %v1510 = vunpack.c.h.b16 %v1441
        %v1511 = vunpack.c.l.b16 %v1442
        %v1512 = vunpack.c.h.b16 %v1442
        %v1513 = vunpack.c.l.b16 %v1443
        %v1514 = vunpack.c.h.b16 %v1443
        %v1515 = vunpack.c.l.b16 %v1444
        %v1516 = vunpack.c.h.b16 %v1444
        %v1517 = vunpack.c.l.b16 %v1445
        %v1518 = vunpack.c.h.b16 %v1445
        %v1519 = vunpack.c.l.b16 %v1446
        %v1520 = vunpack.c.h.b16 %v1446
        %v1521 = vunpack.c.l.b16 %v1447
        %v1522 = vunpack.c.h.b16 %v1447
        %v1523 = vunpack.c.l.b16 %v1448
        %v1524 = vunpack.c.h.b16 %v1448
        %v1525 = vunpack.c.l.b16 %v1449
        %v1526 = vunpack.c.h.b16 %v1449
        %v1527 = vunpack.c.l.b16 %v1450
        %v1528 = vunpack.c.h.b16 %v1450
        %v1529 = vunpack.c.l.b16 %v1451
        %v1530 = vunpack.c.h.b16 %v1451
        %v1531 = vunpack.c.l.b16 %v1452
        %v1532 = vunpack.c.h.b16 %v1452
        %v1533 = vunpack.c.l.b16 %v1453
        %v1534 = vunpack.c.h.b16 %v1453
        %v1535 = vunpack.c.l.b16 %v1454
        %v1536 = vunpack.c.h.b16 %v1454
        %v1537 = vunpack.c.l.b16 %v1455
        %v1538 = vunpack.c.h.b16 %v1455
        %v1539 = vunpack.c.l.b16 %v1456
        %v1540 = vunpack.c.h.b16 %v1456
        %v1541 = vunpack.c.l.b16 %v1457
        %v1542 = vunpack.c.h.b16 %v1457
        %v1543 = vunpack.c.l.b16 %v1458
        %v1544 = vunpack.c.h.b16 %v1458
        %v1545 = vunpack.c.l.b16 %v1459
        %v1546 = vunpack.c.h.b16 %v1459
        %v1547 = vunpack.c.l.b16 %v1460
        %v1548 = vunpack.c.h.b16 %v1460
        %v1549 = vunpack.c.l.b16 %v1461
        %v1550 = vunpack.c.h.b16 %v1461
        %v1551 = vunpack.c.l.b16 %v1462
        %v1552 = vunpack.c.h.b16 %v1462
        %v1553 = vunpack.c.l.b16 %v1463
        %v1554 = vunpack.c.h.b16 %v1463
        %v1555 = vunpack.c.l.b16 %v1464
        %v1556 = vunpack.c.h.b16 %v1464
        %v1557 = vunpack.c.l.b16 %v1465
        %v1558 = vunpack.c.h.b16 %v1465
        %v1559 = vunpack.c.l.b16 %v1466
        %v1560 = vunpack.c.h.b16 %v1466
        %v1561 = vunpack.c.l.b16 %v1467
        %v1562 = vunpack.c.h.b16 %v1467
        %v1563 = vunpack.c.l.b16 %v1468
        %v1564 = vunpack.c.h.b16 %v1468
        %v1565 = vpack.c.b16 %v1505, %v1501
        %v1566 = vpack.c.b16 %v1506, %v1502
        %v1567 = vpack.c.b16 %v1507, %v1503
        %v1568 = vpack.c.b16 %v1508, %v1504
        %v1569 = vpack.c.b16 %v1513, %v1509
        %v1570 = vpack.c.b16 %v1514, %v1510
        %v1571 = vpack.c.b16 %v1515, %v1511
        %v1572 = vpack.c.b16 %v1516, %v1512
        %v1573 = vpack.c.b16 %v1521, %v1517
        %v1574 = vpack.c.b16 %v1522, %v1518
        %v1575 = vpack.c.b16 %v1523, %v1519
        %v1576 = vpack.c.b16 %v1524, %v1520
        %v1577 = vpack.c.b16 %v1529, %v1525
        %v1578 = vpack.c.b16 %v1530, %v1526
        %v1579 = vpack.c.b16 %v1531, %v1527
        %v1580 = vpack.c.b16 %v1532, %v1528
        %v1581 = vpack.c.b16 %v1537, %v1533
        %v1582 = vpack.c.b16 %v1538, %v1534
        %v1583 = vpack.c.b16 %v1539, %v1535
        %v1584 = vpack.c.b16 %v1540, %v1536
        %v1585 = vpack.c.b16 %v1545, %v1541
        %v1586 = vpack.c.b16 %v1546, %v1542
        %v1587 = vpack.c.b16 %v1547, %v1543
        %v1588 = vpack.c.b16 %v1548, %v1544
        %v1589 = vpack.c.b16 %v1553, %v1549
        %v1590 = vpack.c.b16 %v1554, %v1550
        %v1591 = vpack.c.b16 %v1555, %v1551
        %v1592 = vpack.c.b16 %v1556, %v1552
        %v1593 = vpack.c.b16 %v1561, %v1557
        %v1594 = vpack.c.b16 %v1562, %v1558
        %v1595 = vpack.c.b16 %v1563, %v1559
        %v1596 = vpack.c.b16 %v1564, %v1560
        %1629 = vmatprep.subr.bf16.mxu0 %v1594
        %1630 = vmatpush1.bf16.msra.mxu0 %v1593
        %1631 = vmatprep.subr.bf16.mxu0 %v1590
        %1632 = vmatpush1.bf16.msra.mxu0 %v1589
        %1633 = vmatprep.subr.bf16.mxu0 %v1586
        %1634 = vmatpush1.bf16.msra.mxu0 %v1585
        %1635 = vmatprep.subr.bf16.mxu0 %v1582
        %1636 = vmatpush1.bf16.msra.mxu0 %v1581
        %1637 = vmatprep.subr.bf16.mxu0 %v1578
        %1638 = vmatpush1.bf16.msra.mxu0 %v1577
        %1639 = vmatprep.subr.bf16.mxu0 %v1574
        %1640 = vmatpush1.bf16.msra.mxu0 %v1573
        %1641 = vmatprep.subr.bf16.mxu0 %v1570
        %1642 = vmatpush1.bf16.msra.mxu0 %v1569
        %1643 = vmatprep.subr.bf16.mxu0 %v1566
        %1644 = vmatpush1.bf16.msra.mxu0 %v1565
        %1645 = vmatprep.subr.bf16.mxu0 0
        %1646 = vmatpush2.bf16.msra.mxu0 0
        %1647 = vmatprep.subr.bf16.mxu0 0
        %1648 = vmatpush2.bf16.msra.mxu0 0
        %1649 = vmatprep.subr.bf16.mxu0 0
        %1650 = vmatpush2.bf16.msra.mxu0 0
        %1651 = vmatprep.subr.bf16.mxu0 0
        %1652 = vmatpush2.bf16.msra.mxu0 0
        %1653 = vmatprep.subr.bf16.mxu0 0
        %1654 = vmatpush2.bf16.msra.mxu0 0
        %1655 = vmatprep.subr.bf16.mxu0 0
        %1656 = vmatpush2.bf16.msra.mxu0 0
        %1657 = vmatprep.subr.bf16.mxu0 0
        %1658 = vmatpush2.bf16.msra.mxu0 0
        %1659 = vmatprep.subr.bf16.mxu0 0
        %1660 = vmatpush2.bf16.msra.mxu0 0
        %1661 = vmatprep.mubr.bf16.mxu0 0
        %1662 = vmatmul.mubr.bf16.gmra.mxu0 %v1436
        %v1663 = vpop.f32.mrf.mxu0
        %v1664 = vadd.f32 0.0, %v1663
        %v1665 = vpop.f32.mrf.mxu0
        %v1666 = vadd.f32 0.0, %v1665
        %v1667 = vpop.f32.mrf.mxu0
        %v1668 = vpop.f32.mrf.mxu0
        %1669 = vdwg.mxu0
        %1670 = vmatprep.subr.bf16.mxu0 %v1596
        %1671 = vmatpush1.bf16.msra.mxu0 %v1595
        %1672 = vmatprep.subr.bf16.mxu0 %v1592
        %1673 = vmatpush1.bf16.msra.mxu0 %v1591
        %1674 = vmatprep.subr.bf16.mxu0 %v1588
        %1675 = vmatpush1.bf16.msra.mxu0 %v1587
        %1676 = vmatprep.subr.bf16.mxu0 %v1584
        %1677 = vmatpush1.bf16.msra.mxu0 %v1583
        %1678 = vmatprep.subr.bf16.mxu0 %v1580
        %1679 = vmatpush1.bf16.msra.mxu0 %v1579
        %1680 = vmatprep.subr.bf16.mxu0 %v1576
        %1681 = vmatpush1.bf16.msra.mxu0 %v1575
        %1682 = vmatprep.subr.bf16.mxu0 %v1572
        %1683 = vmatpush1.bf16.msra.mxu0 %v1571
        %1684 = vmatprep.subr.bf16.mxu0 %v1568
        %1685 = vmatpush1.bf16.msra.mxu0 %v1567
        %1686 = vmatprep.subr.bf16.mxu0 0
        %1687 = vmatpush2.bf16.msra.mxu0 0
        %1688 = vmatprep.subr.bf16.mxu0 0
        %1689 = vmatpush2.bf16.msra.mxu0 0
        %1690 = vmatprep.subr.bf16.mxu0 0
        %1691 = vmatpush2.bf16.msra.mxu0 0
        %1692 = vmatprep.subr.bf16.mxu0 0
        %1693 = vmatpush2.bf16.msra.mxu0 0
        %1694 = vmatprep.subr.bf16.mxu0 0
        %1695 = vmatpush2.bf16.msra.mxu0 0
        %1696 = vmatprep.subr.bf16.mxu0 0
        %1697 = vmatpush2.bf16.msra.mxu0 0
        %1698 = vmatprep.subr.bf16.mxu0 0
        %1699 = vmatpush2.bf16.msra.mxu0 0
        %1700 = vmatprep.subr.bf16.mxu0 0
        %1701 = vmatpush2.bf16.msra.mxu0 0
        %1702 = vmatprep.mubr.bf16.mxu0 0
        %1703 = vmatmul.mubr.bf16.gmra.mxu0 %v1436
        %v1704 = vpop.f32.mrf.mxu0
        %v1705 = vadd.f32 0.0, %v1704
        %v1706 = vpop.f32.mrf.mxu0
        %v1707 = vadd.f32 0.0, %v1706
        %v1708 = vpop.f32.mrf.mxu0
        %v1709 = vpop.f32.mrf.mxu0
        %1710 = vdwg.mxu0
        %v1711 = vadd.f32 %v1432, %v1664
        %v1712 = vadd.f32 %v1433, %v1666
        %v1713 = vadd.f32 %v1434, %v1705
        %v1714 = vadd.f32 %v1435, %v1707
        %v1715 = vmul.f32 %v1711, 0.5
        %v1716 = vtanh.pop %v1715
        %v1717 = vmul.f32 %v1716, 0.5
        %v1718 = vadd.f32 %v1717, 0.5
        %v1719 = vmul.f32 %v1712, 0.5
        %v1720 = vtanh.pop %v1719
        %v1721 = vmul.f32 %v1720, 0.5
        %v1722 = vadd.f32 %v1721, 0.5
        %v1723 = vtanh.pop %v1713
        %v1724 = vmul.f32 %v1714, 0.5
        %v1725 = vtanh.pop %v1724
        %v1726 = vmul.f32 %v1725, 0.5
        %v1727 = vadd.f32 %v1726, 0.5
        %v1728 = vmul.f32 %v1722, %v1420
        %v1729 = vmul.f32 %v1718, %v1723
        %v1730 = vadd.f32 %v1728, %v1729
        %v1731 = vtanh.pop %v1730
        %v1732 = vmul.f32 %v1727, %v1731
        %s1733 = scalar_lea.vmem [#allocation3], 24
        %1734 = vst [vmem:[%s1733] sm:$0xff] %v1732
        %s1735 = scalar_lea.vmem %s417, 64 [#allocation4]
        %v1736 = vld [vmem:[%s1735] sm:$0xff]
        %v1737 = vld [vmem:[%s1735 + $0x8] sm:$0xff]
        %v1738 = vunpack.c.l.bf16 %v1736
        %v1739 = vunpack.c.h.bf16 %v1736
        %v1740 = vunpack.c.l.bf16 %v1737
        %v1741 = vunpack.c.h.bf16 %v1737
        %v1742 = vadd.f32 %v1738, %v487
        %v1743 = vadd.f32 %v1739, %v491
        %v1744 = vadd.f32 %v1740, %v495
        %v1745 = vadd.f32 %v1741, %v499
        %v1746 = vpack.c.bf16 %v1732, %v1732
        %v1747 = vld [vmem:[%s1] sm:$0xff]
        %v1748 = vld [vmem:[%s1 + $0x8] sm:$0xff]
        %v1749 = vld [vmem:[%s1 + $0x10] sm:$0xff]
        %v1750 = vld [vmem:[%s1 + $0x18] sm:$0xff]
        %v1751 = vld [vmem:[%s1 + $0x20] sm:$0xff]
        %v1752 = vld [vmem:[%s1 + $0x28] sm:$0xff]
        %v1753 = vld [vmem:[%s1 + $0x30] sm:$0xff]
        %v1754 = vld [vmem:[%s1 + $0x38] sm:$0xff]
        %v1755 = vld [vmem:[%s1 + $0x40] sm:$0xff]
        %v1756 = vld [vmem:[%s1 + $0x48] sm:$0xff]
        %v1757 = vld [vmem:[%s1 + $0x50] sm:$0xff]
        %v1758 = vld [vmem:[%s1 + $0x58] sm:$0xff]
        %v1759 = vld [vmem:[%s1 + $0x60] sm:$0xff]
        %v1760 = vld [vmem:[%s1 + $0x68] sm:$0xff]
        %v1761 = vld [vmem:[%s1 + $0x70] sm:$0xff]
        %v1762 = vld [vmem:[%s1 + $0x78] sm:$0xff]
        %v1763 = vld [vmem:[%s1 + $0x80] sm:$0xff]
        %v1764 = vld [vmem:[%s1 + $0x88] sm:$0xff]
        %v1765 = vld [vmem:[%s1 + $0x90] sm:$0xff]
        %v1766 = vld [vmem:[%s1 + $0x98] sm:$0xff]
        %v1767 = vld [vmem:[%s1 + $0xa0] sm:$0xff]
        %v1768 = vld [vmem:[%s1 + $0xa8] sm:$0xff]
        %v1769 = vld [vmem:[%s1 + $0xb0] sm:$0xff]
        %v1770 = vld [vmem:[%s1 + $0xb8] sm:$0xff]
        %v1771 = vld [vmem:[%s1 + $0xc0] sm:$0xff]
        %v1772 = vld [vmem:[%s1 + $0xc8] sm:$0xff]
        %v1773 = vld [vmem:[%s1 + $0xd0] sm:$0xff]
        %v1774 = vld [vmem:[%s1 + $0xd8] sm:$0xff]
        %v1775 = vld [vmem:[%s1 + $0xe0] sm:$0xff]
        %v1776 = vld [vmem:[%s1 + $0xe8] sm:$0xff]
        %v1777 = vld [vmem:[%s1 + $0xf0] sm:$0xff]
        %v1778 = vld [vmem:[%s1 + $0xf8] sm:$0xff]
        %v1811 = vunpack.c.l.b16 %v1747
        %v1812 = vunpack.c.h.b16 %v1747
        %v1813 = vunpack.c.l.b16 %v1748
        %v1814 = vunpack.c.h.b16 %v1748
        %v1815 = vunpack.c.l.b16 %v1749
        %v1816 = vunpack.c.h.b16 %v1749
        %v1817 = vunpack.c.l.b16 %v1750
        %v1818 = vunpack.c.h.b16 %v1750
        %v1819 = vunpack.c.l.b16 %v1751
        %v1820 = vunpack.c.h.b16 %v1751
        %v1821 = vunpack.c.l.b16 %v1752
        %v1822 = vunpack.c.h.b16 %v1752
        %v1823 = vunpack.c.l.b16 %v1753
        %v1824 = vunpack.c.h.b16 %v1753
        %v1825 = vunpack.c.l.b16 %v1754
        %v1826 = vunpack.c.h.b16 %v1754
        %v1827 = vunpack.c.l.b16 %v1755
        %v1828 = vunpack.c.h.b16 %v1755
        %v1829 = vunpack.c.l.b16 %v1756
        %v1830 = vunpack.c.h.b16 %v1756
        %v1831 = vunpack.c.l.b16 %v1757
        %v1832 = vunpack.c.h.b16 %v1757
        %v1833 = vunpack.c.l.b16 %v1758
        %v1834 = vunpack.c.h.b16 %v1758
        %v1835 = vunpack.c.l.b16 %v1759
        %v1836 = vunpack.c.h.b16 %v1759
        %v1837 = vunpack.c.l.b16 %v1760
        %v1838 = vunpack.c.h.b16 %v1760
        %v1839 = vunpack.c.l.b16 %v1761
        %v1840 = vunpack.c.h.b16 %v1761
        %v1841 = vunpack.c.l.b16 %v1762
        %v1842 = vunpack.c.h.b16 %v1762
        %v1843 = vunpack.c.l.b16 %v1763
        %v1844 = vunpack.c.h.b16 %v1763
        %v1845 = vunpack.c.l.b16 %v1764
        %v1846 = vunpack.c.h.b16 %v1764
        %v1847 = vunpack.c.l.b16 %v1765
        %v1848 = vunpack.c.h.b16 %v1765
        %v1849 = vunpack.c.l.b16 %v1766
        %v1850 = vunpack.c.h.b16 %v1766
        %v1851 = vunpack.c.l.b16 %v1767
        %v1852 = vunpack.c.h.b16 %v1767
        %v1853 = vunpack.c.l.b16 %v1768
        %v1854 = vunpack.c.h.b16 %v1768
        %v1855 = vunpack.c.l.b16 %v1769
        %v1856 = vunpack.c.h.b16 %v1769
        %v1857 = vunpack.c.l.b16 %v1770
        %v1858 = vunpack.c.h.b16 %v1770
        %v1859 = vunpack.c.l.b16 %v1771
        %v1860 = vunpack.c.h.b16 %v1771
        %v1861 = vunpack.c.l.b16 %v1772
        %v1862 = vunpack.c.h.b16 %v1772
        %v1863 = vunpack.c.l.b16 %v1773
        %v1864 = vunpack.c.h.b16 %v1773
        %v1865 = vunpack.c.l.b16 %v1774
        %v1866 = vunpack.c.h.b16 %v1774
        %v1867 = vunpack.c.l.b16 %v1775
        %v1868 = vunpack.c.h.b16 %v1775
        %v1869 = vunpack.c.l.b16 %v1776
        %v1870 = vunpack.c.h.b16 %v1776
        %v1871 = vunpack.c.l.b16 %v1777
        %v1872 = vunpack.c.h.b16 %v1777
        %v1873 = vunpack.c.l.b16 %v1778
        %v1874 = vunpack.c.h.b16 %v1778
        %v1875 = vpack.c.b16 %v1815, %v1811
        %v1876 = vpack.c.b16 %v1816, %v1812
        %v1877 = vpack.c.b16 %v1817, %v1813
        %v1878 = vpack.c.b16 %v1818, %v1814
        %v1879 = vpack.c.b16 %v1823, %v1819
        %v1880 = vpack.c.b16 %v1824, %v1820
        %v1881 = vpack.c.b16 %v1825, %v1821
        %v1882 = vpack.c.b16 %v1826, %v1822
        %v1883 = vpack.c.b16 %v1831, %v1827
        %v1884 = vpack.c.b16 %v1832, %v1828
        %v1885 = vpack.c.b16 %v1833, %v1829
        %v1886 = vpack.c.b16 %v1834, %v1830
        %v1887 = vpack.c.b16 %v1839, %v1835
        %v1888 = vpack.c.b16 %v1840, %v1836
        %v1889 = vpack.c.b16 %v1841, %v1837
        %v1890 = vpack.c.b16 %v1842, %v1838
        %v1891 = vpack.c.b16 %v1847, %v1843
        %v1892 = vpack.c.b16 %v1848, %v1844
        %v1893 = vpack.c.b16 %v1849, %v1845
        %v1894 = vpack.c.b16 %v1850, %v1846
        %v1895 = vpack.c.b16 %v1855, %v1851
        %v1896 = vpack.c.b16 %v1856, %v1852
        %v1897 = vpack.c.b16 %v1857, %v1853
        %v1898 = vpack.c.b16 %v1858, %v1854
        %v1899 = vpack.c.b16 %v1863, %v1859
        %v1900 = vpack.c.b16 %v1864, %v1860
        %v1901 = vpack.c.b16 %v1865, %v1861
        %v1902 = vpack.c.b16 %v1866, %v1862
        %v1903 = vpack.c.b16 %v1871, %v1867
        %v1904 = vpack.c.b16 %v1872, %v1868
        %v1905 = vpack.c.b16 %v1873, %v1869
        %v1906 = vpack.c.b16 %v1874, %v1870
        %1939 = vmatprep.subr.bf16.mxu0 %v1904
        %1940 = vmatpush1.bf16.msra.mxu0 %v1903
        %1941 = vmatprep.subr.bf16.mxu0 %v1900
        %1942 = vmatpush1.bf16.msra.mxu0 %v1899
        %1943 = vmatprep.subr.bf16.mxu0 %v1896
        %1944 = vmatpush1.bf16.msra.mxu0 %v1895
        %1945 = vmatprep.subr.bf16.mxu0 %v1892
        %1946 = vmatpush1.bf16.msra.mxu0 %v1891
        %1947 = vmatprep.subr.bf16.mxu0 %v1888
        %1948 = vmatpush1.bf16.msra.mxu0 %v1887
        %1949 = vmatprep.subr.bf16.mxu0 %v1884
        %1950 = vmatpush1.bf16.msra.mxu0 %v1883
        %1951 = vmatprep.subr.bf16.mxu0 %v1880
        %1952 = vmatpush1.bf16.msra.mxu0 %v1879
        %1953 = vmatprep.subr.bf16.mxu0 %v1876
        %1954 = vmatpush1.bf16.msra.mxu0 %v1875
        %1955 = vmatprep.subr.bf16.mxu0 0
        %1956 = vmatpush2.bf16.msra.mxu0 0
        %1957 = vmatprep.subr.bf16.mxu0 0
        %1958 = vmatpush2.bf16.msra.mxu0 0
        %1959 = vmatprep.subr.bf16.mxu0 0
        %1960 = vmatpush2.bf16.msra.mxu0 0
        %1961 = vmatprep.subr.bf16.mxu0 0
        %1962 = vmatpush2.bf16.msra.mxu0 0
        %1963 = vmatprep.subr.bf16.mxu0 0
        %1964 = vmatpush2.bf16.msra.mxu0 0
        %1965 = vmatprep.subr.bf16.mxu0 0
        %1966 = vmatpush2.bf16.msra.mxu0 0
        %1967 = vmatprep.subr.bf16.mxu0 0
        %1968 = vmatpush2.bf16.msra.mxu0 0
        %1969 = vmatprep.subr.bf16.mxu0 0
        %1970 = vmatpush2.bf16.msra.mxu0 0
        %1971 = vmatprep.mubr.bf16.mxu0 0
        %1972 = vmatmul.mubr.bf16.gmra.mxu0 %v1746
        %v1973 = vpop.f32.mrf.mxu0
        %v1974 = vadd.f32 0.0, %v1973
        %v1975 = vpop.f32.mrf.mxu0
        %v1976 = vadd.f32 0.0, %v1975
        %v1977 = vpop.f32.mrf.mxu0
        %v1978 = vpop.f32.mrf.mxu0
        %1979 = vdwg.mxu0
        %1980 = vmatprep.subr.bf16.mxu0 %v1906
        %1981 = vmatpush1.bf16.msra.mxu0 %v1905
        %1982 = vmatprep.subr.bf16.mxu0 %v1902
        %1983 = vmatpush1.bf16.msra.mxu0 %v1901
        %1984 = vmatprep.subr.bf16.mxu0 %v1898
        %1985 = vmatpush1.bf16.msra.mxu0 %v1897
        %1986 = vmatprep.subr.bf16.mxu0 %v1894
        %1987 = vmatpush1.bf16.msra.mxu0 %v1893
        %1988 = vmatprep.subr.bf16.mxu0 %v1890
        %1989 = vmatpush1.bf16.msra.mxu0 %v1889
        %1990 = vmatprep.subr.bf16.mxu0 %v1886
        %1991 = vmatpush1.bf16.msra.mxu0 %v1885
        %1992 = vmatprep.subr.bf16.mxu0 %v1882
        %1993 = vmatpush1.bf16.msra.mxu0 %v1881
        %1994 = vmatprep.subr.bf16.mxu0 %v1878
        %1995 = vmatpush1.bf16.msra.mxu0 %v1877
        %1996 = vmatprep.subr.bf16.mxu0 0
        %1997 = vmatpush2.bf16.msra.mxu0 0
        %1998 = vmatprep.subr.bf16.mxu0 0
        %1999 = vmatpush2.bf16.msra.mxu0 0
        %2000 = vmatprep.subr.bf16.mxu0 0
        %2001 = vmatpush2.bf16.msra.mxu0 0
        %2002 = vmatprep.subr.bf16.mxu0 0
        %2003 = vmatpush2.bf16.msra.mxu0 0
        %2004 = vmatprep.subr.bf16.mxu0 0
        %2005 = vmatpush2.bf16.msra.mxu0 0
        %2006 = vmatprep.subr.bf16.mxu0 0
        %2007 = vmatpush2.bf16.msra.mxu0 0
        %2008 = vmatprep.subr.bf16.mxu0 0
        %2009 = vmatpush2.bf16.msra.mxu0 0
        %2010 = vmatprep.subr.bf16.mxu0 0
        %2011 = vmatpush2.bf16.msra.mxu0 0
        %2012 = vmatprep.mubr.bf16.mxu0 0
        %2013 = vmatmul.mubr.bf16.gmra.mxu0 %v1746
        %v2014 = vpop.f32.mrf.mxu0
        %v2015 = vadd.f32 0.0, %v2014
        %v2016 = vpop.f32.mrf.mxu0
        %v2017 = vadd.f32 0.0, %v2016
        %v2018 = vpop.f32.mrf.mxu0
        %v2019 = vpop.f32.mrf.mxu0
        %2020 = vdwg.mxu0
        %v2021 = vadd.f32 %v1742, %v1974
        %v2022 = vadd.f32 %v1743, %v1976
        %v2023 = vadd.f32 %v1744, %v2015
        %v2024 = vadd.f32 %v1745, %v2017
        %v2025 = vmul.f32 %v2021, 0.5
        %v2026 = vtanh.pop %v2025
        %v2027 = vmul.f32 %v2026, 0.5
        %v2028 = vadd.f32 %v2027, 0.5
        %v2029 = vmul.f32 %v2022, 0.5
        %v2030 = vtanh.pop %v2029
        %v2031 = vmul.f32 %v2030, 0.5
        %v2032 = vadd.f32 %v2031, 0.5
        %v2033 = vtanh.pop %v2023
        %v2034 = vmul.f32 %v2024, 0.5
        %v2035 = vtanh.pop %v2034
        %v2036 = vmul.f32 %v2035, 0.5
        %v2037 = vadd.f32 %v2036, 0.5
        %v2038 = vmul.f32 %v2032, %v1730
        %v2039 = vmul.f32 %v2028, %v2033
        %v2040 = vadd.f32 %v2038, %v2039
        %v2041 = vtanh.pop %v2040
        %v2042 = vmul.f32 %v2037, %v2041
        %s2043 = scalar_lea.vmem [#allocation3], 32
        %2044 = vst [vmem:[%s2043] sm:$0xff] %v2042
        %s2045 = scalar_lea.vmem %s417, 80 [#allocation4]
        %v2046 = vld [vmem:[%s2045] sm:$0xff]
        %v2047 = vld [vmem:[%s2045 + $0x8] sm:$0xff]
        %v2048 = vunpack.c.l.bf16 %v2046
        %v2049 = vunpack.c.h.bf16 %v2046
        %v2050 = vunpack.c.l.bf16 %v2047
        %v2051 = vunpack.c.h.bf16 %v2047
        %v2052 = vadd.f32 %v2048, %v487
        %v2053 = vadd.f32 %v2049, %v491
        %v2054 = vadd.f32 %v2050, %v495
        %v2055 = vadd.f32 %v2051, %v499
        %v2056 = vpack.c.bf16 %v2042, %v2042
        %v2057 = vld [vmem:[%s1] sm:$0xff]
        %v2058 = vld [vmem:[%s1 + $0x8] sm:$0xff]
        %v2059 = vld [vmem:[%s1 + $0x10] sm:$0xff]
        %v2060 = vld [vmem:[%s1 + $0x18] sm:$0xff]
        %v2061 = vld [vmem:[%s1 + $0x20] sm:$0xff]
        %v2062 = vld [vmem:[%s1 + $0x28] sm:$0xff]
        %v2063 = vld [vmem:[%s1 + $0x30] sm:$0xff]
        %v2064 = vld [vmem:[%s1 + $0x38] sm:$0xff]
        %v2065 = vld [vmem:[%s1 + $0x40] sm:$0xff]
        %v2066 = vld [vmem:[%s1 + $0x48] sm:$0xff]
        %v2067 = vld [vmem:[%s1 + $0x50] sm:$0xff]
        %v2068 = vld [vmem:[%s1 + $0x58] sm:$0xff]
        %v2069 = vld [vmem:[%s1 + $0x60] sm:$0xff]
        %v2070 = vld [vmem:[%s1 + $0x68] sm:$0xff]
        %v2071 = vld [vmem:[%s1 + $0x70] sm:$0xff]
        %v2072 = vld [vmem:[%s1 + $0x78] sm:$0xff]
        %v2073 = vld [vmem:[%s1 + $0x80] sm:$0xff]
        %v2074 = vld [vmem:[%s1 + $0x88] sm:$0xff]
        %v2075 = vld [vmem:[%s1 + $0x90] sm:$0xff]
        %v2076 = vld [vmem:[%s1 + $0x98] sm:$0xff]
        %v2077 = vld [vmem:[%s1 + $0xa0] sm:$0xff]
        %v2078 = vld [vmem:[%s1 + $0xa8] sm:$0xff]
        %v2079 = vld [vmem:[%s1 + $0xb0] sm:$0xff]
        %v2080 = vld [vmem:[%s1 + $0xb8] sm:$0xff]
        %v2081 = vld [vmem:[%s1 + $0xc0] sm:$0xff]
        %v2082 = vld [vmem:[%s1 + $0xc8] sm:$0xff]
        %v2083 = vld [vmem:[%s1 + $0xd0] sm:$0xff]
        %v2084 = vld [vmem:[%s1 + $0xd8] sm:$0xff]
        %v2085 = vld [vmem:[%s1 + $0xe0] sm:$0xff]
        %v2086 = vld [vmem:[%s1 + $0xe8] sm:$0xff]
        %v2087 = vld [vmem:[%s1 + $0xf0] sm:$0xff]
        %v2088 = vld [vmem:[%s1 + $0xf8] sm:$0xff]
        %v2121 = vunpack.c.l.b16 %v2057
        %v2122 = vunpack.c.h.b16 %v2057
        %v2123 = vunpack.c.l.b16 %v2058
        %v2124 = vunpack.c.h.b16 %v2058
        %v2125 = vunpack.c.l.b16 %v2059
        %v2126 = vunpack.c.h.b16 %v2059
        %v2127 = vunpack.c.l.b16 %v2060
        %v2128 = vunpack.c.h.b16 %v2060
        %v2129 = vunpack.c.l.b16 %v2061
        %v2130 = vunpack.c.h.b16 %v2061
        %v2131 = vunpack.c.l.b16 %v2062
        %v2132 = vunpack.c.h.b16 %v2062
        %v2133 = vunpack.c.l.b16 %v2063
        %v2134 = vunpack.c.h.b16 %v2063
        %v2135 = vunpack.c.l.b16 %v2064
        %v2136 = vunpack.c.h.b16 %v2064
        %v2137 = vunpack.c.l.b16 %v2065
        %v2138 = vunpack.c.h.b16 %v2065
        %v2139 = vunpack.c.l.b16 %v2066
        %v2140 = vunpack.c.h.b16 %v2066
        %v2141 = vunpack.c.l.b16 %v2067
        %v2142 = vunpack.c.h.b16 %v2067
        %v2143 = vunpack.c.l.b16 %v2068
        %v2144 = vunpack.c.h.b16 %v2068
        %v2145 = vunpack.c.l.b16 %v2069
        %v2146 = vunpack.c.h.b16 %v2069
        %v2147 = vunpack.c.l.b16 %v2070
        %v2148 = vunpack.c.h.b16 %v2070
        %v2149 = vunpack.c.l.b16 %v2071
        %v2150 = vunpack.c.h.b16 %v2071
        %v2151 = vunpack.c.l.b16 %v2072
        %v2152 = vunpack.c.h.b16 %v2072
        %v2153 = vunpack.c.l.b16 %v2073
        %v2154 = vunpack.c.h.b16 %v2073
        %v2155 = vunpack.c.l.b16 %v2074
        %v2156 = vunpack.c.h.b16 %v2074
        %v2157 = vunpack.c.l.b16 %v2075
        %v2158 = vunpack.c.h.b16 %v2075
        %v2159 = vunpack.c.l.b16 %v2076
        %v2160 = vunpack.c.h.b16 %v2076
        %v2161 = vunpack.c.l.b16 %v2077
        %v2162 = vunpack.c.h.b16 %v2077
        %v2163 = vunpack.c.l.b16 %v2078
        %v2164 = vunpack.c.h.b16 %v2078
        %v2165 = vunpack.c.l.b16 %v2079
        %v2166 = vunpack.c.h.b16 %v2079
        %v2167 = vunpack.c.l.b16 %v2080
        %v2168 = vunpack.c.h.b16 %v2080
        %v2169 = vunpack.c.l.b16 %v2081
        %v2170 = vunpack.c.h.b16 %v2081
        %v2171 = vunpack.c.l.b16 %v2082
        %v2172 = vunpack.c.h.b16 %v2082
        %v2173 = vunpack.c.l.b16 %v2083
        %v2174 = vunpack.c.h.b16 %v2083
        %v2175 = vunpack.c.l.b16 %v2084
        %v2176 = vunpack.c.h.b16 %v2084
        %v2177 = vunpack.c.l.b16 %v2085
        %v2178 = vunpack.c.h.b16 %v2085
        %v2179 = vunpack.c.l.b16 %v2086
        %v2180 = vunpack.c.h.b16 %v2086
        %v2181 = vunpack.c.l.b16 %v2087
        %v2182 = vunpack.c.h.b16 %v2087
        %v2183 = vunpack.c.l.b16 %v2088
        %v2184 = vunpack.c.h.b16 %v2088
        %v2185 = vpack.c.b16 %v2125, %v2121
        %v2186 = vpack.c.b16 %v2126, %v2122
        %v2187 = vpack.c.b16 %v2127, %v2123
        %v2188 = vpack.c.b16 %v2128, %v2124
        %v2189 = vpack.c.b16 %v2133, %v2129
        %v2190 = vpack.c.b16 %v2134, %v2130
        %v2191 = vpack.c.b16 %v2135, %v2131
        %v2192 = vpack.c.b16 %v2136, %v2132
        %v2193 = vpack.c.b16 %v2141, %v2137
        %v2194 = vpack.c.b16 %v2142, %v2138
        %v2195 = vpack.c.b16 %v2143, %v2139
        %v2196 = vpack.c.b16 %v2144, %v2140
        %v2197 = vpack.c.b16 %v2149, %v2145
        %v2198 = vpack.c.b16 %v2150, %v2146
        %v2199 = vpack.c.b16 %v2151, %v2147
        %v2200 = vpack.c.b16 %v2152, %v2148
        %v2201 = vpack.c.b16 %v2157, %v2153
        %v2202 = vpack.c.b16 %v2158, %v2154
        %v2203 = vpack.c.b16 %v2159, %v2155
        %v2204 = vpack.c.b16 %v2160, %v2156
        %v2205 = vpack.c.b16 %v2165, %v2161
        %v2206 = vpack.c.b16 %v2166, %v2162
        %v2207 = vpack.c.b16 %v2167, %v2163
        %v2208 = vpack.c.b16 %v2168, %v2164
        %v2209 = vpack.c.b16 %v2173, %v2169
        %v2210 = vpack.c.b16 %v2174, %v2170
        %v2211 = vpack.c.b16 %v2175, %v2171
        %v2212 = vpack.c.b16 %v2176, %v2172
        %v2213 = vpack.c.b16 %v2181, %v2177
        %v2214 = vpack.c.b16 %v2182, %v2178
        %v2215 = vpack.c.b16 %v2183, %v2179
        %v2216 = vpack.c.b16 %v2184, %v2180
        %2249 = vmatprep.subr.bf16.mxu0 %v2214
        %2250 = vmatpush1.bf16.msra.mxu0 %v2213
        %2251 = vmatprep.subr.bf16.mxu0 %v2210
        %2252 = vmatpush1.bf16.msra.mxu0 %v2209
        %2253 = vmatprep.subr.bf16.mxu0 %v2206
        %2254 = vmatpush1.bf16.msra.mxu0 %v2205
        %2255 = vmatprep.subr.bf16.mxu0 %v2202
        %2256 = vmatpush1.bf16.msra.mxu0 %v2201
        %2257 = vmatprep.subr.bf16.mxu0 %v2198
        %2258 = vmatpush1.bf16.msra.mxu0 %v2197
        %2259 = vmatprep.subr.bf16.mxu0 %v2194
        %2260 = vmatpush1.bf16.msra.mxu0 %v2193
        %2261 = vmatprep.subr.bf16.mxu0 %v2190
        %2262 = vmatpush1.bf16.msra.mxu0 %v2189
        %2263 = vmatprep.subr.bf16.mxu0 %v2186
        %2264 = vmatpush1.bf16.msra.mxu0 %v2185
        %2265 = vmatprep.subr.bf16.mxu0 0
        %2266 = vmatpush2.bf16.msra.mxu0 0
        %2267 = vmatprep.subr.bf16.mxu0 0
        %2268 = vmatpush2.bf16.msra.mxu0 0
        %2269 = vmatprep.subr.bf16.mxu0 0
        %2270 = vmatpush2.bf16.msra.mxu0 0
        %2271 = vmatprep.subr.bf16.mxu0 0
        %2272 = vmatpush2.bf16.msra.mxu0 0
        %2273 = vmatprep.subr.bf16.mxu0 0
        %2274 = vmatpush2.bf16.msra.mxu0 0
        %2275 = vmatprep.subr.bf16.mxu0 0
        %2276 = vmatpush2.bf16.msra.mxu0 0
        %2277 = vmatprep.subr.bf16.mxu0 0
        %2278 = vmatpush2.bf16.msra.mxu0 0
        %2279 = vmatprep.subr.bf16.mxu0 0
        %2280 = vmatpush2.bf16.msra.mxu0 0
        %2281 = vmatprep.mubr.bf16.mxu0 0
        %2282 = vmatmul.mubr.bf16.gmra.mxu0 %v2056
        %v2283 = vpop.f32.mrf.mxu0
        %v2284 = vadd.f32 0.0, %v2283
        %v2285 = vpop.f32.mrf.mxu0
        %v2286 = vadd.f32 0.0, %v2285
        %v2287 = vpop.f32.mrf.mxu0
        %v2288 = vpop.f32.mrf.mxu0
        %2289 = vdwg.mxu0
        %2290 = vmatprep.subr.bf16.mxu0 %v2216
        %2291 = vmatpush1.bf16.msra.mxu0 %v2215
        %2292 = vmatprep.subr.bf16.mxu0 %v2212
        %2293 = vmatpush1.bf16.msra.mxu0 %v2211
        %2294 = vmatprep.subr.bf16.mxu0 %v2208
        %2295 = vmatpush1.bf16.msra.mxu0 %v2207
        %2296 = vmatprep.subr.bf16.mxu0 %v2204
        %2297 = vmatpush1.bf16.msra.mxu0 %v2203
        %2298 = vmatprep.subr.bf16.mxu0 %v2200
        %2299 = vmatpush1.bf16.msra.mxu0 %v2199
        %2300 = vmatprep.subr.bf16.mxu0 %v2196
        %2301 = vmatpush1.bf16.msra.mxu0 %v2195
        %2302 = vmatprep.subr.bf16.mxu0 %v2192
        %2303 = vmatpush1.bf16.msra.mxu0 %v2191
        %2304 = vmatprep.subr.bf16.mxu0 %v2188
        %2305 = vmatpush1.bf16.msra.mxu0 %v2187
        %2306 = vmatprep.subr.bf16.mxu0 0
        %2307 = vmatpush2.bf16.msra.mxu0 0
        %2308 = vmatprep.subr.bf16.mxu0 0
        %2309 = vmatpush2.bf16.msra.mxu0 0
        %2310 = vmatprep.subr.bf16.mxu0 0
        %2311 = vmatpush2.bf16.msra.mxu0 0
        %2312 = vmatprep.subr.bf16.mxu0 0
        %2313 = vmatpush2.bf16.msra.mxu0 0
        %2314 = vmatprep.subr.bf16.mxu0 0
        %2315 = vmatpush2.bf16.msra.mxu0 0
        %2316 = vmatprep.subr.bf16.mxu0 0
        %2317 = vmatpush2.bf16.msra.mxu0 0
        %2318 = vmatprep.subr.bf16.mxu0 0
        %2319 = vmatpush2.bf16.msra.mxu0 0
        %2320 = vmatprep.subr.bf16.mxu0 0
        %2321 = vmatpush2.bf16.msra.mxu0 0
        %2322 = vmatprep.mubr.bf16.mxu0 0
        %2323 = vmatmul.mubr.bf16.gmra.mxu0 %v2056
        %v2324 = vpop.f32.mrf.mxu0
        %v2325 = vadd.f32 0.0, %v2324
        %v2326 = vpop.f32.mrf.mxu0
        %v2327 = vadd.f32 0.0, %v2326
        %v2328 = vpop.f32.mrf.mxu0
        %v2329 = vpop.f32.mrf.mxu0
        %2330 = vdwg.mxu0
        %v2331 = vadd.f32 %v2052, %v2284
        %v2332 = vadd.f32 %v2053, %v2286
        %v2333 = vadd.f32 %v2054, %v2325
        %v2334 = vadd.f32 %v2055, %v2327
        %v2335 = vmul.f32 %v2331, 0.5
        %v2336 = vtanh.pop %v2335
        %v2337 = vmul.f32 %v2336, 0.5
        %v2338 = vadd.f32 %v2337, 0.5
        %v2339 = vmul.f32 %v2332, 0.5
        %v2340 = vtanh.pop %v2339
        %v2341 = vmul.f32 %v2340, 0.5
        %v2342 = vadd.f32 %v2341, 0.5
        %v2343 = vtanh.pop %v2333
        %v2344 = vmul.f32 %v2334, 0.5
        %v2345 = vtanh.pop %v2344
        %v2346 = vmul.f32 %v2345, 0.5
        %v2347 = vadd.f32 %v2346, 0.5
        %v2348 = vmul.f32 %v2342, %v2040
        %v2349 = vmul.f32 %v2338, %v2343
        %v2350 = vadd.f32 %v2348, %v2349
        %v2351 = vtanh.pop %v2350
        %v2352 = vmul.f32 %v2347, %v2351
        %s2353 = scalar_lea.vmem [#allocation3], 40
        %2354 = vst [vmem:[%s2353] sm:$0xff] %v2352
        %s2355 = scalar_lea.vmem %s417, 96 [#allocation4]
        %v2356 = vld [vmem:[%s2355] sm:$0xff]
        %v2357 = vld [vmem:[%s2355 + $0x8] sm:$0xff]
        %v2358 = vunpack.c.l.bf16 %v2356
        %v2359 = vunpack.c.h.bf16 %v2356
        %v2360 = vunpack.c.l.bf16 %v2357
        %v2361 = vunpack.c.h.bf16 %v2357
        %v2362 = vadd.f32 %v2358, %v487
        %v2363 = vadd.f32 %v2359, %v491
        %v2364 = vadd.f32 %v2360, %v495
        %v2365 = vadd.f32 %v2361, %v499
        %v2366 = vpack.c.bf16 %v2352, %v2352
        %v2367 = vld [vmem:[%s1] sm:$0xff]
        %v2368 = vld [vmem:[%s1 + $0x8] sm:$0xff]
        %v2369 = vld [vmem:[%s1 + $0x10] sm:$0xff]
        %v2370 = vld [vmem:[%s1 + $0x18] sm:$0xff]
        %v2371 = vld [vmem:[%s1 + $0x20] sm:$0xff]
        %v2372 = vld [vmem:[%s1 + $0x28] sm:$0xff]
        %v2373 = vld [vmem:[%s1 + $0x30] sm:$0xff]
        %v2374 = vld [vmem:[%s1 + $0x38] sm:$0xff]
        %v2375 = vld [vmem:[%s1 + $0x40] sm:$0xff]
        %v2376 = vld [vmem:[%s1 + $0x48] sm:$0xff]
        %v2377 = vld [vmem:[%s1 + $0x50] sm:$0xff]
        %v2378 = vld [vmem:[%s1 + $0x58] sm:$0xff]
        %v2379 = vld [vmem:[%s1 + $0x60] sm:$0xff]
        %v2380 = vld [vmem:[%s1 + $0x68] sm:$0xff]
        %v2381 = vld [vmem:[%s1 + $0x70] sm:$0xff]
        %v2382 = vld [vmem:[%s1 + $0x78] sm:$0xff]
        %v2383 = vld [vmem:[%s1 + $0x80] sm:$0xff]
        %v2384 = vld [vmem:[%s1 + $0x88] sm:$0xff]
        %v2385 = vld [vmem:[%s1 + $0x90] sm:$0xff]
        %v2386 = vld [vmem:[%s1 + $0x98] sm:$0xff]
        %v2387 = vld [vmem:[%s1 + $0xa0] sm:$0xff]
        %v2388 = vld [vmem:[%s1 + $0xa8] sm:$0xff]
        %v2389 = vld [vmem:[%s1 + $0xb0] sm:$0xff]
        %v2390 = vld [vmem:[%s1 + $0xb8] sm:$0xff]
        %v2391 = vld [vmem:[%s1 + $0xc0] sm:$0xff]
        %v2392 = vld [vmem:[%s1 + $0xc8] sm:$0xff]
        %v2393 = vld [vmem:[%s1 + $0xd0] sm:$0xff]
        %v2394 = vld [vmem:[%s1 + $0xd8] sm:$0xff]
        %v2395 = vld [vmem:[%s1 + $0xe0] sm:$0xff]
        %v2396 = vld [vmem:[%s1 + $0xe8] sm:$0xff]
        %v2397 = vld [vmem:[%s1 + $0xf0] sm:$0xff]
        %v2398 = vld [vmem:[%s1 + $0xf8] sm:$0xff]
        %v2431 = vunpack.c.l.b16 %v2367
        %v2432 = vunpack.c.h.b16 %v2367
        %v2433 = vunpack.c.l.b16 %v2368
        %v2434 = vunpack.c.h.b16 %v2368
        %v2435 = vunpack.c.l.b16 %v2369
        %v2436 = vunpack.c.h.b16 %v2369
        %v2437 = vunpack.c.l.b16 %v2370
        %v2438 = vunpack.c.h.b16 %v2370
        %v2439 = vunpack.c.l.b16 %v2371
        %v2440 = vunpack.c.h.b16 %v2371
        %v2441 = vunpack.c.l.b16 %v2372
        %v2442 = vunpack.c.h.b16 %v2372
        %v2443 = vunpack.c.l.b16 %v2373
        %v2444 = vunpack.c.h.b16 %v2373
        %v2445 = vunpack.c.l.b16 %v2374
        %v2446 = vunpack.c.h.b16 %v2374
        %v2447 = vunpack.c.l.b16 %v2375
        %v2448 = vunpack.c.h.b16 %v2375
        %v2449 = vunpack.c.l.b16 %v2376
        %v2450 = vunpack.c.h.b16 %v2376
        %v2451 = vunpack.c.l.b16 %v2377
        %v2452 = vunpack.c.h.b16 %v2377
        %v2453 = vunpack.c.l.b16 %v2378
        %v2454 = vunpack.c.h.b16 %v2378
        %v2455 = vunpack.c.l.b16 %v2379
        %v2456 = vunpack.c.h.b16 %v2379
        %v2457 = vunpack.c.l.b16 %v2380
        %v2458 = vunpack.c.h.b16 %v2380
        %v2459 = vunpack.c.l.b16 %v2381
        %v2460 = vunpack.c.h.b16 %v2381
        %v2461 = vunpack.c.l.b16 %v2382
        %v2462 = vunpack.c.h.b16 %v2382
        %v2463 = vunpack.c.l.b16 %v2383
        %v2464 = vunpack.c.h.b16 %v2383
        %v2465 = vunpack.c.l.b16 %v2384
        %v2466 = vunpack.c.h.b16 %v2384
        %v2467 = vunpack.c.l.b16 %v2385
        %v2468 = vunpack.c.h.b16 %v2385
        %v2469 = vunpack.c.l.b16 %v2386
        %v2470 = vunpack.c.h.b16 %v2386
        %v2471 = vunpack.c.l.b16 %v2387
        %v2472 = vunpack.c.h.b16 %v2387
        %v2473 = vunpack.c.l.b16 %v2388
        %v2474 = vunpack.c.h.b16 %v2388
        %v2475 = vunpack.c.l.b16 %v2389
        %v2476 = vunpack.c.h.b16 %v2389
        %v2477 = vunpack.c.l.b16 %v2390
        %v2478 = vunpack.c.h.b16 %v2390
        %v2479 = vunpack.c.l.b16 %v2391
        %v2480 = vunpack.c.h.b16 %v2391
        %v2481 = vunpack.c.l.b16 %v2392
        %v2482 = vunpack.c.h.b16 %v2392
        %v2483 = vunpack.c.l.b16 %v2393
        %v2484 = vunpack.c.h.b16 %v2393
        %v2485 = vunpack.c.l.b16 %v2394
        %v2486 = vunpack.c.h.b16 %v2394
        %v2487 = vunpack.c.l.b16 %v2395
        %v2488 = vunpack.c.h.b16 %v2395
        %v2489 = vunpack.c.l.b16 %v2396
        %v2490 = vunpack.c.h.b16 %v2396
        %v2491 = vunpack.c.l.b16 %v2397
        %v2492 = vunpack.c.h.b16 %v2397
        %v2493 = vunpack.c.l.b16 %v2398
        %v2494 = vunpack.c.h.b16 %v2398
        %v2495 = vpack.c.b16 %v2435, %v2431
        %v2496 = vpack.c.b16 %v2436, %v2432
        %v2497 = vpack.c.b16 %v2437, %v2433
        %v2498 = vpack.c.b16 %v2438, %v2434
        %v2499 = vpack.c.b16 %v2443, %v2439
        %v2500 = vpack.c.b16 %v2444, %v2440
        %v2501 = vpack.c.b16 %v2445, %v2441
        %v2502 = vpack.c.b16 %v2446, %v2442
        %v2503 = vpack.c.b16 %v2451, %v2447
        %v2504 = vpack.c.b16 %v2452, %v2448
        %v2505 = vpack.c.b16 %v2453, %v2449
        %v2506 = vpack.c.b16 %v2454, %v2450
        %v2507 = vpack.c.b16 %v2459, %v2455
        %v2508 = vpack.c.b16 %v2460, %v2456
        %v2509 = vpack.c.b16 %v2461, %v2457
        %v2510 = vpack.c.b16 %v2462, %v2458
        %v2511 = vpack.c.b16 %v2467, %v2463
        %v2512 = vpack.c.b16 %v2468, %v2464
        %v2513 = vpack.c.b16 %v2469, %v2465
        %v2514 = vpack.c.b16 %v2470, %v2466
        %v2515 = vpack.c.b16 %v2475, %v2471
        %v2516 = vpack.c.b16 %v2476, %v2472
        %v2517 = vpack.c.b16 %v2477, %v2473
        %v2518 = vpack.c.b16 %v2478, %v2474
        %v2519 = vpack.c.b16 %v2483, %v2479
        %v2520 = vpack.c.b16 %v2484, %v2480
        %v2521 = vpack.c.b16 %v2485, %v2481
        %v2522 = vpack.c.b16 %v2486, %v2482
        %v2523 = vpack.c.b16 %v2491, %v2487
        %v2524 = vpack.c.b16 %v2492, %v2488
        %v2525 = vpack.c.b16 %v2493, %v2489
        %v2526 = vpack.c.b16 %v2494, %v2490
        %2559 = vmatprep.subr.bf16.mxu0 %v2524
        %2560 = vmatpush1.bf16.msra.mxu0 %v2523
        %2561 = vmatprep.subr.bf16.mxu0 %v2520
        %2562 = vmatpush1.bf16.msra.mxu0 %v2519
        %2563 = vmatprep.subr.bf16.mxu0 %v2516
        %2564 = vmatpush1.bf16.msra.mxu0 %v2515
        %2565 = vmatprep.subr.bf16.mxu0 %v2512
        %2566 = vmatpush1.bf16.msra.mxu0 %v2511
        %2567 = vmatprep.subr.bf16.mxu0 %v2508
        %2568 = vmatpush1.bf16.msra.mxu0 %v2507
        %2569 = vmatprep.subr.bf16.mxu0 %v2504
        %2570 = vmatpush1.bf16.msra.mxu0 %v2503
        %2571 = vmatprep.subr.bf16.mxu0 %v2500
        %2572 = vmatpush1.bf16.msra.mxu0 %v2499
        %2573 = vmatprep.subr.bf16.mxu0 %v2496
        %2574 = vmatpush1.bf16.msra.mxu0 %v2495
        %2575 = vmatprep.subr.bf16.mxu0 0
        %2576 = vmatpush2.bf16.msra.mxu0 0
        %2577 = vmatprep.subr.bf16.mxu0 0
        %2578 = vmatpush2.bf16.msra.mxu0 0
        %2579 = vmatprep.subr.bf16.mxu0 0
        %2580 = vmatpush2.bf16.msra.mxu0 0
        %2581 = vmatprep.subr.bf16.mxu0 0
        %2582 = vmatpush2.bf16.msra.mxu0 0
        %2583 = vmatprep.subr.bf16.mxu0 0
        %2584 = vmatpush2.bf16.msra.mxu0 0
        %2585 = vmatprep.subr.bf16.mxu0 0
        %2586 = vmatpush2.bf16.msra.mxu0 0
        %2587 = vmatprep.subr.bf16.mxu0 0
        %2588 = vmatpush2.bf16.msra.mxu0 0
        %2589 = vmatprep.subr.bf16.mxu0 0
        %2590 = vmatpush2.bf16.msra.mxu0 0
        %2591 = vmatprep.mubr.bf16.mxu0 0
        %2592 = vmatmul.mubr.bf16.gmra.mxu0 %v2366
        %v2593 = vpop.f32.mrf.mxu0
        %v2594 = vadd.f32 0.0, %v2593
        %v2595 = vpop.f32.mrf.mxu0
        %v2596 = vadd.f32 0.0, %v2595
        %v2597 = vpop.f32.mrf.mxu0
        %v2598 = vpop.f32.mrf.mxu0
        %2599 = vdwg.mxu0
        %2600 = vmatprep.subr.bf16.mxu0 %v2526
        %2601 = vmatpush1.bf16.msra.mxu0 %v2525
        %2602 = vmatprep.subr.bf16.mxu0 %v2522
        %2603 = vmatpush1.bf16.msra.mxu0 %v2521
        %2604 = vmatprep.subr.bf16.mxu0 %v2518
        %2605 = vmatpush1.bf16.msra.mxu0 %v2517
        %2606 = vmatprep.subr.bf16.mxu0 %v2514
        %2607 = vmatpush1.bf16.msra.mxu0 %v2513
        %2608 = vmatprep.subr.bf16.mxu0 %v2510
        %2609 = vmatpush1.bf16.msra.mxu0 %v2509
        %2610 = vmatprep.subr.bf16.mxu0 %v2506
        %2611 = vmatpush1.bf16.msra.mxu0 %v2505
        %2612 = vmatprep.subr.bf16.mxu0 %v2502
        %2613 = vmatpush1.bf16.msra.mxu0 %v2501
        %2614 = vmatprep.subr.bf16.mxu0 %v2498
        %2615 = vmatpush1.bf16.msra.mxu0 %v2497
        %2616 = vmatprep.subr.bf16.mxu0 0
        %2617 = vmatpush2.bf16.msra.mxu0 0
        %2618 = vmatprep.subr.bf16.mxu0 0
        %2619 = vmatpush2.bf16.msra.mxu0 0
        %2620 = vmatprep.subr.bf16.mxu0 0
        %2621 = vmatpush2.bf16.msra.mxu0 0
        %2622 = vmatprep.subr.bf16.mxu0 0
        %2623 = vmatpush2.bf16.msra.mxu0 0
        %2624 = vmatprep.subr.bf16.mxu0 0
        %2625 = vmatpush2.bf16.msra.mxu0 0
        %2626 = vmatprep.subr.bf16.mxu0 0
        %2627 = vmatpush2.bf16.msra.mxu0 0
        %2628 = vmatprep.subr.bf16.mxu0 0
        %2629 = vmatpush2.bf16.msra.mxu0 0
        %2630 = vmatprep.subr.bf16.mxu0 0
        %2631 = vmatpush2.bf16.msra.mxu0 0
        %2632 = vmatprep.mubr.bf16.mxu0 0
        %2633 = vmatmul.mubr.bf16.gmra.mxu0 %v2366
        %v2634 = vpop.f32.mrf.mxu0
        %v2635 = vadd.f32 0.0, %v2634
        %v2636 = vpop.f32.mrf.mxu0
        %v2637 = vadd.f32 0.0, %v2636
        %v2638 = vpop.f32.mrf.mxu0
        %v2639 = vpop.f32.mrf.mxu0
        %2640 = vdwg.mxu0
        %v2641 = vadd.f32 %v2362, %v2594
        %v2642 = vadd.f32 %v2363, %v2596
        %v2643 = vadd.f32 %v2364, %v2635
        %v2644 = vadd.f32 %v2365, %v2637
        %v2645 = vmul.f32 %v2641, 0.5
        %v2646 = vtanh.pop %v2645
        %v2647 = vmul.f32 %v2646, 0.5
        %v2648 = vadd.f32 %v2647, 0.5
        %v2649 = vmul.f32 %v2642, 0.5
        %v2650 = vtanh.pop %v2649
        %v2651 = vmul.f32 %v2650, 0.5
        %v2652 = vadd.f32 %v2651, 0.5
        %v2653 = vtanh.pop %v2643
        %v2654 = vmul.f32 %v2644, 0.5
        %v2655 = vtanh.pop %v2654
        %v2656 = vmul.f32 %v2655, 0.5
        %v2657 = vadd.f32 %v2656, 0.5
        %v2658 = vmul.f32 %v2652, %v2350
        %v2659 = vmul.f32 %v2648, %v2653
        %v2660 = vadd.f32 %v2658, %v2659
        %v2661 = vtanh.pop %v2660
        %v2662 = vmul.f32 %v2657, %v2661
        %s2663 = scalar_lea.vmem [#allocation3], 48
        %2664 = vst [vmem:[%s2663] sm:$0xff] %v2662
        %s2665 = scalar_lea.vmem %s417, 112 [#allocation4]
        %v2666 = vld [vmem:[%s2665] sm:$0xff]
        %v2667 = vld [vmem:[%s2665 + $0x8] sm:$0xff]
        %v2668 = vunpack.c.l.bf16 %v2666
        %v2669 = vunpack.c.h.bf16 %v2666
        %v2670 = vunpack.c.l.bf16 %v2667
        %v2671 = vunpack.c.h.bf16 %v2667
        %v2672 = vadd.f32 %v2668, %v487
        %v2673 = vadd.f32 %v2669, %v491
        %v2674 = vadd.f32 %v2670, %v495
        %v2675 = vadd.f32 %v2671, %v499
        %v2676 = vpack.c.bf16 %v2662, %v2662
        %v2677 = vld [vmem:[%s1] sm:$0xff]
        %v2678 = vld [vmem:[%s1 + $0x8] sm:$0xff]
        %v2679 = vld [vmem:[%s1 + $0x10] sm:$0xff]
        %v2680 = vld [vmem:[%s1 + $0x18] sm:$0xff]
        %v2681 = vld [vmem:[%s1 + $0x20] sm:$0xff]
        %v2682 = vld [vmem:[%s1 + $0x28] sm:$0xff]
        %v2683 = vld [vmem:[%s1 + $0x30] sm:$0xff]
        %v2684 = vld [vmem:[%s1 + $0x38] sm:$0xff]
        %v2685 = vld [vmem:[%s1 + $0x40] sm:$0xff]
        %v2686 = vld [vmem:[%s1 + $0x48] sm:$0xff]
        %v2687 = vld [vmem:[%s1 + $0x50] sm:$0xff]
        %v2688 = vld [vmem:[%s1 + $0x58] sm:$0xff]
        %v2689 = vld [vmem:[%s1 + $0x60] sm:$0xff]
        %v2690 = vld [vmem:[%s1 + $0x68] sm:$0xff]
        %v2691 = vld [vmem:[%s1 + $0x70] sm:$0xff]
        %v2692 = vld [vmem:[%s1 + $0x78] sm:$0xff]
        %v2693 = vld [vmem:[%s1 + $0x80] sm:$0xff]
        %v2694 = vld [vmem:[%s1 + $0x88] sm:$0xff]
        %v2695 = vld [vmem:[%s1 + $0x90] sm:$0xff]
        %v2696 = vld [vmem:[%s1 + $0x98] sm:$0xff]
        %v2697 = vld [vmem:[%s1 + $0xa0] sm:$0xff]
        %v2698 = vld [vmem:[%s1 + $0xa8] sm:$0xff]
        %v2699 = vld [vmem:[%s1 + $0xb0] sm:$0xff]
        %v2700 = vld [vmem:[%s1 + $0xb8] sm:$0xff]
        %v2701 = vld [vmem:[%s1 + $0xc0] sm:$0xff]
        %v2702 = vld [vmem:[%s1 + $0xc8] sm:$0xff]
        %v2703 = vld [vmem:[%s1 + $0xd0] sm:$0xff]
        %v2704 = vld [vmem:[%s1 + $0xd8] sm:$0xff]
        %v2705 = vld [vmem:[%s1 + $0xe0] sm:$0xff]
        %v2706 = vld [vmem:[%s1 + $0xe8] sm:$0xff]
        %v2707 = vld [vmem:[%s1 + $0xf0] sm:$0xff]
        %v2708 = vld [vmem:[%s1 + $0xf8] sm:$0xff]
        %v2741 = vunpack.c.l.b16 %v2677
        %v2742 = vunpack.c.h.b16 %v2677
        %v2743 = vunpack.c.l.b16 %v2678
        %v2744 = vunpack.c.h.b16 %v2678
        %v2745 = vunpack.c.l.b16 %v2679
        %v2746 = vunpack.c.h.b16 %v2679
        %v2747 = vunpack.c.l.b16 %v2680
        %v2748 = vunpack.c.h.b16 %v2680
        %v2749 = vunpack.c.l.b16 %v2681
        %v2750 = vunpack.c.h.b16 %v2681
        %v2751 = vunpack.c.l.b16 %v2682
        %v2752 = vunpack.c.h.b16 %v2682
        %v2753 = vunpack.c.l.b16 %v2683
        %v2754 = vunpack.c.h.b16 %v2683
        %v2755 = vunpack.c.l.b16 %v2684
        %v2756 = vunpack.c.h.b16 %v2684
        %v2757 = vunpack.c.l.b16 %v2685
        %v2758 = vunpack.c.h.b16 %v2685
        %v2759 = vunpack.c.l.b16 %v2686
        %v2760 = vunpack.c.h.b16 %v2686
        %v2761 = vunpack.c.l.b16 %v2687
        %v2762 = vunpack.c.h.b16 %v2687
        %v2763 = vunpack.c.l.b16 %v2688
        %v2764 = vunpack.c.h.b16 %v2688
        %v2765 = vunpack.c.l.b16 %v2689
        %v2766 = vunpack.c.h.b16 %v2689
        %v2767 = vunpack.c.l.b16 %v2690
        %v2768 = vunpack.c.h.b16 %v2690
        %v2769 = vunpack.c.l.b16 %v2691
        %v2770 = vunpack.c.h.b16 %v2691
        %v2771 = vunpack.c.l.b16 %v2692
        %v2772 = vunpack.c.h.b16 %v2692
        %v2773 = vunpack.c.l.b16 %v2693
        %v2774 = vunpack.c.h.b16 %v2693
        %v2775 = vunpack.c.l.b16 %v2694
        %v2776 = vunpack.c.h.b16 %v2694
        %v2777 = vunpack.c.l.b16 %v2695
        %v2778 = vunpack.c.h.b16 %v2695
        %v2779 = vunpack.c.l.b16 %v2696
        %v2780 = vunpack.c.h.b16 %v2696
        %v2781 = vunpack.c.l.b16 %v2697
        %v2782 = vunpack.c.h.b16 %v2697
        %v2783 = vunpack.c.l.b16 %v2698
        %v2784 = vunpack.c.h.b16 %v2698
        %v2785 = vunpack.c.l.b16 %v2699
        %v2786 = vunpack.c.h.b16 %v2699
        %v2787 = vunpack.c.l.b16 %v2700
        %v2788 = vunpack.c.h.b16 %v2700
        %v2789 = vunpack.c.l.b16 %v2701
        %v2790 = vunpack.c.h.b16 %v2701
        %v2791 = vunpack.c.l.b16 %v2702
        %v2792 = vunpack.c.h.b16 %v2702
        %v2793 = vunpack.c.l.b16 %v2703
        %v2794 = vunpack.c.h.b16 %v2703
        %v2795 = vunpack.c.l.b16 %v2704
        %v2796 = vunpack.c.h.b16 %v2704
        %v2797 = vunpack.c.l.b16 %v2705
        %v2798 = vunpack.c.h.b16 %v2705
        %v2799 = vunpack.c.l.b16 %v2706
        %v2800 = vunpack.c.h.b16 %v2706
        %v2801 = vunpack.c.l.b16 %v2707
        %v2802 = vunpack.c.h.b16 %v2707
        %v2803 = vunpack.c.l.b16 %v2708
        %v2804 = vunpack.c.h.b16 %v2708
        %v2805 = vpack.c.b16 %v2745, %v2741
        %v2806 = vpack.c.b16 %v2746, %v2742
        %v2807 = vpack.c.b16 %v2747, %v2743
        %v2808 = vpack.c.b16 %v2748, %v2744
        %v2809 = vpack.c.b16 %v2753, %v2749
        %v2810 = vpack.c.b16 %v2754, %v2750
        %v2811 = vpack.c.b16 %v2755, %v2751
        %v2812 = vpack.c.b16 %v2756, %v2752
        %v2813 = vpack.c.b16 %v2761, %v2757
        %v2814 = vpack.c.b16 %v2762, %v2758
        %v2815 = vpack.c.b16 %v2763, %v2759
        %v2816 = vpack.c.b16 %v2764, %v2760
        %v2817 = vpack.c.b16 %v2769, %v2765
        %v2818 = vpack.c.b16 %v2770, %v2766
        %v2819 = vpack.c.b16 %v2771, %v2767
        %v2820 = vpack.c.b16 %v2772, %v2768
        %v2821 = vpack.c.b16 %v2777, %v2773
        %v2822 = vpack.c.b16 %v2778, %v2774
        %v2823 = vpack.c.b16 %v2779, %v2775
        %v2824 = vpack.c.b16 %v2780, %v2776
        %v2825 = vpack.c.b16 %v2785, %v2781
        %v2826 = vpack.c.b16 %v2786, %v2782
        %v2827 = vpack.c.b16 %v2787, %v2783
        %v2828 = vpack.c.b16 %v2788, %v2784
        %v2829 = vpack.c.b16 %v2793, %v2789
        %v2830 = vpack.c.b16 %v2794, %v2790
        %v2831 = vpack.c.b16 %v2795, %v2791
        %v2832 = vpack.c.b16 %v2796, %v2792
        %v2833 = vpack.c.b16 %v2801, %v2797
        %v2834 = vpack.c.b16 %v2802, %v2798
        %v2835 = vpack.c.b16 %v2803, %v2799
        %v2836 = vpack.c.b16 %v2804, %v2800
        %2869 = vmatprep.subr.bf16.mxu0 %v2834
        %2870 = vmatpush1.bf16.msra.mxu0 %v2833
        %2871 = vmatprep.subr.bf16.mxu0 %v2830
        %2872 = vmatpush1.bf16.msra.mxu0 %v2829
        %2873 = vmatprep.subr.bf16.mxu0 %v2826
        %2874 = vmatpush1.bf16.msra.mxu0 %v2825
        %2875 = vmatprep.subr.bf16.mxu0 %v2822
        %2876 = vmatpush1.bf16.msra.mxu0 %v2821
        %2877 = vmatprep.subr.bf16.mxu0 %v2818
        %2878 = vmatpush1.bf16.msra.mxu0 %v2817
        %2879 = vmatprep.subr.bf16.mxu0 %v2814
        %2880 = vmatpush1.bf16.msra.mxu0 %v2813
        %2881 = vmatprep.subr.bf16.mxu0 %v2810
        %2882 = vmatpush1.bf16.msra.mxu0 %v2809
        %2883 = vmatprep.subr.bf16.mxu0 %v2806
        %2884 = vmatpush1.bf16.msra.mxu0 %v2805
        %2885 = vmatprep.subr.bf16.mxu0 0
        %2886 = vmatpush2.bf16.msra.mxu0 0
        %2887 = vmatprep.subr.bf16.mxu0 0
        %2888 = vmatpush2.bf16.msra.mxu0 0
        %2889 = vmatprep.subr.bf16.mxu0 0
        %2890 = vmatpush2.bf16.msra.mxu0 0
        %2891 = vmatprep.subr.bf16.mxu0 0
        %2892 = vmatpush2.bf16.msra.mxu0 0
        %2893 = vmatprep.subr.bf16.mxu0 0
        %2894 = vmatpush2.bf16.msra.mxu0 0
        %2895 = vmatprep.subr.bf16.mxu0 0
        %2896 = vmatpush2.bf16.msra.mxu0 0
        %2897 = vmatprep.subr.bf16.mxu0 0
        %2898 = vmatpush2.bf16.msra.mxu0 0
        %2899 = vmatprep.subr.bf16.mxu0 0
        %2900 = vmatpush2.bf16.msra.mxu0 0
        %2901 = vmatprep.mubr.bf16.mxu0 0
        %2902 = vmatmul.mubr.bf16.gmra.mxu0 %v2676
        %v2903 = vpop.f32.mrf.mxu0
        %v2904 = vadd.f32 0.0, %v2903
        %v2905 = vpop.f32.mrf.mxu0
        %v2906 = vadd.f32 0.0, %v2905
        %v2907 = vpop.f32.mrf.mxu0
        %v2908 = vpop.f32.mrf.mxu0
        %2909 = vdwg.mxu0
        %2910 = vmatprep.subr.bf16.mxu0 %v2836
        %2911 = vmatpush1.bf16.msra.mxu0 %v2835
        %2912 = vmatprep.subr.bf16.mxu0 %v2832
        %2913 = vmatpush1.bf16.msra.mxu0 %v2831
        %2914 = vmatprep.subr.bf16.mxu0 %v2828
        %2915 = vmatpush1.bf16.msra.mxu0 %v2827
        %2916 = vmatprep.subr.bf16.mxu0 %v2824
        %2917 = vmatpush1.bf16.msra.mxu0 %v2823
        %2918 = vmatprep.subr.bf16.mxu0 %v2820
        %2919 = vmatpush1.bf16.msra.mxu0 %v2819
        %2920 = vmatprep.subr.bf16.mxu0 %v2816
        %2921 = vmatpush1.bf16.msra.mxu0 %v2815
        %2922 = vmatprep.subr.bf16.mxu0 %v2812
        %2923 = vmatpush1.bf16.msra.mxu0 %v2811
        %2924 = vmatprep.subr.bf16.mxu0 %v2808
        %2925 = vmatpush1.bf16.msra.mxu0 %v2807
        %2926 = vmatprep.subr.bf16.mxu0 0
        %2927 = vmatpush2.bf16.msra.mxu0 0
        %2928 = vmatprep.subr.bf16.mxu0 0
        %2929 = vmatpush2.bf16.msra.mxu0 0
        %2930 = vmatprep.subr.bf16.mxu0 0
        %2931 = vmatpush2.bf16.msra.mxu0 0
        %2932 = vmatprep.subr.bf16.mxu0 0
        %2933 = vmatpush2.bf16.msra.mxu0 0
        %2934 = vmatprep.subr.bf16.mxu0 0
        %2935 = vmatpush2.bf16.msra.mxu0 0
        %2936 = vmatprep.subr.bf16.mxu0 0
        %2937 = vmatpush2.bf16.msra.mxu0 0
        %2938 = vmatprep.subr.bf16.mxu0 0
        %2939 = vmatpush2.bf16.msra.mxu0 0
        %2940 = vmatprep.subr.bf16.mxu0 0
        %2941 = vmatpush2.bf16.msra.mxu0 0
        %2942 = vmatprep.mubr.bf16.mxu0 0
        %2943 = vmatmul.mubr.bf16.gmra.mxu0 %v2676
        %v2944 = vpop.f32.mrf.mxu0
        %v2945 = vadd.f32 0.0, %v2944
        %v2946 = vpop.f32.mrf.mxu0
        %v2947 = vadd.f32 0.0, %v2946
        %v2948 = vpop.f32.mrf.mxu0
        %v2949 = vpop.f32.mrf.mxu0
        %2950 = vdwg.mxu0
        %v2951 = vadd.f32 %v2672, %v2904
        %v2952 = vadd.f32 %v2673, %v2906
        %v2953 = vadd.f32 %v2674, %v2945
        %v2954 = vadd.f32 %v2675, %v2947
        %v2955 = vmul.f32 %v2951, 0.5
        %v2956 = vtanh.pop %v2955
        %v2957 = vmul.f32 %v2956, 0.5
        %v2958 = vadd.f32 %v2957, 0.5
        %v2959 = vmul.f32 %v2952, 0.5
        %v2960 = vtanh.pop %v2959
        %v2961 = vmul.f32 %v2960, 0.5
        %v2962 = vadd.f32 %v2961, 0.5
        %v2963 = vtanh.pop %v2953
        %v2964 = vmul.f32 %v2954, 0.5
        %v2965 = vtanh.pop %v2964
        %v2966 = vmul.f32 %v2965, 0.5
        %v2967 = vadd.f32 %v2966, 0.5
        %v2968 = vmul.f32 %v2962, %v2660
        %v2969 = vmul.f32 %v2958, %v2963
        %v2970 = vadd.f32 %v2968, %v2969
        %v2971 = vtanh.pop %v2970
        %v2972 = vmul.f32 %v2967, %v2971
        %s2973 = scalar_lea.vmem [#allocation3], 56
        %2974 = vst [vmem:[%s2973] sm:$0xff] %v2972
        %v2975 = vld [vmem:[#allocation3] sm:$0xff]
        %v2976 = vld [vmem:[#allocation3 + $0x8] sm:$0xff]
        %v2977 = vld [vmem:[#allocation3 + $0x10] sm:$0xff]
        %v2978 = vld [vmem:[#allocation3 + $0x18] sm:$0xff]
        %v2979 = vld [vmem:[#allocation3 + $0x20] sm:$0xff]
        %v2980 = vld [vmem:[#allocation3 + $0x28] sm:$0xff]
        %v2981 = vld [vmem:[#allocation3 + $0x30] sm:$0xff]
        %v2982 = vld [vmem:[#allocation3 + $0x38] sm:$0xff]
        %v2983 = vpack.c.bf16 %v2976, %v2975
        %v2984 = vpack.c.bf16 %v2978, %v2977
        %v2985 = vpack.c.bf16 %v2980, %v2979
        %v2986 = vpack.c.bf16 %v2982, %v2981
        %v2987 = vld [vmem:[%s3] sm:$0xff]
        %v2988 = vld [vmem:[%s3 + $0x8] sm:$0xff]
        %v2989 = vld [vmem:[%s3 + $0x10] sm:$0xff]
        %v2990 = vld [vmem:[%s3 + $0x18] sm:$0xff]
        %v2991 = vld [vmem:[%s3 + $0x20] sm:$0xff]
        %v2992 = vld [vmem:[%s3 + $0x28] sm:$0xff]
        %v2993 = vld [vmem:[%s3 + $0x30] sm:$0xff]
        %v2994 = vld [vmem:[%s3 + $0x38] sm:$0xff]
        %v2995 = vld [vmem:[%s3 + $0x40] sm:$0xff]
        %v2996 = vld [vmem:[%s3 + $0x48] sm:$0xff]
        %v2997 = vld [vmem:[%s3 + $0x50] sm:$0xff]
        %v2998 = vld [vmem:[%s3 + $0x58] sm:$0xff]
        %v2999 = vld [vmem:[%s3 + $0x60] sm:$0xff]
        %v3000 = vld [vmem:[%s3 + $0x68] sm:$0xff]
        %v3001 = vld [vmem:[%s3 + $0x70] sm:$0xff]
        %v3002 = vld [vmem:[%s3 + $0x78] sm:$0xff]
        %v3003 = vld [vmem:[%s3 + $0x80] sm:$0xff]
        %v3004 = vld [vmem:[%s3 + $0x88] sm:$0xff]
        %v3005 = vld [vmem:[%s3 + $0x90] sm:$0xff]
        %v3006 = vld [vmem:[%s3 + $0x98] sm:$0xff]
        %v3007 = vld [vmem:[%s3 + $0xa0] sm:$0xff]
        %v3008 = vld [vmem:[%s3 + $0xa8] sm:$0xff]
        %v3009 = vld [vmem:[%s3 + $0xb0] sm:$0xff]
        %v3010 = vld [vmem:[%s3 + $0xb8] sm:$0xff]
        %v3011 = vld [vmem:[%s3 + $0xc0] sm:$0xff]
        %v3012 = vld [vmem:[%s3 + $0xc8] sm:$0xff]
        %v3013 = vld [vmem:[%s3 + $0xd0] sm:$0xff]
        %v3014 = vld [vmem:[%s3 + $0xd8] sm:$0xff]
        %v3015 = vld [vmem:[%s3 + $0xe0] sm:$0xff]
        %v3016 = vld [vmem:[%s3 + $0xe8] sm:$0xff]
        %v3017 = vld [vmem:[%s3 + $0xf0] sm:$0xff]
        %v3018 = vld [vmem:[%s3 + $0xf8] sm:$0xff]
        %v3051 = vunpack.c.l.b16 %v2987
        %v3052 = vunpack.c.h.b16 %v2987
        %v3053 = vunpack.c.l.b16 %v2988
        %v3054 = vunpack.c.h.b16 %v2988
        %v3055 = vunpack.c.l.b16 %v2989
        %v3056 = vunpack.c.h.b16 %v2989
        %v3057 = vunpack.c.l.b16 %v2990
        %v3058 = vunpack.c.h.b16 %v2990
        %v3059 = vunpack.c.l.b16 %v2991
        %v3060 = vunpack.c.h.b16 %v2991
        %v3061 = vunpack.c.l.b16 %v2992
        %v3062 = vunpack.c.h.b16 %v2992
        %v3063 = vunpack.c.l.b16 %v2993
        %v3064 = vunpack.c.h.b16 %v2993
        %v3065 = vunpack.c.l.b16 %v2994
        %v3066 = vunpack.c.h.b16 %v2994
        %v3067 = vunpack.c.l.b16 %v2995
        %v3068 = vunpack.c.h.b16 %v2995
        %v3069 = vunpack.c.l.b16 %v2996
        %v3070 = vunpack.c.h.b16 %v2996
        %v3071 = vunpack.c.l.b16 %v2997
        %v3072 = vunpack.c.h.b16 %v2997
        %v3073 = vunpack.c.l.b16 %v2998
        %v3074 = vunpack.c.h.b16 %v2998
        %v3075 = vunpack.c.l.b16 %v2999
        %v3076 = vunpack.c.h.b16 %v2999
        %v3077 = vunpack.c.l.b16 %v3000
        %v3078 = vunpack.c.h.b16 %v3000
        %v3079 = vunpack.c.l.b16 %v3001
        %v3080 = vunpack.c.h.b16 %v3001
        %v3081 = vunpack.c.l.b16 %v3002
        %v3082 = vunpack.c.h.b16 %v3002
        %v3083 = vunpack.c.l.b16 %v3003
        %v3084 = vunpack.c.h.b16 %v3003
        %v3085 = vunpack.c.l.b16 %v3004
        %v3086 = vunpack.c.h.b16 %v3004
        %v3087 = vunpack.c.l.b16 %v3005
        %v3088 = vunpack.c.h.b16 %v3005
        %v3089 = vunpack.c.l.b16 %v3006
        %v3090 = vunpack.c.h.b16 %v3006
        %v3091 = vunpack.c.l.b16 %v3007
        %v3092 = vunpack.c.h.b16 %v3007
        %v3093 = vunpack.c.l.b16 %v3008
        %v3094 = vunpack.c.h.b16 %v3008
        %v3095 = vunpack.c.l.b16 %v3009
        %v3096 = vunpack.c.h.b16 %v3009
        %v3097 = vunpack.c.l.b16 %v3010
        %v3098 = vunpack.c.h.b16 %v3010
        %v3099 = vunpack.c.l.b16 %v3011
        %v3100 = vunpack.c.h.b16 %v3011
        %v3101 = vunpack.c.l.b16 %v3012
        %v3102 = vunpack.c.h.b16 %v3012
        %v3103 = vunpack.c.l.b16 %v3013
        %v3104 = vunpack.c.h.b16 %v3013
        %v3105 = vunpack.c.l.b16 %v3014
        %v3106 = vunpack.c.h.b16 %v3014
        %v3107 = vunpack.c.l.b16 %v3015
        %v3108 = vunpack.c.h.b16 %v3015
        %v3109 = vunpack.c.l.b16 %v3016
        %v3110 = vunpack.c.h.b16 %v3016
        %v3111 = vunpack.c.l.b16 %v3017
        %v3112 = vunpack.c.h.b16 %v3017
        %v3113 = vunpack.c.l.b16 %v3018
        %v3114 = vunpack.c.h.b16 %v3018
        %v3115 = vpack.c.b16 %v3055, %v3051
        %v3116 = vpack.c.b16 %v3056, %v3052
        %v3117 = vpack.c.b16 %v3057, %v3053
        %v3118 = vpack.c.b16 %v3058, %v3054
        %v3119 = vpack.c.b16 %v3063, %v3059
        %v3120 = vpack.c.b16 %v3064, %v3060
        %v3121 = vpack.c.b16 %v3065, %v3061
        %v3122 = vpack.c.b16 %v3066, %v3062
        %v3123 = vpack.c.b16 %v3071, %v3067
        %v3124 = vpack.c.b16 %v3072, %v3068
        %v3125 = vpack.c.b16 %v3073, %v3069
        %v3126 = vpack.c.b16 %v3074, %v3070
        %v3127 = vpack.c.b16 %v3079, %v3075
        %v3128 = vpack.c.b16 %v3080, %v3076
        %v3129 = vpack.c.b16 %v3081, %v3077
        %v3130 = vpack.c.b16 %v3082, %v3078
        %v3131 = vpack.c.b16 %v3087, %v3083
        %v3132 = vpack.c.b16 %v3088, %v3084
        %v3133 = vpack.c.b16 %v3089, %v3085
        %v3134 = vpack.c.b16 %v3090, %v3086
        %v3135 = vpack.c.b16 %v3095, %v3091
        %v3136 = vpack.c.b16 %v3096, %v3092
        %v3137 = vpack.c.b16 %v3097, %v3093
        %v3138 = vpack.c.b16 %v3098, %v3094
        %v3139 = vpack.c.b16 %v3103, %v3099
        %v3140 = vpack.c.b16 %v3104, %v3100
        %v3141 = vpack.c.b16 %v3105, %v3101
        %v3142 = vpack.c.b16 %v3106, %v3102
        %v3143 = vpack.c.b16 %v3111, %v3107
        %v3144 = vpack.c.b16 %v3112, %v3108
        %v3145 = vpack.c.b16 %v3113, %v3109
        %v3146 = vpack.c.b16 %v3114, %v3110
        %3179 = vmatprep.subr.bf16.mxu0 %v3144
        %3180 = vmatpush1.bf16.msra.mxu0 %v3143
        %3181 = vmatprep.subr.bf16.mxu0 %v3140
        %3182 = vmatpush1.bf16.msra.mxu0 %v3139
        %3183 = vmatprep.subr.bf16.mxu0 %v3136
        %3184 = vmatpush1.bf16.msra.mxu0 %v3135
        %3185 = vmatprep.subr.bf16.mxu0 %v3132
        %3186 = vmatpush1.bf16.msra.mxu0 %v3131
        %3187 = vmatprep.subr.bf16.mxu0 %v3128
        %3188 = vmatpush1.bf16.msra.mxu0 %v3127
        %3189 = vmatprep.subr.bf16.mxu0 %v3124
        %3190 = vmatpush1.bf16.msra.mxu0 %v3123
        %3191 = vmatprep.subr.bf16.mxu0 %v3120
        %3192 = vmatpush1.bf16.msra.mxu0 %v3119
        %3193 = vmatprep.subr.bf16.mxu0 %v3116
        %3194 = vmatpush1.bf16.msra.mxu0 %v3115
        %3195 = vmatprep.subr.bf16.mxu0 0
        %3196 = vmatpush2.bf16.msra.mxu0 0
        %3197 = vmatprep.subr.bf16.mxu0 0
        %3198 = vmatpush2.bf16.msra.mxu0 0
        %3199 = vmatprep.subr.bf16.mxu0 0
        %3200 = vmatpush2.bf16.msra.mxu0 0
        %3201 = vmatprep.subr.bf16.mxu0 0
        %3202 = vmatpush2.bf16.msra.mxu0 0
        %3203 = vmatprep.subr.bf16.mxu0 0
        %3204 = vmatpush2.bf16.msra.mxu0 0
        %3205 = vmatprep.subr.bf16.mxu0 0
        %3206 = vmatpush2.bf16.msra.mxu0 0
        %3207 = vmatprep.subr.bf16.mxu0 0
        %3208 = vmatpush2.bf16.msra.mxu0 0
        %3209 = vmatprep.subr.bf16.mxu0 0
        %3210 = vmatpush2.bf16.msra.mxu0 0
        %3211 = vmatprep.mubr.bf16.mxu0 0
        %3212 = vmatmul.mubr.bf16.gmra.mxu0 %v2983
        %v3213 = vpop.f32.mrf.mxu0
        %v3214 = vadd.f32 0.0, %v3213
        %v3215 = vpop.f32.mrf.mxu0
        %v3216 = vadd.f32 0.0, %v3215
        %v3217 = vpop.f32.mrf.mxu0
        %v3218 = vadd.f32 0.0, %v3217
        %v3219 = vpop.f32.mrf.mxu0
        %v3220 = vadd.f32 0.0, %v3219
        %3221 = vmatprep.mubr.bf16.mxu0 0
        %3222 = vmatmul.mubr.bf16.gmra.mxu0 %v2984
        %v3223 = vpop.f32.mrf.mxu0
        %v3224 = vadd.f32 0.0, %v3223
        %v3225 = vpop.f32.mrf.mxu0
        %v3226 = vadd.f32 0.0, %v3225
        %v3227 = vpop.f32.mrf.mxu0
        %v3228 = vadd.f32 0.0, %v3227
        %v3229 = vpop.f32.mrf.mxu0
        %v3230 = vadd.f32 0.0, %v3229
        %3231 = vmatprep.mubr.bf16.mxu0 0
        %3232 = vmatmul.mubr.bf16.gmra.mxu0 %v2985
        %v3233 = vpop.f32.mrf.mxu0
        %v3234 = vadd.f32 0.0, %v3233
        %v3235 = vpop.f32.mrf.mxu0
        %v3236 = vadd.f32 0.0, %v3235
        %v3237 = vpop.f32.mrf.mxu0
        %v3238 = vadd.f32 0.0, %v3237
        %v3239 = vpop.f32.mrf.mxu0
        %v3240 = vadd.f32 0.0, %v3239
        %3241 = vmatprep.mubr.bf16.mxu0 0
        %3242 = vmatmul.mubr.bf16.gmra.mxu0 %v2986
        %v3243 = vpop.f32.mrf.mxu0
        %v3244 = vadd.f32 0.0, %v3243
        %v3245 = vpop.f32.mrf.mxu0
        %v3246 = vadd.f32 0.0, %v3245
        %v3247 = vpop.f32.mrf.mxu0
        %v3248 = vadd.f32 0.0, %v3247
        %v3249 = vpop.f32.mrf.mxu0
        %v3250 = vadd.f32 0.0, %v3249
        %3251 = vdwg.mxu0
        %3252 = vmatprep.subr.bf16.mxu0 %v3146
        %3253 = vmatpush1.bf16.msra.mxu0 %v3145
        %3254 = vmatprep.subr.bf16.mxu0 %v3142
        %3255 = vmatpush1.bf16.msra.mxu0 %v3141
        %3256 = vmatprep.subr.bf16.mxu0 %v3138
        %3257 = vmatpush1.bf16.msra.mxu0 %v3137
        %3258 = vmatprep.subr.bf16.mxu0 %v3134
        %3259 = vmatpush1.bf16.msra.mxu0 %v3133
        %3260 = vmatprep.subr.bf16.mxu0 %v3130
        %3261 = vmatpush1.bf16.msra.mxu0 %v3129
        %3262 = vmatprep.subr.bf16.mxu0 %v3126
        %3263 = vmatpush1.bf16.msra.mxu0 %v3125
        %3264 = vmatprep.subr.bf16.mxu0 %v3122
        %3265 = vmatpush1.bf16.msra.mxu0 %v3121
        %3266 = vmatprep.subr.bf16.mxu0 %v3118
        %3267 = vmatpush1.bf16.msra.mxu0 %v3117
        %3268 = vmatprep.subr.bf16.mxu0 0
        %3269 = vmatpush2.bf16.msra.mxu0 0
        %3270 = vmatprep.subr.bf16.mxu0 0
        %3271 = vmatpush2.bf16.msra.mxu0 0
        %3272 = vmatprep.subr.bf16.mxu0 0
        %3273 = vmatpush2.bf16.msra.mxu0 0
        %3274 = vmatprep.subr.bf16.mxu0 0
        %3275 = vmatpush2.bf16.msra.mxu0 0
        %3276 = vmatprep.subr.bf16.mxu0 0
        %3277 = vmatpush2.bf16.msra.mxu0 0
        %3278 = vmatprep.subr.bf16.mxu0 0
        %3279 = vmatpush2.bf16.msra.mxu0 0
        %3280 = vmatprep.subr.bf16.mxu0 0
        %3281 = vmatpush2.bf16.msra.mxu0 0
        %3282 = vmatprep.subr.bf16.mxu0 0
        %3283 = vmatpush2.bf16.msra.mxu0 0
        %3284 = vmatprep.mubr.bf16.mxu0 0
        %3285 = vmatmul.mubr.bf16.gmra.mxu0 %v2983
        %v3286 = vpop.f32.mrf.mxu0
        %v3287 = vadd.f32 0.0, %v3286
        %v3288 = vpop.f32.mrf.mxu0
        %v3289 = vadd.f32 0.0, %v3288
        %v3290 = vpop.f32.mrf.mxu0
        %v3291 = vadd.f32 0.0, %v3290
        %v3292 = vpop.f32.mrf.mxu0
        %v3293 = vadd.f32 0.0, %v3292
        %3294 = vmatprep.mubr.bf16.mxu0 0
        %3295 = vmatmul.mubr.bf16.gmra.mxu0 %v2984
        %v3296 = vpop.f32.mrf.mxu0
        %v3297 = vadd.f32 0.0, %v3296
        %v3298 = vpop.f32.mrf.mxu0
        %v3299 = vadd.f32 0.0, %v3298
        %v3300 = vpop.f32.mrf.mxu0
        %v3301 = vadd.f32 0.0, %v3300
        %v3302 = vpop.f32.mrf.mxu0
        %v3303 = vadd.f32 0.0, %v3302
        %3304 = vmatprep.mubr.bf16.mxu0 0
        %3305 = vmatmul.mubr.bf16.gmra.mxu0 %v2985
        %v3306 = vpop.f32.mrf.mxu0
        %v3307 = vadd.f32 0.0, %v3306
        %v3308 = vpop.f32.mrf.mxu0
        %v3309 = vadd.f32 0.0, %v3308
        %v3310 = vpop.f32.mrf.mxu0
        %v3311 = vadd.f32 0.0, %v3310
        %v3312 = vpop.f32.mrf.mxu0
        %v3313 = vadd.f32 0.0, %v3312
        %3314 = vmatprep.mubr.bf16.mxu0 0
        %3315 = vmatmul.mubr.bf16.gmra.mxu0 %v2986
        %v3316 = vpop.f32.mrf.mxu0
        %v3317 = vadd.f32 0.0, %v3316
        %v3318 = vpop.f32.mrf.mxu0
        %v3319 = vadd.f32 0.0, %v3318
        %v3320 = vpop.f32.mrf.mxu0
        %v3321 = vadd.f32 0.0, %v3320
        %v3322 = vpop.f32.mrf.mxu0
        %v3323 = vadd.f32 0.0, %v3322
        %3324 = vdwg.mxu0
        %v3325 = vpack.c.bf16 %v3214, %v3214
        %v3326 = vpack.c.bf16 %v3216, %v3216
        %v3327 = vpack.c.bf16 %v3287, %v3287
        %v3328 = vpack.c.bf16 %v3289, %v3289
        %v3329 = vpack.c.bf16 %v3218, %v3218
        %v3330 = vpack.c.bf16 %v3220, %v3220
        %v3331 = vpack.c.bf16 %v3291, %v3291
        %v3332 = vpack.c.bf16 %v3293, %v3293
        %v3333 = vpack.c.bf16 %v3224, %v3224
        %v3334 = vpack.c.bf16 %v3226, %v3226
        %v3335 = vpack.c.bf16 %v3297, %v3297
        %v3336 = vpack.c.bf16 %v3299, %v3299
        %v3337 = vpack.c.bf16 %v3228, %v3228
        %v3338 = vpack.c.bf16 %v3230, %v3230
        %v3339 = vpack.c.bf16 %v3301, %v3301
        %v3340 = vpack.c.bf16 %v3303, %v3303
        %v3341 = vpack.c.bf16 %v3234, %v3234
        %v3342 = vpack.c.bf16 %v3236, %v3236
        %v3343 = vpack.c.bf16 %v3307, %v3307
        %v3344 = vpack.c.bf16 %v3309, %v3309
        %v3345 = vpack.c.bf16 %v3238, %v3238
        %v3346 = vpack.c.bf16 %v3240, %v3240
        %v3347 = vpack.c.bf16 %v3311, %v3311
        %v3348 = vpack.c.bf16 %v3313, %v3313
        %v3349 = vpack.c.bf16 %v3244, %v3244
        %v3350 = vpack.c.bf16 %v3246, %v3246
        %v3351 = vpack.c.bf16 %v3317, %v3317
        %v3352 = vpack.c.bf16 %v3319, %v3319
        %v3353 = vpack.c.bf16 %v3248, %v3248
        %v3354 = vpack.c.bf16 %v3250, %v3250
        %v3355 = vpack.c.bf16 %v3321, %v3321
        %v3356 = vpack.c.bf16 %v3323, %v3323
        %v3389 = vunpack.c.l.b16 %v3325
        %v3390 = vunpack.c.l.b16 %v3326
        %v3391 = vunpack.c.l.b16 %v3327
        %v3392 = vunpack.c.l.b16 %v3328
        %v3393 = vunpack.c.l.b16 %v3329
        %v3394 = vunpack.c.l.b16 %v3330
        %v3395 = vunpack.c.l.b16 %v3331
        %v3396 = vunpack.c.l.b16 %v3332
        %v3397 = vunpack.c.l.b16 %v3333
        %v3398 = vunpack.c.l.b16 %v3334
        %v3399 = vunpack.c.l.b16 %v3335
        %v3400 = vunpack.c.l.b16 %v3336
        %v3401 = vunpack.c.l.b16 %v3337
        %v3402 = vunpack.c.l.b16 %v3338
        %v3403 = vunpack.c.l.b16 %v3339
        %v3404 = vunpack.c.l.b16 %v3340
        %v3405 = vunpack.c.l.b16 %v3341
        %v3406 = vunpack.c.l.b16 %v3342
        %v3407 = vunpack.c.l.b16 %v3343
        %v3408 = vunpack.c.l.b16 %v3344
        %v3409 = vunpack.c.l.b16 %v3345
        %v3410 = vunpack.c.l.b16 %v3346
        %v3411 = vunpack.c.l.b16 %v3347
        %v3412 = vunpack.c.l.b16 %v3348
        %v3413 = vunpack.c.l.b16 %v3349
        %v3414 = vunpack.c.l.b16 %v3350
        %v3415 = vunpack.c.l.b16 %v3351
        %v3416 = vunpack.c.l.b16 %v3352
        %v3417 = vunpack.c.l.b16 %v3353
        %v3418 = vunpack.c.l.b16 %v3354
        %v3419 = vunpack.c.l.b16 %v3355
        %v3420 = vunpack.c.l.b16 %v3356
        %v3421 = vpack.c.b16 %v3390, %v3389
        %v3422 = vpack.c.b16 %v3392, %v3391
        %v3423 = vpack.c.b16 %v3394, %v3393
        %v3424 = vpack.c.b16 %v3396, %v3395
        %v3425 = vpack.c.b16 %v3398, %v3397
        %v3426 = vpack.c.b16 %v3400, %v3399
        %v3427 = vpack.c.b16 %v3402, %v3401
        %v3428 = vpack.c.b16 %v3404, %v3403
        %v3429 = vpack.c.b16 %v3406, %v3405
        %v3430 = vpack.c.b16 %v3408, %v3407
        %v3431 = vpack.c.b16 %v3410, %v3409
        %v3432 = vpack.c.b16 %v3412, %v3411
        %v3433 = vpack.c.b16 %v3414, %v3413
        %v3434 = vpack.c.b16 %v3416, %v3415
        %v3435 = vpack.c.b16 %v3418, %v3417
        %v3436 = vpack.c.b16 %v3420, %v3419
        %3453 = vst [vmem:[#allocation2] sm:$0xff] %v3421
        %3454 = vst [vmem:[#allocation2 + $0x8] sm:$0xff] %v3422
        %3455 = vst [vmem:[#allocation2 + $0x10] sm:$0xff] %v3423
        %3456 = vst [vmem:[#allocation2 + $0x18] sm:$0xff] %v3424
        %3457 = vst [vmem:[#allocation2 + $0x20] sm:$0xff] %v3425
        %3458 = vst [vmem:[#allocation2 + $0x28] sm:$0xff] %v3426
        %3459 = vst [vmem:[#allocation2 + $0x30] sm:$0xff] %v3427
        %3460 = vst [vmem:[#allocation2 + $0x38] sm:$0xff] %v3428
        %3461 = vst [vmem:[#allocation2 + $0x40] sm:$0xff] %v3429
        %3462 = vst [vmem:[#allocation2 + $0x48] sm:$0xff] %v3430
        %3463 = vst [vmem:[#allocation2 + $0x50] sm:$0xff] %v3431
        %3464 = vst [vmem:[#allocation2 + $0x58] sm:$0xff] %v3432
        %3465 = vst [vmem:[#allocation2 + $0x60] sm:$0xff] %v3433
        %3466 = vst [vmem:[#allocation2 + $0x68] sm:$0xff] %v3434
        %3467 = vst [vmem:[#allocation2 + $0x70] sm:$0xff] %v3435
        %3468 = vst [vmem:[#allocation2 + $0x78] sm:$0xff] %v3436
        %v3469 = vld [vmem:[#allocation7] sm:$0xf]
        %v3470 = vld [vmem:[#allocation2] sm:$0xff]
        %v3471 = vld [vmem:[#allocation2 + $0x8] sm:$0xff]
        %v3472 = vunpack.c.l.bf16 %v3470
        %v3473 = vunpack.c.h.bf16 %v3470
        %v3474 = vunpack.c.l.bf16 %v3471
        %v3475 = vunpack.c.h.bf16 %v3471
        %v3477 = vlaneseq
        %v3478 = vshrl.u32 %v3477, 7
        %v3479 = vsub.s32 0, %v3478
        %v3480 = vrot.slane %v3469, %v3479
        %v3481 = vlaneseq
        %v3482 = vshrl.u32 %v3481, 7
        %v3483 = vsub.s32 1, %v3482
        %v3484 = vrot.slane %v3469, %v3483
        %v3485 = vlaneseq
        %v3486 = vshrl.u32 %v3485, 7
        %v3487 = vsub.s32 2, %v3486
        %v3488 = vrot.slane %v3469, %v3487
        %v3489 = vlaneseq
        %v3490 = vshrl.u32 %v3489, 7
        %v3491 = vsub.s32 3, %v3490
        %v3492 = vrot.slane %v3469, %v3491
        %v3497 = vadd.f32 %v3472, %v3480
        %v3498 = vadd.f32 %v3473, %v3484
        %v3499 = vadd.f32 %v3474, %v3488
        %v3500 = vadd.f32 %v3475, %v3492
        %v3501 = vld [vmem:[%s4] sm:$0xff]
        %v3502 = vld [vmem:[%s4 + $0x8] sm:$0xff]
        %v3503 = vld [vmem:[%s4 + $0x10] sm:$0xff]
        %v3504 = vld [vmem:[%s4 + $0x18] sm:$0xff]
        %v3505 = vld [vmem:[%s4 + $0x20] sm:$0xff]
        %v3506 = vld [vmem:[%s4 + $0x28] sm:$0xff]
        %v3507 = vld [vmem:[%s4 + $0x30] sm:$0xff]
        %v3508 = vld [vmem:[%s4 + $0x38] sm:$0xff]
        %v3509 = vld [vmem:[%s4 + $0x40] sm:$0xff]
        %v3510 = vld [vmem:[%s4 + $0x48] sm:$0xff]
        %v3511 = vld [vmem:[%s4 + $0x50] sm:$0xff]
        %v3512 = vld [vmem:[%s4 + $0x58] sm:$0xff]
        %v3513 = vld [vmem:[%s4 + $0x60] sm:$0xff]
        %v3514 = vld [vmem:[%s4 + $0x68] sm:$0xff]
        %v3515 = vld [vmem:[%s4 + $0x70] sm:$0xff]
        %v3516 = vld [vmem:[%s4 + $0x78] sm:$0xff]
        %v3517 = vld [vmem:[%s4 + $0x80] sm:$0xff]
        %v3518 = vld [vmem:[%s4 + $0x88] sm:$0xff]
        %v3519 = vld [vmem:[%s4 + $0x90] sm:$0xff]
        %v3520 = vld [vmem:[%s4 + $0x98] sm:$0xff]
        %v3521 = vld [vmem:[%s4 + $0xa0] sm:$0xff]
        %v3522 = vld [vmem:[%s4 + $0xa8] sm:$0xff]
        %v3523 = vld [vmem:[%s4 + $0xb0] sm:$0xff]
        %v3524 = vld [vmem:[%s4 + $0xb8] sm:$0xff]
        %v3525 = vld [vmem:[%s4 + $0xc0] sm:$0xff]
        %v3526 = vld [vmem:[%s4 + $0xc8] sm:$0xff]
        %v3527 = vld [vmem:[%s4 + $0xd0] sm:$0xff]
        %v3528 = vld [vmem:[%s4 + $0xd8] sm:$0xff]
        %v3529 = vld [vmem:[%s4 + $0xe0] sm:$0xff]
        %v3530 = vld [vmem:[%s4 + $0xe8] sm:$0xff]
        %v3531 = vld [vmem:[%s4 + $0xf0] sm:$0xff]
        %v3532 = vld [vmem:[%s4 + $0xf8] sm:$0xff]
        %v3565 = vunpack.c.l.b16 %v3501
        %v3566 = vunpack.c.h.b16 %v3501
        %v3567 = vunpack.c.l.b16 %v3502
        %v3568 = vunpack.c.h.b16 %v3502
        %v3569 = vunpack.c.l.b16 %v3503
        %v3570 = vunpack.c.h.b16 %v3503
        %v3571 = vunpack.c.l.b16 %v3504
        %v3572 = vunpack.c.h.b16 %v3504
        %v3573 = vunpack.c.l.b16 %v3505
        %v3574 = vunpack.c.h.b16 %v3505
        %v3575 = vunpack.c.l.b16 %v3506
        %v3576 = vunpack.c.h.b16 %v3506
        %v3577 = vunpack.c.l.b16 %v3507
        %v3578 = vunpack.c.h.b16 %v3507
        %v3579 = vunpack.c.l.b16 %v3508
        %v3580 = vunpack.c.h.b16 %v3508
        %v3581 = vunpack.c.l.b16 %v3509
        %v3582 = vunpack.c.h.b16 %v3509
        %v3583 = vunpack.c.l.b16 %v3510
        %v3584 = vunpack.c.h.b16 %v3510
        %v3585 = vunpack.c.l.b16 %v3511
        %v3586 = vunpack.c.h.b16 %v3511
        %v3587 = vunpack.c.l.b16 %v3512
        %v3588 = vunpack.c.h.b16 %v3512
        %v3589 = vunpack.c.l.b16 %v3513
        %v3590 = vunpack.c.h.b16 %v3513
        %v3591 = vunpack.c.l.b16 %v3514
        %v3592 = vunpack.c.h.b16 %v3514
        %v3593 = vunpack.c.l.b16 %v3515
        %v3594 = vunpack.c.h.b16 %v3515
        %v3595 = vunpack.c.l.b16 %v3516
        %v3596 = vunpack.c.h.b16 %v3516
        %v3597 = vunpack.c.l.b16 %v3517
        %v3598 = vunpack.c.h.b16 %v3517
        %v3599 = vunpack.c.l.b16 %v3518
        %v3600 = vunpack.c.h.b16 %v3518
        %v3601 = vunpack.c.l.b16 %v3519
        %v3602 = vunpack.c.h.b16 %v3519
        %v3603 = vunpack.c.l.b16 %v3520
        %v3604 = vunpack.c.h.b16 %v3520
        %v3605 = vunpack.c.l.b16 %v3521
        %v3606 = vunpack.c.h.b16 %v3521
        %v3607 = vunpack.c.l.b16 %v3522
        %v3608 = vunpack.c.h.b16 %v3522
        %v3609 = vunpack.c.l.b16 %v3523
        %v3610 = vunpack.c.h.b16 %v3523
        %v3611 = vunpack.c.l.b16 %v3524
        %v3612 = vunpack.c.h.b16 %v3524
        %v3613 = vunpack.c.l.b16 %v3525
        %v3614 = vunpack.c.h.b16 %v3525
        %v3615 = vunpack.c.l.b16 %v3526
        %v3616 = vunpack.c.h.b16 %v3526
        %v3617 = vunpack.c.l.b16 %v3527
        %v3618 = vunpack.c.h.b16 %v3527
        %v3619 = vunpack.c.l.b16 %v3528
        %v3620 = vunpack.c.h.b16 %v3528
        %v3621 = vunpack.c.l.b16 %v3529
        %v3622 = vunpack.c.h.b16 %v3529
        %v3623 = vunpack.c.l.b16 %v3530
        %v3624 = vunpack.c.h.b16 %v3530
        %v3625 = vunpack.c.l.b16 %v3531
        %v3626 = vunpack.c.h.b16 %v3531
        %v3627 = vunpack.c.l.b16 %v3532
        %v3628 = vunpack.c.h.b16 %v3532
        %v3629 = vpack.c.b16 %v3569, %v3565
        %v3630 = vpack.c.b16 %v3570, %v3566
        %v3631 = vpack.c.b16 %v3571, %v3567
        %v3632 = vpack.c.b16 %v3572, %v3568
        %v3633 = vpack.c.b16 %v3577, %v3573
        %v3634 = vpack.c.b16 %v3578, %v3574
        %v3635 = vpack.c.b16 %v3579, %v3575
        %v3636 = vpack.c.b16 %v3580, %v3576
        %v3637 = vpack.c.b16 %v3585, %v3581
        %v3638 = vpack.c.b16 %v3586, %v3582
        %v3639 = vpack.c.b16 %v3587, %v3583
        %v3640 = vpack.c.b16 %v3588, %v3584
        %v3641 = vpack.c.b16 %v3593, %v3589
        %v3642 = vpack.c.b16 %v3594, %v3590
        %v3643 = vpack.c.b16 %v3595, %v3591
        %v3644 = vpack.c.b16 %v3596, %v3592
        %v3645 = vpack.c.b16 %v3601, %v3597
        %v3646 = vpack.c.b16 %v3602, %v3598
        %v3647 = vpack.c.b16 %v3603, %v3599
        %v3648 = vpack.c.b16 %v3604, %v3600
        %v3649 = vpack.c.b16 %v3609, %v3605
        %v3650 = vpack.c.b16 %v3610, %v3606
        %v3651 = vpack.c.b16 %v3611, %v3607
        %v3652 = vpack.c.b16 %v3612, %v3608
        %v3653 = vpack.c.b16 %v3617, %v3613
        %v3654 = vpack.c.b16 %v3618, %v3614
        %v3655 = vpack.c.b16 %v3619, %v3615
        %v3656 = vpack.c.b16 %v3620, %v3616
        %v3657 = vpack.c.b16 %v3625, %v3621
        %v3658 = vpack.c.b16 %v3626, %v3622
        %v3659 = vpack.c.b16 %v3627, %v3623
        %v3660 = vpack.c.b16 %v3628, %v3624
        %3693 = vmatprep.subr.bf16.mxu0 %v3658
        %3694 = vmatpush1.bf16.msra.mxu0 %v3657
        %3695 = vmatprep.subr.bf16.mxu0 %v3654
        %3696 = vmatpush1.bf16.msra.mxu0 %v3653
        %3697 = vmatprep.subr.bf16.mxu0 %v3650
        %3698 = vmatpush1.bf16.msra.mxu0 %v3649
        %3699 = vmatprep.subr.bf16.mxu0 %v3646
        %3700 = vmatpush1.bf16.msra.mxu0 %v3645
        %3701 = vmatprep.subr.bf16.mxu0 %v3642
        %3702 = vmatpush1.bf16.msra.mxu0 %v3641
        %3703 = vmatprep.subr.bf16.mxu0 %v3638
        %3704 = vmatpush1.bf16.msra.mxu0 %v3637
        %3705 = vmatprep.subr.bf16.mxu0 %v3634
        %3706 = vmatpush1.bf16.msra.mxu0 %v3633
        %3707 = vmatprep.subr.bf16.mxu0 %v3630
        %3708 = vmatpush1.bf16.msra.mxu0 %v3629
        %3709 = vmatprep.subr.bf16.mxu0 0
        %3710 = vmatpush2.bf16.msra.mxu0 0
        %3711 = vmatprep.subr.bf16.mxu0 0
        %3712 = vmatpush2.bf16.msra.mxu0 0
        %3713 = vmatprep.subr.bf16.mxu0 0
        %3714 = vmatpush2.bf16.msra.mxu0 0
        %3715 = vmatprep.subr.bf16.mxu0 0
        %3716 = vmatpush2.bf16.msra.mxu0 0
        %3717 = vmatprep.subr.bf16.mxu0 0
        %3718 = vmatpush2.bf16.msra.mxu0 0
        %3719 = vmatprep.subr.bf16.mxu0 0
        %3720 = vmatpush2.bf16.msra.mxu0 0
        %3721 = vmatprep.subr.bf16.mxu0 0
        %3722 = vmatpush2.bf16.msra.mxu0 0
        %3723 = vmatprep.subr.bf16.mxu0 0
        %3724 = vmatpush2.bf16.msra.mxu0 0
        %3725 = vmatprep.mubr.bf16.mxu0 0
        %3726 = vmatmul.mubr.bf16.gmra.mxu0 0
        %v3727 = vpop.f32.mrf.mxu0
        %v3728 = vadd.f32 0.0, %v3727
        %v3729 = vpop.f32.mrf.mxu0
        %v3730 = vadd.f32 0.0, %v3729
        %v3731 = vpop.f32.mrf.mxu0
        %v3732 = vpop.f32.mrf.mxu0
        %3733 = vdwg.mxu0
        %3734 = vmatprep.subr.bf16.mxu0 %v3660
        %3735 = vmatpush1.bf16.msra.mxu0 %v3659
        %3736 = vmatprep.subr.bf16.mxu0 %v3656
        %3737 = vmatpush1.bf16.msra.mxu0 %v3655
        %3738 = vmatprep.subr.bf16.mxu0 %v3652
        %3739 = vmatpush1.bf16.msra.mxu0 %v3651
        %3740 = vmatprep.subr.bf16.mxu0 %v3648
        %3741 = vmatpush1.bf16.msra.mxu0 %v3647
        %3742 = vmatprep.subr.bf16.mxu0 %v3644
        %3743 = vmatpush1.bf16.msra.mxu0 %v3643
        %3744 = vmatprep.subr.bf16.mxu0 %v3640
        %3745 = vmatpush1.bf16.msra.mxu0 %v3639
        %3746 = vmatprep.subr.bf16.mxu0 %v3636
        %3747 = vmatpush1.bf16.msra.mxu0 %v3635
        %3748 = vmatprep.subr.bf16.mxu0 %v3632
        %3749 = vmatpush1.bf16.msra.mxu0 %v3631
        %3750 = vmatprep.subr.bf16.mxu0 0
        %3751 = vmatpush2.bf16.msra.mxu0 0
        %3752 = vmatprep.subr.bf16.mxu0 0
        %3753 = vmatpush2.bf16.msra.mxu0 0
        %3754 = vmatprep.subr.bf16.mxu0 0
        %3755 = vmatpush2.bf16.msra.mxu0 0
        %3756 = vmatprep.subr.bf16.mxu0 0
        %3757 = vmatpush2.bf16.msra.mxu0 0
        %3758 = vmatprep.subr.bf16.mxu0 0
        %3759 = vmatpush2.bf16.msra.mxu0 0
        %3760 = vmatprep.subr.bf16.mxu0 0
        %3761 = vmatpush2.bf16.msra.mxu0 0
        %3762 = vmatprep.subr.bf16.mxu0 0
        %3763 = vmatpush2.bf16.msra.mxu0 0
        %3764 = vmatprep.subr.bf16.mxu0 0
        %3765 = vmatpush2.bf16.msra.mxu0 0
        %3766 = vmatprep.mubr.bf16.mxu0 0
        %3767 = vmatmul.mubr.bf16.gmra.mxu0 0
        %v3768 = vpop.f32.mrf.mxu0
        %v3769 = vadd.f32 0.0, %v3768
        %v3770 = vpop.f32.mrf.mxu0
        %v3771 = vadd.f32 0.0, %v3770
        %v3772 = vpop.f32.mrf.mxu0
        %v3773 = vpop.f32.mrf.mxu0
        %3774 = vdwg.mxu0
        %v3775 = vadd.f32 %v3497, %v3728
        %v3776 = vadd.f32 %v3498, %v3730
        %v3777 = vadd.f32 %v3499, %v3769
        %v3778 = vadd.f32 %v3500, %v3771
        %v3779 = vmul.f32 %v3775, 0.5
        %v3780 = vtanh.pop %v3779
        %v3781 = vmul.f32 %v3780, 0.5
        %v3782 = vadd.f32 %v3781, 0.5
        %v3783 = vmul.f32 %v3776, 0.5
        %v3784 = vtanh.pop %v3783
        %v3785 = vmul.f32 %v3784, 0.5
        %v3786 = vadd.f32 %v3785, 0.5
        %v3787 = vtanh.pop %v3777
        %v3788 = vmul.f32 %v3778, 0.5
        %v3789 = vtanh.pop %v3788
        %v3790 = vmul.f32 %v3789, 0.5
        %v3791 = vadd.f32 %v3790, 0.5
        %v3792 = vmul.f32 %v3786, 0.0
        %v3793 = vmul.f32 %v3782, %v3787
        %v3794 = vadd.f32 %v3792, %v3793
        %v3795 = vtanh.pop %v3794
        %v3796 = vmul.f32 %v3791, %v3795
        %3797 = vst [vmem:[#allocation3] sm:$0xff] %v3796
        %s3798 = scalar_lea.vmem [#allocation2], 16
        %v3799 = vld [vmem:[%s3798] sm:$0xff]
        %v3800 = vld [vmem:[%s3798 + $0x8] sm:$0xff]
        %v3801 = vunpack.c.l.bf16 %v3799
        %v3802 = vunpack.c.h.bf16 %v3799
        %v3803 = vunpack.c.l.bf16 %v3800
        %v3804 = vunpack.c.h.bf16 %v3800
        %v3805 = vadd.f32 %v3801, %v3480
        %v3806 = vadd.f32 %v3802, %v3484
        %v3807 = vadd.f32 %v3803, %v3488
        %v3808 = vadd.f32 %v3804, %v3492
        %v3809 = vpack.c.bf16 %v3796, %v3796
        %v3810 = vld [vmem:[%s4] sm:$0xff]
        %v3811 = vld [vmem:[%s4 + $0x8] sm:$0xff]
        %v3812 = vld [vmem:[%s4 + $0x10] sm:$0xff]
        %v3813 = vld [vmem:[%s4 + $0x18] sm:$0xff]
        %v3814 = vld [vmem:[%s4 + $0x20] sm:$0xff]
        %v3815 = vld [vmem:[%s4 + $0x28] sm:$0xff]
        %v3816 = vld [vmem:[%s4 + $0x30] sm:$0xff]
        %v3817 = vld [vmem:[%s4 + $0x38] sm:$0xff]
        %v3818 = vld [vmem:[%s4 + $0x40] sm:$0xff]
        %v3819 = vld [vmem:[%s4 + $0x48] sm:$0xff]
        %v3820 = vld [vmem:[%s4 + $0x50] sm:$0xff]
        %v3821 = vld [vmem:[%s4 + $0x58] sm:$0xff]
        %v3822 = vld [vmem:[%s4 + $0x60] sm:$0xff]
        %v3823 = vld [vmem:[%s4 + $0x68] sm:$0xff]
        %v3824 = vld [vmem:[%s4 + $0x70] sm:$0xff]
        %v3825 = vld [vmem:[%s4 + $0x78] sm:$0xff]
        %v3826 = vld [vmem:[%s4 + $0x80] sm:$0xff]
        %v3827 = vld [vmem:[%s4 + $0x88] sm:$0xff]
        %v3828 = vld [vmem:[%s4 + $0x90] sm:$0xff]
        %v3829 = vld [vmem:[%s4 + $0x98] sm:$0xff]
        %v3830 = vld [vmem:[%s4 + $0xa0] sm:$0xff]
        %v3831 = vld [vmem:[%s4 + $0xa8] sm:$0xff]
        %v3832 = vld [vmem:[%s4 + $0xb0] sm:$0xff]
        %v3833 = vld [vmem:[%s4 + $0xb8] sm:$0xff]
        %v3834 = vld [vmem:[%s4 + $0xc0] sm:$0xff]
        %v3835 = vld [vmem:[%s4 + $0xc8] sm:$0xff]
        %v3836 = vld [vmem:[%s4 + $0xd0] sm:$0xff]
        %v3837 = vld [vmem:[%s4 + $0xd8] sm:$0xff]
        %v3838 = vld [vmem:[%s4 + $0xe0] sm:$0xff]
        %v3839 = vld [vmem:[%s4 + $0xe8] sm:$0xff]
        %v3840 = vld [vmem:[%s4 + $0xf0] sm:$0xff]
        %v3841 = vld [vmem:[%s4 + $0xf8] sm:$0xff]
        %v3874 = vunpack.c.l.b16 %v3810
        %v3875 = vunpack.c.h.b16 %v3810
        %v3876 = vunpack.c.l.b16 %v3811
        %v3877 = vunpack.c.h.b16 %v3811
        %v3878 = vunpack.c.l.b16 %v3812
        %v3879 = vunpack.c.h.b16 %v3812
        %v3880 = vunpack.c.l.b16 %v3813
        %v3881 = vunpack.c.h.b16 %v3813
        %v3882 = vunpack.c.l.b16 %v3814
        %v3883 = vunpack.c.h.b16 %v3814
        %v3884 = vunpack.c.l.b16 %v3815
        %v3885 = vunpack.c.h.b16 %v3815
        %v3886 = vunpack.c.l.b16 %v3816
        %v3887 = vunpack.c.h.b16 %v3816
        %v3888 = vunpack.c.l.b16 %v3817
        %v3889 = vunpack.c.h.b16 %v3817
        %v3890 = vunpack.c.l.b16 %v3818
        %v3891 = vunpack.c.h.b16 %v3818
        %v3892 = vunpack.c.l.b16 %v3819
        %v3893 = vunpack.c.h.b16 %v3819
        %v3894 = vunpack.c.l.b16 %v3820
        %v3895 = vunpack.c.h.b16 %v3820
        %v3896 = vunpack.c.l.b16 %v3821
        %v3897 = vunpack.c.h.b16 %v3821
        %v3898 = vunpack.c.l.b16 %v3822
        %v3899 = vunpack.c.h.b16 %v3822
        %v3900 = vunpack.c.l.b16 %v3823
        %v3901 = vunpack.c.h.b16 %v3823
        %v3902 = vunpack.c.l.b16 %v3824
        %v3903 = vunpack.c.h.b16 %v3824
        %v3904 = vunpack.c.l.b16 %v3825
        %v3905 = vunpack.c.h.b16 %v3825
        %v3906 = vunpack.c.l.b16 %v3826
        %v3907 = vunpack.c.h.b16 %v3826
        %v3908 = vunpack.c.l.b16 %v3827
        %v3909 = vunpack.c.h.b16 %v3827
        %v3910 = vunpack.c.l.b16 %v3828
        %v3911 = vunpack.c.h.b16 %v3828
        %v3912 = vunpack.c.l.b16 %v3829
        %v3913 = vunpack.c.h.b16 %v3829
        %v3914 = vunpack.c.l.b16 %v3830
        %v3915 = vunpack.c.h.b16 %v3830
        %v3916 = vunpack.c.l.b16 %v3831
        %v3917 = vunpack.c.h.b16 %v3831
        %v3918 = vunpack.c.l.b16 %v3832
        %v3919 = vunpack.c.h.b16 %v3832
        %v3920 = vunpack.c.l.b16 %v3833
        %v3921 = vunpack.c.h.b16 %v3833
        %v3922 = vunpack.c.l.b16 %v3834
        %v3923 = vunpack.c.h.b16 %v3834
        %v3924 = vunpack.c.l.b16 %v3835
        %v3925 = vunpack.c.h.b16 %v3835
        %v3926 = vunpack.c.l.b16 %v3836
        %v3927 = vunpack.c.h.b16 %v3836
        %v3928 = vunpack.c.l.b16 %v3837
        %v3929 = vunpack.c.h.b16 %v3837
        %v3930 = vunpack.c.l.b16 %v3838
        %v3931 = vunpack.c.h.b16 %v3838
        %v3932 = vunpack.c.l.b16 %v3839
        %v3933 = vunpack.c.h.b16 %v3839
        %v3934 = vunpack.c.l.b16 %v3840
        %v3935 = vunpack.c.h.b16 %v3840
        %v3936 = vunpack.c.l.b16 %v3841
        %v3937 = vunpack.c.h.b16 %v3841
        %v3938 = vpack.c.b16 %v3878, %v3874
        %v3939 = vpack.c.b16 %v3879, %v3875
        %v3940 = vpack.c.b16 %v3880, %v3876
        %v3941 = vpack.c.b16 %v3881, %v3877
        %v3942 = vpack.c.b16 %v3886, %v3882
        %v3943 = vpack.c.b16 %v3887, %v3883
        %v3944 = vpack.c.b16 %v3888, %v3884
        %v3945 = vpack.c.b16 %v3889, %v3885
        %v3946 = vpack.c.b16 %v3894, %v3890
        %v3947 = vpack.c.b16 %v3895, %v3891
        %v3948 = vpack.c.b16 %v3896, %v3892
        %v3949 = vpack.c.b16 %v3897, %v3893
        %v3950 = vpack.c.b16 %v3902, %v3898
        %v3951 = vpack.c.b16 %v3903, %v3899
        %v3952 = vpack.c.b16 %v3904, %v3900
        %v3953 = vpack.c.b16 %v3905, %v3901
        %v3954 = vpack.c.b16 %v3910, %v3906
        %v3955 = vpack.c.b16 %v3911, %v3907
        %v3956 = vpack.c.b16 %v3912, %v3908
        %v3957 = vpack.c.b16 %v3913, %v3909
        %v3958 = vpack.c.b16 %v3918, %v3914
        %v3959 = vpack.c.b16 %v3919, %v3915
        %v3960 = vpack.c.b16 %v3920, %v3916
        %v3961 = vpack.c.b16 %v3921, %v3917
        %v3962 = vpack.c.b16 %v3926, %v3922
        %v3963 = vpack.c.b16 %v3927, %v3923
        %v3964 = vpack.c.b16 %v3928, %v3924
        %v3965 = vpack.c.b16 %v3929, %v3925
        %v3966 = vpack.c.b16 %v3934, %v3930
        %v3967 = vpack.c.b16 %v3935, %v3931
        %v3968 = vpack.c.b16 %v3936, %v3932
        %v3969 = vpack.c.b16 %v3937, %v3933
        %4002 = vmatprep.subr.bf16.mxu0 %v3967
        %4003 = vmatpush1.bf16.msra.mxu0 %v3966
        %4004 = vmatprep.subr.bf16.mxu0 %v3963
        %4005 = vmatpush1.bf16.msra.mxu0 %v3962
        %4006 = vmatprep.subr.bf16.mxu0 %v3959
        %4007 = vmatpush1.bf16.msra.mxu0 %v3958
        %4008 = vmatprep.subr.bf16.mxu0 %v3955
        %4009 = vmatpush1.bf16.msra.mxu0 %v3954
        %4010 = vmatprep.subr.bf16.mxu0 %v3951
        %4011 = vmatpush1.bf16.msra.mxu0 %v3950
        %4012 = vmatprep.subr.bf16.mxu0 %v3947
        %4013 = vmatpush1.bf16.msra.mxu0 %v3946
        %4014 = vmatprep.subr.bf16.mxu0 %v3943
        %4015 = vmatpush1.bf16.msra.mxu0 %v3942
        %4016 = vmatprep.subr.bf16.mxu0 %v3939
        %4017 = vmatpush1.bf16.msra.mxu0 %v3938
        %4018 = vmatprep.subr.bf16.mxu0 0
        %4019 = vmatpush2.bf16.msra.mxu0 0
        %4020 = vmatprep.subr.bf16.mxu0 0
        %4021 = vmatpush2.bf16.msra.mxu0 0
        %4022 = vmatprep.subr.bf16.mxu0 0
        %4023 = vmatpush2.bf16.msra.mxu0 0
        %4024 = vmatprep.subr.bf16.mxu0 0
        %4025 = vmatpush2.bf16.msra.mxu0 0
        %4026 = vmatprep.subr.bf16.mxu0 0
        %4027 = vmatpush2.bf16.msra.mxu0 0
        %4028 = vmatprep.subr.bf16.mxu0 0
        %4029 = vmatpush2.bf16.msra.mxu0 0
        %4030 = vmatprep.subr.bf16.mxu0 0
        %4031 = vmatpush2.bf16.msra.mxu0 0
        %4032 = vmatprep.subr.bf16.mxu0 0
        %4033 = vmatpush2.bf16.msra.mxu0 0
        %4034 = vmatprep.mubr.bf16.mxu0 0
        %4035 = vmatmul.mubr.bf16.gmra.mxu0 %v3809
        %v4036 = vpop.f32.mrf.mxu0
        %v4037 = vadd.f32 0.0, %v4036
        %v4038 = vpop.f32.mrf.mxu0
        %v4039 = vadd.f32 0.0, %v4038
        %v4040 = vpop.f32.mrf.mxu0
        %v4041 = vpop.f32.mrf.mxu0
        %4042 = vdwg.mxu0
        %4043 = vmatprep.subr.bf16.mxu0 %v3969
        %4044 = vmatpush1.bf16.msra.mxu0 %v3968
        %4045 = vmatprep.subr.bf16.mxu0 %v3965
        %4046 = vmatpush1.bf16.msra.mxu0 %v3964
        %4047 = vmatprep.subr.bf16.mxu0 %v3961
        %4048 = vmatpush1.bf16.msra.mxu0 %v3960
        %4049 = vmatprep.subr.bf16.mxu0 %v3957
        %4050 = vmatpush1.bf16.msra.mxu0 %v3956
        %4051 = vmatprep.subr.bf16.mxu0 %v3953
        %4052 = vmatpush1.bf16.msra.mxu0 %v3952
        %4053 = vmatprep.subr.bf16.mxu0 %v3949
        %4054 = vmatpush1.bf16.msra.mxu0 %v3948
        %4055 = vmatprep.subr.bf16.mxu0 %v3945
        %4056 = vmatpush1.bf16.msra.mxu0 %v3944
        %4057 = vmatprep.subr.bf16.mxu0 %v3941
        %4058 = vmatpush1.bf16.msra.mxu0 %v3940
        %4059 = vmatprep.subr.bf16.mxu0 0
        %4060 = vmatpush2.bf16.msra.mxu0 0
        %4061 = vmatprep.subr.bf16.mxu0 0
        %4062 = vmatpush2.bf16.msra.mxu0 0
        %4063 = vmatprep.subr.bf16.mxu0 0
        %4064 = vmatpush2.bf16.msra.mxu0 0
        %4065 = vmatprep.subr.bf16.mxu0 0
        %4066 = vmatpush2.bf16.msra.mxu0 0
        %4067 = vmatprep.subr.bf16.mxu0 0
        %4068 = vmatpush2.bf16.msra.mxu0 0
        %4069 = vmatprep.subr.bf16.mxu0 0
        %4070 = vmatpush2.bf16.msra.mxu0 0
        %4071 = vmatprep.subr.bf16.mxu0 0
        %4072 = vmatpush2.bf16.msra.mxu0 0
        %4073 = vmatprep.subr.bf16.mxu0 0
        %4074 = vmatpush2.bf16.msra.mxu0 0
        %4075 = vmatprep.mubr.bf16.mxu0 0
        %4076 = vmatmul.mubr.bf16.gmra.mxu0 %v3809
        %v4077 = vpop.f32.mrf.mxu0
        %v4078 = vadd.f32 0.0, %v4077
        %v4079 = vpop.f32.mrf.mxu0
        %v4080 = vadd.f32 0.0, %v4079
        %v4081 = vpop.f32.mrf.mxu0
        %v4082 = vpop.f32.mrf.mxu0
        %4083 = vdwg.mxu0
        %v4084 = vadd.f32 %v3805, %v4037
        %v4085 = vadd.f32 %v3806, %v4039
        %v4086 = vadd.f32 %v3807, %v4078
        %v4087 = vadd.f32 %v3808, %v4080
        %v4088 = vmul.f32 %v4084, 0.5
        %v4089 = vtanh.pop %v4088
        %v4090 = vmul.f32 %v4089, 0.5
        %v4091 = vadd.f32 %v4090, 0.5
        %v4092 = vmul.f32 %v4085, 0.5
        %v4093 = vtanh.pop %v4092
        %v4094 = vmul.f32 %v4093, 0.5
        %v4095 = vadd.f32 %v4094, 0.5
        %v4096 = vtanh.pop %v4086
        %v4097 = vmul.f32 %v4087, 0.5
        %v4098 = vtanh.pop %v4097
        %v4099 = vmul.f32 %v4098, 0.5
        %v4100 = vadd.f32 %v4099, 0.5
        %v4101 = vmul.f32 %v4095, %v3794
        %v4102 = vmul.f32 %v4091, %v4096
        %v4103 = vadd.f32 %v4101, %v4102
        %v4104 = vtanh.pop %v4103
        %v4105 = vmul.f32 %v4100, %v4104
        %4106 = vst [vmem:[%s1113] sm:$0xff] %v4105
        %s4107 = scalar_lea.vmem [#allocation2], 32
        %v4108 = vld [vmem:[%s4107] sm:$0xff]
        %v4109 = vld [vmem:[%s4107 + $0x8] sm:$0xff]
        %v4110 = vunpack.c.l.bf16 %v4108
        %v4111 = vunpack.c.h.bf16 %v4108
        %v4112 = vunpack.c.l.bf16 %v4109
        %v4113 = vunpack.c.h.bf16 %v4109
        %v4114 = vadd.f32 %v4110, %v3480
        %v4115 = vadd.f32 %v4111, %v3484
        %v4116 = vadd.f32 %v4112, %v3488
        %v4117 = vadd.f32 %v4113, %v3492
        %v4118 = vpack.c.bf16 %v4105, %v4105
        %v4119 = vld [vmem:[%s4] sm:$0xff]
        %v4120 = vld [vmem:[%s4 + $0x8] sm:$0xff]
        %v4121 = vld [vmem:[%s4 + $0x10] sm:$0xff]
        %v4122 = vld [vmem:[%s4 + $0x18] sm:$0xff]
        %v4123 = vld [vmem:[%s4 + $0x20] sm:$0xff]
        %v4124 = vld [vmem:[%s4 + $0x28] sm:$0xff]
        %v4125 = vld [vmem:[%s4 + $0x30] sm:$0xff]
        %v4126 = vld [vmem:[%s4 + $0x38] sm:$0xff]
        %v4127 = vld [vmem:[%s4 + $0x40] sm:$0xff]
        %v4128 = vld [vmem:[%s4 + $0x48] sm:$0xff]
        %v4129 = vld [vmem:[%s4 + $0x50] sm:$0xff]
        %v4130 = vld [vmem:[%s4 + $0x58] sm:$0xff]
        %v4131 = vld [vmem:[%s4 + $0x60] sm:$0xff]
        %v4132 = vld [vmem:[%s4 + $0x68] sm:$0xff]
        %v4133 = vld [vmem:[%s4 + $0x70] sm:$0xff]
        %v4134 = vld [vmem:[%s4 + $0x78] sm:$0xff]
        %v4135 = vld [vmem:[%s4 + $0x80] sm:$0xff]
        %v4136 = vld [vmem:[%s4 + $0x88] sm:$0xff]
        %v4137 = vld [vmem:[%s4 + $0x90] sm:$0xff]
        %v4138 = vld [vmem:[%s4 + $0x98] sm:$0xff]
        %v4139 = vld [vmem:[%s4 + $0xa0] sm:$0xff]
        %v4140 = vld [vmem:[%s4 + $0xa8] sm:$0xff]
        %v4141 = vld [vmem:[%s4 + $0xb0] sm:$0xff]
        %v4142 = vld [vmem:[%s4 + $0xb8] sm:$0xff]
        %v4143 = vld [vmem:[%s4 + $0xc0] sm:$0xff]
        %v4144 = vld [vmem:[%s4 + $0xc8] sm:$0xff]
        %v4145 = vld [vmem:[%s4 + $0xd0] sm:$0xff]
        %v4146 = vld [vmem:[%s4 + $0xd8] sm:$0xff]
        %v4147 = vld [vmem:[%s4 + $0xe0] sm:$0xff]
        %v4148 = vld [vmem:[%s4 + $0xe8] sm:$0xff]
        %v4149 = vld [vmem:[%s4 + $0xf0] sm:$0xff]
        %v4150 = vld [vmem:[%s4 + $0xf8] sm:$0xff]
        %v4183 = vunpack.c.l.b16 %v4119
        %v4184 = vunpack.c.h.b16 %v4119
        %v4185 = vunpack.c.l.b16 %v4120
        %v4186 = vunpack.c.h.b16 %v4120
        %v4187 = vunpack.c.l.b16 %v4121
        %v4188 = vunpack.c.h.b16 %v4121
        %v4189 = vunpack.c.l.b16 %v4122
        %v4190 = vunpack.c.h.b16 %v4122
        %v4191 = vunpack.c.l.b16 %v4123
        %v4192 = vunpack.c.h.b16 %v4123
        %v4193 = vunpack.c.l.b16 %v4124
        %v4194 = vunpack.c.h.b16 %v4124
        %v4195 = vunpack.c.l.b16 %v4125
        %v4196 = vunpack.c.h.b16 %v4125
        %v4197 = vunpack.c.l.b16 %v4126
        %v4198 = vunpack.c.h.b16 %v4126
        %v4199 = vunpack.c.l.b16 %v4127
        %v4200 = vunpack.c.h.b16 %v4127
        %v4201 = vunpack.c.l.b16 %v4128
        %v4202 = vunpack.c.h.b16 %v4128
        %v4203 = vunpack.c.l.b16 %v4129
        %v4204 = vunpack.c.h.b16 %v4129
        %v4205 = vunpack.c.l.b16 %v4130
        %v4206 = vunpack.c.h.b16 %v4130
        %v4207 = vunpack.c.l.b16 %v4131
        %v4208 = vunpack.c.h.b16 %v4131
        %v4209 = vunpack.c.l.b16 %v4132
        %v4210 = vunpack.c.h.b16 %v4132
        %v4211 = vunpack.c.l.b16 %v4133
        %v4212 = vunpack.c.h.b16 %v4133
        %v4213 = vunpack.c.l.b16 %v4134
        %v4214 = vunpack.c.h.b16 %v4134
        %v4215 = vunpack.c.l.b16 %v4135
        %v4216 = vunpack.c.h.b16 %v4135
        %v4217 = vunpack.c.l.b16 %v4136
        %v4218 = vunpack.c.h.b16 %v4136
        %v4219 = vunpack.c.l.b16 %v4137
        %v4220 = vunpack.c.h.b16 %v4137
        %v4221 = vunpack.c.l.b16 %v4138
        %v4222 = vunpack.c.h.b16 %v4138
        %v4223 = vunpack.c.l.b16 %v4139
        %v4224 = vunpack.c.h.b16 %v4139
        %v4225 = vunpack.c.l.b16 %v4140
        %v4226 = vunpack.c.h.b16 %v4140
        %v4227 = vunpack.c.l.b16 %v4141
        %v4228 = vunpack.c.h.b16 %v4141
        %v4229 = vunpack.c.l.b16 %v4142
        %v4230 = vunpack.c.h.b16 %v4142
        %v4231 = vunpack.c.l.b16 %v4143
        %v4232 = vunpack.c.h.b16 %v4143
        %v4233 = vunpack.c.l.b16 %v4144
        %v4234 = vunpack.c.h.b16 %v4144
        %v4235 = vunpack.c.l.b16 %v4145
        %v4236 = vunpack.c.h.b16 %v4145
        %v4237 = vunpack.c.l.b16 %v4146
        %v4238 = vunpack.c.h.b16 %v4146
        %v4239 = vunpack.c.l.b16 %v4147
        %v4240 = vunpack.c.h.b16 %v4147
        %v4241 = vunpack.c.l.b16 %v4148
        %v4242 = vunpack.c.h.b16 %v4148
        %v4243 = vunpack.c.l.b16 %v4149
        %v4244 = vunpack.c.h.b16 %v4149
        %v4245 = vunpack.c.l.b16 %v4150
        %v4246 = vunpack.c.h.b16 %v4150
        %v4247 = vpack.c.b16 %v4187, %v4183
        %v4248 = vpack.c.b16 %v4188, %v4184
        %v4249 = vpack.c.b16 %v4189, %v4185
        %v4250 = vpack.c.b16 %v4190, %v4186
        %v4251 = vpack.c.b16 %v4195, %v4191
        %v4252 = vpack.c.b16 %v4196, %v4192
        %v4253 = vpack.c.b16 %v4197, %v4193
        %v4254 = vpack.c.b16 %v4198, %v4194
        %v4255 = vpack.c.b16 %v4203, %v4199
        %v4256 = vpack.c.b16 %v4204, %v4200
        %v4257 = vpack.c.b16 %v4205, %v4201
        %v4258 = vpack.c.b16 %v4206, %v4202
        %v4259 = vpack.c.b16 %v4211, %v4207
        %v4260 = vpack.c.b16 %v4212, %v4208
        %v4261 = vpack.c.b16 %v4213, %v4209
        %v4262 = vpack.c.b16 %v4214, %v4210
        %v4263 = vpack.c.b16 %v4219, %v4215
        %v4264 = vpack.c.b16 %v4220, %v4216
        %v4265 = vpack.c.b16 %v4221, %v4217
        %v4266 = vpack.c.b16 %v4222, %v4218
        %v4267 = vpack.c.b16 %v4227, %v4223
        %v4268 = vpack.c.b16 %v4228, %v4224
        %v4269 = vpack.c.b16 %v4229, %v4225
        %v4270 = vpack.c.b16 %v4230, %v4226
        %v4271 = vpack.c.b16 %v4235, %v4231
        %v4272 = vpack.c.b16 %v4236, %v4232
        %v4273 = vpack.c.b16 %v4237, %v4233
        %v4274 = vpack.c.b16 %v4238, %v4234
        %v4275 = vpack.c.b16 %v4243, %v4239
        %v4276 = vpack.c.b16 %v4244, %v4240
        %v4277 = vpack.c.b16 %v4245, %v4241
        %v4278 = vpack.c.b16 %v4246, %v4242
        %4311 = vmatprep.subr.bf16.mxu0 %v4276
        %4312 = vmatpush1.bf16.msra.mxu0 %v4275
        %4313 = vmatprep.subr.bf16.mxu0 %v4272
        %4314 = vmatpush1.bf16.msra.mxu0 %v4271
        %4315 = vmatprep.subr.bf16.mxu0 %v4268
        %4316 = vmatpush1.bf16.msra.mxu0 %v4267
        %4317 = vmatprep.subr.bf16.mxu0 %v4264
        %4318 = vmatpush1.bf16.msra.mxu0 %v4263
        %4319 = vmatprep.subr.bf16.mxu0 %v4260
        %4320 = vmatpush1.bf16.msra.mxu0 %v4259
        %4321 = vmatprep.subr.bf16.mxu0 %v4256
        %4322 = vmatpush1.bf16.msra.mxu0 %v4255
        %4323 = vmatprep.subr.bf16.mxu0 %v4252
        %4324 = vmatpush1.bf16.msra.mxu0 %v4251
        %4325 = vmatprep.subr.bf16.mxu0 %v4248
        %4326 = vmatpush1.bf16.msra.mxu0 %v4247
        %4327 = vmatprep.subr.bf16.mxu0 0
        %4328 = vmatpush2.bf16.msra.mxu0 0
        %4329 = vmatprep.subr.bf16.mxu0 0
        %4330 = vmatpush2.bf16.msra.mxu0 0
        %4331 = vmatprep.subr.bf16.mxu0 0
        %4332 = vmatpush2.bf16.msra.mxu0 0
        %4333 = vmatprep.subr.bf16.mxu0 0
        %4334 = vmatpush2.bf16.msra.mxu0 0
        %4335 = vmatprep.subr.bf16.mxu0 0
        %4336 = vmatpush2.bf16.msra.mxu0 0
        %4337 = vmatprep.subr.bf16.mxu0 0
        %4338 = vmatpush2.bf16.msra.mxu0 0
        %4339 = vmatprep.subr.bf16.mxu0 0
        %4340 = vmatpush2.bf16.msra.mxu0 0
        %4341 = vmatprep.subr.bf16.mxu0 0
        %4342 = vmatpush2.bf16.msra.mxu0 0
        %4343 = vmatprep.mubr.bf16.mxu0 0
        %4344 = vmatmul.mubr.bf16.gmra.mxu0 %v4118
        %v4345 = vpop.f32.mrf.mxu0
        %v4346 = vadd.f32 0.0, %v4345
        %v4347 = vpop.f32.mrf.mxu0
        %v4348 = vadd.f32 0.0, %v4347
        %v4349 = vpop.f32.mrf.mxu0
        %v4350 = vpop.f32.mrf.mxu0
        %4351 = vdwg.mxu0
        %4352 = vmatprep.subr.bf16.mxu0 %v4278
        %4353 = vmatpush1.bf16.msra.mxu0 %v4277
        %4354 = vmatprep.subr.bf16.mxu0 %v4274
        %4355 = vmatpush1.bf16.msra.mxu0 %v4273
        %4356 = vmatprep.subr.bf16.mxu0 %v4270
        %4357 = vmatpush1.bf16.msra.mxu0 %v4269
        %4358 = vmatprep.subr.bf16.mxu0 %v4266
        %4359 = vmatpush1.bf16.msra.mxu0 %v4265
        %4360 = vmatprep.subr.bf16.mxu0 %v4262
        %4361 = vmatpush1.bf16.msra.mxu0 %v4261
        %4362 = vmatprep.subr.bf16.mxu0 %v4258
        %4363 = vmatpush1.bf16.msra.mxu0 %v4257
        %4364 = vmatprep.subr.bf16.mxu0 %v4254
        %4365 = vmatpush1.bf16.msra.mxu0 %v4253
        %4366 = vmatprep.subr.bf16.mxu0 %v4250
        %4367 = vmatpush1.bf16.msra.mxu0 %v4249
        %4368 = vmatprep.subr.bf16.mxu0 0
        %4369 = vmatpush2.bf16.msra.mxu0 0
        %4370 = vmatprep.subr.bf16.mxu0 0
        %4371 = vmatpush2.bf16.msra.mxu0 0
        %4372 = vmatprep.subr.bf16.mxu0 0
        %4373 = vmatpush2.bf16.msra.mxu0 0
        %4374 = vmatprep.subr.bf16.mxu0 0
        %4375 = vmatpush2.bf16.msra.mxu0 0
        %4376 = vmatprep.subr.bf16.mxu0 0
        %4377 = vmatpush2.bf16.msra.mxu0 0
        %4378 = vmatprep.subr.bf16.mxu0 0
        %4379 = vmatpush2.bf16.msra.mxu0 0
        %4380 = vmatprep.subr.bf16.mxu0 0
        %4381 = vmatpush2.bf16.msra.mxu0 0
        %4382 = vmatprep.subr.bf16.mxu0 0
        %4383 = vmatpush2.bf16.msra.mxu0 0
        %4384 = vmatprep.mubr.bf16.mxu0 0
        %4385 = vmatmul.mubr.bf16.gmra.mxu0 %v4118
        %v4386 = vpop.f32.mrf.mxu0
        %v4387 = vadd.f32 0.0, %v4386
        %v4388 = vpop.f32.mrf.mxu0
        %v4389 = vadd.f32 0.0, %v4388
        %v4390 = vpop.f32.mrf.mxu0
        %v4391 = vpop.f32.mrf.mxu0
        %4392 = vdwg.mxu0
        %v4393 = vadd.f32 %v4114, %v4346
        %v4394 = vadd.f32 %v4115, %v4348
        %v4395 = vadd.f32 %v4116, %v4387
        %v4396 = vadd.f32 %v4117, %v4389
        %v4397 = vmul.f32 %v4393, 0.5
        %v4398 = vtanh.pop %v4397
        %v4399 = vmul.f32 %v4398, 0.5
        %v4400 = vadd.f32 %v4399, 0.5
        %v4401 = vmul.f32 %v4394, 0.5
        %v4402 = vtanh.pop %v4401
        %v4403 = vmul.f32 %v4402, 0.5
        %v4404 = vadd.f32 %v4403, 0.5
        %v4405 = vtanh.pop %v4395
        %v4406 = vmul.f32 %v4396, 0.5
        %v4407 = vtanh.pop %v4406
        %v4408 = vmul.f32 %v4407, 0.5
        %v4409 = vadd.f32 %v4408, 0.5
        %v4410 = vmul.f32 %v4404, %v4103
        %v4411 = vmul.f32 %v4400, %v4405
        %v4412 = vadd.f32 %v4410, %v4411
        %v4413 = vtanh.pop %v4412
        %v4414 = vmul.f32 %v4409, %v4413
        %4415 = vst [vmem:[%s1423] sm:$0xff] %v4414
        %s4416 = scalar_lea.vmem [#allocation2], 48
        %v4417 = vld [vmem:[%s4416] sm:$0xff]
        %v4418 = vld [vmem:[%s4416 + $0x8] sm:$0xff]
        %v4419 = vunpack.c.l.bf16 %v4417
        %v4420 = vunpack.c.h.bf16 %v4417
        %v4421 = vunpack.c.l.bf16 %v4418
        %v4422 = vunpack.c.h.bf16 %v4418
        %v4423 = vadd.f32 %v4419, %v3480
        %v4424 = vadd.f32 %v4420, %v3484
        %v4425 = vadd.f32 %v4421, %v3488
        %v4426 = vadd.f32 %v4422, %v3492
        %v4427 = vpack.c.bf16 %v4414, %v4414
        %v4428 = vld [vmem:[%s4] sm:$0xff]
        %v4429 = vld [vmem:[%s4 + $0x8] sm:$0xff]
        %v4430 = vld [vmem:[%s4 + $0x10] sm:$0xff]
        %v4431 = vld [vmem:[%s4 + $0x18] sm:$0xff]
        %v4432 = vld [vmem:[%s4 + $0x20] sm:$0xff]
        %v4433 = vld [vmem:[%s4 + $0x28] sm:$0xff]
        %v4434 = vld [vmem:[%s4 + $0x30] sm:$0xff]
        %v4435 = vld [vmem:[%s4 + $0x38] sm:$0xff]
        %v4436 = vld [vmem:[%s4 + $0x40] sm:$0xff]
        %v4437 = vld [vmem:[%s4 + $0x48] sm:$0xff]
        %v4438 = vld [vmem:[%s4 + $0x50] sm:$0xff]
        %v4439 = vld [vmem:[%s4 + $0x58] sm:$0xff]
        %v4440 = vld [vmem:[%s4 + $0x60] sm:$0xff]
        %v4441 = vld [vmem:[%s4 + $0x68] sm:$0xff]
        %v4442 = vld [vmem:[%s4 + $0x70] sm:$0xff]
        %v4443 = vld [vmem:[%s4 + $0x78] sm:$0xff]
        %v4444 = vld [vmem:[%s4 + $0x80] sm:$0xff]
        %v4445 = vld [vmem:[%s4 + $0x88] sm:$0xff]
        %v4446 = vld [vmem:[%s4 + $0x90] sm:$0xff]
        %v4447 = vld [vmem:[%s4 + $0x98] sm:$0xff]
        %v4448 = vld [vmem:[%s4 + $0xa0] sm:$0xff]
        %v4449 = vld [vmem:[%s4 + $0xa8] sm:$0xff]
        %v4450 = vld [vmem:[%s4 + $0xb0] sm:$0xff]
        %v4451 = vld [vmem:[%s4 + $0xb8] sm:$0xff]
        %v4452 = vld [vmem:[%s4 + $0xc0] sm:$0xff]
        %v4453 = vld [vmem:[%s4 + $0xc8] sm:$0xff]
        %v4454 = vld [vmem:[%s4 + $0xd0] sm:$0xff]
        %v4455 = vld [vmem:[%s4 + $0xd8] sm:$0xff]
        %v4456 = vld [vmem:[%s4 + $0xe0] sm:$0xff]
        %v4457 = vld [vmem:[%s4 + $0xe8] sm:$0xff]
        %v4458 = vld [vmem:[%s4 + $0xf0] sm:$0xff]
        %v4459 = vld [vmem:[%s4 + $0xf8] sm:$0xff]
        %v4492 = vunpack.c.l.b16 %v4428
        %v4493 = vunpack.c.h.b16 %v4428
        %v4494 = vunpack.c.l.b16 %v4429
        %v4495 = vunpack.c.h.b16 %v4429
        %v4496 = vunpack.c.l.b16 %v4430
        %v4497 = vunpack.c.h.b16 %v4430
        %v4498 = vunpack.c.l.b16 %v4431
        %v4499 = vunpack.c.h.b16 %v4431
        %v4500 = vunpack.c.l.b16 %v4432
        %v4501 = vunpack.c.h.b16 %v4432
        %v4502 = vunpack.c.l.b16 %v4433
        %v4503 = vunpack.c.h.b16 %v4433
        %v4504 = vunpack.c.l.b16 %v4434
        %v4505 = vunpack.c.h.b16 %v4434
        %v4506 = vunpack.c.l.b16 %v4435
        %v4507 = vunpack.c.h.b16 %v4435
        %v4508 = vunpack.c.l.b16 %v4436
        %v4509 = vunpack.c.h.b16 %v4436
        %v4510 = vunpack.c.l.b16 %v4437
        %v4511 = vunpack.c.h.b16 %v4437
        %v4512 = vunpack.c.l.b16 %v4438
        %v4513 = vunpack.c.h.b16 %v4438
        %v4514 = vunpack.c.l.b16 %v4439
        %v4515 = vunpack.c.h.b16 %v4439
        %v4516 = vunpack.c.l.b16 %v4440
        %v4517 = vunpack.c.h.b16 %v4440
        %v4518 = vunpack.c.l.b16 %v4441
        %v4519 = vunpack.c.h.b16 %v4441
        %v4520 = vunpack.c.l.b16 %v4442
        %v4521 = vunpack.c.h.b16 %v4442
        %v4522 = vunpack.c.l.b16 %v4443
        %v4523 = vunpack.c.h.b16 %v4443
        %v4524 = vunpack.c.l.b16 %v4444
        %v4525 = vunpack.c.h.b16 %v4444
        %v4526 = vunpack.c.l.b16 %v4445
        %v4527 = vunpack.c.h.b16 %v4445
        %v4528 = vunpack.c.l.b16 %v4446
        %v4529 = vunpack.c.h.b16 %v4446
        %v4530 = vunpack.c.l.b16 %v4447
        %v4531 = vunpack.c.h.b16 %v4447
        %v4532 = vunpack.c.l.b16 %v4448
        %v4533 = vunpack.c.h.b16 %v4448
        %v4534 = vunpack.c.l.b16 %v4449
        %v4535 = vunpack.c.h.b16 %v4449
        %v4536 = vunpack.c.l.b16 %v4450
        %v4537 = vunpack.c.h.b16 %v4450
        %v4538 = vunpack.c.l.b16 %v4451
        %v4539 = vunpack.c.h.b16 %v4451
        %v4540 = vunpack.c.l.b16 %v4452
        %v4541 = vunpack.c.h.b16 %v4452
        %v4542 = vunpack.c.l.b16 %v4453
        %v4543 = vunpack.c.h.b16 %v4453
        %v4544 = vunpack.c.l.b16 %v4454
        %v4545 = vunpack.c.h.b16 %v4454
        %v4546 = vunpack.c.l.b16 %v4455
        %v4547 = vunpack.c.h.b16 %v4455
        %v4548 = vunpack.c.l.b16 %v4456
        %v4549 = vunpack.c.h.b16 %v4456
        %v4550 = vunpack.c.l.b16 %v4457
        %v4551 = vunpack.c.h.b16 %v4457
        %v4552 = vunpack.c.l.b16 %v4458
        %v4553 = vunpack.c.h.b16 %v4458
        %v4554 = vunpack.c.l.b16 %v4459
        %v4555 = vunpack.c.h.b16 %v4459
        %v4556 = vpack.c.b16 %v4496, %v4492
        %v4557 = vpack.c.b16 %v4497, %v4493
        %v4558 = vpack.c.b16 %v4498, %v4494
        %v4559 = vpack.c.b16 %v4499, %v4495
        %v4560 = vpack.c.b16 %v4504, %v4500
        %v4561 = vpack.c.b16 %v4505, %v4501
        %v4562 = vpack.c.b16 %v4506, %v4502
        %v4563 = vpack.c.b16 %v4507, %v4503
        %v4564 = vpack.c.b16 %v4512, %v4508
        %v4565 = vpack.c.b16 %v4513, %v4509
        %v4566 = vpack.c.b16 %v4514, %v4510
        %v4567 = vpack.c.b16 %v4515, %v4511
        %v4568 = vpack.c.b16 %v4520, %v4516
        %v4569 = vpack.c.b16 %v4521, %v4517
        %v4570 = vpack.c.b16 %v4522, %v4518
        %v4571 = vpack.c.b16 %v4523, %v4519
        %v4572 = vpack.c.b16 %v4528, %v4524
        %v4573 = vpack.c.b16 %v4529, %v4525
        %v4574 = vpack.c.b16 %v4530, %v4526
        %v4575 = vpack.c.b16 %v4531, %v4527
        %v4576 = vpack.c.b16 %v4536, %v4532
        %v4577 = vpack.c.b16 %v4537, %v4533
        %v4578 = vpack.c.b16 %v4538, %v4534
        %v4579 = vpack.c.b16 %v4539, %v4535
        %v4580 = vpack.c.b16 %v4544, %v4540
        %v4581 = vpack.c.b16 %v4545, %v4541
        %v4582 = vpack.c.b16 %v4546, %v4542
        %v4583 = vpack.c.b16 %v4547, %v4543
        %v4584 = vpack.c.b16 %v4552, %v4548
        %v4585 = vpack.c.b16 %v4553, %v4549
        %v4586 = vpack.c.b16 %v4554, %v4550
        %v4587 = vpack.c.b16 %v4555, %v4551
        %4620 = vmatprep.subr.bf16.mxu0 %v4585
        %4621 = vmatpush1.bf16.msra.mxu0 %v4584
        %4622 = vmatprep.subr.bf16.mxu0 %v4581
        %4623 = vmatpush1.bf16.msra.mxu0 %v4580
        %4624 = vmatprep.subr.bf16.mxu0 %v4577
        %4625 = vmatpush1.bf16.msra.mxu0 %v4576
        %4626 = vmatprep.subr.bf16.mxu0 %v4573
        %4627 = vmatpush1.bf16.msra.mxu0 %v4572
        %4628 = vmatprep.subr.bf16.mxu0 %v4569
        %4629 = vmatpush1.bf16.msra.mxu0 %v4568
        %4630 = vmatprep.subr.bf16.mxu0 %v4565
        %4631 = vmatpush1.bf16.msra.mxu0 %v4564
        %4632 = vmatprep.subr.bf16.mxu0 %v4561
        %4633 = vmatpush1.bf16.msra.mxu0 %v4560
        %4634 = vmatprep.subr.bf16.mxu0 %v4557
        %4635 = vmatpush1.bf16.msra.mxu0 %v4556
        %4636 = vmatprep.subr.bf16.mxu0 0
        %4637 = vmatpush2.bf16.msra.mxu0 0
        %4638 = vmatprep.subr.bf16.mxu0 0
        %4639 = vmatpush2.bf16.msra.mxu0 0
        %4640 = vmatprep.subr.bf16.mxu0 0
        %4641 = vmatpush2.bf16.msra.mxu0 0
        %4642 = vmatprep.subr.bf16.mxu0 0
        %4643 = vmatpush2.bf16.msra.mxu0 0
        %4644 = vmatprep.subr.bf16.mxu0 0
        %4645 = vmatpush2.bf16.msra.mxu0 0
        %4646 = vmatprep.subr.bf16.mxu0 0
        %4647 = vmatpush2.bf16.msra.mxu0 0
        %4648 = vmatprep.subr.bf16.mxu0 0
        %4649 = vmatpush2.bf16.msra.mxu0 0
        %4650 = vmatprep.subr.bf16.mxu0 0
        %4651 = vmatpush2.bf16.msra.mxu0 0
        %4652 = vmatprep.mubr.bf16.mxu0 0
        %4653 = vmatmul.mubr.bf16.gmra.mxu0 %v4427
        %v4654 = vpop.f32.mrf.mxu0
        %v4655 = vadd.f32 0.0, %v4654
        %v4656 = vpop.f32.mrf.mxu0
        %v4657 = vadd.f32 0.0, %v4656
        %v4658 = vpop.f32.mrf.mxu0
        %v4659 = vpop.f32.mrf.mxu0
        %4660 = vdwg.mxu0
        %4661 = vmatprep.subr.bf16.mxu0 %v4587
        %4662 = vmatpush1.bf16.msra.mxu0 %v4586
        %4663 = vmatprep.subr.bf16.mxu0 %v4583
        %4664 = vmatpush1.bf16.msra.mxu0 %v4582
        %4665 = vmatprep.subr.bf16.mxu0 %v4579
        %4666 = vmatpush1.bf16.msra.mxu0 %v4578
        %4667 = vmatprep.subr.bf16.mxu0 %v4575
        %4668 = vmatpush1.bf16.msra.mxu0 %v4574
        %4669 = vmatprep.subr.bf16.mxu0 %v4571
        %4670 = vmatpush1.bf16.msra.mxu0 %v4570
        %4671 = vmatprep.subr.bf16.mxu0 %v4567
        %4672 = vmatpush1.bf16.msra.mxu0 %v4566
        %4673 = vmatprep.subr.bf16.mxu0 %v4563
        %4674 = vmatpush1.bf16.msra.mxu0 %v4562
        %4675 = vmatprep.subr.bf16.mxu0 %v4559
        %4676 = vmatpush1.bf16.msra.mxu0 %v4558
        %4677 = vmatprep.subr.bf16.mxu0 0
        %4678 = vmatpush2.bf16.msra.mxu0 0
        %4679 = vmatprep.subr.bf16.mxu0 0
        %4680 = vmatpush2.bf16.msra.mxu0 0
        %4681 = vmatprep.subr.bf16.mxu0 0
        %4682 = vmatpush2.bf16.msra.mxu0 0
        %4683 = vmatprep.subr.bf16.mxu0 0
        %4684 = vmatpush2.bf16.msra.mxu0 0
        %4685 = vmatprep.subr.bf16.mxu0 0
        %4686 = vmatpush2.bf16.msra.mxu0 0
        %4687 = vmatprep.subr.bf16.mxu0 0
        %4688 = vmatpush2.bf16.msra.mxu0 0
        %4689 = vmatprep.subr.bf16.mxu0 0
        %4690 = vmatpush2.bf16.msra.mxu0 0
        %4691 = vmatprep.subr.bf16.mxu0 0
        %4692 = vmatpush2.bf16.msra.mxu0 0
        %4693 = vmatprep.mubr.bf16.mxu0 0
        %4694 = vmatmul.mubr.bf16.gmra.mxu0 %v4427
        %v4695 = vpop.f32.mrf.mxu0
        %v4696 = vadd.f32 0.0, %v4695
        %v4697 = vpop.f32.mrf.mxu0
        %v4698 = vadd.f32 0.0, %v4697
        %v4699 = vpop.f32.mrf.mxu0
        %v4700 = vpop.f32.mrf.mxu0
        %4701 = vdwg.mxu0
        %v4702 = vadd.f32 %v4423, %v4655
        %v4703 = vadd.f32 %v4424, %v4657
        %v4704 = vadd.f32 %v4425, %v4696
        %v4705 = vadd.f32 %v4426, %v4698
        %v4706 = vmul.f32 %v4702, 0.5
        %v4707 = vtanh.pop %v4706
        %v4708 = vmul.f32 %v4707, 0.5
        %v4709 = vadd.f32 %v4708, 0.5
        %v4710 = vmul.f32 %v4703, 0.5
        %v4711 = vtanh.pop %v4710
        %v4712 = vmul.f32 %v4711, 0.5
        %v4713 = vadd.f32 %v4712, 0.5
        %v4714 = vtanh.pop %v4704
        %v4715 = vmul.f32 %v4705, 0.5
        %v4716 = vtanh.pop %v4715
        %v4717 = vmul.f32 %v4716, 0.5
        %v4718 = vadd.f32 %v4717, 0.5
        %v4719 = vmul.f32 %v4713, %v4412
        %v4720 = vmul.f32 %v4709, %v4714
        %v4721 = vadd.f32 %v4719, %v4720
        %v4722 = vtanh.pop %v4721
        %v4723 = vmul.f32 %v4718, %v4722
        %4724 = vst [vmem:[%s1733] sm:$0xff] %v4723
        %s4725 = scalar_lea.vmem [#allocation2], 64
        %v4726 = vld [vmem:[%s4725] sm:$0xff]
        %v4727 = vld [vmem:[%s4725 + $0x8] sm:$0xff]
        %v4728 = vunpack.c.l.bf16 %v4726
        %v4729 = vunpack.c.h.bf16 %v4726
        %v4730 = vunpack.c.l.bf16 %v4727
        %v4731 = vunpack.c.h.bf16 %v4727
        %v4732 = vadd.f32 %v4728, %v3480
        %v4733 = vadd.f32 %v4729, %v3484
        %v4734 = vadd.f32 %v4730, %v3488
        %v4735 = vadd.f32 %v4731, %v3492
        %v4736 = vpack.c.bf16 %v4723, %v4723
        %v4737 = vld [vmem:[%s4] sm:$0xff]
        %v4738 = vld [vmem:[%s4 + $0x8] sm:$0xff]
        %v4739 = vld [vmem:[%s4 + $0x10] sm:$0xff]
        %v4740 = vld [vmem:[%s4 + $0x18] sm:$0xff]
        %v4741 = vld [vmem:[%s4 + $0x20] sm:$0xff]
        %v4742 = vld [vmem:[%s4 + $0x28] sm:$0xff]
        %v4743 = vld [vmem:[%s4 + $0x30] sm:$0xff]
        %v4744 = vld [vmem:[%s4 + $0x38] sm:$0xff]
        %v4745 = vld [vmem:[%s4 + $0x40] sm:$0xff]
        %v4746 = vld [vmem:[%s4 + $0x48] sm:$0xff]
        %v4747 = vld [vmem:[%s4 + $0x50] sm:$0xff]
        %v4748 = vld [vmem:[%s4 + $0x58] sm:$0xff]
        %v4749 = vld [vmem:[%s4 + $0x60] sm:$0xff]
        %v4750 = vld [vmem:[%s4 + $0x68] sm:$0xff]
        %v4751 = vld [vmem:[%s4 + $0x70] sm:$0xff]
        %v4752 = vld [vmem:[%s4 + $0x78] sm:$0xff]
        %v4753 = vld [vmem:[%s4 + $0x80] sm:$0xff]
        %v4754 = vld [vmem:[%s4 + $0x88] sm:$0xff]
        %v4755 = vld [vmem:[%s4 + $0x90] sm:$0xff]
        %v4756 = vld [vmem:[%s4 + $0x98] sm:$0xff]
        %v4757 = vld [vmem:[%s4 + $0xa0] sm:$0xff]
        %v4758 = vld [vmem:[%s4 + $0xa8] sm:$0xff]
        %v4759 = vld [vmem:[%s4 + $0xb0] sm:$0xff]
        %v4760 = vld [vmem:[%s4 + $0xb8] sm:$0xff]
        %v4761 = vld [vmem:[%s4 + $0xc0] sm:$0xff]
        %v4762 = vld [vmem:[%s4 + $0xc8] sm:$0xff]
        %v4763 = vld [vmem:[%s4 + $0xd0] sm:$0xff]
        %v4764 = vld [vmem:[%s4 + $0xd8] sm:$0xff]
        %v4765 = vld [vmem:[%s4 + $0xe0] sm:$0xff]
        %v4766 = vld [vmem:[%s4 + $0xe8] sm:$0xff]
        %v4767 = vld [vmem:[%s4 + $0xf0] sm:$0xff]
        %v4768 = vld [vmem:[%s4 + $0xf8] sm:$0xff]
        %v4801 = vunpack.c.l.b16 %v4737
        %v4802 = vunpack.c.h.b16 %v4737
        %v4803 = vunpack.c.l.b16 %v4738
        %v4804 = vunpack.c.h.b16 %v4738
        %v4805 = vunpack.c.l.b16 %v4739
        %v4806 = vunpack.c.h.b16 %v4739
        %v4807 = vunpack.c.l.b16 %v4740
        %v4808 = vunpack.c.h.b16 %v4740
        %v4809 = vunpack.c.l.b16 %v4741
        %v4810 = vunpack.c.h.b16 %v4741
        %v4811 = vunpack.c.l.b16 %v4742
        %v4812 = vunpack.c.h.b16 %v4742
        %v4813 = vunpack.c.l.b16 %v4743
        %v4814 = vunpack.c.h.b16 %v4743
        %v4815 = vunpack.c.l.b16 %v4744
        %v4816 = vunpack.c.h.b16 %v4744
        %v4817 = vunpack.c.l.b16 %v4745
        %v4818 = vunpack.c.h.b16 %v4745
        %v4819 = vunpack.c.l.b16 %v4746
        %v4820 = vunpack.c.h.b16 %v4746
        %v4821 = vunpack.c.l.b16 %v4747
        %v4822 = vunpack.c.h.b16 %v4747
        %v4823 = vunpack.c.l.b16 %v4748
        %v4824 = vunpack.c.h.b16 %v4748
        %v4825 = vunpack.c.l.b16 %v4749
        %v4826 = vunpack.c.h.b16 %v4749
        %v4827 = vunpack.c.l.b16 %v4750
        %v4828 = vunpack.c.h.b16 %v4750
        %v4829 = vunpack.c.l.b16 %v4751
        %v4830 = vunpack.c.h.b16 %v4751
        %v4831 = vunpack.c.l.b16 %v4752
        %v4832 = vunpack.c.h.b16 %v4752
        %v4833 = vunpack.c.l.b16 %v4753
        %v4834 = vunpack.c.h.b16 %v4753
        %v4835 = vunpack.c.l.b16 %v4754
        %v4836 = vunpack.c.h.b16 %v4754
        %v4837 = vunpack.c.l.b16 %v4755
        %v4838 = vunpack.c.h.b16 %v4755
        %v4839 = vunpack.c.l.b16 %v4756
        %v4840 = vunpack.c.h.b16 %v4756
        %v4841 = vunpack.c.l.b16 %v4757
        %v4842 = vunpack.c.h.b16 %v4757
        %v4843 = vunpack.c.l.b16 %v4758
        %v4844 = vunpack.c.h.b16 %v4758
        %v4845 = vunpack.c.l.b16 %v4759
        %v4846 = vunpack.c.h.b16 %v4759
        %v4847 = vunpack.c.l.b16 %v4760
        %v4848 = vunpack.c.h.b16 %v4760
        %v4849 = vunpack.c.l.b16 %v4761
        %v4850 = vunpack.c.h.b16 %v4761
        %v4851 = vunpack.c.l.b16 %v4762
        %v4852 = vunpack.c.h.b16 %v4762
        %v4853 = vunpack.c.l.b16 %v4763
        %v4854 = vunpack.c.h.b16 %v4763
        %v4855 = vunpack.c.l.b16 %v4764
        %v4856 = vunpack.c.h.b16 %v4764
        %v4857 = vunpack.c.l.b16 %v4765
        %v4858 = vunpack.c.h.b16 %v4765
        %v4859 = vunpack.c.l.b16 %v4766
        %v4860 = vunpack.c.h.b16 %v4766
        %v4861 = vunpack.c.l.b16 %v4767
        %v4862 = vunpack.c.h.b16 %v4767
        %v4863 = vunpack.c.l.b16 %v4768
        %v4864 = vunpack.c.h.b16 %v4768
        %v4865 = vpack.c.b16 %v4805, %v4801
        %v4866 = vpack.c.b16 %v4806, %v4802
        %v4867 = vpack.c.b16 %v4807, %v4803
        %v4868 = vpack.c.b16 %v4808, %v4804
        %v4869 = vpack.c.b16 %v4813, %v4809
        %v4870 = vpack.c.b16 %v4814, %v4810
        %v4871 = vpack.c.b16 %v4815, %v4811
        %v4872 = vpack.c.b16 %v4816, %v4812
        %v4873 = vpack.c.b16 %v4821, %v4817
        %v4874 = vpack.c.b16 %v4822, %v4818
        %v4875 = vpack.c.b16 %v4823, %v4819
        %v4876 = vpack.c.b16 %v4824, %v4820
        %v4877 = vpack.c.b16 %v4829, %v4825
        %v4878 = vpack.c.b16 %v4830, %v4826
        %v4879 = vpack.c.b16 %v4831, %v4827
        %v4880 = vpack.c.b16 %v4832, %v4828
        %v4881 = vpack.c.b16 %v4837, %v4833
        %v4882 = vpack.c.b16 %v4838, %v4834
        %v4883 = vpack.c.b16 %v4839, %v4835
        %v4884 = vpack.c.b16 %v4840, %v4836
        %v4885 = vpack.c.b16 %v4845, %v4841
        %v4886 = vpack.c.b16 %v4846, %v4842
        %v4887 = vpack.c.b16 %v4847, %v4843
        %v4888 = vpack.c.b16 %v4848, %v4844
        %v4889 = vpack.c.b16 %v4853, %v4849
        %v4890 = vpack.c.b16 %v4854, %v4850
        %v4891 = vpack.c.b16 %v4855, %v4851
        %v4892 = vpack.c.b16 %v4856, %v4852
        %v4893 = vpack.c.b16 %v4861, %v4857
        %v4894 = vpack.c.b16 %v4862, %v4858
        %v4895 = vpack.c.b16 %v4863, %v4859
        %v4896 = vpack.c.b16 %v4864, %v4860
        %4929 = vmatprep.subr.bf16.mxu0 %v4894
        %4930 = vmatpush1.bf16.msra.mxu0 %v4893
        %4931 = vmatprep.subr.bf16.mxu0 %v4890
        %4932 = vmatpush1.bf16.msra.mxu0 %v4889
        %4933 = vmatprep.subr.bf16.mxu0 %v4886
        %4934 = vmatpush1.bf16.msra.mxu0 %v4885
        %4935 = vmatprep.subr.bf16.mxu0 %v4882
        %4936 = vmatpush1.bf16.msra.mxu0 %v4881
        %4937 = vmatprep.subr.bf16.mxu0 %v4878
        %4938 = vmatpush1.bf16.msra.mxu0 %v4877
        %4939 = vmatprep.subr.bf16.mxu0 %v4874
        %4940 = vmatpush1.bf16.msra.mxu0 %v4873
        %4941 = vmatprep.subr.bf16.mxu0 %v4870
        %4942 = vmatpush1.bf16.msra.mxu0 %v4869
        %4943 = vmatprep.subr.bf16.mxu0 %v4866
        %4944 = vmatpush1.bf16.msra.mxu0 %v4865
        %4945 = vmatprep.subr.bf16.mxu0 0
        %4946 = vmatpush2.bf16.msra.mxu0 0
        %4947 = vmatprep.subr.bf16.mxu0 0
        %4948 = vmatpush2.bf16.msra.mxu0 0
        %4949 = vmatprep.subr.bf16.mxu0 0
        %4950 = vmatpush2.bf16.msra.mxu0 0
        %4951 = vmatprep.subr.bf16.mxu0 0
        %4952 = vmatpush2.bf16.msra.mxu0 0
        %4953 = vmatprep.subr.bf16.mxu0 0
        %4954 = vmatpush2.bf16.msra.mxu0 0
        %4955 = vmatprep.subr.bf16.mxu0 0
        %4956 = vmatpush2.bf16.msra.mxu0 0
        %4957 = vmatprep.subr.bf16.mxu0 0
        %4958 = vmatpush2.bf16.msra.mxu0 0
        %4959 = vmatprep.subr.bf16.mxu0 0
        %4960 = vmatpush2.bf16.msra.mxu0 0
        %4961 = vmatprep.mubr.bf16.mxu0 0
        %4962 = vmatmul.mubr.bf16.gmra.mxu0 %v4736
        %v4963 = vpop.f32.mrf.mxu0
        %v4964 = vadd.f32 0.0, %v4963
        %v4965 = vpop.f32.mrf.mxu0
        %v4966 = vadd.f32 0.0, %v4965
        %v4967 = vpop.f32.mrf.mxu0
        %v4968 = vpop.f32.mrf.mxu0
        %4969 = vdwg.mxu0
        %4970 = vmatprep.subr.bf16.mxu0 %v4896
        %4971 = vmatpush1.bf16.msra.mxu0 %v4895
        %4972 = vmatprep.subr.bf16.mxu0 %v4892
        %4973 = vmatpush1.bf16.msra.mxu0 %v4891
        %4974 = vmatprep.subr.bf16.mxu0 %v4888
        %4975 = vmatpush1.bf16.msra.mxu0 %v4887
        %4976 = vmatprep.subr.bf16.mxu0 %v4884
        %4977 = vmatpush1.bf16.msra.mxu0 %v4883
        %4978 = vmatprep.subr.bf16.mxu0 %v4880
        %4979 = vmatpush1.bf16.msra.mxu0 %v4879
        %4980 = vmatprep.subr.bf16.mxu0 %v4876
        %4981 = vmatpush1.bf16.msra.mxu0 %v4875
        %4982 = vmatprep.subr.bf16.mxu0 %v4872
        %4983 = vmatpush1.bf16.msra.mxu0 %v4871
        %4984 = vmatprep.subr.bf16.mxu0 %v4868
        %4985 = vmatpush1.bf16.msra.mxu0 %v4867
        %4986 = vmatprep.subr.bf16.mxu0 0
        %4987 = vmatpush2.bf16.msra.mxu0 0
        %4988 = vmatprep.subr.bf16.mxu0 0
        %4989 = vmatpush2.bf16.msra.mxu0 0
        %4990 = vmatprep.subr.bf16.mxu0 0
        %4991 = vmatpush2.bf16.msra.mxu0 0
        %4992 = vmatprep.subr.bf16.mxu0 0
        %4993 = vmatpush2.bf16.msra.mxu0 0
        %4994 = vmatprep.subr.bf16.mxu0 0
        %4995 = vmatpush2.bf16.msra.mxu0 0
        %4996 = vmatprep.subr.bf16.mxu0 0
        %4997 = vmatpush2.bf16.msra.mxu0 0
        %4998 = vmatprep.subr.bf16.mxu0 0
        %4999 = vmatpush2.bf16.msra.mxu0 0
        %5000 = vmatprep.subr.bf16.mxu0 0
        %5001 = vmatpush2.bf16.msra.mxu0 0
        %5002 = vmatprep.mubr.bf16.mxu0 0
        %5003 = vmatmul.mubr.bf16.gmra.mxu0 %v4736
        %v5004 = vpop.f32.mrf.mxu0
        %v5005 = vadd.f32 0.0, %v5004
        %v5006 = vpop.f32.mrf.mxu0
        %v5007 = vadd.f32 0.0, %v5006
        %v5008 = vpop.f32.mrf.mxu0
        %v5009 = vpop.f32.mrf.mxu0
        %5010 = vdwg.mxu0
        %v5011 = vadd.f32 %v4732, %v4964
        %v5012 = vadd.f32 %v4733, %v4966
        %v5013 = vadd.f32 %v4734, %v5005
        %v5014 = vadd.f32 %v4735, %v5007
        %v5015 = vmul.f32 %v5011, 0.5
        %v5016 = vtanh.pop %v5015
        %v5017 = vmul.f32 %v5016, 0.5
        %v5018 = vadd.f32 %v5017, 0.5
        %v5019 = vmul.f32 %v5012, 0.5
        %v5020 = vtanh.pop %v5019
        %v5021 = vmul.f32 %v5020, 0.5
        %v5022 = vadd.f32 %v5021, 0.5
        %v5023 = vtanh.pop %v5013
        %v5024 = vmul.f32 %v5014, 0.5
        %v5025 = vtanh.pop %v5024
        %v5026 = vmul.f32 %v5025, 0.5
        %v5027 = vadd.f32 %v5026, 0.5
        %v5028 = vmul.f32 %v5022, %v4721
        %v5029 = vmul.f32 %v5018, %v5023
        %v5030 = vadd.f32 %v5028, %v5029
        %v5031 = vtanh.pop %v5030
        %v5032 = vmul.f32 %v5027, %v5031
        %5033 = vst [vmem:[%s2043] sm:$0xff] %v5032
        %s5034 = scalar_lea.vmem [#allocation2], 80
        %v5035 = vld [vmem:[%s5034] sm:$0xff]
        %v5036 = vld [vmem:[%s5034 + $0x8] sm:$0xff]
        %v5037 = vunpack.c.l.bf16 %v5035
        %v5038 = vunpack.c.h.bf16 %v5035
        %v5039 = vunpack.c.l.bf16 %v5036
        %v5040 = vunpack.c.h.bf16 %v5036
        %v5041 = vadd.f32 %v5037, %v3480
        %v5042 = vadd.f32 %v5038, %v3484
        %v5043 = vadd.f32 %v5039, %v3488
        %v5044 = vadd.f32 %v5040, %v3492
        %v5045 = vpack.c.bf16 %v5032, %v5032
        %v5046 = vld [vmem:[%s4] sm:$0xff]
        %v5047 = vld [vmem:[%s4 + $0x8] sm:$0xff]
        %v5048 = vld [vmem:[%s4 + $0x10] sm:$0xff]
        %v5049 = vld [vmem:[%s4 + $0x18] sm:$0xff]
        %v5050 = vld [vmem:[%s4 + $0x20] sm:$0xff]
        %v5051 = vld [vmem:[%s4 + $0x28] sm:$0xff]
        %v5052 = vld [vmem:[%s4 + $0x30] sm:$0xff]
        %v5053 = vld [vmem:[%s4 + $0x38] sm:$0xff]
        %v5054 = vld [vmem:[%s4 + $0x40] sm:$0xff]
        %v5055 = vld [vmem:[%s4 + $0x48] sm:$0xff]
        %v5056 = vld [vmem:[%s4 + $0x50] sm:$0xff]
        %v5057 = vld [vmem:[%s4 + $0x58] sm:$0xff]
        %v5058 = vld [vmem:[%s4 + $0x60] sm:$0xff]
        %v5059 = vld [vmem:[%s4 + $0x68] sm:$0xff]
        %v5060 = vld [vmem:[%s4 + $0x70] sm:$0xff]
        %v5061 = vld [vmem:[%s4 + $0x78] sm:$0xff]
        %v5062 = vld [vmem:[%s4 + $0x80] sm:$0xff]
        %v5063 = vld [vmem:[%s4 + $0x88] sm:$0xff]
        %v5064 = vld [vmem:[%s4 + $0x90] sm:$0xff]
        %v5065 = vld [vmem:[%s4 + $0x98] sm:$0xff]
        %v5066 = vld [vmem:[%s4 + $0xa0] sm:$0xff]
        %v5067 = vld [vmem:[%s4 + $0xa8] sm:$0xff]
        %v5068 = vld [vmem:[%s4 + $0xb0] sm:$0xff]
        %v5069 = vld [vmem:[%s4 + $0xb8] sm:$0xff]
        %v5070 = vld [vmem:[%s4 + $0xc0] sm:$0xff]
        %v5071 = vld [vmem:[%s4 + $0xc8] sm:$0xff]
        %v5072 = vld [vmem:[%s4 + $0xd0] sm:$0xff]
        %v5073 = vld [vmem:[%s4 + $0xd8] sm:$0xff]
        %v5074 = vld [vmem:[%s4 + $0xe0] sm:$0xff]
        %v5075 = vld [vmem:[%s4 + $0xe8] sm:$0xff]
        %v5076 = vld [vmem:[%s4 + $0xf0] sm:$0xff]
        %v5077 = vld [vmem:[%s4 + $0xf8] sm:$0xff]
        %v5110 = vunpack.c.l.b16 %v5046
        %v5111 = vunpack.c.h.b16 %v5046
        %v5112 = vunpack.c.l.b16 %v5047
        %v5113 = vunpack.c.h.b16 %v5047
        %v5114 = vunpack.c.l.b16 %v5048
        %v5115 = vunpack.c.h.b16 %v5048
        %v5116 = vunpack.c.l.b16 %v5049
        %v5117 = vunpack.c.h.b16 %v5049
        %v5118 = vunpack.c.l.b16 %v5050
        %v5119 = vunpack.c.h.b16 %v5050
        %v5120 = vunpack.c.l.b16 %v5051
        %v5121 = vunpack.c.h.b16 %v5051
        %v5122 = vunpack.c.l.b16 %v5052
        %v5123 = vunpack.c.h.b16 %v5052
        %v5124 = vunpack.c.l.b16 %v5053
        %v5125 = vunpack.c.h.b16 %v5053
        %v5126 = vunpack.c.l.b16 %v5054
        %v5127 = vunpack.c.h.b16 %v5054
        %v5128 = vunpack.c.l.b16 %v5055
        %v5129 = vunpack.c.h.b16 %v5055
        %v5130 = vunpack.c.l.b16 %v5056
        %v5131 = vunpack.c.h.b16 %v5056
        %v5132 = vunpack.c.l.b16 %v5057
        %v5133 = vunpack.c.h.b16 %v5057
        %v5134 = vunpack.c.l.b16 %v5058
        %v5135 = vunpack.c.h.b16 %v5058
        %v5136 = vunpack.c.l.b16 %v5059
        %v5137 = vunpack.c.h.b16 %v5059
        %v5138 = vunpack.c.l.b16 %v5060
        %v5139 = vunpack.c.h.b16 %v5060
        %v5140 = vunpack.c.l.b16 %v5061
        %v5141 = vunpack.c.h.b16 %v5061
        %v5142 = vunpack.c.l.b16 %v5062
        %v5143 = vunpack.c.h.b16 %v5062
        %v5144 = vunpack.c.l.b16 %v5063
        %v5145 = vunpack.c.h.b16 %v5063
        %v5146 = vunpack.c.l.b16 %v5064
        %v5147 = vunpack.c.h.b16 %v5064
        %v5148 = vunpack.c.l.b16 %v5065
        %v5149 = vunpack.c.h.b16 %v5065
        %v5150 = vunpack.c.l.b16 %v5066
        %v5151 = vunpack.c.h.b16 %v5066
        %v5152 = vunpack.c.l.b16 %v5067
        %v5153 = vunpack.c.h.b16 %v5067
        %v5154 = vunpack.c.l.b16 %v5068
        %v5155 = vunpack.c.h.b16 %v5068
        %v5156 = vunpack.c.l.b16 %v5069
        %v5157 = vunpack.c.h.b16 %v5069
        %v5158 = vunpack.c.l.b16 %v5070
        %v5159 = vunpack.c.h.b16 %v5070
        %v5160 = vunpack.c.l.b16 %v5071
        %v5161 = vunpack.c.h.b16 %v5071
        %v5162 = vunpack.c.l.b16 %v5072
        %v5163 = vunpack.c.h.b16 %v5072
        %v5164 = vunpack.c.l.b16 %v5073
        %v5165 = vunpack.c.h.b16 %v5073
        %v5166 = vunpack.c.l.b16 %v5074
        %v5167 = vunpack.c.h.b16 %v5074
        %v5168 = vunpack.c.l.b16 %v5075
        %v5169 = vunpack.c.h.b16 %v5075
        %v5170 = vunpack.c.l.b16 %v5076
        %v5171 = vunpack.c.h.b16 %v5076
        %v5172 = vunpack.c.l.b16 %v5077
        %v5173 = vunpack.c.h.b16 %v5077
        %v5174 = vpack.c.b16 %v5114, %v5110
        %v5175 = vpack.c.b16 %v5115, %v5111
        %v5176 = vpack.c.b16 %v5116, %v5112
        %v5177 = vpack.c.b16 %v5117, %v5113
        %v5178 = vpack.c.b16 %v5122, %v5118
        %v5179 = vpack.c.b16 %v5123, %v5119
        %v5180 = vpack.c.b16 %v5124, %v5120
        %v5181 = vpack.c.b16 %v5125, %v5121
        %v5182 = vpack.c.b16 %v5130, %v5126
        %v5183 = vpack.c.b16 %v5131, %v5127
        %v5184 = vpack.c.b16 %v5132, %v5128
        %v5185 = vpack.c.b16 %v5133, %v5129
        %v5186 = vpack.c.b16 %v5138, %v5134
        %v5187 = vpack.c.b16 %v5139, %v5135
        %v5188 = vpack.c.b16 %v5140, %v5136
        %v5189 = vpack.c.b16 %v5141, %v5137
        %v5190 = vpack.c.b16 %v5146, %v5142
        %v5191 = vpack.c.b16 %v5147, %v5143
        %v5192 = vpack.c.b16 %v5148, %v5144
        %v5193 = vpack.c.b16 %v5149, %v5145
        %v5194 = vpack.c.b16 %v5154, %v5150
        %v5195 = vpack.c.b16 %v5155, %v5151
        %v5196 = vpack.c.b16 %v5156, %v5152
        %v5197 = vpack.c.b16 %v5157, %v5153
        %v5198 = vpack.c.b16 %v5162, %v5158
        %v5199 = vpack.c.b16 %v5163, %v5159
        %v5200 = vpack.c.b16 %v5164, %v5160
        %v5201 = vpack.c.b16 %v5165, %v5161
        %v5202 = vpack.c.b16 %v5170, %v5166
        %v5203 = vpack.c.b16 %v5171, %v5167
        %v5204 = vpack.c.b16 %v5172, %v5168
        %v5205 = vpack.c.b16 %v5173, %v5169
        %5238 = vmatprep.subr.bf16.mxu0 %v5203
        %5239 = vmatpush1.bf16.msra.mxu0 %v5202
        %5240 = vmatprep.subr.bf16.mxu0 %v5199
        %5241 = vmatpush1.bf16.msra.mxu0 %v5198
        %5242 = vmatprep.subr.bf16.mxu0 %v5195
        %5243 = vmatpush1.bf16.msra.mxu0 %v5194
        %5244 = vmatprep.subr.bf16.mxu0 %v5191
        %5245 = vmatpush1.bf16.msra.mxu0 %v5190
        %5246 = vmatprep.subr.bf16.mxu0 %v5187
        %5247 = vmatpush1.bf16.msra.mxu0 %v5186
        %5248 = vmatprep.subr.bf16.mxu0 %v5183
        %5249 = vmatpush1.bf16.msra.mxu0 %v5182
        %5250 = vmatprep.subr.bf16.mxu0 %v5179
        %5251 = vmatpush1.bf16.msra.mxu0 %v5178
        %5252 = vmatprep.subr.bf16.mxu0 %v5175
        %5253 = vmatpush1.bf16.msra.mxu0 %v5174
        %5254 = vmatprep.subr.bf16.mxu0 0
        %5255 = vmatpush2.bf16.msra.mxu0 0
        %5256 = vmatprep.subr.bf16.mxu0 0
        %5257 = vmatpush2.bf16.msra.mxu0 0
        %5258 = vmatprep.subr.bf16.mxu0 0
        %5259 = vmatpush2.bf16.msra.mxu0 0
        %5260 = vmatprep.subr.bf16.mxu0 0
        %5261 = vmatpush2.bf16.msra.mxu0 0
        %5262 = vmatprep.subr.bf16.mxu0 0
        %5263 = vmatpush2.bf16.msra.mxu0 0
        %5264 = vmatprep.subr.bf16.mxu0 0
        %5265 = vmatpush2.bf16.msra.mxu0 0
        %5266 = vmatprep.subr.bf16.mxu0 0
        %5267 = vmatpush2.bf16.msra.mxu0 0
        %5268 = vmatprep.subr.bf16.mxu0 0
        %5269 = vmatpush2.bf16.msra.mxu0 0
        %5270 = vmatprep.mubr.bf16.mxu0 0
        %5271 = vmatmul.mubr.bf16.gmra.mxu0 %v5045
        %v5272 = vpop.f32.mrf.mxu0
        %v5273 = vadd.f32 0.0, %v5272
        %v5274 = vpop.f32.mrf.mxu0
        %v5275 = vadd.f32 0.0, %v5274
        %v5276 = vpop.f32.mrf.mxu0
        %v5277 = vpop.f32.mrf.mxu0
        %5278 = vdwg.mxu0
        %5279 = vmatprep.subr.bf16.mxu0 %v5205
        %5280 = vmatpush1.bf16.msra.mxu0 %v5204
        %5281 = vmatprep.subr.bf16.mxu0 %v5201
        %5282 = vmatpush1.bf16.msra.mxu0 %v5200
        %5283 = vmatprep.subr.bf16.mxu0 %v5197
        %5284 = vmatpush1.bf16.msra.mxu0 %v5196
        %5285 = vmatprep.subr.bf16.mxu0 %v5193
        %5286 = vmatpush1.bf16.msra.mxu0 %v5192
        %5287 = vmatprep.subr.bf16.mxu0 %v5189
        %5288 = vmatpush1.bf16.msra.mxu0 %v5188
        %5289 = vmatprep.subr.bf16.mxu0 %v5185
        %5290 = vmatpush1.bf16.msra.mxu0 %v5184
        %5291 = vmatprep.subr.bf16.mxu0 %v5181
        %5292 = vmatpush1.bf16.msra.mxu0 %v5180
        %5293 = vmatprep.subr.bf16.mxu0 %v5177
        %5294 = vmatpush1.bf16.msra.mxu0 %v5176
        %5295 = vmatprep.subr.bf16.mxu0 0
        %5296 = vmatpush2.bf16.msra.mxu0 0
        %5297 = vmatprep.subr.bf16.mxu0 0
        %5298 = vmatpush2.bf16.msra.mxu0 0
        %5299 = vmatprep.subr.bf16.mxu0 0
        %5300 = vmatpush2.bf16.msra.mxu0 0
        %5301 = vmatprep.subr.bf16.mxu0 0
        %5302 = vmatpush2.bf16.msra.mxu0 0
        %5303 = vmatprep.subr.bf16.mxu0 0
        %5304 = vmatpush2.bf16.msra.mxu0 0
        %5305 = vmatprep.subr.bf16.mxu0 0
        %5306 = vmatpush2.bf16.msra.mxu0 0
        %5307 = vmatprep.subr.bf16.mxu0 0
        %5308 = vmatpush2.bf16.msra.mxu0 0
        %5309 = vmatprep.subr.bf16.mxu0 0
        %5310 = vmatpush2.bf16.msra.mxu0 0
        %5311 = vmatprep.mubr.bf16.mxu0 0
        %5312 = vmatmul.mubr.bf16.gmra.mxu0 %v5045
        %v5313 = vpop.f32.mrf.mxu0
        %v5314 = vadd.f32 0.0, %v5313
        %v5315 = vpop.f32.mrf.mxu0
        %v5316 = vadd.f32 0.0, %v5315
        %v5317 = vpop.f32.mrf.mxu0
        %v5318 = vpop.f32.mrf.mxu0
        %5319 = vdwg.mxu0
        %v5320 = vadd.f32 %v5041, %v5273
        %v5321 = vadd.f32 %v5042, %v5275
        %v5322 = vadd.f32 %v5043, %v5314
        %v5323 = vadd.f32 %v5044, %v5316
        %v5324 = vmul.f32 %v5320, 0.5
        %v5325 = vtanh.pop %v5324
        %v5326 = vmul.f32 %v5325, 0.5
        %v5327 = vadd.f32 %v5326, 0.5
        %v5328 = vmul.f32 %v5321, 0.5
        %v5329 = vtanh.pop %v5328
        %v5330 = vmul.f32 %v5329, 0.5
        %v5331 = vadd.f32 %v5330, 0.5
        %v5332 = vtanh.pop %v5322
        %v5333 = vmul.f32 %v5323, 0.5
        %v5334 = vtanh.pop %v5333
        %v5335 = vmul.f32 %v5334, 0.5
        %v5336 = vadd.f32 %v5335, 0.5
        %v5337 = vmul.f32 %v5331, %v5030
        %v5338 = vmul.f32 %v5327, %v5332
        %v5339 = vadd.f32 %v5337, %v5338
        %v5340 = vtanh.pop %v5339
        %v5341 = vmul.f32 %v5336, %v5340
        %5342 = vst [vmem:[%s2353] sm:$0xff] %v5341
        %s5343 = scalar_lea.vmem [#allocation2], 96
        %v5344 = vld [vmem:[%s5343] sm:$0xff]
        %v5345 = vld [vmem:[%s5343 + $0x8] sm:$0xff]
        %v5346 = vunpack.c.l.bf16 %v5344
        %v5347 = vunpack.c.h.bf16 %v5344
        %v5348 = vunpack.c.l.bf16 %v5345
        %v5349 = vunpack.c.h.bf16 %v5345
        %v5350 = vadd.f32 %v5346, %v3480
        %v5351 = vadd.f32 %v5347, %v3484
        %v5352 = vadd.f32 %v5348, %v3488
        %v5353 = vadd.f32 %v5349, %v3492
        %v5354 = vpack.c.bf16 %v5341, %v5341
        %v5355 = vld [vmem:[%s4] sm:$0xff]
        %v5356 = vld [vmem:[%s4 + $0x8] sm:$0xff]
        %v5357 = vld [vmem:[%s4 + $0x10] sm:$0xff]
        %v5358 = vld [vmem:[%s4 + $0x18] sm:$0xff]
        %v5359 = vld [vmem:[%s4 + $0x20] sm:$0xff]
        %v5360 = vld [vmem:[%s4 + $0x28] sm:$0xff]
        %v5361 = vld [vmem:[%s4 + $0x30] sm:$0xff]
        %v5362 = vld [vmem:[%s4 + $0x38] sm:$0xff]
        %v5363 = vld [vmem:[%s4 + $0x40] sm:$0xff]
        %v5364 = vld [vmem:[%s4 + $0x48] sm:$0xff]
        %v5365 = vld [vmem:[%s4 + $0x50] sm:$0xff]
        %v5366 = vld [vmem:[%s4 + $0x58] sm:$0xff]
        %v5367 = vld [vmem:[%s4 + $0x60] sm:$0xff]
        %v5368 = vld [vmem:[%s4 + $0x68] sm:$0xff]
        %v5369 = vld [vmem:[%s4 + $0x70] sm:$0xff]
        %v5370 = vld [vmem:[%s4 + $0x78] sm:$0xff]
        %v5371 = vld [vmem:[%s4 + $0x80] sm:$0xff]
        %v5372 = vld [vmem:[%s4 + $0x88] sm:$0xff]
        %v5373 = vld [vmem:[%s4 + $0x90] sm:$0xff]
        %v5374 = vld [vmem:[%s4 + $0x98] sm:$0xff]
        %v5375 = vld [vmem:[%s4 + $0xa0] sm:$0xff]
        %v5376 = vld [vmem:[%s4 + $0xa8] sm:$0xff]
        %v5377 = vld [vmem:[%s4 + $0xb0] sm:$0xff]
        %v5378 = vld [vmem:[%s4 + $0xb8] sm:$0xff]
        %v5379 = vld [vmem:[%s4 + $0xc0] sm:$0xff]
        %v5380 = vld [vmem:[%s4 + $0xc8] sm:$0xff]
        %v5381 = vld [vmem:[%s4 + $0xd0] sm:$0xff]
        %v5382 = vld [vmem:[%s4 + $0xd8] sm:$0xff]
        %v5383 = vld [vmem:[%s4 + $0xe0] sm:$0xff]
        %v5384 = vld [vmem:[%s4 + $0xe8] sm:$0xff]
        %v5385 = vld [vmem:[%s4 + $0xf0] sm:$0xff]
        %v5386 = vld [vmem:[%s4 + $0xf8] sm:$0xff]
        %v5419 = vunpack.c.l.b16 %v5355
        %v5420 = vunpack.c.h.b16 %v5355
        %v5421 = vunpack.c.l.b16 %v5356
        %v5422 = vunpack.c.h.b16 %v5356
        %v5423 = vunpack.c.l.b16 %v5357
        %v5424 = vunpack.c.h.b16 %v5357
        %v5425 = vunpack.c.l.b16 %v5358
        %v5426 = vunpack.c.h.b16 %v5358
        %v5427 = vunpack.c.l.b16 %v5359
        %v5428 = vunpack.c.h.b16 %v5359
        %v5429 = vunpack.c.l.b16 %v5360
        %v5430 = vunpack.c.h.b16 %v5360
        %v5431 = vunpack.c.l.b16 %v5361
        %v5432 = vunpack.c.h.b16 %v5361
        %v5433 = vunpack.c.l.b16 %v5362
        %v5434 = vunpack.c.h.b16 %v5362
        %v5435 = vunpack.c.l.b16 %v5363
        %v5436 = vunpack.c.h.b16 %v5363
        %v5437 = vunpack.c.l.b16 %v5364
        %v5438 = vunpack.c.h.b16 %v5364
        %v5439 = vunpack.c.l.b16 %v5365
        %v5440 = vunpack.c.h.b16 %v5365
        %v5441 = vunpack.c.l.b16 %v5366
        %v5442 = vunpack.c.h.b16 %v5366
        %v5443 = vunpack.c.l.b16 %v5367
        %v5444 = vunpack.c.h.b16 %v5367
        %v5445 = vunpack.c.l.b16 %v5368
        %v5446 = vunpack.c.h.b16 %v5368
        %v5447 = vunpack.c.l.b16 %v5369
        %v5448 = vunpack.c.h.b16 %v5369
        %v5449 = vunpack.c.l.b16 %v5370
        %v5450 = vunpack.c.h.b16 %v5370
        %v5451 = vunpack.c.l.b16 %v5371
        %v5452 = vunpack.c.h.b16 %v5371
        %v5453 = vunpack.c.l.b16 %v5372
        %v5454 = vunpack.c.h.b16 %v5372
        %v5455 = vunpack.c.l.b16 %v5373
        %v5456 = vunpack.c.h.b16 %v5373
        %v5457 = vunpack.c.l.b16 %v5374
        %v5458 = vunpack.c.h.b16 %v5374
        %v5459 = vunpack.c.l.b16 %v5375
        %v5460 = vunpack.c.h.b16 %v5375
        %v5461 = vunpack.c.l.b16 %v5376
        %v5462 = vunpack.c.h.b16 %v5376
        %v5463 = vunpack.c.l.b16 %v5377
        %v5464 = vunpack.c.h.b16 %v5377
        %v5465 = vunpack.c.l.b16 %v5378
        %v5466 = vunpack.c.h.b16 %v5378
        %v5467 = vunpack.c.l.b16 %v5379
        %v5468 = vunpack.c.h.b16 %v5379
        %v5469 = vunpack.c.l.b16 %v5380
        %v5470 = vunpack.c.h.b16 %v5380
        %v5471 = vunpack.c.l.b16 %v5381
        %v5472 = vunpack.c.h.b16 %v5381
        %v5473 = vunpack.c.l.b16 %v5382
        %v5474 = vunpack.c.h.b16 %v5382
        %v5475 = vunpack.c.l.b16 %v5383
        %v5476 = vunpack.c.h.b16 %v5383
        %v5477 = vunpack.c.l.b16 %v5384
        %v5478 = vunpack.c.h.b16 %v5384
        %v5479 = vunpack.c.l.b16 %v5385
        %v5480 = vunpack.c.h.b16 %v5385
        %v5481 = vunpack.c.l.b16 %v5386
        %v5482 = vunpack.c.h.b16 %v5386
        %v5483 = vpack.c.b16 %v5423, %v5419
        %v5484 = vpack.c.b16 %v5424, %v5420
        %v5485 = vpack.c.b16 %v5425, %v5421
        %v5486 = vpack.c.b16 %v5426, %v5422
        %v5487 = vpack.c.b16 %v5431, %v5427
        %v5488 = vpack.c.b16 %v5432, %v5428
        %v5489 = vpack.c.b16 %v5433, %v5429
        %v5490 = vpack.c.b16 %v5434, %v5430
        %v5491 = vpack.c.b16 %v5439, %v5435
        %v5492 = vpack.c.b16 %v5440, %v5436
        %v5493 = vpack.c.b16 %v5441, %v5437
        %v5494 = vpack.c.b16 %v5442, %v5438
        %v5495 = vpack.c.b16 %v5447, %v5443
        %v5496 = vpack.c.b16 %v5448, %v5444
        %v5497 = vpack.c.b16 %v5449, %v5445
        %v5498 = vpack.c.b16 %v5450, %v5446
        %v5499 = vpack.c.b16 %v5455, %v5451
        %v5500 = vpack.c.b16 %v5456, %v5452
        %v5501 = vpack.c.b16 %v5457, %v5453
        %v5502 = vpack.c.b16 %v5458, %v5454
        %v5503 = vpack.c.b16 %v5463, %v5459
        %v5504 = vpack.c.b16 %v5464, %v5460
        %v5505 = vpack.c.b16 %v5465, %v5461
        %v5506 = vpack.c.b16 %v5466, %v5462
        %v5507 = vpack.c.b16 %v5471, %v5467
        %v5508 = vpack.c.b16 %v5472, %v5468
        %v5509 = vpack.c.b16 %v5473, %v5469
        %v5510 = vpack.c.b16 %v5474, %v5470
        %v5511 = vpack.c.b16 %v5479, %v5475
        %v5512 = vpack.c.b16 %v5480, %v5476
        %v5513 = vpack.c.b16 %v5481, %v5477
        %v5514 = vpack.c.b16 %v5482, %v5478
        %5547 = vmatprep.subr.bf16.mxu0 %v5512
        %5548 = vmatpush1.bf16.msra.mxu0 %v5511
        %5549 = vmatprep.subr.bf16.mxu0 %v5508
        %5550 = vmatpush1.bf16.msra.mxu0 %v5507
        %5551 = vmatprep.subr.bf16.mxu0 %v5504
        %5552 = vmatpush1.bf16.msra.mxu0 %v5503
        %5553 = vmatprep.subr.bf16.mxu0 %v5500
        %5554 = vmatpush1.bf16.msra.mxu0 %v5499
        %5555 = vmatprep.subr.bf16.mxu0 %v5496
        %5556 = vmatpush1.bf16.msra.mxu0 %v5495
        %5557 = vmatprep.subr.bf16.mxu0 %v5492
        %5558 = vmatpush1.bf16.msra.mxu0 %v5491
        %5559 = vmatprep.subr.bf16.mxu0 %v5488
        %5560 = vmatpush1.bf16.msra.mxu0 %v5487
        %5561 = vmatprep.subr.bf16.mxu0 %v5484
        %5562 = vmatpush1.bf16.msra.mxu0 %v5483
        %5563 = vmatprep.subr.bf16.mxu0 0
        %5564 = vmatpush2.bf16.msra.mxu0 0
        %5565 = vmatprep.subr.bf16.mxu0 0
        %5566 = vmatpush2.bf16.msra.mxu0 0
        %5567 = vmatprep.subr.bf16.mxu0 0
        %5568 = vmatpush2.bf16.msra.mxu0 0
        %5569 = vmatprep.subr.bf16.mxu0 0
        %5570 = vmatpush2.bf16.msra.mxu0 0
        %5571 = vmatprep.subr.bf16.mxu0 0
        %5572 = vmatpush2.bf16.msra.mxu0 0
        %5573 = vmatprep.subr.bf16.mxu0 0
        %5574 = vmatpush2.bf16.msra.mxu0 0
        %5575 = vmatprep.subr.bf16.mxu0 0
        %5576 = vmatpush2.bf16.msra.mxu0 0
        %5577 = vmatprep.subr.bf16.mxu0 0
        %5578 = vmatpush2.bf16.msra.mxu0 0
        %5579 = vmatprep.mubr.bf16.mxu0 0
        %5580 = vmatmul.mubr.bf16.gmra.mxu0 %v5354
        %v5581 = vpop.f32.mrf.mxu0
        %v5582 = vadd.f32 0.0, %v5581
        %v5583 = vpop.f32.mrf.mxu0
        %v5584 = vadd.f32 0.0, %v5583
        %v5585 = vpop.f32.mrf.mxu0
        %v5586 = vpop.f32.mrf.mxu0
        %5587 = vdwg.mxu0
        %5588 = vmatprep.subr.bf16.mxu0 %v5514
        %5589 = vmatpush1.bf16.msra.mxu0 %v5513
        %5590 = vmatprep.subr.bf16.mxu0 %v5510
        %5591 = vmatpush1.bf16.msra.mxu0 %v5509
        %5592 = vmatprep.subr.bf16.mxu0 %v5506
        %5593 = vmatpush1.bf16.msra.mxu0 %v5505
        %5594 = vmatprep.subr.bf16.mxu0 %v5502
        %5595 = vmatpush1.bf16.msra.mxu0 %v5501
        %5596 = vmatprep.subr.bf16.mxu0 %v5498
        %5597 = vmatpush1.bf16.msra.mxu0 %v5497
        %5598 = vmatprep.subr.bf16.mxu0 %v5494
        %5599 = vmatpush1.bf16.msra.mxu0 %v5493
        %5600 = vmatprep.subr.bf16.mxu0 %v5490
        %5601 = vmatpush1.bf16.msra.mxu0 %v5489
        %5602 = vmatprep.subr.bf16.mxu0 %v5486
        %5603 = vmatpush1.bf16.msra.mxu0 %v5485
        %5604 = vmatprep.subr.bf16.mxu0 0
        %5605 = vmatpush2.bf16.msra.mxu0 0
        %5606 = vmatprep.subr.bf16.mxu0 0
        %5607 = vmatpush2.bf16.msra.mxu0 0
        %5608 = vmatprep.subr.bf16.mxu0 0
        %5609 = vmatpush2.bf16.msra.mxu0 0
        %5610 = vmatprep.subr.bf16.mxu0 0
        %5611 = vmatpush2.bf16.msra.mxu0 0
        %5612 = vmatprep.subr.bf16.mxu0 0
        %5613 = vmatpush2.bf16.msra.mxu0 0
        %5614 = vmatprep.subr.bf16.mxu0 0
        %5615 = vmatpush2.bf16.msra.mxu0 0
        %5616 = vmatprep.subr.bf16.mxu0 0
        %5617 = vmatpush2.bf16.msra.mxu0 0
        %5618 = vmatprep.subr.bf16.mxu0 0
        %5619 = vmatpush2.bf16.msra.mxu0 0
        %5620 = vmatprep.mubr.bf16.mxu0 0
        %5621 = vmatmul.mubr.bf16.gmra.mxu0 %v5354
        %v5622 = vpop.f32.mrf.mxu0
        %v5623 = vadd.f32 0.0, %v5622
        %v5624 = vpop.f32.mrf.mxu0
        %v5625 = vadd.f32 0.0, %v5624
        %v5626 = vpop.f32.mrf.mxu0
        %v5627 = vpop.f32.mrf.mxu0
        %5628 = vdwg.mxu0
        %v5629 = vadd.f32 %v5350, %v5582
        %v5630 = vadd.f32 %v5351, %v5584
        %v5631 = vadd.f32 %v5352, %v5623
        %v5632 = vadd.f32 %v5353, %v5625
        %v5633 = vmul.f32 %v5629, 0.5
        %v5634 = vtanh.pop %v5633
        %v5635 = vmul.f32 %v5634, 0.5
        %v5636 = vadd.f32 %v5635, 0.5
        %v5637 = vmul.f32 %v5630, 0.5
        %v5638 = vtanh.pop %v5637
        %v5639 = vmul.f32 %v5638, 0.5
        %v5640 = vadd.f32 %v5639, 0.5
        %v5641 = vtanh.pop %v5631
        %v5642 = vmul.f32 %v5632, 0.5
        %v5643 = vtanh.pop %v5642
        %v5644 = vmul.f32 %v5643, 0.5
        %v5645 = vadd.f32 %v5644, 0.5
        %v5646 = vmul.f32 %v5640, %v5339
        %v5647 = vmul.f32 %v5636, %v5641
        %v5648 = vadd.f32 %v5646, %v5647
        %v5649 = vtanh.pop %v5648
        %v5650 = vmul.f32 %v5645, %v5649
        %5651 = vst [vmem:[%s2663] sm:$0xff] %v5650
        %s5652 = scalar_lea.vmem [#allocation2], 112
        %v5653 = vld [vmem:[%s5652] sm:$0xff]
        %v5654 = vld [vmem:[%s5652 + $0x8] sm:$0xff]
        %v5655 = vunpack.c.l.bf16 %v5653
        %v5656 = vunpack.c.h.bf16 %v5653
        %v5657 = vunpack.c.l.bf16 %v5654
        %v5658 = vunpack.c.h.bf16 %v5654
        %v5659 = vadd.f32 %v5655, %v3480
        %v5660 = vadd.f32 %v5656, %v3484
        %v5661 = vadd.f32 %v5657, %v3488
        %v5662 = vadd.f32 %v5658, %v3492
        %v5663 = vpack.c.bf16 %v5650, %v5650
        %v5664 = vld [vmem:[%s4] sm:$0xff]
        %v5665 = vld [vmem:[%s4 + $0x8] sm:$0xff]
        %v5666 = vld [vmem:[%s4 + $0x10] sm:$0xff]
        %v5667 = vld [vmem:[%s4 + $0x18] sm:$0xff]
        %v5668 = vld [vmem:[%s4 + $0x20] sm:$0xff]
        %v5669 = vld [vmem:[%s4 + $0x28] sm:$0xff]
        %v5670 = vld [vmem:[%s4 + $0x30] sm:$0xff]
        %v5671 = vld [vmem:[%s4 + $0x38] sm:$0xff]
        %v5672 = vld [vmem:[%s4 + $0x40] sm:$0xff]
        %v5673 = vld [vmem:[%s4 + $0x48] sm:$0xff]
        %v5674 = vld [vmem:[%s4 + $0x50] sm:$0xff]
        %v5675 = vld [vmem:[%s4 + $0x58] sm:$0xff]
        %v5676 = vld [vmem:[%s4 + $0x60] sm:$0xff]
        %v5677 = vld [vmem:[%s4 + $0x68] sm:$0xff]
        %v5678 = vld [vmem:[%s4 + $0x70] sm:$0xff]
        %v5679 = vld [vmem:[%s4 + $0x78] sm:$0xff]
        %v5680 = vld [vmem:[%s4 + $0x80] sm:$0xff]
        %v5681 = vld [vmem:[%s4 + $0x88] sm:$0xff]
        %v5682 = vld [vmem:[%s4 + $0x90] sm:$0xff]
        %v5683 = vld [vmem:[%s4 + $0x98] sm:$0xff]
        %v5684 = vld [vmem:[%s4 + $0xa0] sm:$0xff]
        %v5685 = vld [vmem:[%s4 + $0xa8] sm:$0xff]
        %v5686 = vld [vmem:[%s4 + $0xb0] sm:$0xff]
        %v5687 = vld [vmem:[%s4 + $0xb8] sm:$0xff]
        %v5688 = vld [vmem:[%s4 + $0xc0] sm:$0xff]
        %v5689 = vld [vmem:[%s4 + $0xc8] sm:$0xff]
        %v5690 = vld [vmem:[%s4 + $0xd0] sm:$0xff]
        %v5691 = vld [vmem:[%s4 + $0xd8] sm:$0xff]
        %v5692 = vld [vmem:[%s4 + $0xe0] sm:$0xff]
        %v5693 = vld [vmem:[%s4 + $0xe8] sm:$0xff]
        %v5694 = vld [vmem:[%s4 + $0xf0] sm:$0xff]
        %v5695 = vld [vmem:[%s4 + $0xf8] sm:$0xff]
        %v5728 = vunpack.c.l.b16 %v5664
        %v5729 = vunpack.c.h.b16 %v5664
        %v5730 = vunpack.c.l.b16 %v5665
        %v5731 = vunpack.c.h.b16 %v5665
        %v5732 = vunpack.c.l.b16 %v5666
        %v5733 = vunpack.c.h.b16 %v5666
        %v5734 = vunpack.c.l.b16 %v5667
        %v5735 = vunpack.c.h.b16 %v5667
        %v5736 = vunpack.c.l.b16 %v5668
        %v5737 = vunpack.c.h.b16 %v5668
        %v5738 = vunpack.c.l.b16 %v5669
        %v5739 = vunpack.c.h.b16 %v5669
        %v5740 = vunpack.c.l.b16 %v5670
        %v5741 = vunpack.c.h.b16 %v5670
        %v5742 = vunpack.c.l.b16 %v5671
        %v5743 = vunpack.c.h.b16 %v5671
        %v5744 = vunpack.c.l.b16 %v5672
        %v5745 = vunpack.c.h.b16 %v5672
        %v5746 = vunpack.c.l.b16 %v5673
        %v5747 = vunpack.c.h.b16 %v5673
        %v5748 = vunpack.c.l.b16 %v5674
        %v5749 = vunpack.c.h.b16 %v5674
        %v5750 = vunpack.c.l.b16 %v5675
        %v5751 = vunpack.c.h.b16 %v5675
        %v5752 = vunpack.c.l.b16 %v5676
        %v5753 = vunpack.c.h.b16 %v5676
        %v5754 = vunpack.c.l.b16 %v5677
        %v5755 = vunpack.c.h.b16 %v5677
        %v5756 = vunpack.c.l.b16 %v5678
        %v5757 = vunpack.c.h.b16 %v5678
        %v5758 = vunpack.c.l.b16 %v5679
        %v5759 = vunpack.c.h.b16 %v5679
        %v5760 = vunpack.c.l.b16 %v5680
        %v5761 = vunpack.c.h.b16 %v5680
        %v5762 = vunpack.c.l.b16 %v5681
        %v5763 = vunpack.c.h.b16 %v5681
        %v5764 = vunpack.c.l.b16 %v5682
        %v5765 = vunpack.c.h.b16 %v5682
        %v5766 = vunpack.c.l.b16 %v5683
        %v5767 = vunpack.c.h.b16 %v5683
        %v5768 = vunpack.c.l.b16 %v5684
        %v5769 = vunpack.c.h.b16 %v5684
        %v5770 = vunpack.c.l.b16 %v5685
        %v5771 = vunpack.c.h.b16 %v5685
        %v5772 = vunpack.c.l.b16 %v5686
        %v5773 = vunpack.c.h.b16 %v5686
        %v5774 = vunpack.c.l.b16 %v5687
        %v5775 = vunpack.c.h.b16 %v5687
        %v5776 = vunpack.c.l.b16 %v5688
        %v5777 = vunpack.c.h.b16 %v5688
        %v5778 = vunpack.c.l.b16 %v5689
        %v5779 = vunpack.c.h.b16 %v5689
        %v5780 = vunpack.c.l.b16 %v5690
        %v5781 = vunpack.c.h.b16 %v5690
        %v5782 = vunpack.c.l.b16 %v5691
        %v5783 = vunpack.c.h.b16 %v5691
        %v5784 = vunpack.c.l.b16 %v5692
        %v5785 = vunpack.c.h.b16 %v5692
        %v5786 = vunpack.c.l.b16 %v5693
        %v5787 = vunpack.c.h.b16 %v5693
        %v5788 = vunpack.c.l.b16 %v5694
        %v5789 = vunpack.c.h.b16 %v5694
        %v5790 = vunpack.c.l.b16 %v5695
        %v5791 = vunpack.c.h.b16 %v5695
        %v5792 = vpack.c.b16 %v5732, %v5728
        %v5793 = vpack.c.b16 %v5733, %v5729
        %v5794 = vpack.c.b16 %v5734, %v5730
        %v5795 = vpack.c.b16 %v5735, %v5731
        %v5796 = vpack.c.b16 %v5740, %v5736
        %v5797 = vpack.c.b16 %v5741, %v5737
        %v5798 = vpack.c.b16 %v5742, %v5738
        %v5799 = vpack.c.b16 %v5743, %v5739
        %v5800 = vpack.c.b16 %v5748, %v5744
        %v5801 = vpack.c.b16 %v5749, %v5745
        %v5802 = vpack.c.b16 %v5750, %v5746
        %v5803 = vpack.c.b16 %v5751, %v5747
        %v5804 = vpack.c.b16 %v5756, %v5752
        %v5805 = vpack.c.b16 %v5757, %v5753
        %v5806 = vpack.c.b16 %v5758, %v5754
        %v5807 = vpack.c.b16 %v5759, %v5755
        %v5808 = vpack.c.b16 %v5764, %v5760
        %v5809 = vpack.c.b16 %v5765, %v5761
        %v5810 = vpack.c.b16 %v5766, %v5762
        %v5811 = vpack.c.b16 %v5767, %v5763
        %v5812 = vpack.c.b16 %v5772, %v5768
        %v5813 = vpack.c.b16 %v5773, %v5769
        %v5814 = vpack.c.b16 %v5774, %v5770
        %v5815 = vpack.c.b16 %v5775, %v5771
        %v5816 = vpack.c.b16 %v5780, %v5776
        %v5817 = vpack.c.b16 %v5781, %v5777
        %v5818 = vpack.c.b16 %v5782, %v5778
        %v5819 = vpack.c.b16 %v5783, %v5779
        %v5820 = vpack.c.b16 %v5788, %v5784
        %v5821 = vpack.c.b16 %v5789, %v5785
        %v5822 = vpack.c.b16 %v5790, %v5786
        %v5823 = vpack.c.b16 %v5791, %v5787
        %5856 = vmatprep.subr.bf16.mxu0 %v5821
        %5857 = vmatpush1.bf16.msra.mxu0 %v5820
        %5858 = vmatprep.subr.bf16.mxu0 %v5817
        %5859 = vmatpush1.bf16.msra.mxu0 %v5816
        %5860 = vmatprep.subr.bf16.mxu0 %v5813
        %5861 = vmatpush1.bf16.msra.mxu0 %v5812
        %5862 = vmatprep.subr.bf16.mxu0 %v5809
        %5863 = vmatpush1.bf16.msra.mxu0 %v5808
        %5864 = vmatprep.subr.bf16.mxu0 %v5805
        %5865 = vmatpush1.bf16.msra.mxu0 %v5804
        %5866 = vmatprep.subr.bf16.mxu0 %v5801
        %5867 = vmatpush1.bf16.msra.mxu0 %v5800
        %5868 = vmatprep.subr.bf16.mxu0 %v5797
        %5869 = vmatpush1.bf16.msra.mxu0 %v5796
        %5870 = vmatprep.subr.bf16.mxu0 %v5793
        %5871 = vmatpush1.bf16.msra.mxu0 %v5792
        %5872 = vmatprep.subr.bf16.mxu0 0
        %5873 = vmatpush2.bf16.msra.mxu0 0
        %5874 = vmatprep.subr.bf16.mxu0 0
        %5875 = vmatpush2.bf16.msra.mxu0 0
        %5876 = vmatprep.subr.bf16.mxu0 0
        %5877 = vmatpush2.bf16.msra.mxu0 0
        %5878 = vmatprep.subr.bf16.mxu0 0
        %5879 = vmatpush2.bf16.msra.mxu0 0
        %5880 = vmatprep.subr.bf16.mxu0 0
        %5881 = vmatpush2.bf16.msra.mxu0 0
        %5882 = vmatprep.subr.bf16.mxu0 0
        %5883 = vmatpush2.bf16.msra.mxu0 0
        %5884 = vmatprep.subr.bf16.mxu0 0
        %5885 = vmatpush2.bf16.msra.mxu0 0
        %5886 = vmatprep.subr.bf16.mxu0 0
        %5887 = vmatpush2.bf16.msra.mxu0 0
        %5888 = vmatprep.mubr.bf16.mxu0 0
        %5889 = vmatmul.mubr.bf16.gmra.mxu0 %v5663
        %v5890 = vpop.f32.mrf.mxu0
        %v5891 = vadd.f32 0.0, %v5890
        %v5892 = vpop.f32.mrf.mxu0
        %v5893 = vadd.f32 0.0, %v5892
        %v5894 = vpop.f32.mrf.mxu0
        %v5895 = vpop.f32.mrf.mxu0
        %5896 = vdwg.mxu0
        %5897 = vmatprep.subr.bf16.mxu0 %v5823
        %5898 = vmatpush1.bf16.msra.mxu0 %v5822
        %5899 = vmatprep.subr.bf16.mxu0 %v5819
        %5900 = vmatpush1.bf16.msra.mxu0 %v5818
        %5901 = vmatprep.subr.bf16.mxu0 %v5815
        %5902 = vmatpush1.bf16.msra.mxu0 %v5814
        %5903 = vmatprep.subr.bf16.mxu0 %v5811
        %5904 = vmatpush1.bf16.msra.mxu0 %v5810
        %5905 = vmatprep.subr.bf16.mxu0 %v5807
        %5906 = vmatpush1.bf16.msra.mxu0 %v5806
        %5907 = vmatprep.subr.bf16.mxu0 %v5803
        %5908 = vmatpush1.bf16.msra.mxu0 %v5802
        %5909 = vmatprep.subr.bf16.mxu0 %v5799
        %5910 = vmatpush1.bf16.msra.mxu0 %v5798
        %5911 = vmatprep.subr.bf16.mxu0 %v5795
        %5912 = vmatpush1.bf16.msra.mxu0 %v5794
        %5913 = vmatprep.subr.bf16.mxu0 0
        %5914 = vmatpush2.bf16.msra.mxu0 0
        %5915 = vmatprep.subr.bf16.mxu0 0
        %5916 = vmatpush2.bf16.msra.mxu0 0
        %5917 = vmatprep.subr.bf16.mxu0 0
        %5918 = vmatpush2.bf16.msra.mxu0 0
        %5919 = vmatprep.subr.bf16.mxu0 0
        %5920 = vmatpush2.bf16.msra.mxu0 0
        %5921 = vmatprep.subr.bf16.mxu0 0
        %5922 = vmatpush2.bf16.msra.mxu0 0
        %5923 = vmatprep.subr.bf16.mxu0 0
        %5924 = vmatpush2.bf16.msra.mxu0 0
        %5925 = vmatprep.subr.bf16.mxu0 0
        %5926 = vmatpush2.bf16.msra.mxu0 0
        %5927 = vmatprep.subr.bf16.mxu0 0
        %5928 = vmatpush2.bf16.msra.mxu0 0
        %5929 = vmatprep.mubr.bf16.mxu0 0
        %5930 = vmatmul.mubr.bf16.gmra.mxu0 %v5663
        %v5931 = vpop.f32.mrf.mxu0
        %v5932 = vadd.f32 0.0, %v5931
        %v5933 = vpop.f32.mrf.mxu0
        %v5934 = vadd.f32 0.0, %v5933
        %v5935 = vpop.f32.mrf.mxu0
        %v5936 = vpop.f32.mrf.mxu0
        %5937 = vdwg.mxu0
        %v5938 = vadd.f32 %v5659, %v5891
        %v5939 = vadd.f32 %v5660, %v5893
        %v5940 = vadd.f32 %v5661, %v5932
        %v5941 = vadd.f32 %v5662, %v5934
        %v5942 = vmul.f32 %v5938, 0.5
        %v5943 = vtanh.pop %v5942
        %v5944 = vmul.f32 %v5943, 0.5
        %v5945 = vadd.f32 %v5944, 0.5
        %v5946 = vmul.f32 %v5939, 0.5
        %v5947 = vtanh.pop %v5946
        %v5948 = vmul.f32 %v5947, 0.5
        %v5949 = vadd.f32 %v5948, 0.5
        %v5950 = vtanh.pop %v5940
        %v5951 = vmul.f32 %v5941, 0.5
        %v5952 = vtanh.pop %v5951
        %v5953 = vmul.f32 %v5952, 0.5
        %v5954 = vadd.f32 %v5953, 0.5
        %v5955 = vmul.f32 %v5949, %v5648
        %v5956 = vmul.f32 %v5945, %v5950
        %v5957 = vadd.f32 %v5955, %v5956
        %v5958 = vtanh.pop %v5957
        %v5959 = vmul.f32 %v5954, %v5958
        %5960 = vst [vmem:[%s2973] sm:$0xff] %v5959
        %v5961 = vld [vmem:[#allocation3] sm:$0xff]
        %v5962 = vld [vmem:[#allocation3 + $0x8] sm:$0xff]
        %v5963 = vld [vmem:[#allocation3 + $0x10] sm:$0xff]
        %v5964 = vld [vmem:[#allocation3 + $0x18] sm:$0xff]
        %v5965 = vld [vmem:[#allocation3 + $0x20] sm:$0xff]
        %v5966 = vld [vmem:[#allocation3 + $0x28] sm:$0xff]
        %v5967 = vld [vmem:[#allocation3 + $0x30] sm:$0xff]
        %v5968 = vld [vmem:[#allocation3 + $0x38] sm:$0xff]
        %v5969 = vpack.c.bf16 %v5962, %v5961
        %v5970 = vpack.c.bf16 %v5964, %v5963
        %v5971 = vpack.c.bf16 %v5966, %v5965
        %v5972 = vpack.c.bf16 %v5968, %v5967
        %v5973 = vld [vmem:[#allocation9] sm:$0xff]
        %v5974 = vld [vmem:[#allocation9 + $0x8] sm:$0xff]
        %v5975 = vld [vmem:[#allocation9 + $0x10] sm:$0xff]
        %v5976 = vld [vmem:[#allocation9 + $0x18] sm:$0xff]
        %v5977 = vld [vmem:[#allocation9 + $0x20] sm:$0xff]
        %v5978 = vld [vmem:[#allocation9 + $0x28] sm:$0xff]
        %v5979 = vld [vmem:[#allocation9 + $0x30] sm:$0xff]
        %v5980 = vld [vmem:[#allocation9 + $0x38] sm:$0xff]
        %v5981 = vld [vmem:[#allocation9 + $0x40] sm:$0xff]
        %v5982 = vld [vmem:[#allocation9 + $0x48] sm:$0xff]
        %v5983 = vld [vmem:[#allocation9 + $0x50] sm:$0xff]
        %v5984 = vld [vmem:[#allocation9 + $0x58] sm:$0xff]
        %v5985 = vld [vmem:[#allocation9 + $0x60] sm:$0xff]
        %v5986 = vld [vmem:[#allocation9 + $0x68] sm:$0xff]
        %v5987 = vld [vmem:[#allocation9 + $0x70] sm:$0xff]
        %v5988 = vld [vmem:[#allocation9 + $0x78] sm:$0xff]
        %v5989 = vld [vmem:[#allocation9 + $0x80] sm:$0xff]
        %v5990 = vld [vmem:[#allocation9 + $0x88] sm:$0xff]
        %v5991 = vld [vmem:[#allocation9 + $0x90] sm:$0xff]
        %v5992 = vld [vmem:[#allocation9 + $0x98] sm:$0xff]
        %v5993 = vld [vmem:[#allocation9 + $0xa0] sm:$0xff]
        %v5994 = vld [vmem:[#allocation9 + $0xa8] sm:$0xff]
        %v5995 = vld [vmem:[#allocation9 + $0xb0] sm:$0xff]
        %v5996 = vld [vmem:[#allocation9 + $0xb8] sm:$0xff]
        %v5997 = vld [vmem:[#allocation9 + $0xc0] sm:$0xff]
        %v5998 = vld [vmem:[#allocation9 + $0xc8] sm:$0xff]
        %v5999 = vld [vmem:[#allocation9 + $0xd0] sm:$0xff]
        %v6000 = vld [vmem:[#allocation9 + $0xd8] sm:$0xff]
        %v6001 = vld [vmem:[#allocation9 + $0xe0] sm:$0xff]
        %v6002 = vld [vmem:[#allocation9 + $0xe8] sm:$0xff]
        %v6003 = vld [vmem:[#allocation9 + $0xf0] sm:$0xff]
        %v6004 = vld [vmem:[#allocation9 + $0xf8] sm:$0xff]
        %v6037 = vunpack.c.l.b16 %v5973
        %v6038 = vunpack.c.h.b16 %v5973
        %v6039 = vunpack.c.l.b16 %v5974
        %v6040 = vunpack.c.h.b16 %v5974
        %v6041 = vunpack.c.l.b16 %v5975
        %v6042 = vunpack.c.h.b16 %v5975
        %v6043 = vunpack.c.l.b16 %v5976
        %v6044 = vunpack.c.h.b16 %v5976
        %v6045 = vunpack.c.l.b16 %v5977
        %v6046 = vunpack.c.h.b16 %v5977
        %v6047 = vunpack.c.l.b16 %v5978
        %v6048 = vunpack.c.h.b16 %v5978
        %v6049 = vunpack.c.l.b16 %v5979
        %v6050 = vunpack.c.h.b16 %v5979
        %v6051 = vunpack.c.l.b16 %v5980
        %v6052 = vunpack.c.h.b16 %v5980
        %v6053 = vunpack.c.l.b16 %v5981
        %v6054 = vunpack.c.h.b16 %v5981
        %v6055 = vunpack.c.l.b16 %v5982
        %v6056 = vunpack.c.h.b16 %v5982
        %v6057 = vunpack.c.l.b16 %v5983
        %v6058 = vunpack.c.h.b16 %v5983
        %v6059 = vunpack.c.l.b16 %v5984
        %v6060 = vunpack.c.h.b16 %v5984
        %v6061 = vunpack.c.l.b16 %v5985
        %v6062 = vunpack.c.h.b16 %v5985
        %v6063 = vunpack.c.l.b16 %v5986
        %v6064 = vunpack.c.h.b16 %v5986
        %v6065 = vunpack.c.l.b16 %v5987
        %v6066 = vunpack.c.h.b16 %v5987
        %v6067 = vunpack.c.l.b16 %v5988
        %v6068 = vunpack.c.h.b16 %v5988
        %v6069 = vunpack.c.l.b16 %v5989
        %v6070 = vunpack.c.h.b16 %v5989
        %v6071 = vunpack.c.l.b16 %v5990
        %v6072 = vunpack.c.h.b16 %v5990
        %v6073 = vunpack.c.l.b16 %v5991
        %v6074 = vunpack.c.h.b16 %v5991
        %v6075 = vunpack.c.l.b16 %v5992
        %v6076 = vunpack.c.h.b16 %v5992
        %v6077 = vunpack.c.l.b16 %v5993
        %v6078 = vunpack.c.h.b16 %v5993
        %v6079 = vunpack.c.l.b16 %v5994
        %v6080 = vunpack.c.h.b16 %v5994
        %v6081 = vunpack.c.l.b16 %v5995
        %v6082 = vunpack.c.h.b16 %v5995
        %v6083 = vunpack.c.l.b16 %v5996
        %v6084 = vunpack.c.h.b16 %v5996
        %v6085 = vunpack.c.l.b16 %v5997
        %v6086 = vunpack.c.h.b16 %v5997
        %v6087 = vunpack.c.l.b16 %v5998
        %v6088 = vunpack.c.h.b16 %v5998
        %v6089 = vunpack.c.l.b16 %v5999
        %v6090 = vunpack.c.h.b16 %v5999
        %v6091 = vunpack.c.l.b16 %v6000
        %v6092 = vunpack.c.h.b16 %v6000
        %v6093 = vunpack.c.l.b16 %v6001
        %v6094 = vunpack.c.h.b16 %v6001
        %v6095 = vunpack.c.l.b16 %v6002
        %v6096 = vunpack.c.h.b16 %v6002
        %v6097 = vunpack.c.l.b16 %v6003
        %v6098 = vunpack.c.h.b16 %v6003
        %v6099 = vunpack.c.l.b16 %v6004
        %v6100 = vunpack.c.h.b16 %v6004
        %v6101 = vpack.c.b16 %v6041, %v6037
        %v6102 = vpack.c.b16 %v6042, %v6038
        %v6103 = vpack.c.b16 %v6043, %v6039
        %v6104 = vpack.c.b16 %v6044, %v6040
        %v6105 = vpack.c.b16 %v6049, %v6045
        %v6106 = vpack.c.b16 %v6050, %v6046
        %v6107 = vpack.c.b16 %v6051, %v6047
        %v6108 = vpack.c.b16 %v6052, %v6048
        %v6109 = vpack.c.b16 %v6057, %v6053
        %v6110 = vpack.c.b16 %v6058, %v6054
        %v6111 = vpack.c.b16 %v6059, %v6055
        %v6112 = vpack.c.b16 %v6060, %v6056
        %v6113 = vpack.c.b16 %v6065, %v6061
        %v6114 = vpack.c.b16 %v6066, %v6062
        %v6115 = vpack.c.b16 %v6067, %v6063
        %v6116 = vpack.c.b16 %v6068, %v6064
        %v6117 = vpack.c.b16 %v6073, %v6069
        %v6118 = vpack.c.b16 %v6074, %v6070
        %v6119 = vpack.c.b16 %v6075, %v6071
        %v6120 = vpack.c.b16 %v6076, %v6072
        %v6121 = vpack.c.b16 %v6081, %v6077
        %v6122 = vpack.c.b16 %v6082, %v6078
        %v6123 = vpack.c.b16 %v6083, %v6079
        %v6124 = vpack.c.b16 %v6084, %v6080
        %v6125 = vpack.c.b16 %v6089, %v6085
        %v6126 = vpack.c.b16 %v6090, %v6086
        %v6127 = vpack.c.b16 %v6091, %v6087
        %v6128 = vpack.c.b16 %v6092, %v6088
        %v6129 = vpack.c.b16 %v6097, %v6093
        %v6130 = vpack.c.b16 %v6098, %v6094
        %v6131 = vpack.c.b16 %v6099, %v6095
        %v6132 = vpack.c.b16 %v6100, %v6096
        %6165 = vmatprep.subr.bf16.mxu0 %v6130
        %6166 = vmatpush1.bf16.msra.mxu0 %v6129
        %6167 = vmatprep.subr.bf16.mxu0 %v6126
        %6168 = vmatpush1.bf16.msra.mxu0 %v6125
        %6169 = vmatprep.subr.bf16.mxu0 %v6122
        %6170 = vmatpush1.bf16.msra.mxu0 %v6121
        %6171 = vmatprep.subr.bf16.mxu0 %v6118
        %6172 = vmatpush1.bf16.msra.mxu0 %v6117
        %6173 = vmatprep.subr.bf16.mxu0 %v6114
        %6174 = vmatpush1.bf16.msra.mxu0 %v6113
        %6175 = vmatprep.subr.bf16.mxu0 %v6110
        %6176 = vmatpush1.bf16.msra.mxu0 %v6109
        %6177 = vmatprep.subr.bf16.mxu0 %v6106
        %6178 = vmatpush1.bf16.msra.mxu0 %v6105
        %6179 = vmatprep.subr.bf16.mxu0 %v6102
        %6180 = vmatpush1.bf16.msra.mxu0 %v6101
        %6181 = vmatprep.subr.bf16.mxu0 0
        %6182 = vmatpush2.bf16.msra.mxu0 0
        %6183 = vmatprep.subr.bf16.mxu0 0
        %6184 = vmatpush2.bf16.msra.mxu0 0
        %6185 = vmatprep.subr.bf16.mxu0 0
        %6186 = vmatpush2.bf16.msra.mxu0 0
        %6187 = vmatprep.subr.bf16.mxu0 0
        %6188 = vmatpush2.bf16.msra.mxu0 0
        %6189 = vmatprep.subr.bf16.mxu0 0
        %6190 = vmatpush2.bf16.msra.mxu0 0
        %6191 = vmatprep.subr.bf16.mxu0 0
        %6192 = vmatpush2.bf16.msra.mxu0 0
        %6193 = vmatprep.subr.bf16.mxu0 0
        %6194 = vmatpush2.bf16.msra.mxu0 0
        %6195 = vmatprep.subr.bf16.mxu0 0
        %6196 = vmatpush2.bf16.msra.mxu0 0
        %6197 = vmatprep.mubr.bf16.mxu0 0
        %6198 = vmatmul.mubr.bf16.gmra.mxu0 %v5969
        %v6199 = vpop.f32.mrf.mxu0
        %v6200 = vadd.f32 0.0, %v6199
        %v6201 = vpop.f32.mrf.mxu0
        %v6202 = vadd.f32 0.0, %v6201
        %v6203 = vpop.f32.mrf.mxu0
        %v6204 = vadd.f32 0.0, %v6203
        %v6205 = vpop.f32.mrf.mxu0
        %v6206 = vadd.f32 0.0, %v6205
        %6207 = vmatprep.mubr.bf16.mxu0 0
        %6208 = vmatmul.mubr.bf16.gmra.mxu0 %v5970
        %v6209 = vpop.f32.mrf.mxu0
        %v6210 = vadd.f32 0.0, %v6209
        %v6211 = vpop.f32.mrf.mxu0
        %v6212 = vadd.f32 0.0, %v6211
        %v6213 = vpop.f32.mrf.mxu0
        %v6214 = vadd.f32 0.0, %v6213
        %v6215 = vpop.f32.mrf.mxu0
        %v6216 = vadd.f32 0.0, %v6215
        %6217 = vmatprep.mubr.bf16.mxu0 0
        %6218 = vmatmul.mubr.bf16.gmra.mxu0 %v5971
        %v6219 = vpop.f32.mrf.mxu0
        %v6220 = vadd.f32 0.0, %v6219
        %v6221 = vpop.f32.mrf.mxu0
        %v6222 = vadd.f32 0.0, %v6221
        %v6223 = vpop.f32.mrf.mxu0
        %v6224 = vadd.f32 0.0, %v6223
        %v6225 = vpop.f32.mrf.mxu0
        %v6226 = vadd.f32 0.0, %v6225
        %6227 = vmatprep.mubr.bf16.mxu0 0
        %6228 = vmatmul.mubr.bf16.gmra.mxu0 %v5972
        %v6229 = vpop.f32.mrf.mxu0
        %v6230 = vadd.f32 0.0, %v6229
        %v6231 = vpop.f32.mrf.mxu0
        %v6232 = vadd.f32 0.0, %v6231
        %v6233 = vpop.f32.mrf.mxu0
        %v6234 = vadd.f32 0.0, %v6233
        %v6235 = vpop.f32.mrf.mxu0
        %v6236 = vadd.f32 0.0, %v6235
        %6237 = vdwg.mxu0
        %6238 = vmatprep.subr.bf16.mxu0 %v6132
        %6239 = vmatpush1.bf16.msra.mxu0 %v6131
        %6240 = vmatprep.subr.bf16.mxu0 %v6128
        %6241 = vmatpush1.bf16.msra.mxu0 %v6127
        %6242 = vmatprep.subr.bf16.mxu0 %v6124
        %6243 = vmatpush1.bf16.msra.mxu0 %v6123
        %6244 = vmatprep.subr.bf16.mxu0 %v6120
        %6245 = vmatpush1.bf16.msra.mxu0 %v6119
        %6246 = vmatprep.subr.bf16.mxu0 %v6116
        %6247 = vmatpush1.bf16.msra.mxu0 %v6115
        %6248 = vmatprep.subr.bf16.mxu0 %v6112
        %6249 = vmatpush1.bf16.msra.mxu0 %v6111
        %6250 = vmatprep.subr.bf16.mxu0 %v6108
        %6251 = vmatpush1.bf16.msra.mxu0 %v6107
        %6252 = vmatprep.subr.bf16.mxu0 %v6104
        %6253 = vmatpush1.bf16.msra.mxu0 %v6103
        %6254 = vmatprep.subr.bf16.mxu0 0
        %6255 = vmatpush2.bf16.msra.mxu0 0
        %6256 = vmatprep.subr.bf16.mxu0 0
        %6257 = vmatpush2.bf16.msra.mxu0 0
        %6258 = vmatprep.subr.bf16.mxu0 0
        %6259 = vmatpush2.bf16.msra.mxu0 0
        %6260 = vmatprep.subr.bf16.mxu0 0
        %6261 = vmatpush2.bf16.msra.mxu0 0
        %6262 = vmatprep.subr.bf16.mxu0 0
        %6263 = vmatpush2.bf16.msra.mxu0 0
        %6264 = vmatprep.subr.bf16.mxu0 0
        %6265 = vmatpush2.bf16.msra.mxu0 0
        %6266 = vmatprep.subr.bf16.mxu0 0
        %6267 = vmatpush2.bf16.msra.mxu0 0
        %6268 = vmatprep.subr.bf16.mxu0 0
        %6269 = vmatpush2.bf16.msra.mxu0 0
        %6270 = vmatprep.mubr.bf16.mxu0 0
        %6271 = vmatmul.mubr.bf16.gmra.mxu0 %v5969
        %v6272 = vpop.f32.mrf.mxu0
        %v6273 = vadd.f32 0.0, %v6272
        %v6274 = vpop.f32.mrf.mxu0
        %v6275 = vadd.f32 0.0, %v6274
        %v6276 = vpop.f32.mrf.mxu0
        %v6277 = vadd.f32 0.0, %v6276
        %v6278 = vpop.f32.mrf.mxu0
        %v6279 = vadd.f32 0.0, %v6278
        %6280 = vmatprep.mubr.bf16.mxu0 0
        %6281 = vmatmul.mubr.bf16.gmra.mxu0 %v5970
        %v6282 = vpop.f32.mrf.mxu0
        %v6283 = vadd.f32 0.0, %v6282
        %v6284 = vpop.f32.mrf.mxu0
        %v6285 = vadd.f32 0.0, %v6284
        %v6286 = vpop.f32.mrf.mxu0
        %v6287 = vadd.f32 0.0, %v6286
        %v6288 = vpop.f32.mrf.mxu0
        %v6289 = vadd.f32 0.0, %v6288
        %6290 = vmatprep.mubr.bf16.mxu0 0
        %6291 = vmatmul.mubr.bf16.gmra.mxu0 %v5971
        %v6292 = vpop.f32.mrf.mxu0
        %v6293 = vadd.f32 0.0, %v6292
        %v6294 = vpop.f32.mrf.mxu0
        %v6295 = vadd.f32 0.0, %v6294
        %v6296 = vpop.f32.mrf.mxu0
        %v6297 = vadd.f32 0.0, %v6296
        %v6298 = vpop.f32.mrf.mxu0
        %v6299 = vadd.f32 0.0, %v6298
        %6300 = vmatprep.mubr.bf16.mxu0 0
        %6301 = vmatmul.mubr.bf16.gmra.mxu0 %v5972
        %v6302 = vpop.f32.mrf.mxu0
        %v6303 = vadd.f32 0.0, %v6302
        %v6304 = vpop.f32.mrf.mxu0
        %v6305 = vadd.f32 0.0, %v6304
        %v6306 = vpop.f32.mrf.mxu0
        %v6307 = vadd.f32 0.0, %v6306
        %v6308 = vpop.f32.mrf.mxu0
        %v6309 = vadd.f32 0.0, %v6308
        %6310 = vdwg.mxu0
        %v6311 = vpack.c.bf16 %v6200, %v6200
        %v6312 = vpack.c.bf16 %v6202, %v6202
        %v6313 = vpack.c.bf16 %v6273, %v6273
        %v6314 = vpack.c.bf16 %v6275, %v6275
        %v6315 = vpack.c.bf16 %v6204, %v6204
        %v6316 = vpack.c.bf16 %v6206, %v6206
        %v6317 = vpack.c.bf16 %v6277, %v6277
        %v6318 = vpack.c.bf16 %v6279, %v6279
        %v6319 = vpack.c.bf16 %v6210, %v6210
        %v6320 = vpack.c.bf16 %v6212, %v6212
        %v6321 = vpack.c.bf16 %v6283, %v6283
        %v6322 = vpack.c.bf16 %v6285, %v6285
        %v6323 = vpack.c.bf16 %v6214, %v6214
        %v6324 = vpack.c.bf16 %v6216, %v6216
        %v6325 = vpack.c.bf16 %v6287, %v6287
        %v6326 = vpack.c.bf16 %v6289, %v6289
        %v6327 = vpack.c.bf16 %v6220, %v6220
        %v6328 = vpack.c.bf16 %v6222, %v6222
        %v6329 = vpack.c.bf16 %v6293, %v6293
        %v6330 = vpack.c.bf16 %v6295, %v6295
        %v6331 = vpack.c.bf16 %v6224, %v6224
        %v6332 = vpack.c.bf16 %v6226, %v6226
        %v6333 = vpack.c.bf16 %v6297, %v6297
        %v6334 = vpack.c.bf16 %v6299, %v6299
        %v6335 = vpack.c.bf16 %v6230, %v6230
        %v6336 = vpack.c.bf16 %v6232, %v6232
        %v6337 = vpack.c.bf16 %v6303, %v6303
        %v6338 = vpack.c.bf16 %v6305, %v6305
        %v6339 = vpack.c.bf16 %v6234, %v6234
        %v6340 = vpack.c.bf16 %v6236, %v6236
        %v6341 = vpack.c.bf16 %v6307, %v6307
        %v6342 = vpack.c.bf16 %v6309, %v6309
        %v6375 = vunpack.c.l.b16 %v6311
        %v6376 = vunpack.c.l.b16 %v6312
        %v6377 = vunpack.c.l.b16 %v6313
        %v6378 = vunpack.c.l.b16 %v6314
        %v6379 = vunpack.c.l.b16 %v6315
        %v6380 = vunpack.c.l.b16 %v6316
        %v6381 = vunpack.c.l.b16 %v6317
        %v6382 = vunpack.c.l.b16 %v6318
        %v6383 = vunpack.c.l.b16 %v6319
        %v6384 = vunpack.c.l.b16 %v6320
        %v6385 = vunpack.c.l.b16 %v6321
        %v6386 = vunpack.c.l.b16 %v6322
        %v6387 = vunpack.c.l.b16 %v6323
        %v6388 = vunpack.c.l.b16 %v6324
        %v6389 = vunpack.c.l.b16 %v6325
        %v6390 = vunpack.c.l.b16 %v6326
        %v6391 = vunpack.c.l.b16 %v6327
        %v6392 = vunpack.c.l.b16 %v6328
        %v6393 = vunpack.c.l.b16 %v6329
        %v6394 = vunpack.c.l.b16 %v6330
        %v6395 = vunpack.c.l.b16 %v6331
        %v6396 = vunpack.c.l.b16 %v6332
        %v6397 = vunpack.c.l.b16 %v6333
        %v6398 = vunpack.c.l.b16 %v6334
        %v6399 = vunpack.c.l.b16 %v6335
        %v6400 = vunpack.c.l.b16 %v6336
        %v6401 = vunpack.c.l.b16 %v6337
        %v6402 = vunpack.c.l.b16 %v6338
        %v6403 = vunpack.c.l.b16 %v6339
        %v6404 = vunpack.c.l.b16 %v6340
        %v6405 = vunpack.c.l.b16 %v6341
        %v6406 = vunpack.c.l.b16 %v6342
        %v6407 = vpack.c.b16 %v6376, %v6375
        %v6408 = vpack.c.b16 %v6378, %v6377
        %v6409 = vpack.c.b16 %v6380, %v6379
        %v6410 = vpack.c.b16 %v6382, %v6381
        %v6411 = vpack.c.b16 %v6384, %v6383
        %v6412 = vpack.c.b16 %v6386, %v6385
        %v6413 = vpack.c.b16 %v6388, %v6387
        %v6414 = vpack.c.b16 %v6390, %v6389
        %v6415 = vpack.c.b16 %v6392, %v6391
        %v6416 = vpack.c.b16 %v6394, %v6393
        %v6417 = vpack.c.b16 %v6396, %v6395
        %v6418 = vpack.c.b16 %v6398, %v6397
        %v6419 = vpack.c.b16 %v6400, %v6399
        %v6420 = vpack.c.b16 %v6402, %v6401
        %v6421 = vpack.c.b16 %v6404, %v6403
        %v6422 = vpack.c.b16 %v6406, %v6405
        %6439 = vst [vmem:[#allocation2] sm:$0xff] %v6407
        %6440 = vst [vmem:[#allocation2 + $0x8] sm:$0xff] %v6408
        %6441 = vst [vmem:[#allocation2 + $0x10] sm:$0xff] %v6409
        %6442 = vst [vmem:[#allocation2 + $0x18] sm:$0xff] %v6410
        %6443 = vst [vmem:[#allocation2 + $0x20] sm:$0xff] %v6411
        %6444 = vst [vmem:[#allocation2 + $0x28] sm:$0xff] %v6412
        %6445 = vst [vmem:[#allocation2 + $0x30] sm:$0xff] %v6413
        %6446 = vst [vmem:[#allocation2 + $0x38] sm:$0xff] %v6414
        %6447 = vst [vmem:[#allocation2 + $0x40] sm:$0xff] %v6415
        %6448 = vst [vmem:[#allocation2 + $0x48] sm:$0xff] %v6416
        %6449 = vst [vmem:[#allocation2 + $0x50] sm:$0xff] %v6417
        %6450 = vst [vmem:[#allocation2 + $0x58] sm:$0xff] %v6418
        %6451 = vst [vmem:[#allocation2 + $0x60] sm:$0xff] %v6419
        %6452 = vst [vmem:[#allocation2 + $0x68] sm:$0xff] %v6420
        %6453 = vst [vmem:[#allocation2 + $0x70] sm:$0xff] %v6421
        %6454 = vst [vmem:[#allocation2 + $0x78] sm:$0xff] %v6422
        %v6455 = vld [vmem:[#allocation12] sm:$0xf]
        %v6456 = vld [vmem:[#allocation2] sm:$0xff]
        %v6457 = vld [vmem:[#allocation2 + $0x8] sm:$0xff]
        %v6458 = vunpack.c.l.bf16 %v6456
        %v6459 = vunpack.c.h.bf16 %v6456
        %v6460 = vunpack.c.l.bf16 %v6457
        %v6461 = vunpack.c.h.bf16 %v6457
        %v6463 = vlaneseq
        %v6464 = vshrl.u32 %v6463, 7
        %v6465 = vsub.s32 0, %v6464
        %v6466 = vrot.slane %v6455, %v6465
        %v6467 = vlaneseq
        %v6468 = vshrl.u32 %v6467, 7
        %v6469 = vsub.s32 1, %v6468
        %v6470 = vrot.slane %v6455, %v6469
        %v6471 = vlaneseq
        %v6472 = vshrl.u32 %v6471, 7
        %v6473 = vsub.s32 2, %v6472
        %v6474 = vrot.slane %v6455, %v6473
        %v6475 = vlaneseq
        %v6476 = vshrl.u32 %v6475, 7
        %v6477 = vsub.s32 3, %v6476
        %v6478 = vrot.slane %v6455, %v6477
        %v6483 = vadd.f32 %v6458, %v6466
        %v6484 = vadd.f32 %v6459, %v6470
        %v6485 = vadd.f32 %v6460, %v6474
        %v6486 = vadd.f32 %v6461, %v6478
        %v6487 = vld [vmem:[#allocation10] sm:$0xff]
        %v6488 = vld [vmem:[#allocation10 + $0x8] sm:$0xff]
        %v6489 = vld [vmem:[#allocation10 + $0x10] sm:$0xff]
        %v6490 = vld [vmem:[#allocation10 + $0x18] sm:$0xff]
        %v6491 = vld [vmem:[#allocation10 + $0x20] sm:$0xff]
        %v6492 = vld [vmem:[#allocation10 + $0x28] sm:$0xff]
        %v6493 = vld [vmem:[#allocation10 + $0x30] sm:$0xff]
        %v6494 = vld [vmem:[#allocation10 + $0x38] sm:$0xff]
        %v6495 = vld [vmem:[#allocation10 + $0x40] sm:$0xff]
        %v6496 = vld [vmem:[#allocation10 + $0x48] sm:$0xff]
        %v6497 = vld [vmem:[#allocation10 + $0x50] sm:$0xff]
        %v6498 = vld [vmem:[#allocation10 + $0x58] sm:$0xff]
        %v6499 = vld [vmem:[#allocation10 + $0x60] sm:$0xff]
        %v6500 = vld [vmem:[#allocation10 + $0x68] sm:$0xff]
        %v6501 = vld [vmem:[#allocation10 + $0x70] sm:$0xff]
        %v6502 = vld [vmem:[#allocation10 + $0x78] sm:$0xff]
        %v6503 = vld [vmem:[#allocation10 + $0x80] sm:$0xff]
        %v6504 = vld [vmem:[#allocation10 + $0x88] sm:$0xff]
        %v6505 = vld [vmem:[#allocation10 + $0x90] sm:$0xff]
        %v6506 = vld [vmem:[#allocation10 + $0x98] sm:$0xff]
        %v6507 = vld [vmem:[#allocation10 + $0xa0] sm:$0xff]
        %v6508 = vld [vmem:[#allocation10 + $0xa8] sm:$0xff]
        %v6509 = vld [vmem:[#allocation10 + $0xb0] sm:$0xff]
        %v6510 = vld [vmem:[#allocation10 + $0xb8] sm:$0xff]
        %v6511 = vld [vmem:[#allocation10 + $0xc0] sm:$0xff]
        %v6512 = vld [vmem:[#allocation10 + $0xc8] sm:$0xff]
        %v6513 = vld [vmem:[#allocation10 + $0xd0] sm:$0xff]
        %v6514 = vld [vmem:[#allocation10 + $0xd8] sm:$0xff]
        %v6515 = vld [vmem:[#allocation10 + $0xe0] sm:$0xff]
        %v6516 = vld [vmem:[#allocation10 + $0xe8] sm:$0xff]
        %v6517 = vld [vmem:[#allocation10 + $0xf0] sm:$0xff]
        %v6518 = vld [vmem:[#allocation10 + $0xf8] sm:$0xff]
        %v6551 = vunpack.c.l.b16 %v6487
        %v6552 = vunpack.c.h.b16 %v6487
        %v6553 = vunpack.c.l.b16 %v6488
        %v6554 = vunpack.c.h.b16 %v6488
        %v6555 = vunpack.c.l.b16 %v6489
        %v6556 = vunpack.c.h.b16 %v6489
        %v6557 = vunpack.c.l.b16 %v6490
        %v6558 = vunpack.c.h.b16 %v6490
        %v6559 = vunpack.c.l.b16 %v6491
        %v6560 = vunpack.c.h.b16 %v6491
        %v6561 = vunpack.c.l.b16 %v6492
        %v6562 = vunpack.c.h.b16 %v6492
        %v6563 = vunpack.c.l.b16 %v6493
        %v6564 = vunpack.c.h.b16 %v6493
        %v6565 = vunpack.c.l.b16 %v6494
        %v6566 = vunpack.c.h.b16 %v6494
        %v6567 = vunpack.c.l.b16 %v6495
        %v6568 = vunpack.c.h.b16 %v6495
        %v6569 = vunpack.c.l.b16 %v6496
        %v6570 = vunpack.c.h.b16 %v6496
        %v6571 = vunpack.c.l.b16 %v6497
        %v6572 = vunpack.c.h.b16 %v6497
        %v6573 = vunpack.c.l.b16 %v6498
        %v6574 = vunpack.c.h.b16 %v6498
        %v6575 = vunpack.c.l.b16 %v6499
        %v6576 = vunpack.c.h.b16 %v6499
        %v6577 = vunpack.c.l.b16 %v6500
        %v6578 = vunpack.c.h.b16 %v6500
        %v6579 = vunpack.c.l.b16 %v6501
        %v6580 = vunpack.c.h.b16 %v6501
        %v6581 = vunpack.c.l.b16 %v6502
        %v6582 = vunpack.c.h.b16 %v6502
        %v6583 = vunpack.c.l.b16 %v6503
        %v6584 = vunpack.c.h.b16 %v6503
        %v6585 = vunpack.c.l.b16 %v6504
        %v6586 = vunpack.c.h.b16 %v6504
        %v6587 = vunpack.c.l.b16 %v6505
        %v6588 = vunpack.c.h.b16 %v6505
        %v6589 = vunpack.c.l.b16 %v6506
        %v6590 = vunpack.c.h.b16 %v6506
        %v6591 = vunpack.c.l.b16 %v6507
        %v6592 = vunpack.c.h.b16 %v6507
        %v6593 = vunpack.c.l.b16 %v6508
        %v6594 = vunpack.c.h.b16 %v6508
        %v6595 = vunpack.c.l.b16 %v6509
        %v6596 = vunpack.c.h.b16 %v6509
        %v6597 = vunpack.c.l.b16 %v6510
        %v6598 = vunpack.c.h.b16 %v6510
        %v6599 = vunpack.c.l.b16 %v6511
        %v6600 = vunpack.c.h.b16 %v6511
        %v6601 = vunpack.c.l.b16 %v6512
        %v6602 = vunpack.c.h.b16 %v6512
        %v6603 = vunpack.c.l.b16 %v6513
        %v6604 = vunpack.c.h.b16 %v6513
        %v6605 = vunpack.c.l.b16 %v6514
        %v6606 = vunpack.c.h.b16 %v6514
        %v6607 = vunpack.c.l.b16 %v6515
        %v6608 = vunpack.c.h.b16 %v6515
        %v6609 = vunpack.c.l.b16 %v6516
        %v6610 = vunpack.c.h.b16 %v6516
        %v6611 = vunpack.c.l.b16 %v6517
        %v6612 = vunpack.c.h.b16 %v6517
        %v6613 = vunpack.c.l.b16 %v6518
        %v6614 = vunpack.c.h.b16 %v6518
        %v6615 = vpack.c.b16 %v6555, %v6551
        %v6616 = vpack.c.b16 %v6556, %v6552
        %v6617 = vpack.c.b16 %v6557, %v6553
        %v6618 = vpack.c.b16 %v6558, %v6554
        %v6619 = vpack.c.b16 %v6563, %v6559
        %v6620 = vpack.c.b16 %v6564, %v6560
        %v6621 = vpack.c.b16 %v6565, %v6561
        %v6622 = vpack.c.b16 %v6566, %v6562
        %v6623 = vpack.c.b16 %v6571, %v6567
        %v6624 = vpack.c.b16 %v6572, %v6568
        %v6625 = vpack.c.b16 %v6573, %v6569
        %v6626 = vpack.c.b16 %v6574, %v6570
        %v6627 = vpack.c.b16 %v6579, %v6575
        %v6628 = vpack.c.b16 %v6580, %v6576
        %v6629 = vpack.c.b16 %v6581, %v6577
        %v6630 = vpack.c.b16 %v6582, %v6578
        %v6631 = vpack.c.b16 %v6587, %v6583
        %v6632 = vpack.c.b16 %v6588, %v6584
        %v6633 = vpack.c.b16 %v6589, %v6585
        %v6634 = vpack.c.b16 %v6590, %v6586
        %v6635 = vpack.c.b16 %v6595, %v6591
        %v6636 = vpack.c.b16 %v6596, %v6592
        %v6637 = vpack.c.b16 %v6597, %v6593
        %v6638 = vpack.c.b16 %v6598, %v6594
        %v6639 = vpack.c.b16 %v6603, %v6599
        %v6640 = vpack.c.b16 %v6604, %v6600
        %v6641 = vpack.c.b16 %v6605, %v6601
        %v6642 = vpack.c.b16 %v6606, %v6602
        %v6643 = vpack.c.b16 %v6611, %v6607
        %v6644 = vpack.c.b16 %v6612, %v6608
        %v6645 = vpack.c.b16 %v6613, %v6609
        %v6646 = vpack.c.b16 %v6614, %v6610
        %6679 = vmatprep.subr.bf16.mxu0 %v6644
        %6680 = vmatpush1.bf16.msra.mxu0 %v6643
        %6681 = vmatprep.subr.bf16.mxu0 %v6640
        %6682 = vmatpush1.bf16.msra.mxu0 %v6639
        %6683 = vmatprep.subr.bf16.mxu0 %v6636
        %6684 = vmatpush1.bf16.msra.mxu0 %v6635
        %6685 = vmatprep.subr.bf16.mxu0 %v6632
        %6686 = vmatpush1.bf16.msra.mxu0 %v6631
        %6687 = vmatprep.subr.bf16.mxu0 %v6628
        %6688 = vmatpush1.bf16.msra.mxu0 %v6627
        %6689 = vmatprep.subr.bf16.mxu0 %v6624
        %6690 = vmatpush1.bf16.msra.mxu0 %v6623
        %6691 = vmatprep.subr.bf16.mxu0 %v6620
        %6692 = vmatpush1.bf16.msra.mxu0 %v6619
        %6693 = vmatprep.subr.bf16.mxu0 %v6616
        %6694 = vmatpush1.bf16.msra.mxu0 %v6615
        %6695 = vmatprep.subr.bf16.mxu0 0
        %6696 = vmatpush2.bf16.msra.mxu0 0
        %6697 = vmatprep.subr.bf16.mxu0 0
        %6698 = vmatpush2.bf16.msra.mxu0 0
        %6699 = vmatprep.subr.bf16.mxu0 0
        %6700 = vmatpush2.bf16.msra.mxu0 0
        %6701 = vmatprep.subr.bf16.mxu0 0
        %6702 = vmatpush2.bf16.msra.mxu0 0
        %6703 = vmatprep.subr.bf16.mxu0 0
        %6704 = vmatpush2.bf16.msra.mxu0 0
        %6705 = vmatprep.subr.bf16.mxu0 0
        %6706 = vmatpush2.bf16.msra.mxu0 0
        %6707 = vmatprep.subr.bf16.mxu0 0
        %6708 = vmatpush2.bf16.msra.mxu0 0
        %6709 = vmatprep.subr.bf16.mxu0 0
        %6710 = vmatpush2.bf16.msra.mxu0 0
        %6711 = vmatprep.mubr.bf16.mxu0 0
        %6712 = vmatmul.mubr.bf16.gmra.mxu0 0
        %v6713 = vpop.f32.mrf.mxu0
        %v6714 = vadd.f32 0.0, %v6713
        %v6715 = vpop.f32.mrf.mxu0
        %v6716 = vadd.f32 0.0, %v6715
        %v6717 = vpop.f32.mrf.mxu0
        %v6718 = vpop.f32.mrf.mxu0
        %6719 = vdwg.mxu0
        %6720 = vmatprep.subr.bf16.mxu0 %v6646
        %6721 = vmatpush1.bf16.msra.mxu0 %v6645
        %6722 = vmatprep.subr.bf16.mxu0 %v6642
        %6723 = vmatpush1.bf16.msra.mxu0 %v6641
        %6724 = vmatprep.subr.bf16.mxu0 %v6638
        %6725 = vmatpush1.bf16.msra.mxu0 %v6637
        %6726 = vmatprep.subr.bf16.mxu0 %v6634
        %6727 = vmatpush1.bf16.msra.mxu0 %v6633
        %6728 = vmatprep.subr.bf16.mxu0 %v6630
        %6729 = vmatpush1.bf16.msra.mxu0 %v6629
        %6730 = vmatprep.subr.bf16.mxu0 %v6626
        %6731 = vmatpush1.bf16.msra.mxu0 %v6625
        %6732 = vmatprep.subr.bf16.mxu0 %v6622
        %6733 = vmatpush1.bf16.msra.mxu0 %v6621
        %6734 = vmatprep.subr.bf16.mxu0 %v6618
        %6735 = vmatpush1.bf16.msra.mxu0 %v6617
        %6736 = vmatprep.subr.bf16.mxu0 0
        %6737 = vmatpush2.bf16.msra.mxu0 0
        %6738 = vmatprep.subr.bf16.mxu0 0
        %6739 = vmatpush2.bf16.msra.mxu0 0
        %6740 = vmatprep.subr.bf16.mxu0 0
        %6741 = vmatpush2.bf16.msra.mxu0 0
        %6742 = vmatprep.subr.bf16.mxu0 0
        %6743 = vmatpush2.bf16.msra.mxu0 0
        %6744 = vmatprep.subr.bf16.mxu0 0
        %6745 = vmatpush2.bf16.msra.mxu0 0
        %6746 = vmatprep.subr.bf16.mxu0 0
        %6747 = vmatpush2.bf16.msra.mxu0 0
        %6748 = vmatprep.subr.bf16.mxu0 0
        %6749 = vmatpush2.bf16.msra.mxu0 0
        %6750 = vmatprep.subr.bf16.mxu0 0
        %6751 = vmatpush2.bf16.msra.mxu0 0
        %6752 = vmatprep.mubr.bf16.mxu0 0
        %6753 = vmatmul.mubr.bf16.gmra.mxu0 0
        %v6754 = vpop.f32.mrf.mxu0
        %v6755 = vadd.f32 0.0, %v6754
        %v6756 = vpop.f32.mrf.mxu0
        %v6757 = vadd.f32 0.0, %v6756
        %v6758 = vpop.f32.mrf.mxu0
        %v6759 = vpop.f32.mrf.mxu0
        %6760 = vdwg.mxu0
        %v6761 = vadd.f32 %v6483, %v6714
        %v6762 = vadd.f32 %v6484, %v6716
        %v6763 = vadd.f32 %v6485, %v6755
        %v6764 = vadd.f32 %v6486, %v6757
        %v6765 = vmul.f32 %v6761, 0.5
        %v6766 = vtanh.pop %v6765
        %v6767 = vmul.f32 %v6766, 0.5
        %v6768 = vadd.f32 %v6767, 0.5
        %v6769 = vmul.f32 %v6762, 0.5
        %v6770 = vtanh.pop %v6769
        %v6771 = vmul.f32 %v6770, 0.5
        %v6772 = vadd.f32 %v6771, 0.5
        %v6773 = vtanh.pop %v6763
        %v6774 = vmul.f32 %v6764, 0.5
        %v6775 = vtanh.pop %v6774
        %v6776 = vmul.f32 %v6775, 0.5
        %v6777 = vadd.f32 %v6776, 0.5
        %v6778 = vmul.f32 %v6772, 0.0
        %v6779 = vmul.f32 %v6768, %v6773
        %v6780 = vadd.f32 %v6778, %v6779
        %v6781 = vtanh.pop %v6780
        %v6782 = vmul.f32 %v6777, %v6781
        %6783 = vst [vmem:[#allocation3] sm:$0xff] %v6782
        %v6784 = vld [vmem:[%s3798] sm:$0xff]
        %v6785 = vld [vmem:[%s3798 + $0x8] sm:$0xff]
        %v6786 = vunpack.c.l.bf16 %v6784
        %v6787 = vunpack.c.h.bf16 %v6784
        %v6788 = vunpack.c.l.bf16 %v6785
        %v6789 = vunpack.c.h.bf16 %v6785
        %v6790 = vadd.f32 %v6786, %v6466
        %v6791 = vadd.f32 %v6787, %v6470
        %v6792 = vadd.f32 %v6788, %v6474
        %v6793 = vadd.f32 %v6789, %v6478
        %v6794 = vpack.c.bf16 %v6782, %v6782
        %v6795 = vld [vmem:[#allocation10] sm:$0xff]
        %v6796 = vld [vmem:[#allocation10 + $0x8] sm:$0xff]
        %v6797 = vld [vmem:[#allocation10 + $0x10] sm:$0xff]
        %v6798 = vld [vmem:[#allocation10 + $0x18] sm:$0xff]
        %v6799 = vld [vmem:[#allocation10 + $0x20] sm:$0xff]
        %v6800 = vld [vmem:[#allocation10 + $0x28] sm:$0xff]
        %v6801 = vld [vmem:[#allocation10 + $0x30] sm:$0xff]
        %v6802 = vld [vmem:[#allocation10 + $0x38] sm:$0xff]
        %v6803 = vld [vmem:[#allocation10 + $0x40] sm:$0xff]
        %v6804 = vld [vmem:[#allocation10 + $0x48] sm:$0xff]
        %v6805 = vld [vmem:[#allocation10 + $0x50] sm:$0xff]
        %v6806 = vld [vmem:[#allocation10 + $0x58] sm:$0xff]
        %v6807 = vld [vmem:[#allocation10 + $0x60] sm:$0xff]
        %v6808 = vld [vmem:[#allocation10 + $0x68] sm:$0xff]
        %v6809 = vld [vmem:[#allocation10 + $0x70] sm:$0xff]
        %v6810 = vld [vmem:[#allocation10 + $0x78] sm:$0xff]
        %v6811 = vld [vmem:[#allocation10 + $0x80] sm:$0xff]
        %v6812 = vld [vmem:[#allocation10 + $0x88] sm:$0xff]
        %v6813 = vld [vmem:[#allocation10 + $0x90] sm:$0xff]
        %v6814 = vld [vmem:[#allocation10 + $0x98] sm:$0xff]
        %v6815 = vld [vmem:[#allocation10 + $0xa0] sm:$0xff]
        %v6816 = vld [vmem:[#allocation10 + $0xa8] sm:$0xff]
        %v6817 = vld [vmem:[#allocation10 + $0xb0] sm:$0xff]
        %v6818 = vld [vmem:[#allocation10 + $0xb8] sm:$0xff]
        %v6819 = vld [vmem:[#allocation10 + $0xc0] sm:$0xff]
        %v6820 = vld [vmem:[#allocation10 + $0xc8] sm:$0xff]
        %v6821 = vld [vmem:[#allocation10 + $0xd0] sm:$0xff]
        %v6822 = vld [vmem:[#allocation10 + $0xd8] sm:$0xff]
        %v6823 = vld [vmem:[#allocation10 + $0xe0] sm:$0xff]
        %v6824 = vld [vmem:[#allocation10 + $0xe8] sm:$0xff]
        %v6825 = vld [vmem:[#allocation10 + $0xf0] sm:$0xff]
        %v6826 = vld [vmem:[#allocation10 + $0xf8] sm:$0xff]
        %v6859 = vunpack.c.l.b16 %v6795
        %v6860 = vunpack.c.h.b16 %v6795
        %v6861 = vunpack.c.l.b16 %v6796
        %v6862 = vunpack.c.h.b16 %v6796
        %v6863 = vunpack.c.l.b16 %v6797
        %v6864 = vunpack.c.h.b16 %v6797
        %v6865 = vunpack.c.l.b16 %v6798
        %v6866 = vunpack.c.h.b16 %v6798
        %v6867 = vunpack.c.l.b16 %v6799
        %v6868 = vunpack.c.h.b16 %v6799
        %v6869 = vunpack.c.l.b16 %v6800
        %v6870 = vunpack.c.h.b16 %v6800
        %v6871 = vunpack.c.l.b16 %v6801
        %v6872 = vunpack.c.h.b16 %v6801
        %v6873 = vunpack.c.l.b16 %v6802
        %v6874 = vunpack.c.h.b16 %v6802
        %v6875 = vunpack.c.l.b16 %v6803
        %v6876 = vunpack.c.h.b16 %v6803
        %v6877 = vunpack.c.l.b16 %v6804
        %v6878 = vunpack.c.h.b16 %v6804
        %v6879 = vunpack.c.l.b16 %v6805
        %v6880 = vunpack.c.h.b16 %v6805
        %v6881 = vunpack.c.l.b16 %v6806
        %v6882 = vunpack.c.h.b16 %v6806
        %v6883 = vunpack.c.l.b16 %v6807
        %v6884 = vunpack.c.h.b16 %v6807
        %v6885 = vunpack.c.l.b16 %v6808
        %v6886 = vunpack.c.h.b16 %v6808
        %v6887 = vunpack.c.l.b16 %v6809
        %v6888 = vunpack.c.h.b16 %v6809
        %v6889 = vunpack.c.l.b16 %v6810
        %v6890 = vunpack.c.h.b16 %v6810
        %v6891 = vunpack.c.l.b16 %v6811
        %v6892 = vunpack.c.h.b16 %v6811
        %v6893 = vunpack.c.l.b16 %v6812
        %v6894 = vunpack.c.h.b16 %v6812
        %v6895 = vunpack.c.l.b16 %v6813
        %v6896 = vunpack.c.h.b16 %v6813
        %v6897 = vunpack.c.l.b16 %v6814
        %v6898 = vunpack.c.h.b16 %v6814
        %v6899 = vunpack.c.l.b16 %v6815
        %v6900 = vunpack.c.h.b16 %v6815
        %v6901 = vunpack.c.l.b16 %v6816
        %v6902 = vunpack.c.h.b16 %v6816
        %v6903 = vunpack.c.l.b16 %v6817
        %v6904 = vunpack.c.h.b16 %v6817
        %v6905 = vunpack.c.l.b16 %v6818
        %v6906 = vunpack.c.h.b16 %v6818
        %v6907 = vunpack.c.l.b16 %v6819
        %v6908 = vunpack.c.h.b16 %v6819
        %v6909 = vunpack.c.l.b16 %v6820
        %v6910 = vunpack.c.h.b16 %v6820
        %v6911 = vunpack.c.l.b16 %v6821
        %v6912 = vunpack.c.h.b16 %v6821
        %v6913 = vunpack.c.l.b16 %v6822
        %v6914 = vunpack.c.h.b16 %v6822
        %v6915 = vunpack.c.l.b16 %v6823
        %v6916 = vunpack.c.h.b16 %v6823
        %v6917 = vunpack.c.l.b16 %v6824
        %v6918 = vunpack.c.h.b16 %v6824
        %v6919 = vunpack.c.l.b16 %v6825
        %v6920 = vunpack.c.h.b16 %v6825
        %v6921 = vunpack.c.l.b16 %v6826
        %v6922 = vunpack.c.h.b16 %v6826
        %v6923 = vpack.c.b16 %v6863, %v6859
        %v6924 = vpack.c.b16 %v6864, %v6860
        %v6925 = vpack.c.b16 %v6865, %v6861
        %v6926 = vpack.c.b16 %v6866, %v6862
        %v6927 = vpack.c.b16 %v6871, %v6867
        %v6928 = vpack.c.b16 %v6872, %v6868
        %v6929 = vpack.c.b16 %v6873, %v6869
        %v6930 = vpack.c.b16 %v6874, %v6870
        %v6931 = vpack.c.b16 %v6879, %v6875
        %v6932 = vpack.c.b16 %v6880, %v6876
        %v6933 = vpack.c.b16 %v6881, %v6877
        %v6934 = vpack.c.b16 %v6882, %v6878
        %v6935 = vpack.c.b16 %v6887, %v6883
        %v6936 = vpack.c.b16 %v6888, %v6884
        %v6937 = vpack.c.b16 %v6889, %v6885
        %v6938 = vpack.c.b16 %v6890, %v6886
        %v6939 = vpack.c.b16 %v6895, %v6891
        %v6940 = vpack.c.b16 %v6896, %v6892
        %v6941 = vpack.c.b16 %v6897, %v6893
        %v6942 = vpack.c.b16 %v6898, %v6894
        %v6943 = vpack.c.b16 %v6903, %v6899
        %v6944 = vpack.c.b16 %v6904, %v6900
        %v6945 = vpack.c.b16 %v6905, %v6901
        %v6946 = vpack.c.b16 %v6906, %v6902
        %v6947 = vpack.c.b16 %v6911, %v6907
        %v6948 = vpack.c.b16 %v6912, %v6908
        %v6949 = vpack.c.b16 %v6913, %v6909
        %v6950 = vpack.c.b16 %v6914, %v6910
        %v6951 = vpack.c.b16 %v6919, %v6915
        %v6952 = vpack.c.b16 %v6920, %v6916
        %v6953 = vpack.c.b16 %v6921, %v6917
        %v6954 = vpack.c.b16 %v6922, %v6918
        %6987 = vmatprep.subr.bf16.mxu0 %v6952
        %6988 = vmatpush1.bf16.msra.mxu0 %v6951
        %6989 = vmatprep.subr.bf16.mxu0 %v6948
        %6990 = vmatpush1.bf16.msra.mxu0 %v6947
        %6991 = vmatprep.subr.bf16.mxu0 %v6944
        %6992 = vmatpush1.bf16.msra.mxu0 %v6943
        %6993 = vmatprep.subr.bf16.mxu0 %v6940
        %6994 = vmatpush1.bf16.msra.mxu0 %v6939
        %6995 = vmatprep.subr.bf16.mxu0 %v6936
        %6996 = vmatpush1.bf16.msra.mxu0 %v6935
        %6997 = vmatprep.subr.bf16.mxu0 %v6932
        %6998 = vmatpush1.bf16.msra.mxu0 %v6931
        %6999 = vmatprep.subr.bf16.mxu0 %v6928
        %7000 = vmatpush1.bf16.msra.mxu0 %v6927
        %7001 = vmatprep.subr.bf16.mxu0 %v6924
        %7002 = vmatpush1.bf16.msra.mxu0 %v6923
        %7003 = vmatprep.subr.bf16.mxu0 0
        %7004 = vmatpush2.bf16.msra.mxu0 0
        %7005 = vmatprep.subr.bf16.mxu0 0
        %7006 = vmatpush2.bf16.msra.mxu0 0
        %7007 = vmatprep.subr.bf16.mxu0 0
        %7008 = vmatpush2.bf16.msra.mxu0 0
        %7009 = vmatprep.subr.bf16.mxu0 0
        %7010 = vmatpush2.bf16.msra.mxu0 0
        %7011 = vmatprep.subr.bf16.mxu0 0
        %7012 = vmatpush2.bf16.msra.mxu0 0
        %7013 = vmatprep.subr.bf16.mxu0 0
        %7014 = vmatpush2.bf16.msra.mxu0 0
        %7015 = vmatprep.subr.bf16.mxu0 0
        %7016 = vmatpush2.bf16.msra.mxu0 0
        %7017 = vmatprep.subr.bf16.mxu0 0
        %7018 = vmatpush2.bf16.msra.mxu0 0
        %7019 = vmatprep.mubr.bf16.mxu0 0
        %7020 = vmatmul.mubr.bf16.gmra.mxu0 %v6794
        %v7021 = vpop.f32.mrf.mxu0
        %v7022 = vadd.f32 0.0, %v7021
        %v7023 = vpop.f32.mrf.mxu0
        %v7024 = vadd.f32 0.0, %v7023
        %v7025 = vpop.f32.mrf.mxu0
        %v7026 = vpop.f32.mrf.mxu0
        %7027 = vdwg.mxu0
        %7028 = vmatprep.subr.bf16.mxu0 %v6954
        %7029 = vmatpush1.bf16.msra.mxu0 %v6953
        %7030 = vmatprep.subr.bf16.mxu0 %v6950
        %7031 = vmatpush1.bf16.msra.mxu0 %v6949
        %7032 = vmatprep.subr.bf16.mxu0 %v6946
        %7033 = vmatpush1.bf16.msra.mxu0 %v6945
        %7034 = vmatprep.subr.bf16.mxu0 %v6942
        %7035 = vmatpush1.bf16.msra.mxu0 %v6941
        %7036 = vmatprep.subr.bf16.mxu0 %v6938
        %7037 = vmatpush1.bf16.msra.mxu0 %v6937
        %7038 = vmatprep.subr.bf16.mxu0 %v6934
        %7039 = vmatpush1.bf16.msra.mxu0 %v6933
        %7040 = vmatprep.subr.bf16.mxu0 %v6930
        %7041 = vmatpush1.bf16.msra.mxu0 %v6929
        %7042 = vmatprep.subr.bf16.mxu0 %v6926
        %7043 = vmatpush1.bf16.msra.mxu0 %v6925
        %7044 = vmatprep.subr.bf16.mxu0 0
        %7045 = vmatpush2.bf16.msra.mxu0 0
        %7046 = vmatprep.subr.bf16.mxu0 0
        %7047 = vmatpush2.bf16.msra.mxu0 0
        %7048 = vmatprep.subr.bf16.mxu0 0
        %7049 = vmatpush2.bf16.msra.mxu0 0
        %7050 = vmatprep.subr.bf16.mxu0 0
        %7051 = vmatpush2.bf16.msra.mxu0 0
        %7052 = vmatprep.subr.bf16.mxu0 0
        %7053 = vmatpush2.bf16.msra.mxu0 0
        %7054 = vmatprep.subr.bf16.mxu0 0
        %7055 = vmatpush2.bf16.msra.mxu0 0
        %7056 = vmatprep.subr.bf16.mxu0 0
        %7057 = vmatpush2.bf16.msra.mxu0 0
        %7058 = vmatprep.subr.bf16.mxu0 0
        %7059 = vmatpush2.bf16.msra.mxu0 0
        %7060 = vmatprep.mubr.bf16.mxu0 0
        %7061 = vmatmul.mubr.bf16.gmra.mxu0 %v6794
        %v7062 = vpop.f32.mrf.mxu0
        %v7063 = vadd.f32 0.0, %v7062
        %v7064 = vpop.f32.mrf.mxu0
        %v7065 = vadd.f32 0.0, %v7064
        %v7066 = vpop.f32.mrf.mxu0
        %v7067 = vpop.f32.mrf.mxu0
        %7068 = vdwg.mxu0
        %v7069 = vadd.f32 %v6790, %v7022
        %v7070 = vadd.f32 %v6791, %v7024
        %v7071 = vadd.f32 %v6792, %v7063
        %v7072 = vadd.f32 %v6793, %v7065
        %v7073 = vmul.f32 %v7069, 0.5
        %v7074 = vtanh.pop %v7073
        %v7075 = vmul.f32 %v7074, 0.5
        %v7076 = vadd.f32 %v7075, 0.5
        %v7077 = vmul.f32 %v7070, 0.5
        %v7078 = vtanh.pop %v7077
        %v7079 = vmul.f32 %v7078, 0.5
        %v7080 = vadd.f32 %v7079, 0.5
        %v7081 = vtanh.pop %v7071
        %v7082 = vmul.f32 %v7072, 0.5
        %v7083 = vtanh.pop %v7082
        %v7084 = vmul.f32 %v7083, 0.5
        %v7085 = vadd.f32 %v7084, 0.5
        %v7086 = vmul.f32 %v7080, %v6780
        %v7087 = vmul.f32 %v7076, %v7081
        %v7088 = vadd.f32 %v7086, %v7087
        %v7089 = vtanh.pop %v7088
        %v7090 = vmul.f32 %v7085, %v7089
        %7091 = vst [vmem:[%s1113] sm:$0xff] %v7090
        %v7092 = vld [vmem:[%s4107] sm:$0xff]
        %v7093 = vld [vmem:[%s4107 + $0x8] sm:$0xff]
        %v7094 = vunpack.c.l.bf16 %v7092
        %v7095 = vunpack.c.h.bf16 %v7092
        %v7096 = vunpack.c.l.bf16 %v7093
        %v7097 = vunpack.c.h.bf16 %v7093
        %v7098 = vadd.f32 %v7094, %v6466
        %v7099 = vadd.f32 %v7095, %v6470
        %v7100 = vadd.f32 %v7096, %v6474
        %v7101 = vadd.f32 %v7097, %v6478
        %v7102 = vpack.c.bf16 %v7090, %v7090
        %v7103 = vld [vmem:[#allocation10] sm:$0xff]
        %v7104 = vld [vmem:[#allocation10 + $0x8] sm:$0xff]
        %v7105 = vld [vmem:[#allocation10 + $0x10] sm:$0xff]
        %v7106 = vld [vmem:[#allocation10 + $0x18] sm:$0xff]
        %v7107 = vld [vmem:[#allocation10 + $0x20] sm:$0xff]
        %v7108 = vld [vmem:[#allocation10 + $0x28] sm:$0xff]
        %v7109 = vld [vmem:[#allocation10 + $0x30] sm:$0xff]
        %v7110 = vld [vmem:[#allocation10 + $0x38] sm:$0xff]
        %v7111 = vld [vmem:[#allocation10 + $0x40] sm:$0xff]
        %v7112 = vld [vmem:[#allocation10 + $0x48] sm:$0xff]
        %v7113 = vld [vmem:[#allocation10 + $0x50] sm:$0xff]
        %v7114 = vld [vmem:[#allocation10 + $0x58] sm:$0xff]
        %v7115 = vld [vmem:[#allocation10 + $0x60] sm:$0xff]
        %v7116 = vld [vmem:[#allocation10 + $0x68] sm:$0xff]
        %v7117 = vld [vmem:[#allocation10 + $0x70] sm:$0xff]
        %v7118 = vld [vmem:[#allocation10 + $0x78] sm:$0xff]
        %v7119 = vld [vmem:[#allocation10 + $0x80] sm:$0xff]
        %v7120 = vld [vmem:[#allocation10 + $0x88] sm:$0xff]
        %v7121 = vld [vmem:[#allocation10 + $0x90] sm:$0xff]
        %v7122 = vld [vmem:[#allocation10 + $0x98] sm:$0xff]
        %v7123 = vld [vmem:[#allocation10 + $0xa0] sm:$0xff]
        %v7124 = vld [vmem:[#allocation10 + $0xa8] sm:$0xff]
        %v7125 = vld [vmem:[#allocation10 + $0xb0] sm:$0xff]
        %v7126 = vld [vmem:[#allocation10 + $0xb8] sm:$0xff]
        %v7127 = vld [vmem:[#allocation10 + $0xc0] sm:$0xff]
        %v7128 = vld [vmem:[#allocation10 + $0xc8] sm:$0xff]
        %v7129 = vld [vmem:[#allocation10 + $0xd0] sm:$0xff]
        %v7130 = vld [vmem:[#allocation10 + $0xd8] sm:$0xff]
        %v7131 = vld [vmem:[#allocation10 + $0xe0] sm:$0xff]
        %v7132 = vld [vmem:[#allocation10 + $0xe8] sm:$0xff]
        %v7133 = vld [vmem:[#allocation10 + $0xf0] sm:$0xff]
        %v7134 = vld [vmem:[#allocation10 + $0xf8] sm:$0xff]
        %v7167 = vunpack.c.l.b16 %v7103
        %v7168 = vunpack.c.h.b16 %v7103
        %v7169 = vunpack.c.l.b16 %v7104
        %v7170 = vunpack.c.h.b16 %v7104
        %v7171 = vunpack.c.l.b16 %v7105
        %v7172 = vunpack.c.h.b16 %v7105
        %v7173 = vunpack.c.l.b16 %v7106
        %v7174 = vunpack.c.h.b16 %v7106
        %v7175 = vunpack.c.l.b16 %v7107
        %v7176 = vunpack.c.h.b16 %v7107
        %v7177 = vunpack.c.l.b16 %v7108
        %v7178 = vunpack.c.h.b16 %v7108
        %v7179 = vunpack.c.l.b16 %v7109
        %v7180 = vunpack.c.h.b16 %v7109
        %v7181 = vunpack.c.l.b16 %v7110
        %v7182 = vunpack.c.h.b16 %v7110
        %v7183 = vunpack.c.l.b16 %v7111
        %v7184 = vunpack.c.h.b16 %v7111
        %v7185 = vunpack.c.l.b16 %v7112
        %v7186 = vunpack.c.h.b16 %v7112
        %v7187 = vunpack.c.l.b16 %v7113
        %v7188 = vunpack.c.h.b16 %v7113
        %v7189 = vunpack.c.l.b16 %v7114
        %v7190 = vunpack.c.h.b16 %v7114
        %v7191 = vunpack.c.l.b16 %v7115
        %v7192 = vunpack.c.h.b16 %v7115
        %v7193 = vunpack.c.l.b16 %v7116
        %v7194 = vunpack.c.h.b16 %v7116
        %v7195 = vunpack.c.l.b16 %v7117
        %v7196 = vunpack.c.h.b16 %v7117
        %v7197 = vunpack.c.l.b16 %v7118
        %v7198 = vunpack.c.h.b16 %v7118
        %v7199 = vunpack.c.l.b16 %v7119
        %v7200 = vunpack.c.h.b16 %v7119
        %v7201 = vunpack.c.l.b16 %v7120
        %v7202 = vunpack.c.h.b16 %v7120
        %v7203 = vunpack.c.l.b16 %v7121
        %v7204 = vunpack.c.h.b16 %v7121
        %v7205 = vunpack.c.l.b16 %v7122
        %v7206 = vunpack.c.h.b16 %v7122
        %v7207 = vunpack.c.l.b16 %v7123
        %v7208 = vunpack.c.h.b16 %v7123
        %v7209 = vunpack.c.l.b16 %v7124
        %v7210 = vunpack.c.h.b16 %v7124
        %v7211 = vunpack.c.l.b16 %v7125
        %v7212 = vunpack.c.h.b16 %v7125
        %v7213 = vunpack.c.l.b16 %v7126
        %v7214 = vunpack.c.h.b16 %v7126
        %v7215 = vunpack.c.l.b16 %v7127
        %v7216 = vunpack.c.h.b16 %v7127
        %v7217 = vunpack.c.l.b16 %v7128
        %v7218 = vunpack.c.h.b16 %v7128
        %v7219 = vunpack.c.l.b16 %v7129
        %v7220 = vunpack.c.h.b16 %v7129
        %v7221 = vunpack.c.l.b16 %v7130
        %v7222 = vunpack.c.h.b16 %v7130
        %v7223 = vunpack.c.l.b16 %v7131
        %v7224 = vunpack.c.h.b16 %v7131
        %v7225 = vunpack.c.l.b16 %v7132
        %v7226 = vunpack.c.h.b16 %v7132
        %v7227 = vunpack.c.l.b16 %v7133
        %v7228 = vunpack.c.h.b16 %v7133
        %v7229 = vunpack.c.l.b16 %v7134
        %v7230 = vunpack.c.h.b16 %v7134
        %v7231 = vpack.c.b16 %v7171, %v7167
        %v7232 = vpack.c.b16 %v7172, %v7168
        %v7233 = vpack.c.b16 %v7173, %v7169
        %v7234 = vpack.c.b16 %v7174, %v7170
        %v7235 = vpack.c.b16 %v7179, %v7175
        %v7236 = vpack.c.b16 %v7180, %v7176
        %v7237 = vpack.c.b16 %v7181, %v7177
        %v7238 = vpack.c.b16 %v7182, %v7178
        %v7239 = vpack.c.b16 %v7187, %v7183
        %v7240 = vpack.c.b16 %v7188, %v7184
        %v7241 = vpack.c.b16 %v7189, %v7185
        %v7242 = vpack.c.b16 %v7190, %v7186
        %v7243 = vpack.c.b16 %v7195, %v7191
        %v7244 = vpack.c.b16 %v7196, %v7192
        %v7245 = vpack.c.b16 %v7197, %v7193
        %v7246 = vpack.c.b16 %v7198, %v7194
        %v7247 = vpack.c.b16 %v7203, %v7199
        %v7248 = vpack.c.b16 %v7204, %v7200
        %v7249 = vpack.c.b16 %v7205, %v7201
        %v7250 = vpack.c.b16 %v7206, %v7202
        %v7251 = vpack.c.b16 %v7211, %v7207
        %v7252 = vpack.c.b16 %v7212, %v7208
        %v7253 = vpack.c.b16 %v7213, %v7209
        %v7254 = vpack.c.b16 %v7214, %v7210
        %v7255 = vpack.c.b16 %v7219, %v7215
        %v7256 = vpack.c.b16 %v7220, %v7216
        %v7257 = vpack.c.b16 %v7221, %v7217
        %v7258 = vpack.c.b16 %v7222, %v7218
        %v7259 = vpack.c.b16 %v7227, %v7223
        %v7260 = vpack.c.b16 %v7228, %v7224
        %v7261 = vpack.c.b16 %v7229, %v7225
        %v7262 = vpack.c.b16 %v7230, %v7226
        %7295 = vmatprep.subr.bf16.mxu0 %v7260
        %7296 = vmatpush1.bf16.msra.mxu0 %v7259
        %7297 = vmatprep.subr.bf16.mxu0 %v7256
        %7298 = vmatpush1.bf16.msra.mxu0 %v7255
        %7299 = vmatprep.subr.bf16.mxu0 %v7252
        %7300 = vmatpush1.bf16.msra.mxu0 %v7251
        %7301 = vmatprep.subr.bf16.mxu0 %v7248
        %7302 = vmatpush1.bf16.msra.mxu0 %v7247
        %7303 = vmatprep.subr.bf16.mxu0 %v7244
        %7304 = vmatpush1.bf16.msra.mxu0 %v7243
        %7305 = vmatprep.subr.bf16.mxu0 %v7240
        %7306 = vmatpush1.bf16.msra.mxu0 %v7239
        %7307 = vmatprep.subr.bf16.mxu0 %v7236
        %7308 = vmatpush1.bf16.msra.mxu0 %v7235
        %7309 = vmatprep.subr.bf16.mxu0 %v7232
        %7310 = vmatpush1.bf16.msra.mxu0 %v7231
        %7311 = vmatprep.subr.bf16.mxu0 0
        %7312 = vmatpush2.bf16.msra.mxu0 0
        %7313 = vmatprep.subr.bf16.mxu0 0
        %7314 = vmatpush2.bf16.msra.mxu0 0
        %7315 = vmatprep.subr.bf16.mxu0 0
        %7316 = vmatpush2.bf16.msra.mxu0 0
        %7317 = vmatprep.subr.bf16.mxu0 0
        %7318 = vmatpush2.bf16.msra.mxu0 0
        %7319 = vmatprep.subr.bf16.mxu0 0
        %7320 = vmatpush2.bf16.msra.mxu0 0
        %7321 = vmatprep.subr.bf16.mxu0 0
        %7322 = vmatpush2.bf16.msra.mxu0 0
        %7323 = vmatprep.subr.bf16.mxu0 0
        %7324 = vmatpush2.bf16.msra.mxu0 0
        %7325 = vmatprep.subr.bf16.mxu0 0
        %7326 = vmatpush2.bf16.msra.mxu0 0
        %7327 = vmatprep.mubr.bf16.mxu0 0
        %7328 = vmatmul.mubr.bf16.gmra.mxu0 %v7102
        %v7329 = vpop.f32.mrf.mxu0
        %v7330 = vadd.f32 0.0, %v7329
        %v7331 = vpop.f32.mrf.mxu0
        %v7332 = vadd.f32 0.0, %v7331
        %v7333 = vpop.f32.mrf.mxu0
        %v7334 = vpop.f32.mrf.mxu0
        %7335 = vdwg.mxu0
        %7336 = vmatprep.subr.bf16.mxu0 %v7262
        %7337 = vmatpush1.bf16.msra.mxu0 %v7261
        %7338 = vmatprep.subr.bf16.mxu0 %v7258
        %7339 = vmatpush1.bf16.msra.mxu0 %v7257
        %7340 = vmatprep.subr.bf16.mxu0 %v7254
        %7341 = vmatpush1.bf16.msra.mxu0 %v7253
        %7342 = vmatprep.subr.bf16.mxu0 %v7250
        %7343 = vmatpush1.bf16.msra.mxu0 %v7249
        %7344 = vmatprep.subr.bf16.mxu0 %v7246
        %7345 = vmatpush1.bf16.msra.mxu0 %v7245
        %7346 = vmatprep.subr.bf16.mxu0 %v7242
        %7347 = vmatpush1.bf16.msra.mxu0 %v7241
        %7348 = vmatprep.subr.bf16.mxu0 %v7238
        %7349 = vmatpush1.bf16.msra.mxu0 %v7237
        %7350 = vmatprep.subr.bf16.mxu0 %v7234
        %7351 = vmatpush1.bf16.msra.mxu0 %v7233
        %7352 = vmatprep.subr.bf16.mxu0 0
        %7353 = vmatpush2.bf16.msra.mxu0 0
        %7354 = vmatprep.subr.bf16.mxu0 0
        %7355 = vmatpush2.bf16.msra.mxu0 0
        %7356 = vmatprep.subr.bf16.mxu0 0
        %7357 = vmatpush2.bf16.msra.mxu0 0
        %7358 = vmatprep.subr.bf16.mxu0 0
        %7359 = vmatpush2.bf16.msra.mxu0 0
        %7360 = vmatprep.subr.bf16.mxu0 0
        %7361 = vmatpush2.bf16.msra.mxu0 0
        %7362 = vmatprep.subr.bf16.mxu0 0
        %7363 = vmatpush2.bf16.msra.mxu0 0
        %7364 = vmatprep.subr.bf16.mxu0 0
        %7365 = vmatpush2.bf16.msra.mxu0 0
        %7366 = vmatprep.subr.bf16.mxu0 0
        %7367 = vmatpush2.bf16.msra.mxu0 0
        %7368 = vmatprep.mubr.bf16.mxu0 0
        %7369 = vmatmul.mubr.bf16.gmra.mxu0 %v7102
        %v7370 = vpop.f32.mrf.mxu0
        %v7371 = vadd.f32 0.0, %v7370
        %v7372 = vpop.f32.mrf.mxu0
        %v7373 = vadd.f32 0.0, %v7372
        %v7374 = vpop.f32.mrf.mxu0
        %v7375 = vpop.f32.mrf.mxu0
        %7376 = vdwg.mxu0
        %v7377 = vadd.f32 %v7098, %v7330
        %v7378 = vadd.f32 %v7099, %v7332
        %v7379 = vadd.f32 %v7100, %v7371
        %v7380 = vadd.f32 %v7101, %v7373
        %v7381 = vmul.f32 %v7377, 0.5
        %v7382 = vtanh.pop %v7381
        %v7383 = vmul.f32 %v7382, 0.5
        %v7384 = vadd.f32 %v7383, 0.5
        %v7385 = vmul.f32 %v7378, 0.5
        %v7386 = vtanh.pop %v7385
        %v7387 = vmul.f32 %v7386, 0.5
        %v7388 = vadd.f32 %v7387, 0.5
        %v7389 = vtanh.pop %v7379
        %v7390 = vmul.f32 %v7380, 0.5
        %v7391 = vtanh.pop %v7390
        %v7392 = vmul.f32 %v7391, 0.5
        %v7393 = vadd.f32 %v7392, 0.5
        %v7394 = vmul.f32 %v7388, %v7088
        %v7395 = vmul.f32 %v7384, %v7389
        %v7396 = vadd.f32 %v7394, %v7395
        %v7397 = vtanh.pop %v7396
        %v7398 = vmul.f32 %v7393, %v7397
        %7399 = vst [vmem:[%s1423] sm:$0xff] %v7398
        %v7400 = vld [vmem:[%s4416] sm:$0xff]
        %v7401 = vld [vmem:[%s4416 + $0x8] sm:$0xff]
        %v7402 = vunpack.c.l.bf16 %v7400
        %v7403 = vunpack.c.h.bf16 %v7400
        %v7404 = vunpack.c.l.bf16 %v7401
        %v7405 = vunpack.c.h.bf16 %v7401
        %v7406 = vadd.f32 %v7402, %v6466
        %v7407 = vadd.f32 %v7403, %v6470
        %v7408 = vadd.f32 %v7404, %v6474
        %v7409 = vadd.f32 %v7405, %v6478
        %v7410 = vpack.c.bf16 %v7398, %v7398
        %v7411 = vld [vmem:[#allocation10] sm:$0xff]
        %v7412 = vld [vmem:[#allocation10 + $0x8] sm:$0xff]
        %v7413 = vld [vmem:[#allocation10 + $0x10] sm:$0xff]
        %v7414 = vld [vmem:[#allocation10 + $0x18] sm:$0xff]
        %v7415 = vld [vmem:[#allocation10 + $0x20] sm:$0xff]
        %v7416 = vld [vmem:[#allocation10 + $0x28] sm:$0xff]
        %v7417 = vld [vmem:[#allocation10 + $0x30] sm:$0xff]
        %v7418 = vld [vmem:[#allocation10 + $0x38] sm:$0xff]
        %v7419 = vld [vmem:[#allocation10 + $0x40] sm:$0xff]
        %v7420 = vld [vmem:[#allocation10 + $0x48] sm:$0xff]
        %v7421 = vld [vmem:[#allocation10 + $0x50] sm:$0xff]
        %v7422 = vld [vmem:[#allocation10 + $0x58] sm:$0xff]
        %v7423 = vld [vmem:[#allocation10 + $0x60] sm:$0xff]
        %v7424 = vld [vmem:[#allocation10 + $0x68] sm:$0xff]
        %v7425 = vld [vmem:[#allocation10 + $0x70] sm:$0xff]
        %v7426 = vld [vmem:[#allocation10 + $0x78] sm:$0xff]
        %v7427 = vld [vmem:[#allocation10 + $0x80] sm:$0xff]
        %v7428 = vld [vmem:[#allocation10 + $0x88] sm:$0xff]
        %v7429 = vld [vmem:[#allocation10 + $0x90] sm:$0xff]
        %v7430 = vld [vmem:[#allocation10 + $0x98] sm:$0xff]
        %v7431 = vld [vmem:[#allocation10 + $0xa0] sm:$0xff]
        %v7432 = vld [vmem:[#allocation10 + $0xa8] sm:$0xff]
        %v7433 = vld [vmem:[#allocation10 + $0xb0] sm:$0xff]
        %v7434 = vld [vmem:[#allocation10 + $0xb8] sm:$0xff]
        %v7435 = vld [vmem:[#allocation10 + $0xc0] sm:$0xff]
        %v7436 = vld [vmem:[#allocation10 + $0xc8] sm:$0xff]
        %v7437 = vld [vmem:[#allocation10 + $0xd0] sm:$0xff]
        %v7438 = vld [vmem:[#allocation10 + $0xd8] sm:$0xff]
        %v7439 = vld [vmem:[#allocation10 + $0xe0] sm:$0xff]
        %v7440 = vld [vmem:[#allocation10 + $0xe8] sm:$0xff]
        %v7441 = vld [vmem:[#allocation10 + $0xf0] sm:$0xff]
        %v7442 = vld [vmem:[#allocation10 + $0xf8] sm:$0xff]
        %v7475 = vunpack.c.l.b16 %v7411
        %v7476 = vunpack.c.h.b16 %v7411
        %v7477 = vunpack.c.l.b16 %v7412
        %v7478 = vunpack.c.h.b16 %v7412
        %v7479 = vunpack.c.l.b16 %v7413
        %v7480 = vunpack.c.h.b16 %v7413
        %v7481 = vunpack.c.l.b16 %v7414
        %v7482 = vunpack.c.h.b16 %v7414
        %v7483 = vunpack.c.l.b16 %v7415
        %v7484 = vunpack.c.h.b16 %v7415
        %v7485 = vunpack.c.l.b16 %v7416
        %v7486 = vunpack.c.h.b16 %v7416
        %v7487 = vunpack.c.l.b16 %v7417
        %v7488 = vunpack.c.h.b16 %v7417
        %v7489 = vunpack.c.l.b16 %v7418
        %v7490 = vunpack.c.h.b16 %v7418
        %v7491 = vunpack.c.l.b16 %v7419
        %v7492 = vunpack.c.h.b16 %v7419
        %v7493 = vunpack.c.l.b16 %v7420
        %v7494 = vunpack.c.h.b16 %v7420
        %v7495 = vunpack.c.l.b16 %v7421
        %v7496 = vunpack.c.h.b16 %v7421
        %v7497 = vunpack.c.l.b16 %v7422
        %v7498 = vunpack.c.h.b16 %v7422
        %v7499 = vunpack.c.l.b16 %v7423
        %v7500 = vunpack.c.h.b16 %v7423
        %v7501 = vunpack.c.l.b16 %v7424
        %v7502 = vunpack.c.h.b16 %v7424
        %v7503 = vunpack.c.l.b16 %v7425
        %v7504 = vunpack.c.h.b16 %v7425
        %v7505 = vunpack.c.l.b16 %v7426
        %v7506 = vunpack.c.h.b16 %v7426
        %v7507 = vunpack.c.l.b16 %v7427
        %v7508 = vunpack.c.h.b16 %v7427
        %v7509 = vunpack.c.l.b16 %v7428
        %v7510 = vunpack.c.h.b16 %v7428
        %v7511 = vunpack.c.l.b16 %v7429
        %v7512 = vunpack.c.h.b16 %v7429
        %v7513 = vunpack.c.l.b16 %v7430
        %v7514 = vunpack.c.h.b16 %v7430
        %v7515 = vunpack.c.l.b16 %v7431
        %v7516 = vunpack.c.h.b16 %v7431
        %v7517 = vunpack.c.l.b16 %v7432
        %v7518 = vunpack.c.h.b16 %v7432
        %v7519 = vunpack.c.l.b16 %v7433
        %v7520 = vunpack.c.h.b16 %v7433
        %v7521 = vunpack.c.l.b16 %v7434
        %v7522 = vunpack.c.h.b16 %v7434
        %v7523 = vunpack.c.l.b16 %v7435
        %v7524 = vunpack.c.h.b16 %v7435
        %v7525 = vunpack.c.l.b16 %v7436
        %v7526 = vunpack.c.h.b16 %v7436
        %v7527 = vunpack.c.l.b16 %v7437
        %v7528 = vunpack.c.h.b16 %v7437
        %v7529 = vunpack.c.l.b16 %v7438
        %v7530 = vunpack.c.h.b16 %v7438
        %v7531 = vunpack.c.l.b16 %v7439
        %v7532 = vunpack.c.h.b16 %v7439
        %v7533 = vunpack.c.l.b16 %v7440
        %v7534 = vunpack.c.h.b16 %v7440
        %v7535 = vunpack.c.l.b16 %v7441
        %v7536 = vunpack.c.h.b16 %v7441
        %v7537 = vunpack.c.l.b16 %v7442
        %v7538 = vunpack.c.h.b16 %v7442
        %v7539 = vpack.c.b16 %v7479, %v7475
        %v7540 = vpack.c.b16 %v7480, %v7476
        %v7541 = vpack.c.b16 %v7481, %v7477
        %v7542 = vpack.c.b16 %v7482, %v7478
        %v7543 = vpack.c.b16 %v7487, %v7483
        %v7544 = vpack.c.b16 %v7488, %v7484
        %v7545 = vpack.c.b16 %v7489, %v7485
        %v7546 = vpack.c.b16 %v7490, %v7486
        %v7547 = vpack.c.b16 %v7495, %v7491
        %v7548 = vpack.c.b16 %v7496, %v7492
        %v7549 = vpack.c.b16 %v7497, %v7493
        %v7550 = vpack.c.b16 %v7498, %v7494
        %v7551 = vpack.c.b16 %v7503, %v7499
        %v7552 = vpack.c.b16 %v7504, %v7500
        %v7553 = vpack.c.b16 %v7505, %v7501
        %v7554 = vpack.c.b16 %v7506, %v7502
        %v7555 = vpack.c.b16 %v7511, %v7507
        %v7556 = vpack.c.b16 %v7512, %v7508
        %v7557 = vpack.c.b16 %v7513, %v7509
        %v7558 = vpack.c.b16 %v7514, %v7510
        %v7559 = vpack.c.b16 %v7519, %v7515
        %v7560 = vpack.c.b16 %v7520, %v7516
        %v7561 = vpack.c.b16 %v7521, %v7517
        %v7562 = vpack.c.b16 %v7522, %v7518
        %v7563 = vpack.c.b16 %v7527, %v7523
        %v7564 = vpack.c.b16 %v7528, %v7524
        %v7565 = vpack.c.b16 %v7529, %v7525
        %v7566 = vpack.c.b16 %v7530, %v7526
        %v7567 = vpack.c.b16 %v7535, %v7531
        %v7568 = vpack.c.b16 %v7536, %v7532
        %v7569 = vpack.c.b16 %v7537, %v7533
        %v7570 = vpack.c.b16 %v7538, %v7534
        %7603 = vmatprep.subr.bf16.mxu0 %v7568
        %7604 = vmatpush1.bf16.msra.mxu0 %v7567
        %7605 = vmatprep.subr.bf16.mxu0 %v7564
        %7606 = vmatpush1.bf16.msra.mxu0 %v7563
        %7607 = vmatprep.subr.bf16.mxu0 %v7560
        %7608 = vmatpush1.bf16.msra.mxu0 %v7559
        %7609 = vmatprep.subr.bf16.mxu0 %v7556
        %7610 = vmatpush1.bf16.msra.mxu0 %v7555
        %7611 = vmatprep.subr.bf16.mxu0 %v7552
        %7612 = vmatpush1.bf16.msra.mxu0 %v7551
        %7613 = vmatprep.subr.bf16.mxu0 %v7548
        %7614 = vmatpush1.bf16.msra.mxu0 %v7547
        %7615 = vmatprep.subr.bf16.mxu0 %v7544
        %7616 = vmatpush1.bf16.msra.mxu0 %v7543
        %7617 = vmatprep.subr.bf16.mxu0 %v7540
        %7618 = vmatpush1.bf16.msra.mxu0 %v7539
        %7619 = vmatprep.subr.bf16.mxu0 0
        %7620 = vmatpush2.bf16.msra.mxu0 0
        %7621 = vmatprep.subr.bf16.mxu0 0
        %7622 = vmatpush2.bf16.msra.mxu0 0
        %7623 = vmatprep.subr.bf16.mxu0 0
        %7624 = vmatpush2.bf16.msra.mxu0 0
        %7625 = vmatprep.subr.bf16.mxu0 0
        %7626 = vmatpush2.bf16.msra.mxu0 0
        %7627 = vmatprep.subr.bf16.mxu0 0
        %7628 = vmatpush2.bf16.msra.mxu0 0
        %7629 = vmatprep.subr.bf16.mxu0 0
        %7630 = vmatpush2.bf16.msra.mxu0 0
        %7631 = vmatprep.subr.bf16.mxu0 0
        %7632 = vmatpush2.bf16.msra.mxu0 0
        %7633 = vmatprep.subr.bf16.mxu0 0
        %7634 = vmatpush2.bf16.msra.mxu0 0
        %7635 = vmatprep.mubr.bf16.mxu0 0
        %7636 = vmatmul.mubr.bf16.gmra.mxu0 %v7410
        %v7637 = vpop.f32.mrf.mxu0
        %v7638 = vadd.f32 0.0, %v7637
        %v7639 = vpop.f32.mrf.mxu0
        %v7640 = vadd.f32 0.0, %v7639
        %v7641 = vpop.f32.mrf.mxu0
        %v7642 = vpop.f32.mrf.mxu0
        %7643 = vdwg.mxu0
        %7644 = vmatprep.subr.bf16.mxu0 %v7570
        %7645 = vmatpush1.bf16.msra.mxu0 %v7569
        %7646 = vmatprep.subr.bf16.mxu0 %v7566
        %7647 = vmatpush1.bf16.msra.mxu0 %v7565
        %7648 = vmatprep.subr.bf16.mxu0 %v7562
        %7649 = vmatpush1.bf16.msra.mxu0 %v7561
        %7650 = vmatprep.subr.bf16.mxu0 %v7558
        %7651 = vmatpush1.bf16.msra.mxu0 %v7557
        %7652 = vmatprep.subr.bf16.mxu0 %v7554
        %7653 = vmatpush1.bf16.msra.mxu0 %v7553
        %7654 = vmatprep.subr.bf16.mxu0 %v7550
        %7655 = vmatpush1.bf16.msra.mxu0 %v7549
        %7656 = vmatprep.subr.bf16.mxu0 %v7546
        %7657 = vmatpush1.bf16.msra.mxu0 %v7545
        %7658 = vmatprep.subr.bf16.mxu0 %v7542
        %7659 = vmatpush1.bf16.msra.mxu0 %v7541
        %7660 = vmatprep.subr.bf16.mxu0 0
        %7661 = vmatpush2.bf16.msra.mxu0 0
        %7662 = vmatprep.subr.bf16.mxu0 0
        %7663 = vmatpush2.bf16.msra.mxu0 0
        %7664 = vmatprep.subr.bf16.mxu0 0
        %7665 = vmatpush2.bf16.msra.mxu0 0
        %7666 = vmatprep.subr.bf16.mxu0 0
        %7667 = vmatpush2.bf16.msra.mxu0 0
        %7668 = vmatprep.subr.bf16.mxu0 0
        %7669 = vmatpush2.bf16.msra.mxu0 0
        %7670 = vmatprep.subr.bf16.mxu0 0
        %7671 = vmatpush2.bf16.msra.mxu0 0
        %7672 = vmatprep.subr.bf16.mxu0 0
        %7673 = vmatpush2.bf16.msra.mxu0 0
        %7674 = vmatprep.subr.bf16.mxu0 0
        %7675 = vmatpush2.bf16.msra.mxu0 0
        %7676 = vmatprep.mubr.bf16.mxu0 0
        %7677 = vmatmul.mubr.bf16.gmra.mxu0 %v7410
        %v7678 = vpop.f32.mrf.mxu0
        %v7679 = vadd.f32 0.0, %v7678
        %v7680 = vpop.f32.mrf.mxu0
        %v7681 = vadd.f32 0.0, %v7680
        %v7682 = vpop.f32.mrf.mxu0
        %v7683 = vpop.f32.mrf.mxu0
        %7684 = vdwg.mxu0
        %v7685 = vadd.f32 %v7406, %v7638
        %v7686 = vadd.f32 %v7407, %v7640
        %v7687 = vadd.f32 %v7408, %v7679
        %v7688 = vadd.f32 %v7409, %v7681
        %v7689 = vmul.f32 %v7685, 0.5
        %v7690 = vtanh.pop %v7689
        %v7691 = vmul.f32 %v7690, 0.5
        %v7692 = vadd.f32 %v7691, 0.5
        %v7693 = vmul.f32 %v7686, 0.5
        %v7694 = vtanh.pop %v7693
        %v7695 = vmul.f32 %v7694, 0.5
        %v7696 = vadd.f32 %v7695, 0.5
        %v7697 = vtanh.pop %v7687
        %v7698 = vmul.f32 %v7688, 0.5
        %v7699 = vtanh.pop %v7698
        %v7700 = vmul.f32 %v7699, 0.5
        %v7701 = vadd.f32 %v7700, 0.5
        %v7702 = vmul.f32 %v7696, %v7396
        %v7703 = vmul.f32 %v7692, %v7697
        %v7704 = vadd.f32 %v7702, %v7703
        %v7705 = vtanh.pop %v7704
        %v7706 = vmul.f32 %v7701, %v7705
        %7707 = vst [vmem:[%s1733] sm:$0xff] %v7706
        %v7708 = vld [vmem:[%s4725] sm:$0xff]
        %v7709 = vld [vmem:[%s4725 + $0x8] sm:$0xff]
        %v7710 = vunpack.c.l.bf16 %v7708
        %v7711 = vunpack.c.h.bf16 %v7708
        %v7712 = vunpack.c.l.bf16 %v7709
        %v7713 = vunpack.c.h.bf16 %v7709
        %v7714 = vadd.f32 %v7710, %v6466
        %v7715 = vadd.f32 %v7711, %v6470
        %v7716 = vadd.f32 %v7712, %v6474
        %v7717 = vadd.f32 %v7713, %v6478
        %v7718 = vpack.c.bf16 %v7706, %v7706
        %v7719 = vld [vmem:[#allocation10] sm:$0xff]
        %v7720 = vld [vmem:[#allocation10 + $0x8] sm:$0xff]
        %v7721 = vld [vmem:[#allocation10 + $0x10] sm:$0xff]
        %v7722 = vld [vmem:[#allocation10 + $0x18] sm:$0xff]
        %v7723 = vld [vmem:[#allocation10 + $0x20] sm:$0xff]
        %v7724 = vld [vmem:[#allocation10 + $0x28] sm:$0xff]
        %v7725 = vld [vmem:[#allocation10 + $0x30] sm:$0xff]
        %v7726 = vld [vmem:[#allocation10 + $0x38] sm:$0xff]
        %v7727 = vld [vmem:[#allocation10 + $0x40] sm:$0xff]
        %v7728 = vld [vmem:[#allocation10 + $0x48] sm:$0xff]
        %v7729 = vld [vmem:[#allocation10 + $0x50] sm:$0xff]
        %v7730 = vld [vmem:[#allocation10 + $0x58] sm:$0xff]
        %v7731 = vld [vmem:[#allocation10 + $0x60] sm:$0xff]
        %v7732 = vld [vmem:[#allocation10 + $0x68] sm:$0xff]
        %v7733 = vld [vmem:[#allocation10 + $0x70] sm:$0xff]
        %v7734 = vld [vmem:[#allocation10 + $0x78] sm:$0xff]
        %v7735 = vld [vmem:[#allocation10 + $0x80] sm:$0xff]
        %v7736 = vld [vmem:[#allocation10 + $0x88] sm:$0xff]
        %v7737 = vld [vmem:[#allocation10 + $0x90] sm:$0xff]
        %v7738 = vld [vmem:[#allocation10 + $0x98] sm:$0xff]
        %v7739 = vld [vmem:[#allocation10 + $0xa0] sm:$0xff]
        %v7740 = vld [vmem:[#allocation10 + $0xa8] sm:$0xff]
        %v7741 = vld [vmem:[#allocation10 + $0xb0] sm:$0xff]
        %v7742 = vld [vmem:[#allocation10 + $0xb8] sm:$0xff]
        %v7743 = vld [vmem:[#allocation10 + $0xc0] sm:$0xff]
        %v7744 = vld [vmem:[#allocation10 + $0xc8] sm:$0xff]
        %v7745 = vld [vmem:[#allocation10 + $0xd0] sm:$0xff]
        %v7746 = vld [vmem:[#allocation10 + $0xd8] sm:$0xff]
        %v7747 = vld [vmem:[#allocation10 + $0xe0] sm:$0xff]
        %v7748 = vld [vmem:[#allocation10 + $0xe8] sm:$0xff]
        %v7749 = vld [vmem:[#allocation10 + $0xf0] sm:$0xff]
        %v7750 = vld [vmem:[#allocation10 + $0xf8] sm:$0xff]
        %v7783 = vunpack.c.l.b16 %v7719
        %v7784 = vunpack.c.h.b16 %v7719
        %v7785 = vunpack.c.l.b16 %v7720
        %v7786 = vunpack.c.h.b16 %v7720
        %v7787 = vunpack.c.l.b16 %v7721
        %v7788 = vunpack.c.h.b16 %v7721
        %v7789 = vunpack.c.l.b16 %v7722
        %v7790 = vunpack.c.h.b16 %v7722
        %v7791 = vunpack.c.l.b16 %v7723
        %v7792 = vunpack.c.h.b16 %v7723
        %v7793 = vunpack.c.l.b16 %v7724
        %v7794 = vunpack.c.h.b16 %v7724
        %v7795 = vunpack.c.l.b16 %v7725
        %v7796 = vunpack.c.h.b16 %v7725
        %v7797 = vunpack.c.l.b16 %v7726
        %v7798 = vunpack.c.h.b16 %v7726
        %v7799 = vunpack.c.l.b16 %v7727
        %v7800 = vunpack.c.h.b16 %v7727
        %v7801 = vunpack.c.l.b16 %v7728
        %v7802 = vunpack.c.h.b16 %v7728
        %v7803 = vunpack.c.l.b16 %v7729
        %v7804 = vunpack.c.h.b16 %v7729
        %v7805 = vunpack.c.l.b16 %v7730
        %v7806 = vunpack.c.h.b16 %v7730
        %v7807 = vunpack.c.l.b16 %v7731
        %v7808 = vunpack.c.h.b16 %v7731
        %v7809 = vunpack.c.l.b16 %v7732
        %v7810 = vunpack.c.h.b16 %v7732
        %v7811 = vunpack.c.l.b16 %v7733
        %v7812 = vunpack.c.h.b16 %v7733
        %v7813 = vunpack.c.l.b16 %v7734
        %v7814 = vunpack.c.h.b16 %v7734
        %v7815 = vunpack.c.l.b16 %v7735
        %v7816 = vunpack.c.h.b16 %v7735
        %v7817 = vunpack.c.l.b16 %v7736
        %v7818 = vunpack.c.h.b16 %v7736
        %v7819 = vunpack.c.l.b16 %v7737
        %v7820 = vunpack.c.h.b16 %v7737
        %v7821 = vunpack.c.l.b16 %v7738
        %v7822 = vunpack.c.h.b16 %v7738
        %v7823 = vunpack.c.l.b16 %v7739
        %v7824 = vunpack.c.h.b16 %v7739
        %v7825 = vunpack.c.l.b16 %v7740
        %v7826 = vunpack.c.h.b16 %v7740
        %v7827 = vunpack.c.l.b16 %v7741
        %v7828 = vunpack.c.h.b16 %v7741
        %v7829 = vunpack.c.l.b16 %v7742
        %v7830 = vunpack.c.h.b16 %v7742
        %v7831 = vunpack.c.l.b16 %v7743
        %v7832 = vunpack.c.h.b16 %v7743
        %v7833 = vunpack.c.l.b16 %v7744
        %v7834 = vunpack.c.h.b16 %v7744
        %v7835 = vunpack.c.l.b16 %v7745
        %v7836 = vunpack.c.h.b16 %v7745
        %v7837 = vunpack.c.l.b16 %v7746
        %v7838 = vunpack.c.h.b16 %v7746
        %v7839 = vunpack.c.l.b16 %v7747
        %v7840 = vunpack.c.h.b16 %v7747
        %v7841 = vunpack.c.l.b16 %v7748
        %v7842 = vunpack.c.h.b16 %v7748
        %v7843 = vunpack.c.l.b16 %v7749
        %v7844 = vunpack.c.h.b16 %v7749
        %v7845 = vunpack.c.l.b16 %v7750
        %v7846 = vunpack.c.h.b16 %v7750
        %v7847 = vpack.c.b16 %v7787, %v7783
        %v7848 = vpack.c.b16 %v7788, %v7784
        %v7849 = vpack.c.b16 %v7789, %v7785
        %v7850 = vpack.c.b16 %v7790, %v7786
        %v7851 = vpack.c.b16 %v7795, %v7791
        %v7852 = vpack.c.b16 %v7796, %v7792
        %v7853 = vpack.c.b16 %v7797, %v7793
        %v7854 = vpack.c.b16 %v7798, %v7794
        %v7855 = vpack.c.b16 %v7803, %v7799
        %v7856 = vpack.c.b16 %v7804, %v7800
        %v7857 = vpack.c.b16 %v7805, %v7801
        %v7858 = vpack.c.b16 %v7806, %v7802
        %v7859 = vpack.c.b16 %v7811, %v7807
        %v7860 = vpack.c.b16 %v7812, %v7808
        %v7861 = vpack.c.b16 %v7813, %v7809
        %v7862 = vpack.c.b16 %v7814, %v7810
        %v7863 = vpack.c.b16 %v7819, %v7815
        %v7864 = vpack.c.b16 %v7820, %v7816
        %v7865 = vpack.c.b16 %v7821, %v7817
        %v7866 = vpack.c.b16 %v7822, %v7818
        %v7867 = vpack.c.b16 %v7827, %v7823
        %v7868 = vpack.c.b16 %v7828, %v7824
        %v7869 = vpack.c.b16 %v7829, %v7825
        %v7870 = vpack.c.b16 %v7830, %v7826
        %v7871 = vpack.c.b16 %v7835, %v7831
        %v7872 = vpack.c.b16 %v7836, %v7832
        %v7873 = vpack.c.b16 %v7837, %v7833
        %v7874 = vpack.c.b16 %v7838, %v7834
        %v7875 = vpack.c.b16 %v7843, %v7839
        %v7876 = vpack.c.b16 %v7844, %v7840
        %v7877 = vpack.c.b16 %v7845, %v7841
        %v7878 = vpack.c.b16 %v7846, %v7842
        %7911 = vmatprep.subr.bf16.mxu0 %v7876
        %7912 = vmatpush1.bf16.msra.mxu0 %v7875
        %7913 = vmatprep.subr.bf16.mxu0 %v7872
        %7914 = vmatpush1.bf16.msra.mxu0 %v7871
        %7915 = vmatprep.subr.bf16.mxu0 %v7868
        %7916 = vmatpush1.bf16.msra.mxu0 %v7867
        %7917 = vmatprep.subr.bf16.mxu0 %v7864
        %7918 = vmatpush1.bf16.msra.mxu0 %v7863
        %7919 = vmatprep.subr.bf16.mxu0 %v7860
        %7920 = vmatpush1.bf16.msra.mxu0 %v7859
        %7921 = vmatprep.subr.bf16.mxu0 %v7856
        %7922 = vmatpush1.bf16.msra.mxu0 %v7855
        %7923 = vmatprep.subr.bf16.mxu0 %v7852
        %7924 = vmatpush1.bf16.msra.mxu0 %v7851
        %7925 = vmatprep.subr.bf16.mxu0 %v7848
        %7926 = vmatpush1.bf16.msra.mxu0 %v7847
        %7927 = vmatprep.subr.bf16.mxu0 0
        %7928 = vmatpush2.bf16.msra.mxu0 0
        %7929 = vmatprep.subr.bf16.mxu0 0
        %7930 = vmatpush2.bf16.msra.mxu0 0
        %7931 = vmatprep.subr.bf16.mxu0 0
        %7932 = vmatpush2.bf16.msra.mxu0 0
        %7933 = vmatprep.subr.bf16.mxu0 0
        %7934 = vmatpush2.bf16.msra.mxu0 0
        %7935 = vmatprep.subr.bf16.mxu0 0
        %7936 = vmatpush2.bf16.msra.mxu0 0
        %7937 = vmatprep.subr.bf16.mxu0 0
        %7938 = vmatpush2.bf16.msra.mxu0 0
        %7939 = vmatprep.subr.bf16.mxu0 0
        %7940 = vmatpush2.bf16.msra.mxu0 0
        %7941 = vmatprep.subr.bf16.mxu0 0
        %7942 = vmatpush2.bf16.msra.mxu0 0
        %7943 = vmatprep.mubr.bf16.mxu0 0
        %7944 = vmatmul.mubr.bf16.gmra.mxu0 %v7718
        %v7945 = vpop.f32.mrf.mxu0
        %v7946 = vadd.f32 0.0, %v7945
        %v7947 = vpop.f32.mrf.mxu0
        %v7948 = vadd.f32 0.0, %v7947
        %v7949 = vpop.f32.mrf.mxu0
        %v7950 = vpop.f32.mrf.mxu0
        %7951 = vdwg.mxu0
        %7952 = vmatprep.subr.bf16.mxu0 %v7878
        %7953 = vmatpush1.bf16.msra.mxu0 %v7877
        %7954 = vmatprep.subr.bf16.mxu0 %v7874
        %7955 = vmatpush1.bf16.msra.mxu0 %v7873
        %7956 = vmatprep.subr.bf16.mxu0 %v7870
        %7957 = vmatpush1.bf16.msra.mxu0 %v7869
        %7958 = vmatprep.subr.bf16.mxu0 %v7866
        %7959 = vmatpush1.bf16.msra.mxu0 %v7865
        %7960 = vmatprep.subr.bf16.mxu0 %v7862
        %7961 = vmatpush1.bf16.msra.mxu0 %v7861
        %7962 = vmatprep.subr.bf16.mxu0 %v7858
        %7963 = vmatpush1.bf16.msra.mxu0 %v7857
        %7964 = vmatprep.subr.bf16.mxu0 %v7854
        %7965 = vmatpush1.bf16.msra.mxu0 %v7853
        %7966 = vmatprep.subr.bf16.mxu0 %v7850
        %7967 = vmatpush1.bf16.msra.mxu0 %v7849
        %7968 = vmatprep.subr.bf16.mxu0 0
        %7969 = vmatpush2.bf16.msra.mxu0 0
        %7970 = vmatprep.subr.bf16.mxu0 0
        %7971 = vmatpush2.bf16.msra.mxu0 0
        %7972 = vmatprep.subr.bf16.mxu0 0
        %7973 = vmatpush2.bf16.msra.mxu0 0
        %7974 = vmatprep.subr.bf16.mxu0 0
        %7975 = vmatpush2.bf16.msra.mxu0 0
        %7976 = vmatprep.subr.bf16.mxu0 0
        %7977 = vmatpush2.bf16.msra.mxu0 0
        %7978 = vmatprep.subr.bf16.mxu0 0
        %7979 = vmatpush2.bf16.msra.mxu0 0
        %7980 = vmatprep.subr.bf16.mxu0 0
        %7981 = vmatpush2.bf16.msra.mxu0 0
        %7982 = vmatprep.subr.bf16.mxu0 0
        %7983 = vmatpush2.bf16.msra.mxu0 0
        %7984 = vmatprep.mubr.bf16.mxu0 0
        %7985 = vmatmul.mubr.bf16.gmra.mxu0 %v7718
        %v7986 = vpop.f32.mrf.mxu0
        %v7987 = vadd.f32 0.0, %v7986
        %v7988 = vpop.f32.mrf.mxu0
        %v7989 = vadd.f32 0.0, %v7988
        %v7990 = vpop.f32.mrf.mxu0
        %v7991 = vpop.f32.mrf.mxu0
        %7992 = vdwg.mxu0
        %v7993 = vadd.f32 %v7714, %v7946
        %v7994 = vadd.f32 %v7715, %v7948
        %v7995 = vadd.f32 %v7716, %v7987
        %v7996 = vadd.f32 %v7717, %v7989
        %v7997 = vmul.f32 %v7993, 0.5
        %v7998 = vtanh.pop %v7997
        %v7999 = vmul.f32 %v7998, 0.5
        %v8000 = vadd.f32 %v7999, 0.5
        %v8001 = vmul.f32 %v7994, 0.5
        %v8002 = vtanh.pop %v8001
        %v8003 = vmul.f32 %v8002, 0.5
        %v8004 = vadd.f32 %v8003, 0.5
        %v8005 = vtanh.pop %v7995
        %v8006 = vmul.f32 %v7996, 0.5
        %v8007 = vtanh.pop %v8006
        %v8008 = vmul.f32 %v8007, 0.5
        %v8009 = vadd.f32 %v8008, 0.5
        %v8010 = vmul.f32 %v8004, %v7704
        %v8011 = vmul.f32 %v8000, %v8005
        %v8012 = vadd.f32 %v8010, %v8011
        %v8013 = vtanh.pop %v8012
        %v8014 = vmul.f32 %v8009, %v8013
        %8015 = vst [vmem:[%s2043] sm:$0xff] %v8014
        %v8016 = vld [vmem:[%s5034] sm:$0xff]
        %v8017 = vld [vmem:[%s5034 + $0x8] sm:$0xff]
        %v8018 = vunpack.c.l.bf16 %v8016
        %v8019 = vunpack.c.h.bf16 %v8016
        %v8020 = vunpack.c.l.bf16 %v8017
        %v8021 = vunpack.c.h.bf16 %v8017
        %v8022 = vadd.f32 %v8018, %v6466
        %v8023 = vadd.f32 %v8019, %v6470
        %v8024 = vadd.f32 %v8020, %v6474
        %v8025 = vadd.f32 %v8021, %v6478
        %v8026 = vpack.c.bf16 %v8014, %v8014
        %v8027 = vld [vmem:[#allocation10] sm:$0xff]
        %v8028 = vld [vmem:[#allocation10 + $0x8] sm:$0xff]
        %v8029 = vld [vmem:[#allocation10 + $0x10] sm:$0xff]
        %v8030 = vld [vmem:[#allocation10 + $0x18] sm:$0xff]
        %v8031 = vld [vmem:[#allocation10 + $0x20] sm:$0xff]
        %v8032 = vld [vmem:[#allocation10 + $0x28] sm:$0xff]
        %v8033 = vld [vmem:[#allocation10 + $0x30] sm:$0xff]
        %v8034 = vld [vmem:[#allocation10 + $0x38] sm:$0xff]
        %v8035 = vld [vmem:[#allocation10 + $0x40] sm:$0xff]
        %v8036 = vld [vmem:[#allocation10 + $0x48] sm:$0xff]
        %v8037 = vld [vmem:[#allocation10 + $0x50] sm:$0xff]
        %v8038 = vld [vmem:[#allocation10 + $0x58] sm:$0xff]
        %v8039 = vld [vmem:[#allocation10 + $0x60] sm:$0xff]
        %v8040 = vld [vmem:[#allocation10 + $0x68] sm:$0xff]
        %v8041 = vld [vmem:[#allocation10 + $0x70] sm:$0xff]
        %v8042 = vld [vmem:[#allocation10 + $0x78] sm:$0xff]
        %v8043 = vld [vmem:[#allocation10 + $0x80] sm:$0xff]
        %v8044 = vld [vmem:[#allocation10 + $0x88] sm:$0xff]
        %v8045 = vld [vmem:[#allocation10 + $0x90] sm:$0xff]
        %v8046 = vld [vmem:[#allocation10 + $0x98] sm:$0xff]
        %v8047 = vld [vmem:[#allocation10 + $0xa0] sm:$0xff]
        %v8048 = vld [vmem:[#allocation10 + $0xa8] sm:$0xff]
        %v8049 = vld [vmem:[#allocation10 + $0xb0] sm:$0xff]
        %v8050 = vld [vmem:[#allocation10 + $0xb8] sm:$0xff]
        %v8051 = vld [vmem:[#allocation10 + $0xc0] sm:$0xff]
        %v8052 = vld [vmem:[#allocation10 + $0xc8] sm:$0xff]
        %v8053 = vld [vmem:[#allocation10 + $0xd0] sm:$0xff]
        %v8054 = vld [vmem:[#allocation10 + $0xd8] sm:$0xff]
        %v8055 = vld [vmem:[#allocation10 + $0xe0] sm:$0xff]
        %v8056 = vld [vmem:[#allocation10 + $0xe8] sm:$0xff]
        %v8057 = vld [vmem:[#allocation10 + $0xf0] sm:$0xff]
        %v8058 = vld [vmem:[#allocation10 + $0xf8] sm:$0xff]
        %v8091 = vunpack.c.l.b16 %v8027
        %v8092 = vunpack.c.h.b16 %v8027
        %v8093 = vunpack.c.l.b16 %v8028
        %v8094 = vunpack.c.h.b16 %v8028
        %v8095 = vunpack.c.l.b16 %v8029
        %v8096 = vunpack.c.h.b16 %v8029
        %v8097 = vunpack.c.l.b16 %v8030
        %v8098 = vunpack.c.h.b16 %v8030
        %v8099 = vunpack.c.l.b16 %v8031
        %v8100 = vunpack.c.h.b16 %v8031
        %v8101 = vunpack.c.l.b16 %v8032
        %v8102 = vunpack.c.h.b16 %v8032
        %v8103 = vunpack.c.l.b16 %v8033
        %v8104 = vunpack.c.h.b16 %v8033
        %v8105 = vunpack.c.l.b16 %v8034
        %v8106 = vunpack.c.h.b16 %v8034
        %v8107 = vunpack.c.l.b16 %v8035
        %v8108 = vunpack.c.h.b16 %v8035
        %v8109 = vunpack.c.l.b16 %v8036
        %v8110 = vunpack.c.h.b16 %v8036
        %v8111 = vunpack.c.l.b16 %v8037
        %v8112 = vunpack.c.h.b16 %v8037
        %v8113 = vunpack.c.l.b16 %v8038
        %v8114 = vunpack.c.h.b16 %v8038
        %v8115 = vunpack.c.l.b16 %v8039
        %v8116 = vunpack.c.h.b16 %v8039
        %v8117 = vunpack.c.l.b16 %v8040
        %v8118 = vunpack.c.h.b16 %v8040
        %v8119 = vunpack.c.l.b16 %v8041
        %v8120 = vunpack.c.h.b16 %v8041
        %v8121 = vunpack.c.l.b16 %v8042
        %v8122 = vunpack.c.h.b16 %v8042
        %v8123 = vunpack.c.l.b16 %v8043
        %v8124 = vunpack.c.h.b16 %v8043
        %v8125 = vunpack.c.l.b16 %v8044
        %v8126 = vunpack.c.h.b16 %v8044
        %v8127 = vunpack.c.l.b16 %v8045
        %v8128 = vunpack.c.h.b16 %v8045
        %v8129 = vunpack.c.l.b16 %v8046
        %v8130 = vunpack.c.h.b16 %v8046
        %v8131 = vunpack.c.l.b16 %v8047
        %v8132 = vunpack.c.h.b16 %v8047
        %v8133 = vunpack.c.l.b16 %v8048
        %v8134 = vunpack.c.h.b16 %v8048
        %v8135 = vunpack.c.l.b16 %v8049
        %v8136 = vunpack.c.h.b16 %v8049
        %v8137 = vunpack.c.l.b16 %v8050
        %v8138 = vunpack.c.h.b16 %v8050
        %v8139 = vunpack.c.l.b16 %v8051
        %v8140 = vunpack.c.h.b16 %v8051
        %v8141 = vunpack.c.l.b16 %v8052
        %v8142 = vunpack.c.h.b16 %v8052
        %v8143 = vunpack.c.l.b16 %v8053
        %v8144 = vunpack.c.h.b16 %v8053
        %v8145 = vunpack.c.l.b16 %v8054
        %v8146 = vunpack.c.h.b16 %v8054
        %v8147 = vunpack.c.l.b16 %v8055
        %v8148 = vunpack.c.h.b16 %v8055
        %v8149 = vunpack.c.l.b16 %v8056
        %v8150 = vunpack.c.h.b16 %v8056
        %v8151 = vunpack.c.l.b16 %v8057
        %v8152 = vunpack.c.h.b16 %v8057
        %v8153 = vunpack.c.l.b16 %v8058
        %v8154 = vunpack.c.h.b16 %v8058
        %v8155 = vpack.c.b16 %v8095, %v8091
        %v8156 = vpack.c.b16 %v8096, %v8092
        %v8157 = vpack.c.b16 %v8097, %v8093
        %v8158 = vpack.c.b16 %v8098, %v8094
        %v8159 = vpack.c.b16 %v8103, %v8099
        %v8160 = vpack.c.b16 %v8104, %v8100
        %v8161 = vpack.c.b16 %v8105, %v8101
        %v8162 = vpack.c.b16 %v8106, %v8102
        %v8163 = vpack.c.b16 %v8111, %v8107
        %v8164 = vpack.c.b16 %v8112, %v8108
        %v8165 = vpack.c.b16 %v8113, %v8109
        %v8166 = vpack.c.b16 %v8114, %v8110
        %v8167 = vpack.c.b16 %v8119, %v8115
        %v8168 = vpack.c.b16 %v8120, %v8116
        %v8169 = vpack.c.b16 %v8121, %v8117
        %v8170 = vpack.c.b16 %v8122, %v8118
        %v8171 = vpack.c.b16 %v8127, %v8123
        %v8172 = vpack.c.b16 %v8128, %v8124
        %v8173 = vpack.c.b16 %v8129, %v8125
        %v8174 = vpack.c.b16 %v8130, %v8126
        %v8175 = vpack.c.b16 %v8135, %v8131
        %v8176 = vpack.c.b16 %v8136, %v8132
        %v8177 = vpack.c.b16 %v8137, %v8133
        %v8178 = vpack.c.b16 %v8138, %v8134
        %v8179 = vpack.c.b16 %v8143, %v8139
        %v8180 = vpack.c.b16 %v8144, %v8140
        %v8181 = vpack.c.b16 %v8145, %v8141
        %v8182 = vpack.c.b16 %v8146, %v8142
        %v8183 = vpack.c.b16 %v8151, %v8147
        %v8184 = vpack.c.b16 %v8152, %v8148
        %v8185 = vpack.c.b16 %v8153, %v8149
        %v8186 = vpack.c.b16 %v8154, %v8150
        %8219 = vmatprep.subr.bf16.mxu0 %v8184
        %8220 = vmatpush1.bf16.msra.mxu0 %v8183
        %8221 = vmatprep.subr.bf16.mxu0 %v8180
        %8222 = vmatpush1.bf16.msra.mxu0 %v8179
        %8223 = vmatprep.subr.bf16.mxu0 %v8176
        %8224 = vmatpush1.bf16.msra.mxu0 %v8175
        %8225 = vmatprep.subr.bf16.mxu0 %v8172
        %8226 = vmatpush1.bf16.msra.mxu0 %v8171
        %8227 = vmatprep.subr.bf16.mxu0 %v8168
        %8228 = vmatpush1.bf16.msra.mxu0 %v8167
        %8229 = vmatprep.subr.bf16.mxu0 %v8164
        %8230 = vmatpush1.bf16.msra.mxu0 %v8163
        %8231 = vmatprep.subr.bf16.mxu0 %v8160
        %8232 = vmatpush1.bf16.msra.mxu0 %v8159
        %8233 = vmatprep.subr.bf16.mxu0 %v8156
        %8234 = vmatpush1.bf16.msra.mxu0 %v8155
        %8235 = vmatprep.subr.bf16.mxu0 0
        %8236 = vmatpush2.bf16.msra.mxu0 0
        %8237 = vmatprep.subr.bf16.mxu0 0
        %8238 = vmatpush2.bf16.msra.mxu0 0
        %8239 = vmatprep.subr.bf16.mxu0 0
        %8240 = vmatpush2.bf16.msra.mxu0 0
        %8241 = vmatprep.subr.bf16.mxu0 0
        %8242 = vmatpush2.bf16.msra.mxu0 0
        %8243 = vmatprep.subr.bf16.mxu0 0
        %8244 = vmatpush2.bf16.msra.mxu0 0
        %8245 = vmatprep.subr.bf16.mxu0 0
        %8246 = vmatpush2.bf16.msra.mxu0 0
        %8247 = vmatprep.subr.bf16.mxu0 0
        %8248 = vmatpush2.bf16.msra.mxu0 0
        %8249 = vmatprep.subr.bf16.mxu0 0
        %8250 = vmatpush2.bf16.msra.mxu0 0
        %8251 = vmatprep.mubr.bf16.mxu0 0
        %8252 = vmatmul.mubr.bf16.gmra.mxu0 %v8026
        %v8253 = vpop.f32.mrf.mxu0
        %v8254 = vadd.f32 0.0, %v8253
        %v8255 = vpop.f32.mrf.mxu0
        %v8256 = vadd.f32 0.0, %v8255
        %v8257 = vpop.f32.mrf.mxu0
        %v8258 = vpop.f32.mrf.mxu0
        %8259 = vdwg.mxu0
        %8260 = vmatprep.subr.bf16.mxu0 %v8186
        %8261 = vmatpush1.bf16.msra.mxu0 %v8185
        %8262 = vmatprep.subr.bf16.mxu0 %v8182
        %8263 = vmatpush1.bf16.msra.mxu0 %v8181
        %8264 = vmatprep.subr.bf16.mxu0 %v8178
        %8265 = vmatpush1.bf16.msra.mxu0 %v8177
        %8266 = vmatprep.subr.bf16.mxu0 %v8174
        %8267 = vmatpush1.bf16.msra.mxu0 %v8173
        %8268 = vmatprep.subr.bf16.mxu0 %v8170
        %8269 = vmatpush1.bf16.msra.mxu0 %v8169
        %8270 = vmatprep.subr.bf16.mxu0 %v8166
        %8271 = vmatpush1.bf16.msra.mxu0 %v8165
        %8272 = vmatprep.subr.bf16.mxu0 %v8162
        %8273 = vmatpush1.bf16.msra.mxu0 %v8161
        %8274 = vmatprep.subr.bf16.mxu0 %v8158
        %8275 = vmatpush1.bf16.msra.mxu0 %v8157
        %8276 = vmatprep.subr.bf16.mxu0 0
        %8277 = vmatpush2.bf16.msra.mxu0 0
        %8278 = vmatprep.subr.bf16.mxu0 0
        %8279 = vmatpush2.bf16.msra.mxu0 0
        %8280 = vmatprep.subr.bf16.mxu0 0
        %8281 = vmatpush2.bf16.msra.mxu0 0
        %8282 = vmatprep.subr.bf16.mxu0 0
        %8283 = vmatpush2.bf16.msra.mxu0 0
        %8284 = vmatprep.subr.bf16.mxu0 0
        %8285 = vmatpush2.bf16.msra.mxu0 0
        %8286 = vmatprep.subr.bf16.mxu0 0
        %8287 = vmatpush2.bf16.msra.mxu0 0
        %8288 = vmatprep.subr.bf16.mxu0 0
        %8289 = vmatpush2.bf16.msra.mxu0 0
        %8290 = vmatprep.subr.bf16.mxu0 0
        %8291 = vmatpush2.bf16.msra.mxu0 0
        %8292 = vmatprep.mubr.bf16.mxu0 0
        %8293 = vmatmul.mubr.bf16.gmra.mxu0 %v8026
        %v8294 = vpop.f32.mrf.mxu0
        %v8295 = vadd.f32 0.0, %v8294
        %v8296 = vpop.f32.mrf.mxu0
        %v8297 = vadd.f32 0.0, %v8296
        %v8298 = vpop.f32.mrf.mxu0
        %v8299 = vpop.f32.mrf.mxu0
        %8300 = vdwg.mxu0
        %v8301 = vadd.f32 %v8022, %v8254
        %v8302 = vadd.f32 %v8023, %v8256
        %v8303 = vadd.f32 %v8024, %v8295
        %v8304 = vadd.f32 %v8025, %v8297
        %v8305 = vmul.f32 %v8301, 0.5
        %v8306 = vtanh.pop %v8305
        %v8307 = vmul.f32 %v8306, 0.5
        %v8308 = vadd.f32 %v8307, 0.5
        %v8309 = vmul.f32 %v8302, 0.5
        %v8310 = vtanh.pop %v8309
        %v8311 = vmul.f32 %v8310, 0.5
        %v8312 = vadd.f32 %v8311, 0.5
        %v8313 = vtanh.pop %v8303
        %v8314 = vmul.f32 %v8304, 0.5
        %v8315 = vtanh.pop %v8314
        %v8316 = vmul.f32 %v8315, 0.5
        %v8317 = vadd.f32 %v8316, 0.5
        %v8318 = vmul.f32 %v8312, %v8012
        %v8319 = vmul.f32 %v8308, %v8313
        %v8320 = vadd.f32 %v8318, %v8319
        %v8321 = vtanh.pop %v8320
        %v8322 = vmul.f32 %v8317, %v8321
        %8323 = vst [vmem:[%s2353] sm:$0xff] %v8322
        %v8324 = vld [vmem:[%s5343] sm:$0xff]
        %v8325 = vld [vmem:[%s5343 + $0x8] sm:$0xff]
        %v8326 = vunpack.c.l.bf16 %v8324
        %v8327 = vunpack.c.h.bf16 %v8324
        %v8328 = vunpack.c.l.bf16 %v8325
        %v8329 = vunpack.c.h.bf16 %v8325
        %v8330 = vadd.f32 %v8326, %v6466
        %v8331 = vadd.f32 %v8327, %v6470
        %v8332 = vadd.f32 %v8328, %v6474
        %v8333 = vadd.f32 %v8329, %v6478
        %v8334 = vpack.c.bf16 %v8322, %v8322
        %v8335 = vld [vmem:[#allocation10] sm:$0xff]
        %v8336 = vld [vmem:[#allocation10 + $0x8] sm:$0xff]
        %v8337 = vld [vmem:[#allocation10 + $0x10] sm:$0xff]
        %v8338 = vld [vmem:[#allocation10 + $0x18] sm:$0xff]
        %v8339 = vld [vmem:[#allocation10 + $0x20] sm:$0xff]
        %v8340 = vld [vmem:[#allocation10 + $0x28] sm:$0xff]
        %v8341 = vld [vmem:[#allocation10 + $0x30] sm:$0xff]
        %v8342 = vld [vmem:[#allocation10 + $0x38] sm:$0xff]
        %v8343 = vld [vmem:[#allocation10 + $0x40] sm:$0xff]
        %v8344 = vld [vmem:[#allocation10 + $0x48] sm:$0xff]
        %v8345 = vld [vmem:[#allocation10 + $0x50] sm:$0xff]
        %v8346 = vld [vmem:[#allocation10 + $0x58] sm:$0xff]
        %v8347 = vld [vmem:[#allocation10 + $0x60] sm:$0xff]
        %v8348 = vld [vmem:[#allocation10 + $0x68] sm:$0xff]
        %v8349 = vld [vmem:[#allocation10 + $0x70] sm:$0xff]
        %v8350 = vld [vmem:[#allocation10 + $0x78] sm:$0xff]
        %v8351 = vld [vmem:[#allocation10 + $0x80] sm:$0xff]
        %v8352 = vld [vmem:[#allocation10 + $0x88] sm:$0xff]
        %v8353 = vld [vmem:[#allocation10 + $0x90] sm:$0xff]
        %v8354 = vld [vmem:[#allocation10 + $0x98] sm:$0xff]
        %v8355 = vld [vmem:[#allocation10 + $0xa0] sm:$0xff]
        %v8356 = vld [vmem:[#allocation10 + $0xa8] sm:$0xff]
        %v8357 = vld [vmem:[#allocation10 + $0xb0] sm:$0xff]
        %v8358 = vld [vmem:[#allocation10 + $0xb8] sm:$0xff]
        %v8359 = vld [vmem:[#allocation10 + $0xc0] sm:$0xff]
        %v8360 = vld [vmem:[#allocation10 + $0xc8] sm:$0xff]
        %v8361 = vld [vmem:[#allocation10 + $0xd0] sm:$0xff]
        %v8362 = vld [vmem:[#allocation10 + $0xd8] sm:$0xff]
        %v8363 = vld [vmem:[#allocation10 + $0xe0] sm:$0xff]
        %v8364 = vld [vmem:[#allocation10 + $0xe8] sm:$0xff]
        %v8365 = vld [vmem:[#allocation10 + $0xf0] sm:$0xff]
        %v8366 = vld [vmem:[#allocation10 + $0xf8] sm:$0xff]
        %v8399 = vunpack.c.l.b16 %v8335
        %v8400 = vunpack.c.h.b16 %v8335
        %v8401 = vunpack.c.l.b16 %v8336
        %v8402 = vunpack.c.h.b16 %v8336
        %v8403 = vunpack.c.l.b16 %v8337
        %v8404 = vunpack.c.h.b16 %v8337
        %v8405 = vunpack.c.l.b16 %v8338
        %v8406 = vunpack.c.h.b16 %v8338
        %v8407 = vunpack.c.l.b16 %v8339
        %v8408 = vunpack.c.h.b16 %v8339
        %v8409 = vunpack.c.l.b16 %v8340
        %v8410 = vunpack.c.h.b16 %v8340
        %v8411 = vunpack.c.l.b16 %v8341
        %v8412 = vunpack.c.h.b16 %v8341
        %v8413 = vunpack.c.l.b16 %v8342
        %v8414 = vunpack.c.h.b16 %v8342
        %v8415 = vunpack.c.l.b16 %v8343
        %v8416 = vunpack.c.h.b16 %v8343
        %v8417 = vunpack.c.l.b16 %v8344
        %v8418 = vunpack.c.h.b16 %v8344
        %v8419 = vunpack.c.l.b16 %v8345
        %v8420 = vunpack.c.h.b16 %v8345
        %v8421 = vunpack.c.l.b16 %v8346
        %v8422 = vunpack.c.h.b16 %v8346
        %v8423 = vunpack.c.l.b16 %v8347
        %v8424 = vunpack.c.h.b16 %v8347
        %v8425 = vunpack.c.l.b16 %v8348
        %v8426 = vunpack.c.h.b16 %v8348
        %v8427 = vunpack.c.l.b16 %v8349
        %v8428 = vunpack.c.h.b16 %v8349
        %v8429 = vunpack.c.l.b16 %v8350
        %v8430 = vunpack.c.h.b16 %v8350
        %v8431 = vunpack.c.l.b16 %v8351
        %v8432 = vunpack.c.h.b16 %v8351
        %v8433 = vunpack.c.l.b16 %v8352
        %v8434 = vunpack.c.h.b16 %v8352
        %v8435 = vunpack.c.l.b16 %v8353
        %v8436 = vunpack.c.h.b16 %v8353
        %v8437 = vunpack.c.l.b16 %v8354
        %v8438 = vunpack.c.h.b16 %v8354
        %v8439 = vunpack.c.l.b16 %v8355
        %v8440 = vunpack.c.h.b16 %v8355
        %v8441 = vunpack.c.l.b16 %v8356
        %v8442 = vunpack.c.h.b16 %v8356
        %v8443 = vunpack.c.l.b16 %v8357
        %v8444 = vunpack.c.h.b16 %v8357
        %v8445 = vunpack.c.l.b16 %v8358
        %v8446 = vunpack.c.h.b16 %v8358
        %v8447 = vunpack.c.l.b16 %v8359
        %v8448 = vunpack.c.h.b16 %v8359
        %v8449 = vunpack.c.l.b16 %v8360
        %v8450 = vunpack.c.h.b16 %v8360
        %v8451 = vunpack.c.l.b16 %v8361
        %v8452 = vunpack.c.h.b16 %v8361
        %v8453 = vunpack.c.l.b16 %v8362
        %v8454 = vunpack.c.h.b16 %v8362
        %v8455 = vunpack.c.l.b16 %v8363
        %v8456 = vunpack.c.h.b16 %v8363
        %v8457 = vunpack.c.l.b16 %v8364
        %v8458 = vunpack.c.h.b16 %v8364
        %v8459 = vunpack.c.l.b16 %v8365
        %v8460 = vunpack.c.h.b16 %v8365
        %v8461 = vunpack.c.l.b16 %v8366
        %v8462 = vunpack.c.h.b16 %v8366
        %v8463 = vpack.c.b16 %v8403, %v8399
        %v8464 = vpack.c.b16 %v8404, %v8400
        %v8465 = vpack.c.b16 %v8405, %v8401
        %v8466 = vpack.c.b16 %v8406, %v8402
        %v8467 = vpack.c.b16 %v8411, %v8407
        %v8468 = vpack.c.b16 %v8412, %v8408
        %v8469 = vpack.c.b16 %v8413, %v8409
        %v8470 = vpack.c.b16 %v8414, %v8410
        %v8471 = vpack.c.b16 %v8419, %v8415
        %v8472 = vpack.c.b16 %v8420, %v8416
        %v8473 = vpack.c.b16 %v8421, %v8417
        %v8474 = vpack.c.b16 %v8422, %v8418
        %v8475 = vpack.c.b16 %v8427, %v8423
        %v8476 = vpack.c.b16 %v8428, %v8424
        %v8477 = vpack.c.b16 %v8429, %v8425
        %v8478 = vpack.c.b16 %v8430, %v8426
        %v8479 = vpack.c.b16 %v8435, %v8431
        %v8480 = vpack.c.b16 %v8436, %v8432
        %v8481 = vpack.c.b16 %v8437, %v8433
        %v8482 = vpack.c.b16 %v8438, %v8434
        %v8483 = vpack.c.b16 %v8443, %v8439
        %v8484 = vpack.c.b16 %v8444, %v8440
        %v8485 = vpack.c.b16 %v8445, %v8441
        %v8486 = vpack.c.b16 %v8446, %v8442
        %v8487 = vpack.c.b16 %v8451, %v8447
        %v8488 = vpack.c.b16 %v8452, %v8448
        %v8489 = vpack.c.b16 %v8453, %v8449
        %v8490 = vpack.c.b16 %v8454, %v8450
        %v8491 = vpack.c.b16 %v8459, %v8455
        %v8492 = vpack.c.b16 %v8460, %v8456
        %v8493 = vpack.c.b16 %v8461, %v8457
        %v8494 = vpack.c.b16 %v8462, %v8458
        %8527 = vmatprep.subr.bf16.mxu0 %v8492
        %8528 = vmatpush1.bf16.msra.mxu0 %v8491
        %8529 = vmatprep.subr.bf16.mxu0 %v8488
        %8530 = vmatpush1.bf16.msra.mxu0 %v8487
        %8531 = vmatprep.subr.bf16.mxu0 %v8484
        %8532 = vmatpush1.bf16.msra.mxu0 %v8483
        %8533 = vmatprep.subr.bf16.mxu0 %v8480
        %8534 = vmatpush1.bf16.msra.mxu0 %v8479
        %8535 = vmatprep.subr.bf16.mxu0 %v8476
        %8536 = vmatpush1.bf16.msra.mxu0 %v8475
        %8537 = vmatprep.subr.bf16.mxu0 %v8472
        %8538 = vmatpush1.bf16.msra.mxu0 %v8471
        %8539 = vmatprep.subr.bf16.mxu0 %v8468
        %8540 = vmatpush1.bf16.msra.mxu0 %v8467
        %8541 = vmatprep.subr.bf16.mxu0 %v8464
        %8542 = vmatpush1.bf16.msra.mxu0 %v8463
        %8543 = vmatprep.subr.bf16.mxu0 0
        %8544 = vmatpush2.bf16.msra.mxu0 0
        %8545 = vmatprep.subr.bf16.mxu0 0
        %8546 = vmatpush2.bf16.msra.mxu0 0
        %8547 = vmatprep.subr.bf16.mxu0 0
        %8548 = vmatpush2.bf16.msra.mxu0 0
        %8549 = vmatprep.subr.bf16.mxu0 0
        %8550 = vmatpush2.bf16.msra.mxu0 0
        %8551 = vmatprep.subr.bf16.mxu0 0
        %8552 = vmatpush2.bf16.msra.mxu0 0
        %8553 = vmatprep.subr.bf16.mxu0 0
        %8554 = vmatpush2.bf16.msra.mxu0 0
        %8555 = vmatprep.subr.bf16.mxu0 0
        %8556 = vmatpush2.bf16.msra.mxu0 0
        %8557 = vmatprep.subr.bf16.mxu0 0
        %8558 = vmatpush2.bf16.msra.mxu0 0
        %8559 = vmatprep.mubr.bf16.mxu0 0
        %8560 = vmatmul.mubr.bf16.gmra.mxu0 %v8334
        %v8561 = vpop.f32.mrf.mxu0
        %v8562 = vadd.f32 0.0, %v8561
        %v8563 = vpop.f32.mrf.mxu0
        %v8564 = vadd.f32 0.0, %v8563
        %v8565 = vpop.f32.mrf.mxu0
        %v8566 = vpop.f32.mrf.mxu0
        %8567 = vdwg.mxu0
        %8568 = vmatprep.subr.bf16.mxu0 %v8494
        %8569 = vmatpush1.bf16.msra.mxu0 %v8493
        %8570 = vmatprep.subr.bf16.mxu0 %v8490
        %8571 = vmatpush1.bf16.msra.mxu0 %v8489
        %8572 = vmatprep.subr.bf16.mxu0 %v8486
        %8573 = vmatpush1.bf16.msra.mxu0 %v8485
        %8574 = vmatprep.subr.bf16.mxu0 %v8482
        %8575 = vmatpush1.bf16.msra.mxu0 %v8481
        %8576 = vmatprep.subr.bf16.mxu0 %v8478
        %8577 = vmatpush1.bf16.msra.mxu0 %v8477
        %8578 = vmatprep.subr.bf16.mxu0 %v8474
        %8579 = vmatpush1.bf16.msra.mxu0 %v8473
        %8580 = vmatprep.subr.bf16.mxu0 %v8470
        %8581 = vmatpush1.bf16.msra.mxu0 %v8469
        %8582 = vmatprep.subr.bf16.mxu0 %v8466
        %8583 = vmatpush1.bf16.msra.mxu0 %v8465
        %8584 = vmatprep.subr.bf16.mxu0 0
        %8585 = vmatpush2.bf16.msra.mxu0 0
        %8586 = vmatprep.subr.bf16.mxu0 0
        %8587 = vmatpush2.bf16.msra.mxu0 0
        %8588 = vmatprep.subr.bf16.mxu0 0
        %8589 = vmatpush2.bf16.msra.mxu0 0
        %8590 = vmatprep.subr.bf16.mxu0 0
        %8591 = vmatpush2.bf16.msra.mxu0 0
        %8592 = vmatprep.subr.bf16.mxu0 0
        %8593 = vmatpush2.bf16.msra.mxu0 0
        %8594 = vmatprep.subr.bf16.mxu0 0
        %8595 = vmatpush2.bf16.msra.mxu0 0
        %8596 = vmatprep.subr.bf16.mxu0 0
        %8597 = vmatpush2.bf16.msra.mxu0 0
        %8598 = vmatprep.subr.bf16.mxu0 0
        %8599 = vmatpush2.bf16.msra.mxu0 0
        %8600 = vmatprep.mubr.bf16.mxu0 0
        %8601 = vmatmul.mubr.bf16.gmra.mxu0 %v8334
        %v8602 = vpop.f32.mrf.mxu0
        %v8603 = vadd.f32 0.0, %v8602
        %v8604 = vpop.f32.mrf.mxu0
        %v8605 = vadd.f32 0.0, %v8604
        %v8606 = vpop.f32.mrf.mxu0
        %v8607 = vpop.f32.mrf.mxu0
        %8608 = vdwg.mxu0
        %v8609 = vadd.f32 %v8330, %v8562
        %v8610 = vadd.f32 %v8331, %v8564
        %v8611 = vadd.f32 %v8332, %v8603
        %v8612 = vadd.f32 %v8333, %v8605
        %v8613 = vmul.f32 %v8609, 0.5
        %v8614 = vtanh.pop %v8613
        %v8615 = vmul.f32 %v8614, 0.5
        %v8616 = vadd.f32 %v8615, 0.5
        %v8617 = vmul.f32 %v8610, 0.5
        %v8618 = vtanh.pop %v8617
        %v8619 = vmul.f32 %v8618, 0.5
        %v8620 = vadd.f32 %v8619, 0.5
        %v8621 = vtanh.pop %v8611
        %v8622 = vmul.f32 %v8612, 0.5
        %v8623 = vtanh.pop %v8622
        %v8624 = vmul.f32 %v8623, 0.5
        %v8625 = vadd.f32 %v8624, 0.5
        %v8626 = vmul.f32 %v8620, %v8320
        %v8627 = vmul.f32 %v8616, %v8621
        %v8628 = vadd.f32 %v8626, %v8627
        %v8629 = vtanh.pop %v8628
        %v8630 = vmul.f32 %v8625, %v8629
        %8631 = vst [vmem:[%s2663] sm:$0xff] %v8630
        %v8632 = vld [vmem:[%s5652] sm:$0xff]
        %v8633 = vld [vmem:[%s5652 + $0x8] sm:$0xff]
        %v8634 = vunpack.c.l.bf16 %v8632
        %v8635 = vunpack.c.h.bf16 %v8632
        %v8636 = vunpack.c.l.bf16 %v8633
        %v8637 = vunpack.c.h.bf16 %v8633
        %v8638 = vadd.f32 %v8634, %v6466
        %v8639 = vadd.f32 %v8635, %v6470
        %v8640 = vadd.f32 %v8636, %v6474
        %v8641 = vadd.f32 %v8637, %v6478
        %v8642 = vpack.c.bf16 %v8630, %v8630
        %v8643 = vld [vmem:[#allocation10] sm:$0xff]
        %v8644 = vld [vmem:[#allocation10 + $0x8] sm:$0xff]
        %v8645 = vld [vmem:[#allocation10 + $0x10] sm:$0xff]
        %v8646 = vld [vmem:[#allocation10 + $0x18] sm:$0xff]
        %v8647 = vld [vmem:[#allocation10 + $0x20] sm:$0xff]
        %v8648 = vld [vmem:[#allocation10 + $0x28] sm:$0xff]
        %v8649 = vld [vmem:[#allocation10 + $0x30] sm:$0xff]
        %v8650 = vld [vmem:[#allocation10 + $0x38] sm:$0xff]
        %v8651 = vld [vmem:[#allocation10 + $0x40] sm:$0xff]
        %v8652 = vld [vmem:[#allocation10 + $0x48] sm:$0xff]
        %v8653 = vld [vmem:[#allocation10 + $0x50] sm:$0xff]
        %v8654 = vld [vmem:[#allocation10 + $0x58] sm:$0xff]
        %v8655 = vld [vmem:[#allocation10 + $0x60] sm:$0xff]
        %v8656 = vld [vmem:[#allocation10 + $0x68] sm:$0xff]
        %v8657 = vld [vmem:[#allocation10 + $0x70] sm:$0xff]
        %v8658 = vld [vmem:[#allocation10 + $0x78] sm:$0xff]
        %v8659 = vld [vmem:[#allocation10 + $0x80] sm:$0xff]
        %v8660 = vld [vmem:[#allocation10 + $0x88] sm:$0xff]
        %v8661 = vld [vmem:[#allocation10 + $0x90] sm:$0xff]
        %v8662 = vld [vmem:[#allocation10 + $0x98] sm:$0xff]
        %v8663 = vld [vmem:[#allocation10 + $0xa0] sm:$0xff]
        %v8664 = vld [vmem:[#allocation10 + $0xa8] sm:$0xff]
        %v8665 = vld [vmem:[#allocation10 + $0xb0] sm:$0xff]
        %v8666 = vld [vmem:[#allocation10 + $0xb8] sm:$0xff]
        %v8667 = vld [vmem:[#allocation10 + $0xc0] sm:$0xff]
        %v8668 = vld [vmem:[#allocation10 + $0xc8] sm:$0xff]
        %v8669 = vld [vmem:[#allocation10 + $0xd0] sm:$0xff]
        %v8670 = vld [vmem:[#allocation10 + $0xd8] sm:$0xff]
        %v8671 = vld [vmem:[#allocation10 + $0xe0] sm:$0xff]
        %v8672 = vld [vmem:[#allocation10 + $0xe8] sm:$0xff]
        %v8673 = vld [vmem:[#allocation10 + $0xf0] sm:$0xff]
        %v8674 = vld [vmem:[#allocation10 + $0xf8] sm:$0xff]
        %v8707 = vunpack.c.l.b16 %v8643
        %v8708 = vunpack.c.h.b16 %v8643
        %v8709 = vunpack.c.l.b16 %v8644
        %v8710 = vunpack.c.h.b16 %v8644
        %v8711 = vunpack.c.l.b16 %v8645
        %v8712 = vunpack.c.h.b16 %v8645
        %v8713 = vunpack.c.l.b16 %v8646
        %v8714 = vunpack.c.h.b16 %v8646
        %v8715 = vunpack.c.l.b16 %v8647
        %v8716 = vunpack.c.h.b16 %v8647
        %v8717 = vunpack.c.l.b16 %v8648
        %v8718 = vunpack.c.h.b16 %v8648
        %v8719 = vunpack.c.l.b16 %v8649
        %v8720 = vunpack.c.h.b16 %v8649
        %v8721 = vunpack.c.l.b16 %v8650
        %v8722 = vunpack.c.h.b16 %v8650
        %v8723 = vunpack.c.l.b16 %v8651
        %v8724 = vunpack.c.h.b16 %v8651
        %v8725 = vunpack.c.l.b16 %v8652
        %v8726 = vunpack.c.h.b16 %v8652
        %v8727 = vunpack.c.l.b16 %v8653
        %v8728 = vunpack.c.h.b16 %v8653
        %v8729 = vunpack.c.l.b16 %v8654
        %v8730 = vunpack.c.h.b16 %v8654
        %v8731 = vunpack.c.l.b16 %v8655
        %v8732 = vunpack.c.h.b16 %v8655
        %v8733 = vunpack.c.l.b16 %v8656
        %v8734 = vunpack.c.h.b16 %v8656
        %v8735 = vunpack.c.l.b16 %v8657
        %v8736 = vunpack.c.h.b16 %v8657
        %v8737 = vunpack.c.l.b16 %v8658
        %v8738 = vunpack.c.h.b16 %v8658
        %v8739 = vunpack.c.l.b16 %v8659
        %v8740 = vunpack.c.h.b16 %v8659
        %v8741 = vunpack.c.l.b16 %v8660
        %v8742 = vunpack.c.h.b16 %v8660
        %v8743 = vunpack.c.l.b16 %v8661
        %v8744 = vunpack.c.h.b16 %v8661
        %v8745 = vunpack.c.l.b16 %v8662
        %v8746 = vunpack.c.h.b16 %v8662
        %v8747 = vunpack.c.l.b16 %v8663
        %v8748 = vunpack.c.h.b16 %v8663
        %v8749 = vunpack.c.l.b16 %v8664
        %v8750 = vunpack.c.h.b16 %v8664
        %v8751 = vunpack.c.l.b16 %v8665
        %v8752 = vunpack.c.h.b16 %v8665
        %v8753 = vunpack.c.l.b16 %v8666
        %v8754 = vunpack.c.h.b16 %v8666
        %v8755 = vunpack.c.l.b16 %v8667
        %v8756 = vunpack.c.h.b16 %v8667
        %v8757 = vunpack.c.l.b16 %v8668
        %v8758 = vunpack.c.h.b16 %v8668
        %v8759 = vunpack.c.l.b16 %v8669
        %v8760 = vunpack.c.h.b16 %v8669
        %v8761 = vunpack.c.l.b16 %v8670
        %v8762 = vunpack.c.h.b16 %v8670
        %v8763 = vunpack.c.l.b16 %v8671
        %v8764 = vunpack.c.h.b16 %v8671
        %v8765 = vunpack.c.l.b16 %v8672
        %v8766 = vunpack.c.h.b16 %v8672
        %v8767 = vunpack.c.l.b16 %v8673
        %v8768 = vunpack.c.h.b16 %v8673
        %v8769 = vunpack.c.l.b16 %v8674
        %v8770 = vunpack.c.h.b16 %v8674
        %v8771 = vpack.c.b16 %v8711, %v8707
        %v8772 = vpack.c.b16 %v8712, %v8708
        %v8773 = vpack.c.b16 %v8713, %v8709
        %v8774 = vpack.c.b16 %v8714, %v8710
        %v8775 = vpack.c.b16 %v8719, %v8715
        %v8776 = vpack.c.b16 %v8720, %v8716
        %v8777 = vpack.c.b16 %v8721, %v8717
        %v8778 = vpack.c.b16 %v8722, %v8718
        %v8779 = vpack.c.b16 %v8727, %v8723
        %v8780 = vpack.c.b16 %v8728, %v8724
        %v8781 = vpack.c.b16 %v8729, %v8725
        %v8782 = vpack.c.b16 %v8730, %v8726
        %v8783 = vpack.c.b16 %v8735, %v8731
        %v8784 = vpack.c.b16 %v8736, %v8732
        %v8785 = vpack.c.b16 %v8737, %v8733
        %v8786 = vpack.c.b16 %v8738, %v8734
        %v8787 = vpack.c.b16 %v8743, %v8739
        %v8788 = vpack.c.b16 %v8744, %v8740
        %v8789 = vpack.c.b16 %v8745, %v8741
        %v8790 = vpack.c.b16 %v8746, %v8742
        %v8791 = vpack.c.b16 %v8751, %v8747
        %v8792 = vpack.c.b16 %v8752, %v8748
        %v8793 = vpack.c.b16 %v8753, %v8749
        %v8794 = vpack.c.b16 %v8754, %v8750
        %v8795 = vpack.c.b16 %v8759, %v8755
        %v8796 = vpack.c.b16 %v8760, %v8756
        %v8797 = vpack.c.b16 %v8761, %v8757
        %v8798 = vpack.c.b16 %v8762, %v8758
        %v8799 = vpack.c.b16 %v8767, %v8763
        %v8800 = vpack.c.b16 %v8768, %v8764
        %v8801 = vpack.c.b16 %v8769, %v8765
        %v8802 = vpack.c.b16 %v8770, %v8766
        %8835 = vmatprep.subr.bf16.mxu0 %v8800
        %8836 = vmatpush1.bf16.msra.mxu0 %v8799
        %8837 = vmatprep.subr.bf16.mxu0 %v8796
        %8838 = vmatpush1.bf16.msra.mxu0 %v8795
        %8839 = vmatprep.subr.bf16.mxu0 %v8792
        %8840 = vmatpush1.bf16.msra.mxu0 %v8791
        %8841 = vmatprep.subr.bf16.mxu0 %v8788
        %8842 = vmatpush1.bf16.msra.mxu0 %v8787
        %8843 = vmatprep.subr.bf16.mxu0 %v8784
        %8844 = vmatpush1.bf16.msra.mxu0 %v8783
        %8845 = vmatprep.subr.bf16.mxu0 %v8780
        %8846 = vmatpush1.bf16.msra.mxu0 %v8779
        %8847 = vmatprep.subr.bf16.mxu0 %v8776
        %8848 = vmatpush1.bf16.msra.mxu0 %v8775
        %8849 = vmatprep.subr.bf16.mxu0 %v8772
        %8850 = vmatpush1.bf16.msra.mxu0 %v8771
        %8851 = vmatprep.subr.bf16.mxu0 0
        %8852 = vmatpush2.bf16.msra.mxu0 0
        %8853 = vmatprep.subr.bf16.mxu0 0
        %8854 = vmatpush2.bf16.msra.mxu0 0
        %8855 = vmatprep.subr.bf16.mxu0 0
        %8856 = vmatpush2.bf16.msra.mxu0 0
        %8857 = vmatprep.subr.bf16.mxu0 0
        %8858 = vmatpush2.bf16.msra.mxu0 0
        %8859 = vmatprep.subr.bf16.mxu0 0
        %8860 = vmatpush2.bf16.msra.mxu0 0
        %8861 = vmatprep.subr.bf16.mxu0 0
        %8862 = vmatpush2.bf16.msra.mxu0 0
        %8863 = vmatprep.subr.bf16.mxu0 0
        %8864 = vmatpush2.bf16.msra.mxu0 0
        %8865 = vmatprep.subr.bf16.mxu0 0
        %8866 = vmatpush2.bf16.msra.mxu0 0
        %8867 = vmatprep.mubr.bf16.mxu0 0
        %8868 = vmatmul.mubr.bf16.gmra.mxu0 %v8642
        %v8869 = vpop.f32.mrf.mxu0
        %v8870 = vadd.f32 0.0, %v8869
        %v8871 = vpop.f32.mrf.mxu0
        %v8872 = vadd.f32 0.0, %v8871
        %v8873 = vpop.f32.mrf.mxu0
        %v8874 = vpop.f32.mrf.mxu0
        %8875 = vdwg.mxu0
        %8876 = vmatprep.subr.bf16.mxu0 %v8802
        %8877 = vmatpush1.bf16.msra.mxu0 %v8801
        %8878 = vmatprep.subr.bf16.mxu0 %v8798
        %8879 = vmatpush1.bf16.msra.mxu0 %v8797
        %8880 = vmatprep.subr.bf16.mxu0 %v8794
        %8881 = vmatpush1.bf16.msra.mxu0 %v8793
        %8882 = vmatprep.subr.bf16.mxu0 %v8790
        %8883 = vmatpush1.bf16.msra.mxu0 %v8789
        %8884 = vmatprep.subr.bf16.mxu0 %v8786
        %8885 = vmatpush1.bf16.msra.mxu0 %v8785
        %8886 = vmatprep.subr.bf16.mxu0 %v8782
        %8887 = vmatpush1.bf16.msra.mxu0 %v8781
        %8888 = vmatprep.subr.bf16.mxu0 %v8778
        %8889 = vmatpush1.bf16.msra.mxu0 %v8777
        %8890 = vmatprep.subr.bf16.mxu0 %v8774
        %8891 = vmatpush1.bf16.msra.mxu0 %v8773
        %8892 = vmatprep.subr.bf16.mxu0 0
        %8893 = vmatpush2.bf16.msra.mxu0 0
        %8894 = vmatprep.subr.bf16.mxu0 0
        %8895 = vmatpush2.bf16.msra.mxu0 0
        %8896 = vmatprep.subr.bf16.mxu0 0
        %8897 = vmatpush2.bf16.msra.mxu0 0
        %8898 = vmatprep.subr.bf16.mxu0 0
        %8899 = vmatpush2.bf16.msra.mxu0 0
        %8900 = vmatprep.subr.bf16.mxu0 0
        %8901 = vmatpush2.bf16.msra.mxu0 0
        %8902 = vmatprep.subr.bf16.mxu0 0
        %8903 = vmatpush2.bf16.msra.mxu0 0
        %8904 = vmatprep.subr.bf16.mxu0 0
        %8905 = vmatpush2.bf16.msra.mxu0 0
        %8906 = vmatprep.subr.bf16.mxu0 0
        %8907 = vmatpush2.bf16.msra.mxu0 0
        %8908 = vmatprep.mubr.bf16.mxu0 0
        %8909 = vmatmul.mubr.bf16.gmra.mxu0 %v8642
        %v8910 = vpop.f32.mrf.mxu0
        %v8911 = vadd.f32 0.0, %v8910
        %v8912 = vpop.f32.mrf.mxu0
        %v8913 = vadd.f32 0.0, %v8912
        %v8914 = vpop.f32.mrf.mxu0
        %v8915 = vpop.f32.mrf.mxu0
        %8916 = vdwg.mxu0
        %v8917 = vadd.f32 %v8638, %v8870
        %v8918 = vadd.f32 %v8639, %v8872
        %v8919 = vadd.f32 %v8640, %v8911
        %v8920 = vadd.f32 %v8641, %v8913
        %v8921 = vmul.f32 %v8917, 0.5
        %v8922 = vtanh.pop %v8921
        %v8923 = vmul.f32 %v8922, 0.5
        %v8924 = vadd.f32 %v8923, 0.5
        %v8925 = vmul.f32 %v8918, 0.5
        %v8926 = vtanh.pop %v8925
        %v8927 = vmul.f32 %v8926, 0.5
        %v8928 = vadd.f32 %v8927, 0.5
        %v8929 = vtanh.pop %v8919
        %v8930 = vmul.f32 %v8920, 0.5
        %v8931 = vtanh.pop %v8930
        %v8932 = vmul.f32 %v8931, 0.5
        %v8933 = vadd.f32 %v8932, 0.5
        %v8934 = vmul.f32 %v8928, %v8628
        %v8935 = vmul.f32 %v8924, %v8929
        %v8936 = vadd.f32 %v8934, %v8935
        %v8937 = vtanh.pop %v8936
        %v8938 = vmul.f32 %v8933, %v8937
        %8939 = vst [vmem:[%s2973] sm:$0xff] %v8938
        %v8940 = vld [vmem:[#allocation3] sm:$0xff]
        %v8941 = vld [vmem:[#allocation3 + $0x8] sm:$0xff]
        %v8942 = vld [vmem:[#allocation3 + $0x10] sm:$0xff]
        %v8943 = vld [vmem:[#allocation3 + $0x18] sm:$0xff]
        %v8944 = vld [vmem:[#allocation3 + $0x20] sm:$0xff]
        %v8945 = vld [vmem:[#allocation3 + $0x28] sm:$0xff]
        %v8946 = vld [vmem:[#allocation3 + $0x30] sm:$0xff]
        %v8947 = vld [vmem:[#allocation3 + $0x38] sm:$0xff]
        %v8948 = vmax.f32 %v8940, 0.0
        %v8949 = vmax.f32 %v8941, 0.0
        %v8950 = vmax.f32 %v8942, 0.0
        %v8951 = vmax.f32 %v8943, 0.0
        %v8952 = vmax.f32 %v8944, 0.0
        %v8953 = vmax.f32 %v8945, 0.0
        %v8954 = vmax.f32 %v8946, 0.0
        %v8955 = vmax.f32 %v8947, 0.0
        %v8956 = vadd.f32 %v8948, %v8949
        %v8957 = vadd.f32 %v8956, %v8950
        %v8958 = vadd.f32 %v8957, %v8951
        %v8959 = vadd.f32 %v8958, %v8952
        %v8960 = vadd.f32 %v8959, %v8953
        %v8961 = vadd.f32 %v8960, %v8954
        %v8962 = vadd.f32 %v8961, %v8955
        %v8963 = vrcp.pop 8.0
        %v8964 = vmul.f32 %v8962, %v8963
        %v8965 = vld [vmem:[%s9] sm:$0x1]
        %v8967 = vlaneseq
        %v8968 = vshrl.u32 %v8967, 7
        %v8969 = vsub.s32 0, %v8968
        %v8970 = vrot.slane %v8965, %v8969
        %v8972 = vmul.f32 %v8964, %v8970
        %8973 = vadd.xlane.f32.xlu0 %v8972
        %v8974 = vpop.xlane.xlu0 %8973
        %vm8975 = vcmask 7168
        %8976 = vst.msk [vmem:[%s474] sm:$0xff] %vm8975, %v8974
        %p8977 = scmp.lt.s32.totalorder %s24, 1
        %s8978 = scalar_select %p8977, %s24, 1
        %s8979 = smul.addr %s8978, 8
        %s8980 = scalar_lea.vmem %s10, %s8979
        // Predicated region
        $region104: #{lstm_scorer_forward.1} parent=78 // pred_check
          %p8981 = pneg %p257
        $region105: #{lstm_scorer_forward.1} parent=78 // pred_check_branch
          %8983 = sbr.rel (%p8981) target = $region107
        $region106: #{lstm_scorer_forward.1} parent=78 // pred_region
          _
        $region107: #{lstm_scorer_forward.1} parent=78 // pred_fallthru
          _
      $region79: #{lstm_scorer_forward.1} parent=5 // pred_fallthru
        _
      %p8984 = scmp.le.s32.totalorder 2, %s19
      // Predicated region
      $region108: #{lstm_scorer_forward.1} parent=5 // pred_check
        %p8985 = pneg %p8984
      $region109: #{lstm_scorer_forward.1} parent=5 // pred_check_branch
        %8987 = sbr.rel (%p8985) target = $region111
      $region110: #{lstm_scorer_forward.1} parent=5 // pred_region
        %s8988 = ssub.s32 %s19, 2
        // Predicated region
        $region112: #{lstm_scorer_forward.1} parent=110 // pred_check
          %p8989 = pneg %p263
        $region113: #{lstm_scorer_forward.1} parent=110 // pred_check_branch
          %8991 = sbr.rel (%p8989) target = $region115
        $region114: #{lstm_scorer_forward.1} parent=110 // pred_region
          %p8992 = scmp.lt.s32.totalorder %s25, 1
          %s8993 = scalar_select %p8992, %s25, 1
          %s8994 = smul.addr %s8993, 8
          %s8995 = scalar_lea.vmem %s10, %s8994
        $region115: #{lstm_scorer_forward.1} parent=110 // pred_fallthru
          _
      $region111: #{lstm_scorer_forward.1} parent=5 // pred_fallthru
        _
    $region6: #{lstm_scorer_forward.1} parent=1 // loop_footer
      %s23 = sadd.s32 1, %s19
    $region7: #{lstm_scorer_forward.1} parent=1 // loop_footer_branch
      %18 = sbr.rel target = $region3
    $region8: #{lstm_scorer_forward.1} parent=1 // loop_exit
      _
    %8996 = vsyncpa [#allocation6], 1
    %s8997 = scalar_lea.sflag [#allocation6], 1
    %8998 = vsyncpa %s8997, 1
    %8999 = vsyncpa [#allocation8], 1
    %9000 = vsyncpa [#allocation11], 1

</llo_original>
